<compile_context>
chip_gen: v7x
topology: tpu7x:2x2x1
jax: 0.10.0
libtpu: 0.0.40
codegen_flags: <defaults>
</compile_context>

<pallas_src>
import jax
import jax.numpy as jnp
from jax import lax
from jax.experimental import pallas as pl
from jax.experimental.pallas import tpu as pltpu

NC = 1
NDF = 32
BN_EPS = 1e-5
LRELU_SLOPE = 0.2

H_IN = 16             # input spatial size
H1, C1 = 8, NDF       # after conv1: 8x8x32
H2, C2 = 4, NDF * 2   # after conv2: 4x4x64
K_IN = H_IN * H_IN    # 256   conv1 GEMM contraction (all input pixels, C=1)
L1 = H1 * H1 * C1     # 2048  conv1 output lanes, ordered (oh, ow, co)
L2 = H2 * H2 * C2     # 1024  conv2 output lanes, ordered (oh, ow, co)


def _lrelu(v):
    return jnp.where(v > 0, v, LRELU_SLOPE * v)


# --------------------------------------------------------------------------
# Fused forward kernel: conv1+lrelu -> conv2+BN+lrelu -> conv3+sigmoid
# --------------------------------------------------------------------------
def disc_fused_kernel(x_ref, w1_ref, w2_ref, rep_ref, rept_ref,
                      gam_ref, bet_ref, w3_ref, o_ref):
    # conv1 (unrolled GEMM, bf16 inputs on the MXU, f32 accumulation) + LeakyReLU
    z1 = jnp.dot(x_ref[...], w1_ref[...], preferred_element_type=jnp.float32)
    a1 = _lrelu(z1)                                                     # (N, 2048) f32

    # conv2 (unrolled GEMM)
    z2 = jnp.dot(a1.astype(jnp.bfloat16), w2_ref[...],
                 preferred_element_type=jnp.float32)                    # (N, 1024) f32

    # BatchNorm2d, training-mode batch stats over (N, OH, OW) per channel.
    # z2 lanes are ordered (oh, ow, c); rep / rept fold the 16 spatial lane-blocks
    # into per-channel sums and broadcast them back (tiny MXU matmuls).
    inv_m = 1.0 / float(z2.shape[0] * H2 * H2)
    bsum = jnp.sum(z2, axis=0, keepdims=True)                            # (1, 1024)
    mean_c = jnp.dot(bsum, rep_ref[...],
                     preferred_element_type=jnp.float32) * inv_m         # (1, 64)
    mean = jnp.dot(mean_c, rept_ref[...],
                   preferred_element_type=jnp.float32)                   # (1, 1024)
    cent = z2 - mean
    vsum = jnp.sum(cent * cent, axis=0, keepdims=True)                   # (1, 1024)
    var_c = jnp.dot(vsum, rep_ref[...],
                    preferred_element_type=jnp.float32) * inv_m          # (1, 64)
    var = jnp.dot(var_c, rept_ref[...],
                  preferred_element_type=jnp.float32)                    # (1, 1024)
    scale = gam_ref[...] * lax.rsqrt(var + BN_EPS)   # folded per-lane BN scale
    a2 = _lrelu(cent * scale + bet_ref[...])                             # (N, 1024)

    # conv3 (4x4 kernel == full spatial extent): VPU multiply + lane reduction.
    logits = jnp.sum(a2 * w3_ref[...], axis=1, keepdims=True)            # (N, 1)
    o_ref[...] = jax.nn.sigmoid(logits)


def _full(shape):
    # whole array as a single VMEM block (no grid)
    return pl.BlockSpec(shape, lambda: (0,) * len(shape))


def discriminator_forward(x, params):
    """x: (N, 1, 16, 16) NCHW float32 -> (N,) sigmoid scores."""
    w1u, w2u, rep, rept, gam, bet, w3r = params
    n = x.shape[0]
    x_flat = x.reshape(n, K_IN).astype(jnp.bfloat16)   # lanes = (ih, iw)

    out = pl.pallas_call(
        disc_fused_kernel,
        out_shape=jax.ShapeDtypeStruct((n, 1), jnp.float32),
        in_specs=[_full((n, K_IN)), _full((K_IN, L1)), _full((L1, L2)),
                  _full((L2, C2)), _full((C2, L2)),
                  _full((1, L2)), _full((1, L2)), _full((1, L2))],
        out_specs=_full((n, 1)),
        compiler_params=pltpu.CompilerParams(vmem_limit_bytes=32 * 1024 * 1024),
    )(x_flat, w1u, w2u, rep, rept, gam, bet, w3r)
    # TODO(synk): for large batch, add an M-grid (parallel over v7x's two
    # TensorCores) plus a two-pass cross-tile BatchNorm reduction — batch stats
    # couple all rows, so a single VMEM block is used here (N is tiny).
    return out.reshape(-1)


# --------------------------------------------------------------------------
# One-time parameter preparation (plain JAX, not in the hot path):
# unroll each conv into a dense lane-major GEMM matrix.
# --------------------------------------------------------------------------
def prepare_params(w1, w2, w3, gamma, beta):
    f32 = jnp.float32
    # sel[ih, oh, k] = 1 iff ih == stride*oh - pad + k  (zero padding drops out)
    ih = jnp.arange(H_IN)[:, None, None]
    oh = jnp.arange(H1)[None, :, None]
    k1 = jnp.arange(4)[None, None, :]
    sel1 = (ih == 2 * oh - 1 + k1).astype(f32)                    # (16, 8, 4)

    ih2 = jnp.arange(H1)[:, None, None]
    oh2 = jnp.arange(H2)[None, :, None]
    k2 = jnp.arange(3)[None, None, :]
    sel2 = (ih2 == 2 * oh2 - 1 + k2).astype(f32)                  # (8, 4, 3)

    w1t = jnp.transpose(w1[:, 0], (1, 2, 0))                      # (4,4,32)    [ky,kx,co]
    w2t = jnp.transpose(w2, (2, 3, 1, 0))                         # (3,3,32,64) [ky,kx,ci,co]

    # conv1 GEMM: rows = input pixel (ih, iw); lanes = (oh, ow, co)
    w1u = jnp.einsum('aik,bjl,klc->abijc', sel1, sel1, w1t).reshape(K_IN, L1)
    # conv2 GEMM: rows = (ih, iw, ci) of conv1's output lanes; lanes = (oh, ow, co)
    w2u = jnp.einsum('aik,bjl,klcd->abcijd', sel2, sel2, w2t).reshape(L1, L2)
    # conv3 weight as one row per (kh, kw, ci) lane of conv2's output
    w3r = jnp.transpose(w3[0], (1, 2, 0)).reshape(1, L2)

    # BatchNorm helpers: fold 16 spatial lane-blocks into per-channel stats and back
    rep = jnp.tile(jnp.eye(C2, dtype=f32), (H2 * H2, 1))          # (1024, 64)
    rept = rep.T                                                  # (64, 1024)
    gam = jnp.tile(gamma, H2 * H2).reshape(1, L2).astype(f32)
    bet = jnp.tile(beta, H2 * H2).reshape(1, L2).astype(f32)

    return (w1u.astype(jnp.bfloat16), w2u.astype(jnp.bfloat16),
            rep, rept, gam, bet, w3r.astype(f32))


def init_params(key):
    k1, k2, k3, k4 = jax.random.split(key, 4)
    # DCGAN-style deterministic init (synthetic weights, not a checkpoint).
    w1 = 0.02 * jax.random.normal(k1, (NDF, NC, 4, 4), jnp.float32)
    w2 = 0.02 * jax.random.normal(k2, (NDF * 2, NDF, 3, 3), jnp.float32)
    w3 = 0.02 * jax.random.normal(k3, (1, NDF * 2, 4, 4), jnp.float32)
    gamma = 1.0 + 0.02 * jax.random.normal(k4, (NDF * 2,), jnp.float32)
    beta = jnp.zeros((NDF * 2,), jnp.float32)
    return w1, w2, w3, gamma, beta


# --------------------------------------------------------------------------
# Plain-JAX reference (matches the PyTorch module) for a correctness check
# --------------------------------------------------------------------------
def reference_forward(x, w1, w2, w3, gamma, beta):
    dn = ('NCHW', 'OIHW', 'NCHW')
    y = lax.conv_general_dilated(x, w1, (2, 2), ((1, 1), (1, 1)), dimension_numbers=dn)
    y = jnp.where(y > 0, y, LRELU_SLOPE * y)
    y = lax.conv_general_dilated(y, w2, (2, 2), ((1, 1), (1, 1)), dimension_numbers=dn)
    mean = jnp.mean(y, axis=(0, 2, 3), keepdims=True)
    var = jnp.mean((y - mean) ** 2, axis=(0, 2, 3), keepdims=True)  # biased, train mode
    y = (y - mean) * lax.rsqrt(var + BN_EPS) * gamma.reshape(1, -1, 1, 1) \
        + beta.reshape(1, -1, 1, 1)
    y = jnp.where(y > 0, y, LRELU_SLOPE * y)
    y = lax.conv_general_dilated(y, w3, (1, 1), ((0, 0), (0, 0)), dimension_numbers=dn)
    return jax.nn.sigmoid(y).reshape(-1)


if __name__ == "__main__":
    key = jax.random.PRNGKey(0)
    kx, kp = jax.random.split(key)
    n = 2
    x = jax.random.normal(kx, (n, NC, H_IN, H_IN), jnp.float32)   # NCHW, batch=2
    raw = init_params(kp)
    params = prepare_params(*raw)   # one-time conv->GEMM unrolling

    fwd = jax.jit(discriminator_forward)
    out = jax.block_until_ready(fwd(x, params))

    assert out.shape == (n,), out.shape
    assert bool(jnp.all(jnp.isfinite(out))), "non-finite output"
    assert bool(jnp.all((out >= 0.0) & (out <= 1.0))), "sigmoid range violated"

    # bf16 MXU inputs vs f32 reference -> loose tolerance on post-sigmoid scores.
    ref = jax.block_until_ready(jax.jit(reference_forward)(x, *raw))
    assert bool(jnp.allclose(out, ref, atol=3e-2, rtol=3e-2)), (out, ref)

    print("KERNEL_OK")
</pallas_src>

<mosaic_0001>
module attributes {stable_mosaic.version = 11 : i64} {
  func.func @disc_fused_kernel(%arg0: memref<2x256xbf16, #tpu.memory_space<vmem>>, %arg1: memref<256x2048xbf16, #tpu.memory_space<vmem>>, %arg2: memref<2048x1024xbf16, #tpu.memory_space<vmem>>, %arg3: memref<1024x64xf32, #tpu.memory_space<vmem>>, %arg4: memref<64x1024xf32, #tpu.memory_space<vmem>>, %arg5: memref<1x1024xf32, #tpu.memory_space<vmem>>, %arg6: memref<1x1024xf32, #tpu.memory_space<vmem>>, %arg7: memref<1x1024xf32, #tpu.memory_space<vmem>>, %arg8: memref<2x1xf32, #tpu.memory_space<vmem>>) attributes {dimension_semantics = [], scalar_prefetch = 0 : i64, scratch_operands = 0 : i64, tpu.core_type = #tpu.core_type<tc>} {
    %c0 = arith.constant 0 : index
    %c0_0 = arith.constant 0 : index
    %0 = vector.load %arg0[%c0, %c0_0] : memref<2x256xbf16, #tpu.memory_space<vmem>>, vector<2x256xbf16>
    %c0_1 = arith.constant 0 : index
    %c0_2 = arith.constant 0 : index
    %1 = vector.load %arg1[%c0_1, %c0_2] : memref<256x2048xbf16, #tpu.memory_space<vmem>>, vector<256x2048xbf16>
    %cst = arith.constant dense<0.000000e+00> : vector<2x2048xf32>
    %2 = tpu.matmul %0, %1, %cst {dimension_numbers = #tpu.dot_dimension_numbers<[1], [0], [0], [1], [0, 0, 1, 1], [], []>} : vector<2x256xbf16>, vector<256x2048xbf16>, vector<2x2048xf32> -> vector<2x2048xf32>
    %cst_3 = arith.constant 0.000000e+00 : f32
    %3 = vector.broadcast %cst_3 : f32 to vector<2x2048xf32>
    %4 = arith.cmpf ogt, %2, %3 : vector<2x2048xf32>
    %cst_4 = arith.constant 2.000000e-01 : f32
    %5 = vector.broadcast %cst_4 : f32 to vector<2x2048xf32>
    %6 = arith.mulf %5, %2 : vector<2x2048xf32>
    %7 = arith.select %4, %2, %6 : vector<2x2048xi1>, vector<2x2048xf32>
    %8 = arith.truncf %7 : vector<2x2048xf32> to vector<2x2048xbf16>
    %c0_5 = arith.constant 0 : index
    %c0_6 = arith.constant 0 : index
    %9 = vector.load %arg2[%c0_5, %c0_6] : memref<2048x1024xbf16, #tpu.memory_space<vmem>>, vector<2048x1024xbf16>
    %cst_7 = arith.constant dense<0.000000e+00> : vector<2x1024xf32>
    %10 = tpu.matmul %8, %9, %cst_7 {dimension_numbers = #tpu.dot_dimension_numbers<[1], [0], [0], [1], [0, 0, 1, 1], [], []>} : vector<2x2048xbf16>, vector<2048x1024xbf16>, vector<2x1024xf32> -> vector<2x1024xf32>
    %cst_8 = arith.constant dense<0.000000e+00> : vector<1024xf32>
    %11 = vector.multi_reduction <add>, %10, %cst_8 [0] : vector<2x1024xf32> to vector<1024xf32>
    %12 = vector.shape_cast %11 : vector<1024xf32> to vector<1x1024xf32>
    %c0_9 = arith.constant 0 : index
    %c0_10 = arith.constant 0 : index
    %13 = vector.load %arg3[%c0_9, %c0_10] : memref<1024x64xf32, #tpu.memory_space<vmem>>, vector<1024x64xf32>
    %cst_11 = arith.constant dense<0.000000e+00> : vector<1x64xf32>
    %14 = tpu.matmul %12, %13, %cst_11 {dimension_numbers = #tpu.dot_dimension_numbers<[1], [0], [0], [1], [0, 0, 1, 1], [], []>} : vector<1x1024xf32>, vector<1024x64xf32>, vector<1x64xf32> -> vector<1x64xf32>
    %cst_12 = arith.constant 3.125000e-02 : f32
    %15 = vector.broadcast %cst_12 : f32 to vector<1x64xf32>
    %16 = arith.mulf %14, %15 : vector<1x64xf32>
    %c0_13 = arith.constant 0 : index
    %c0_14 = arith.constant 0 : index
    %17 = vector.load %arg4[%c0_13, %c0_14] : memref<64x1024xf32, #tpu.memory_space<vmem>>, vector<64x1024xf32>
    %cst_15 = arith.constant dense<0.000000e+00> : vector<1x1024xf32>
    %18 = tpu.matmul %16, %17, %cst_15 {dimension_numbers = #tpu.dot_dimension_numbers<[1], [0], [0], [1], [0, 0, 1, 1], [], []>} : vector<1x64xf32>, vector<64x1024xf32>, vector<1x1024xf32> -> vector<1x1024xf32>
    %19 = vector.broadcast %18 : vector<1x1024xf32> to vector<2x1024xf32>
    %20 = arith.subf %10, %19 : vector<2x1024xf32>
    %21 = arith.mulf %20, %20 : vector<2x1024xf32>
    %cst_16 = arith.constant dense<0.000000e+00> : vector<1024xf32>
    %22 = vector.multi_reduction <add>, %21, %cst_16 [0] : vector<2x1024xf32> to vector<1024xf32>
    %23 = vector.shape_cast %22 : vector<1024xf32> to vector<1x1024xf32>
    %c0_17 = arith.constant 0 : index
    %c0_18 = arith.constant 0 : index
    %24 = vector.load %arg3[%c0_17, %c0_18] : memref<1024x64xf32, #tpu.memory_space<vmem>>, vector<1024x64xf32>
    %cst_19 = arith.constant dense<0.000000e+00> : vector<1x64xf32>
    %25 = tpu.matmul %23, %24, %cst_19 {dimension_numbers = #tpu.dot_dimension_numbers<[1], [0], [0], [1], [0, 0, 1, 1], [], []>} : vector<1x1024xf32>, vector<1024x64xf32>, vector<1x64xf32> -> vector<1x64xf32>
    %cst_20 = arith.constant 3.125000e-02 : f32
    %26 = vector.broadcast %cst_20 : f32 to vector<1x64xf32>
    %27 = arith.mulf %25, %26 : vector<1x64xf32>
    %c0_21 = arith.constant 0 : index
    %c0_22 = arith.constant 0 : index
    %28 = vector.load %arg4[%c0_21, %c0_22] : memref<64x1024xf32, #tpu.memory_space<vmem>>, vector<64x1024xf32>
    %cst_23 = arith.constant dense<0.000000e+00> : vector<1x1024xf32>
    %29 = tpu.matmul %27, %28, %cst_23 {dimension_numbers = #tpu.dot_dimension_numbers<[1], [0], [0], [1], [0, 0, 1, 1], [], []>} : vector<1x64xf32>, vector<64x1024xf32>, vector<1x1024xf32> -> vector<1x1024xf32>
    %c0_24 = arith.constant 0 : index
    %c0_25 = arith.constant 0 : index
    %30 = vector.load %arg5[%c0_24, %c0_25] : memref<1x1024xf32, #tpu.memory_space<vmem>>, vector<1x1024xf32>
    %cst_26 = arith.constant 9.99999974E-6 : f32
    %31 = vector.broadcast %cst_26 : f32 to vector<1x1024xf32>
    %32 = arith.addf %29, %31 : vector<1x1024xf32>
    %33 = math.rsqrt %32 : vector<1x1024xf32>
    %34 = arith.mulf %30, %33 : vector<1x1024xf32>
    %35 = vector.broadcast %34 : vector<1x1024xf32> to vector<2x1024xf32>
    %36 = arith.mulf %20, %35 : vector<2x1024xf32>
    %c0_27 = arith.constant 0 : index
    %c0_28 = arith.constant 0 : index
    %37 = vector.load %arg6[%c0_27, %c0_28] : memref<1x1024xf32, #tpu.memory_space<vmem>>, vector<1x1024xf32>
    %38 = vector.broadcast %37 : vector<1x1024xf32> to vector<2x1024xf32>
    %39 = arith.addf %36, %38 : vector<2x1024xf32>
    %cst_29 = arith.constant 0.000000e+00 : f32
    %40 = vector.broadcast %cst_29 : f32 to vector<2x1024xf32>
    %41 = arith.cmpf ogt, %39, %40 : vector<2x1024xf32>
    %cst_30 = arith.constant 2.000000e-01 : f32
    %42 = vector.broadcast %cst_30 : f32 to vector<2x1024xf32>
    %43 = arith.mulf %42, %39 : vector<2x1024xf32>
    %44 = arith.select %41, %39, %43 : vector<2x1024xi1>, vector<2x1024xf32>
    %c0_31 = arith.constant 0 : index
    %c0_32 = arith.constant 0 : index
    %45 = vector.load %arg7[%c0_31, %c0_32] : memref<1x1024xf32, #tpu.memory_space<vmem>>, vector<1x1024xf32>
    %46 = vector.broadcast %45 : vector<1x1024xf32> to vector<2x1024xf32>
    %47 = arith.mulf %44, %46 : vector<2x1024xf32>
    %cst_33 = arith.constant dense<0.000000e+00> : vector<2xf32>
    %48 = vector.multi_reduction <add>, %47, %cst_33 [1] : vector<2x1024xf32> to vector<2xf32>
    %49 = vector.shape_cast %48 : vector<2xf32> to vector<2x1xf32>
    %50 = arith.negf %49 : vector<2x1xf32>
    %51 = math.exp %50 : vector<2x1xf32>
    %cst_34 = arith.constant 1.000000e+00 : f32
    %52 = vector.broadcast %cst_34 : f32 to vector<2x1xf32>
    %53 = arith.addf %52, %51 : vector<2x1xf32>
    %54 = arith.divf %52, %53 : vector<2x1xf32>
    %c0_35 = arith.constant 0 : index
    %c0_36 = arith.constant 0 : index
    %55 = vector.load %arg8[%c0_35, %c0_36] : memref<2x1xf32, #tpu.memory_space<vmem>>, vector<2x1xf32>
    tpu.vector_store %arg8[%c0_35, %c0_36], %54 {strides = array<i32>} : memref<2x1xf32, #tpu.memory_space<vmem>>, vector<2x1xf32>,
    return
  }
}

</mosaic_0001>

<llo_original>
// kernel: discriminator_forward.1
$region0: #{discriminator_forward.1}
  #allocation0 [shape = 'u32[]', space=smem, size = 0x4, offset = 0x4, fixed_abs, tag = 'smem constant byte address 0x4 - core index']
  #allocation1 [shape = 'u32[144,128]{1,0:T(1,128)}', space=vmem, size = 0x12000, scoped, tag = 'internal scratch']
  %s0 = inlined_call_operand.vmem [shape: bf16[2,256], index: 0, kind: input, shape index: {}]
  %s1 = inlined_call_operand.hbm [shape: bf16[256,2048], index: 1, kind: input, shape index: {}]
  %s2 = inlined_call_operand.hbm [shape: bf16[2048,1024], index: 2, kind: input, shape index: {}]
  %s3 = inlined_call_operand.vmem [shape: f32[1024,64], index: 3, kind: input, shape index: {}]
  %s4 = inlined_call_operand.hbm [shape: f32[64,1024], index: 4, kind: input, shape index: {}]
  %s5 = inlined_call_operand.hbm [shape: f32[1,1024], index: 5, kind: input, shape index: {}]
  %s6 = inlined_call_operand.hbm [shape: f32[1,1024], index: 6, kind: input, shape index: {}]
  %s7 = inlined_call_operand.hbm [shape: f32[1,1024], index: 7, kind: input, shape index: {}]
  %s8 = inlined_call_operand.vmem [shape: f32[2,1], index: 8, kind: output, shape index: {}]
  %s9 = sld [smem:[#allocation0]]
  $region66: #{discriminator_forward.1} parent=0
    _
  %s11 = ssub.s32 1, %s9
  %s12 = scalar_select 0, %s11, %s9
  $region1: #{discriminator_forward.1} parent=0
    #allocation2 [shape = 'u8[1048576]{0}', space=vmem, size = 0x100000, scoped, tag = 'input window, operand 1, single buffered']
    #allocation3 [shape = 's32[1]{0}', space=sflag, size = 0x4, scoped, tag = 'scoped memory for discriminator_forward.1']
    #allocation4 [shape = 'u8[4194304]{0}', space=vmem, size = 0x400000, scoped, tag = 'input window, operand 2, single buffered']
    #allocation5 [shape = 's32[1]{0}', space=sflag, size = 0x4, scoped, tag = 'scoped memory for discriminator_forward.1']
    #allocation6 [shape = 'u8[262144]{0}', space=vmem, size = 0x40000, scoped, tag = 'input window, operand 4, single buffered']
    #allocation7 [shape = 'u8[4096]{0}', space=vmem, size = 0x1000, scoped, tag = 'input window, operand 5, single buffered']
    #allocation8 [shape = 's32[1]{0}', space=sflag, size = 0x4, scoped, tag = 'scoped memory for discriminator_forward.1']
    #allocation9 [shape = 'u8[4096]{0}', space=vmem, size = 0x1000, scoped, tag = 'input window, operand 6, single buffered']
    #allocation10 [shape = 'u8[4096]{0}', space=vmem, size = 0x1000, scoped, tag = 'input window, operand 7, single buffered']
    #allocation11 [shape = 's32[1]{0}', space=sflag, size = 0x4, scoped, tag = 'scoped memory for discriminator_forward.1']
    %13 = vsyncpa [#allocation3], 0
    %14 = vsyncpa [#allocation5], 0
    %15 = vsyncpa [#allocation8], 0
    %16 = vsyncpa [#allocation11], 0
    // Predicated region
    $region2: #{discriminator_forward.1} parent=1 // pred_check
      _
    $region3: #{discriminator_forward.1} parent=1 // pred_check_branch
      %18 = sbr.rel (0) target = $region5
    $region4: #{discriminator_forward.1} parent=1 // pred_region
      _
    $region5: #{discriminator_forward.1} parent=1 // pred_fallthru
      _
    // Predicated region
    $region6: #{discriminator_forward.1} parent=1 // pred_check
      _
    $region7: #{discriminator_forward.1} parent=1 // pred_check_branch
      %20 = sbr.rel (0) target = $region9
    $region8: #{discriminator_forward.1} parent=1 // pred_region
      %s22 = ssub.s32 32768, 32768
      %23 = vsyncadd [#allocation3], %s22
      %s24 = sshll.u32 [#allocation2], 4
      %s25 = int_to_ptr.vmem [resolvable:$true] %s24
      %30 = dma.hbm_to_vmem [thread:$0]  %s1, 32768, %s25, [#allocation3], 1024, 1024, 64
    $region9: #{discriminator_forward.1} parent=1 // pred_fallthru
      _
    // Predicated region
    $region10: #{discriminator_forward.1} parent=1 // pred_check
      _
    $region11: #{discriminator_forward.1} parent=1 // pred_check_branch
      %32 = sbr.rel (0) target = $region13
    $region12: #{discriminator_forward.1} parent=1 // pred_region
      %s34 = ssub.s32 131072, 131072
      %35 = vsyncadd [#allocation5], %s34
      %s36 = sshll.u32 [#allocation4], 4
      %s37 = int_to_ptr.vmem [resolvable:$true] %s36
      %42 = dma.hbm_to_vmem [thread:$0]  %s2, 131072, %s37, [#allocation5], 512, 512, 32
    $region13: #{discriminator_forward.1} parent=1 // pred_fallthru
      _
    // Predicated region
    $region14: #{discriminator_forward.1} parent=1 // pred_check
      _
    $region15: #{discriminator_forward.1} parent=1 // pred_check_branch
      %44 = sbr.rel (0) target = $region17
    $region16: #{discriminator_forward.1} parent=1 // pred_region
      _
    $region17: #{discriminator_forward.1} parent=1 // pred_fallthru
      _
    // Predicated region
    $region18: #{discriminator_forward.1} parent=1 // pred_check
      _
    $region19: #{discriminator_forward.1} parent=1 // pred_check_branch
      %46 = sbr.rel (0) target = $region21
    $region20: #{discriminator_forward.1} parent=1 // pred_region
      %s48 = ssub.s32 8192, 8192
      %49 = vsyncadd [#allocation5], %s48
      %s50 = sshll.u32 [#allocation6], 4
      %s51 = int_to_ptr.vmem [resolvable:$true] %s50
      %56 = dma.hbm_to_vmem [thread:$0]  %s4, 8192, %s51, [#allocation5], 1024, 1024, 64
    $region21: #{discriminator_forward.1} parent=1 // pred_fallthru
      _
    // Predicated region
    $region22: #{discriminator_forward.1} parent=1 // pred_check
      _
    $region23: #{discriminator_forward.1} parent=1 // pred_check_branch
      %58 = sbr.rel (0) target = $region25
    $region24: #{discriminator_forward.1} parent=1 // pred_region
      %s60 = ssub.s32 128, 128
      %61 = vsyncadd [#allocation8], %s60
      %s63 = sshll.u32 [#allocation7], 4
      %s64 = int_to_ptr.vmem [resolvable:$true] %s63
      %66 = dma.hbm_to_vmem [thread:$0]  %s5, 128, %s64, [#allocation8]
    $region25: #{discriminator_forward.1} parent=1 // pred_fallthru
      _
    // Predicated region
    $region26: #{discriminator_forward.1} parent=1 // pred_check
      _
    $region27: #{discriminator_forward.1} parent=1 // pred_check_branch
      %68 = sbr.rel (0) target = $region29
    $region28: #{discriminator_forward.1} parent=1 // pred_region
      %s70 = ssub.s32 128, 128
      %71 = vsyncadd [#allocation8], %s70
      %s73 = sshll.u32 [#allocation9], 4
      %s74 = int_to_ptr.vmem [resolvable:$true] %s73
      %76 = dma.hbm_to_vmem [thread:$0]  %s6, 128, %s74, [#allocation8]
    $region29: #{discriminator_forward.1} parent=1 // pred_fallthru
      _
    // Predicated region
    $region30: #{discriminator_forward.1} parent=1 // pred_check
      _
    $region31: #{discriminator_forward.1} parent=1 // pred_check_branch
      %78 = sbr.rel (0) target = $region33
    $region32: #{discriminator_forward.1} parent=1 // pred_region
      %s80 = ssub.s32 128, 128
      %81 = vsyncadd [#allocation11], %s80
      %s83 = sshll.u32 [#allocation10], 4
      %s84 = int_to_ptr.vmem [resolvable:$true] %s83
      %86 = dma.hbm_to_vmem [thread:$0]  %s7, 128, %s84, [#allocation11]
    $region33: #{discriminator_forward.1} parent=1 // pred_fallthru
      _
    // Predicated region
    $region34: #{discriminator_forward.1} parent=1 // pred_check
      _
    $region35: #{discriminator_forward.1} parent=1 // pred_check_branch
      %88 = sbr.rel (0) target = $region37
    $region36: #{discriminator_forward.1} parent=1 // pred_region
      %89 = dma.done [#allocation3], 32768
    $region37: #{discriminator_forward.1} parent=1 // pred_fallthru
      _
    // Predicated region
    $region38: #{discriminator_forward.1} parent=1 // pred_check
      _
    $region39: #{discriminator_forward.1} parent=1 // pred_check_branch
      %91 = sbr.rel (0) target = $region41
    $region40: #{discriminator_forward.1} parent=1 // pred_region
      %92 = dma.done [#allocation5], 131072
    $region41: #{discriminator_forward.1} parent=1 // pred_fallthru
      _
    // Predicated region
    $region42: #{discriminator_forward.1} parent=1 // pred_check
      _
    $region43: #{discriminator_forward.1} parent=1 // pred_check_branch
      %94 = sbr.rel (0) target = $region45
    $region44: #{discriminator_forward.1} parent=1 // pred_region
      %95 = dma.done [#allocation5], 8192
    $region45: #{discriminator_forward.1} parent=1 // pred_fallthru
      _
    // Predicated region
    $region46: #{discriminator_forward.1} parent=1 // pred_check
      _
    $region47: #{discriminator_forward.1} parent=1 // pred_check_branch
      %97 = sbr.rel (0) target = $region49
    $region48: #{discriminator_forward.1} parent=1 // pred_region
      %98 = dma.done [#allocation8], 128
    $region49: #{discriminator_forward.1} parent=1 // pred_fallthru
      _
    // Predicated region
    $region50: #{discriminator_forward.1} parent=1 // pred_check
      _
    $region51: #{discriminator_forward.1} parent=1 // pred_check_branch
      %100 = sbr.rel (0) target = $region53
    $region52: #{discriminator_forward.1} parent=1 // pred_region
      %101 = dma.done [#allocation8], 128
    $region53: #{discriminator_forward.1} parent=1 // pred_fallthru
      _
    // Predicated region
    $region54: #{discriminator_forward.1} parent=1 // pred_check
      _
    $region55: #{discriminator_forward.1} parent=1 // pred_check_branch
      %103 = sbr.rel (0) target = $region57
    $region56: #{discriminator_forward.1} parent=1 // pred_region
      %104 = dma.done [#allocation11], 128
    $region57: #{discriminator_forward.1} parent=1 // pred_fallthru
      _
    %v105 = vld [vmem:[%s0] sm:$0x3]
    %v106 = vld [vmem:[#allocation2] sm:$0xff]
    %v107 = vld [vmem:[#allocation2 + $0x8] sm:$0xff]
    %v108 = vld [vmem:[#allocation2 + $0x10] sm:$0xff]
    %v109 = vld [vmem:[#allocation2 + $0x18] sm:$0xff]
    %v110 = vld [vmem:[#allocation2 + $0x20] sm:$0xff]
    %v111 = vld [vmem:[#allocation2 + $0x28] sm:$0xff]
    %v112 = vld [vmem:[#allocation2 + $0x30] sm:$0xff]
    %v113 = vld [vmem:[#allocation2 + $0x38] sm:$0xff]
    %v114 = vld [vmem:[#allocation2 + $0x40] sm:$0xff]
    %v115 = vld [vmem:[#allocation2 + $0x48] sm:$0xff]
    %v116 = vld [vmem:[#allocation2 + $0x50] sm:$0xff]
    %v117 = vld [vmem:[#allocation2 + $0x58] sm:$0xff]
    %v118 = vld [vmem:[#allocation2 + $0x60] sm:$0xff]
    %v119 = vld [vmem:[#allocation2 + $0x68] sm:$0xff]
    %v120 = vld [vmem:[#allocation2 + $0x70] sm:$0xff]
    %v121 = vld [vmem:[#allocation2 + $0x78] sm:$0xff]
    %v122 = vld [vmem:[#allocation2 + $0x80] sm:$0xff]
    %v123 = vld [vmem:[#allocation2 + $0x88] sm:$0xff]
    %v124 = vld [vmem:[#allocation2 + $0x90] sm:$0xff]
    %v125 = vld [vmem:[#allocation2 + $0x98] sm:$0xff]
    %v126 = vld [vmem:[#allocation2 + $0xa0] sm:$0xff]
    %v127 = vld [vmem:[#allocation2 + $0xa8] sm:$0xff]
    %v128 = vld [vmem:[#allocation2 + $0xb0] sm:$0xff]
    %v129 = vld [vmem:[#allocation2 + $0xb8] sm:$0xff]
    %v130 = vld [vmem:[#allocation2 + $0xc0] sm:$0xff]
    %v131 = vld [vmem:[#allocation2 + $0xc8] sm:$0xff]
    %v132 = vld [vmem:[#allocation2 + $0xd0] sm:$0xff]
    %v133 = vld [vmem:[#allocation2 + $0xd8] sm:$0xff]
    %v134 = vld [vmem:[#allocation2 + $0xe0] sm:$0xff]
    %v135 = vld [vmem:[#allocation2 + $0xe8] sm:$0xff]
    %v136 = vld [vmem:[#allocation2 + $0xf0] sm:$0xff]
    %v137 = vld [vmem:[#allocation2 + $0xf8] sm:$0xff]
    %v138 = vld [vmem:[#allocation2 + $0x100] sm:$0xff]
    %v139 = vld [vmem:[#allocation2 + $0x108] sm:$0xff]
    %v140 = vld [vmem:[#allocation2 + $0x110] sm:$0xff]
    %v141 = vld [vmem:[#allocation2 + $0x118] sm:$0xff]
    %v142 = vld [vmem:[#allocation2 + $0x120] sm:$0xff]
    %v143 = vld [vmem:[#allocation2 + $0x128] sm:$0xff]
    %v144 = vld [vmem:[#allocation2 + $0x130] sm:$0xff]
    %v145 = vld [vmem:[#allocation2 + $0x138] sm:$0xff]
    %v146 = vld [vmem:[#allocation2 + $0x140] sm:$0xff]
    %v147 = vld [vmem:[#allocation2 + $0x148] sm:$0xff]
    %v148 = vld [vmem:[#allocation2 + $0x150] sm:$0xff]
    %v149 = vld [vmem:[#allocation2 + $0x158] sm:$0xff]
    %v150 = vld [vmem:[#allocation2 + $0x160] sm:$0xff]
    %v151 = vld [vmem:[#allocation2 + $0x168] sm:$0xff]
    %v152 = vld [vmem:[#allocation2 + $0x170] sm:$0xff]
    %v153 = vld [vmem:[#allocation2 + $0x178] sm:$0xff]
    %v154 = vld [vmem:[#allocation2 + $0x180] sm:$0xff]
    %v155 = vld [vmem:[#allocation2 + $0x188] sm:$0xff]
    %v156 = vld [vmem:[#allocation2 + $0x190] sm:$0xff]
    %v157 = vld [vmem:[#allocation2 + $0x198] sm:$0xff]
    %v158 = vld [vmem:[#allocation2 + $0x1a0] sm:$0xff]
    %v159 = vld [vmem:[#allocation2 + $0x1a8] sm:$0xff]
    %v160 = vld [vmem:[#allocation2 + $0x1b0] sm:$0xff]
    %v161 = vld [vmem:[#allocation2 + $0x1b8] sm:$0xff]
    %v162 = vld [vmem:[#allocation2 + $0x1c0] sm:$0xff]
    %v163 = vld [vmem:[#allocation2 + $0x1c8] sm:$0xff]
    %v164 = vld [vmem:[#allocation2 + $0x1d0] sm:$0xff]
    %v165 = vld [vmem:[#allocation2 + $0x1d8] sm:$0xff]
    %v166 = vld [vmem:[#allocation2 + $0x1e0] sm:$0xff]
    %v167 = vld [vmem:[#allocation2 + $0x1e8] sm:$0xff]
    %v168 = vld [vmem:[#allocation2 + $0x1f0] sm:$0xff]
    %v169 = vld [vmem:[#allocation2 + $0x1f8] sm:$0xff]
    %v170 = vld [vmem:[#allocation2 + $0x200] sm:$0xff]
    %v171 = vld [vmem:[#allocation2 + $0x208] sm:$0xff]
    %v172 = vld [vmem:[#allocation2 + $0x210] sm:$0xff]
    %v173 = vld [vmem:[#allocation2 + $0x218] sm:$0xff]
    %v174 = vld [vmem:[#allocation2 + $0x220] sm:$0xff]
    %v175 = vld [vmem:[#allocation2 + $0x228] sm:$0xff]
    %v176 = vld [vmem:[#allocation2 + $0x230] sm:$0xff]
    %v177 = vld [vmem:[#allocation2 + $0x238] sm:$0xff]
    %v178 = vld [vmem:[#allocation2 + $0x240] sm:$0xff]
    %v179 = vld [vmem:[#allocation2 + $0x248] sm:$0xff]
    %v180 = vld [vmem:[#allocation2 + $0x250] sm:$0xff]
    %v181 = vld [vmem:[#allocation2 + $0x258] sm:$0xff]
    %v182 = vld [vmem:[#allocation2 + $0x260] sm:$0xff]
    %v183 = vld [vmem:[#allocation2 + $0x268] sm:$0xff]
    %v184 = vld [vmem:[#allocation2 + $0x270] sm:$0xff]
    %v185 = vld [vmem:[#allocation2 + $0x278] sm:$0xff]
    %v186 = vld [vmem:[#allocation2 + $0x280] sm:$0xff]
    %v187 = vld [vmem:[#allocation2 + $0x288] sm:$0xff]
    %v188 = vld [vmem:[#allocation2 + $0x290] sm:$0xff]
    %v189 = vld [vmem:[#allocation2 + $0x298] sm:$0xff]
    %v190 = vld [vmem:[#allocation2 + $0x2a0] sm:$0xff]
    %v191 = vld [vmem:[#allocation2 + $0x2a8] sm:$0xff]
    %v192 = vld [vmem:[#allocation2 + $0x2b0] sm:$0xff]
    %v193 = vld [vmem:[#allocation2 + $0x2b8] sm:$0xff]
    %v194 = vld [vmem:[#allocation2 + $0x2c0] sm:$0xff]
    %v195 = vld [vmem:[#allocation2 + $0x2c8] sm:$0xff]
    %v196 = vld [vmem:[#allocation2 + $0x2d0] sm:$0xff]
    %v197 = vld [vmem:[#allocation2 + $0x2d8] sm:$0xff]
    %v198 = vld [vmem:[#allocation2 + $0x2e0] sm:$0xff]
    %v199 = vld [vmem:[#allocation2 + $0x2e8] sm:$0xff]
    %v200 = vld [vmem:[#allocation2 + $0x2f0] sm:$0xff]
    %v201 = vld [vmem:[#allocation2 + $0x2f8] sm:$0xff]
    %v202 = vld [vmem:[#allocation2 + $0x300] sm:$0xff]
    %v203 = vld [vmem:[#allocation2 + $0x308] sm:$0xff]
    %v204 = vld [vmem:[#allocation2 + $0x310] sm:$0xff]
    %v205 = vld [vmem:[#allocation2 + $0x318] sm:$0xff]
    %v206 = vld [vmem:[#allocation2 + $0x320] sm:$0xff]
    %v207 = vld [vmem:[#allocation2 + $0x328] sm:$0xff]
    %v208 = vld [vmem:[#allocation2 + $0x330] sm:$0xff]
    %v209 = vld [vmem:[#allocation2 + $0x338] sm:$0xff]
    %v210 = vld [vmem:[#allocation2 + $0x340] sm:$0xff]
    %v211 = vld [vmem:[#allocation2 + $0x348] sm:$0xff]
    %v212 = vld [vmem:[#allocation2 + $0x350] sm:$0xff]
    %v213 = vld [vmem:[#allocation2 + $0x358] sm:$0xff]
    %v214 = vld [vmem:[#allocation2 + $0x360] sm:$0xff]
    %v215 = vld [vmem:[#allocation2 + $0x368] sm:$0xff]
    %v216 = vld [vmem:[#allocation2 + $0x370] sm:$0xff]
    %v217 = vld [vmem:[#allocation2 + $0x378] sm:$0xff]
    %v218 = vld [vmem:[#allocation2 + $0x380] sm:$0xff]
    %v219 = vld [vmem:[#allocation2 + $0x388] sm:$0xff]
    %v220 = vld [vmem:[#allocation2 + $0x390] sm:$0xff]
    %v221 = vld [vmem:[#allocation2 + $0x398] sm:$0xff]
    %v222 = vld [vmem:[#allocation2 + $0x3a0] sm:$0xff]
    %v223 = vld [vmem:[#allocation2 + $0x3a8] sm:$0xff]
    %v224 = vld [vmem:[#allocation2 + $0x3b0] sm:$0xff]
    %v225 = vld [vmem:[#allocation2 + $0x3b8] sm:$0xff]
    %v226 = vld [vmem:[#allocation2 + $0x3c0] sm:$0xff]
    %v227 = vld [vmem:[#allocation2 + $0x3c8] sm:$0xff]
    %v228 = vld [vmem:[#allocation2 + $0x3d0] sm:$0xff]
    %v229 = vld [vmem:[#allocation2 + $0x3d8] sm:$0xff]
    %v230 = vld [vmem:[#allocation2 + $0x3e0] sm:$0xff]
    %v231 = vld [vmem:[#allocation2 + $0x3e8] sm:$0xff]
    %v232 = vld [vmem:[#allocation2 + $0x3f0] sm:$0xff]
    %v233 = vld [vmem:[#allocation2 + $0x3f8] sm:$0xff]
    %v234 = vld [vmem:[#allocation2 + $0x400] sm:$0xff]
    %v235 = vld [vmem:[#allocation2 + $0x408] sm:$0xff]
    %v236 = vld [vmem:[#allocation2 + $0x410] sm:$0xff]
    %v237 = vld [vmem:[#allocation2 + $0x418] sm:$0xff]
    %v238 = vld [vmem:[#allocation2 + $0x420] sm:$0xff]
    %v239 = vld [vmem:[#allocation2 + $0x428] sm:$0xff]
    %v240 = vld [vmem:[#allocation2 + $0x430] sm:$0xff]
    %v241 = vld [vmem:[#allocation2 + $0x438] sm:$0xff]
    %v242 = vld [vmem:[#allocation2 + $0x440] sm:$0xff]
    %v243 = vld [vmem:[#allocation2 + $0x448] sm:$0xff]
    %v244 = vld [vmem:[#allocation2 + $0x450] sm:$0xff]
    %v245 = vld [vmem:[#allocation2 + $0x458] sm:$0xff]
    %v246 = vld [vmem:[#allocation2 + $0x460] sm:$0xff]
    %v247 = vld [vmem:[#allocation2 + $0x468] sm:$0xff]
    %v248 = vld [vmem:[#allocation2 + $0x470] sm:$0xff]
    %v249 = vld [vmem:[#allocation2 + $0x478] sm:$0xff]
    %v250 = vld [vmem:[#allocation2 + $0x480] sm:$0xff]
    %v251 = vld [vmem:[#allocation2 + $0x488] sm:$0xff]
    %v252 = vld [vmem:[#allocation2 + $0x490] sm:$0xff]
    %v253 = vld [vmem:[#allocation2 + $0x498] sm:$0xff]
    %v254 = vld [vmem:[#allocation2 + $0x4a0] sm:$0xff]
    %v255 = vld [vmem:[#allocation2 + $0x4a8] sm:$0xff]
    %v256 = vld [vmem:[#allocation2 + $0x4b0] sm:$0xff]
    %v257 = vld [vmem:[#allocation2 + $0x4b8] sm:$0xff]
    %v258 = vld [vmem:[#allocation2 + $0x4c0] sm:$0xff]
    %v259 = vld [vmem:[#allocation2 + $0x4c8] sm:$0xff]
    %v260 = vld [vmem:[#allocation2 + $0x4d0] sm:$0xff]
    %v261 = vld [vmem:[#allocation2 + $0x4d8] sm:$0xff]
    %v262 = vld [vmem:[#allocation2 + $0x4e0] sm:$0xff]
    %v263 = vld [vmem:[#allocation2 + $0x4e8] sm:$0xff]
    %v264 = vld [vmem:[#allocation2 + $0x4f0] sm:$0xff]
    %v265 = vld [vmem:[#allocation2 + $0x4f8] sm:$0xff]
    %v266 = vld [vmem:[#allocation2 + $0x500] sm:$0xff]
    %v267 = vld [vmem:[#allocation2 + $0x508] sm:$0xff]
    %v268 = vld [vmem:[#allocation2 + $0x510] sm:$0xff]
    %v269 = vld [vmem:[#allocation2 + $0x518] sm:$0xff]
    %v270 = vld [vmem:[#allocation2 + $0x520] sm:$0xff]
    %v271 = vld [vmem:[#allocation2 + $0x528] sm:$0xff]
    %v272 = vld [vmem:[#allocation2 + $0x530] sm:$0xff]
    %v273 = vld [vmem:[#allocation2 + $0x538] sm:$0xff]
    %v274 = vld [vmem:[#allocation2 + $0x540] sm:$0xff]
    %v275 = vld [vmem:[#allocation2 + $0x548] sm:$0xff]
    %v276 = vld [vmem:[#allocation2 + $0x550] sm:$0xff]
    %v277 = vld [vmem:[#allocation2 + $0x558] sm:$0xff]
    %v278 = vld [vmem:[#allocation2 + $0x560] sm:$0xff]
    %v279 = vld [vmem:[#allocation2 + $0x568] sm:$0xff]
    %v280 = vld [vmem:[#allocation2 + $0x570] sm:$0xff]
    %v281 = vld [vmem:[#allocation2 + $0x578] sm:$0xff]
    %v282 = vld [vmem:[#allocation2 + $0x580] sm:$0xff]
    %v283 = vld [vmem:[#allocation2 + $0x588] sm:$0xff]
    %v284 = vld [vmem:[#allocation2 + $0x590] sm:$0xff]
    %v285 = vld [vmem:[#allocation2 + $0x598] sm:$0xff]
    %v286 = vld [vmem:[#allocation2 + $0x5a0] sm:$0xff]
    %v287 = vld [vmem:[#allocation2 + $0x5a8] sm:$0xff]
    %v288 = vld [vmem:[#allocation2 + $0x5b0] sm:$0xff]
    %v289 = vld [vmem:[#allocation2 + $0x5b8] sm:$0xff]
    %v290 = vld [vmem:[#allocation2 + $0x5c0] sm:$0xff]
    %v291 = vld [vmem:[#allocation2 + $0x5c8] sm:$0xff]
    %v292 = vld [vmem:[#allocation2 + $0x5d0] sm:$0xff]
    %v293 = vld [vmem:[#allocation2 + $0x5d8] sm:$0xff]
    %v294 = vld [vmem:[#allocation2 + $0x5e0] sm:$0xff]
    %v295 = vld [vmem:[#allocation2 + $0x5e8] sm:$0xff]
    %v296 = vld [vmem:[#allocation2 + $0x5f0] sm:$0xff]
    %v297 = vld [vmem:[#allocation2 + $0x5f8] sm:$0xff]
    %v298 = vld [vmem:[#allocation2 + $0x600] sm:$0xff]
    %v299 = vld [vmem:[#allocation2 + $0x608] sm:$0xff]
    %v300 = vld [vmem:[#allocation2 + $0x610] sm:$0xff]
    %v301 = vld [vmem:[#allocation2 + $0x618] sm:$0xff]
    %v302 = vld [vmem:[#allocation2 + $0x620] sm:$0xff]
    %v303 = vld [vmem:[#allocation2 + $0x628] sm:$0xff]
    %v304 = vld [vmem:[#allocation2 + $0x630] sm:$0xff]
    %v305 = vld [vmem:[#allocation2 + $0x638] sm:$0xff]
    %v306 = vld [vmem:[#allocation2 + $0x640] sm:$0xff]
    %v307 = vld [vmem:[#allocation2 + $0x648] sm:$0xff]
    %v308 = vld [vmem:[#allocation2 + $0x650] sm:$0xff]
    %v309 = vld [vmem:[#allocation2 + $0x658] sm:$0xff]
    %v310 = vld [vmem:[#allocation2 + $0x660] sm:$0xff]
    %v311 = vld [vmem:[#allocation2 + $0x668] sm:$0xff]
    %v312 = vld [vmem:[#allocation2 + $0x670] sm:$0xff]
    %v313 = vld [vmem:[#allocation2 + $0x678] sm:$0xff]
    %v314 = vld [vmem:[#allocation2 + $0x680] sm:$0xff]
    %v315 = vld [vmem:[#allocation2 + $0x688] sm:$0xff]
    %v316 = vld [vmem:[#allocation2 + $0x690] sm:$0xff]
    %v317 = vld [vmem:[#allocation2 + $0x698] sm:$0xff]
    %v318 = vld [vmem:[#allocation2 + $0x6a0] sm:$0xff]
    %v319 = vld [vmem:[#allocation2 + $0x6a8] sm:$0xff]
    %v320 = vld [vmem:[#allocation2 + $0x6b0] sm:$0xff]
    %v321 = vld [vmem:[#allocation2 + $0x6b8] sm:$0xff]
    %v322 = vld [vmem:[#allocation2 + $0x6c0] sm:$0xff]
    %v323 = vld [vmem:[#allocation2 + $0x6c8] sm:$0xff]
    %v324 = vld [vmem:[#allocation2 + $0x6d0] sm:$0xff]
    %v325 = vld [vmem:[#allocation2 + $0x6d8] sm:$0xff]
    %v326 = vld [vmem:[#allocation2 + $0x6e0] sm:$0xff]
    %v327 = vld [vmem:[#allocation2 + $0x6e8] sm:$0xff]
    %v328 = vld [vmem:[#allocation2 + $0x6f0] sm:$0xff]
    %v329 = vld [vmem:[#allocation2 + $0x6f8] sm:$0xff]
    %v330 = vld [vmem:[#allocation2 + $0x700] sm:$0xff]
    %v331 = vld [vmem:[#allocation2 + $0x708] sm:$0xff]
    %v332 = vld [vmem:[#allocation2 + $0x710] sm:$0xff]
    %v333 = vld [vmem:[#allocation2 + $0x718] sm:$0xff]
    %v334 = vld [vmem:[#allocation2 + $0x720] sm:$0xff]
    %v335 = vld [vmem:[#allocation2 + $0x728] sm:$0xff]
    %v336 = vld [vmem:[#allocation2 + $0x730] sm:$0xff]
    %v337 = vld [vmem:[#allocation2 + $0x738] sm:$0xff]
    %v338 = vld [vmem:[#allocation2 + $0x740] sm:$0xff]
    %v339 = vld [vmem:[#allocation2 + $0x748] sm:$0xff]
    %v340 = vld [vmem:[#allocation2 + $0x750] sm:$0xff]
    %v341 = vld [vmem:[#allocation2 + $0x758] sm:$0xff]
    %v342 = vld [vmem:[#allocation2 + $0x760] sm:$0xff]
    %v343 = vld [vmem:[#allocation2 + $0x768] sm:$0xff]
    %v344 = vld [vmem:[#allocation2 + $0x770] sm:$0xff]
    %v345 = vld [vmem:[#allocation2 + $0x778] sm:$0xff]
    %v346 = vld [vmem:[#allocation2 + $0x780] sm:$0xff]
    %v347 = vld [vmem:[#allocation2 + $0x788] sm:$0xff]
    %v348 = vld [vmem:[#allocation2 + $0x790] sm:$0xff]
    %v349 = vld [vmem:[#allocation2 + $0x798] sm:$0xff]
    %v350 = vld [vmem:[#allocation2 + $0x7a0] sm:$0xff]
    %v351 = vld [vmem:[#allocation2 + $0x7a8] sm:$0xff]
    %v352 = vld [vmem:[#allocation2 + $0x7b0] sm:$0xff]
    %v353 = vld [vmem:[#allocation2 + $0x7b8] sm:$0xff]
    %v354 = vld [vmem:[#allocation2 + $0x7c0] sm:$0xff]
    %v355 = vld [vmem:[#allocation2 + $0x7c8] sm:$0xff]
    %v356 = vld [vmem:[#allocation2 + $0x7d0] sm:$0xff]
    %v357 = vld [vmem:[#allocation2 + $0x7d8] sm:$0xff]
    %v358 = vld [vmem:[#allocation2 + $0x7e0] sm:$0xff]
    %v359 = vld [vmem:[#allocation2 + $0x7e8] sm:$0xff]
    %v360 = vld [vmem:[#allocation2 + $0x7f0] sm:$0xff]
    %v361 = vld [vmem:[#allocation2 + $0x7f8] sm:$0xff]
    %v364 = vunpack.c.l.s4 1966171168
    %v365 = vunpack.c.0.s8 %v364
    %v366 = vlaneseq
    %v367 = vshrl.u32 %v366, 7
    %v368 = vsub.s32 %v365, %v367
    %v369 = vrot.slane %v105, %v368
    %v370 = vcombine.high %v369, %v369
    %v372 = vunpack.c.l.s4 1966171168
    %v373 = vunpack.c.0.s8 %v372
    %v374 = vlaneseq
    %v375 = vshrl.u32 %v374, 7
    %v376 = vsub.s32 %v373, %v375
    %v377 = vrot.slane %v369, %v376
    %v379 = vunpack.c.l.s4 1966171168
    %v380 = vunpack.c.0.s8 %v379
    %v381 = vlaneseq
    %v382 = vshrl.u32 %v381, 7
    %v383 = vsub.s32 %v380, %v382
    %v384 = vrot.slane %v370, %v383
    %v643 = vunpack.c.l.b16 %v106
    %v644 = vunpack.c.h.b16 %v106
    %v645 = vunpack.c.l.b16 %v107
    %v646 = vunpack.c.h.b16 %v107
    %v647 = vunpack.c.l.b16 %v108
    %v648 = vunpack.c.h.b16 %v108
    %v649 = vunpack.c.l.b16 %v109
    %v650 = vunpack.c.h.b16 %v109
    %v651 = vunpack.c.l.b16 %v110
    %v652 = vunpack.c.h.b16 %v110
    %v653 = vunpack.c.l.b16 %v111
    %v654 = vunpack.c.h.b16 %v111
    %v655 = vunpack.c.l.b16 %v112
    %v656 = vunpack.c.h.b16 %v112
    %v657 = vunpack.c.l.b16 %v113
    %v658 = vunpack.c.h.b16 %v113
    %v659 = vunpack.c.l.b16 %v114
    %v660 = vunpack.c.h.b16 %v114
    %v661 = vunpack.c.l.b16 %v115
    %v662 = vunpack.c.h.b16 %v115
    %v663 = vunpack.c.l.b16 %v116
    %v664 = vunpack.c.h.b16 %v116
    %v665 = vunpack.c.l.b16 %v117
    %v666 = vunpack.c.h.b16 %v117
    %v667 = vunpack.c.l.b16 %v118
    %v668 = vunpack.c.h.b16 %v118
    %v669 = vunpack.c.l.b16 %v119
    %v670 = vunpack.c.h.b16 %v119
    %v671 = vunpack.c.l.b16 %v120
    %v672 = vunpack.c.h.b16 %v120
    %v673 = vunpack.c.l.b16 %v121
    %v674 = vunpack.c.h.b16 %v121
    %v675 = vunpack.c.l.b16 %v122
    %v676 = vunpack.c.h.b16 %v122
    %v677 = vunpack.c.l.b16 %v123
    %v678 = vunpack.c.h.b16 %v123
    %v679 = vunpack.c.l.b16 %v124
    %v680 = vunpack.c.h.b16 %v124
    %v681 = vunpack.c.l.b16 %v125
    %v682 = vunpack.c.h.b16 %v125
    %v683 = vunpack.c.l.b16 %v126
    %v684 = vunpack.c.h.b16 %v126
    %v685 = vunpack.c.l.b16 %v127
    %v686 = vunpack.c.h.b16 %v127
    %v687 = vunpack.c.l.b16 %v128
    %v688 = vunpack.c.h.b16 %v128
    %v689 = vunpack.c.l.b16 %v129
    %v690 = vunpack.c.h.b16 %v129
    %v691 = vunpack.c.l.b16 %v130
    %v692 = vunpack.c.h.b16 %v130
    %v693 = vunpack.c.l.b16 %v131
    %v694 = vunpack.c.h.b16 %v131
    %v695 = vunpack.c.l.b16 %v132
    %v696 = vunpack.c.h.b16 %v132
    %v697 = vunpack.c.l.b16 %v133
    %v698 = vunpack.c.h.b16 %v133
    %v699 = vunpack.c.l.b16 %v134
    %v700 = vunpack.c.h.b16 %v134
    %v701 = vunpack.c.l.b16 %v135
    %v702 = vunpack.c.h.b16 %v135
    %v703 = vunpack.c.l.b16 %v136
    %v704 = vunpack.c.h.b16 %v136
    %v705 = vunpack.c.l.b16 %v137
    %v706 = vunpack.c.h.b16 %v137
    %v707 = vunpack.c.l.b16 %v138
    %v708 = vunpack.c.h.b16 %v138
    %v709 = vunpack.c.l.b16 %v139
    %v710 = vunpack.c.h.b16 %v139
    %v711 = vunpack.c.l.b16 %v140
    %v712 = vunpack.c.h.b16 %v140
    %v713 = vunpack.c.l.b16 %v141
    %v714 = vunpack.c.h.b16 %v141
    %v715 = vunpack.c.l.b16 %v142
    %v716 = vunpack.c.h.b16 %v142
    %v717 = vunpack.c.l.b16 %v143
    %v718 = vunpack.c.h.b16 %v143
    %v719 = vunpack.c.l.b16 %v144
    %v720 = vunpack.c.h.b16 %v144
    %v721 = vunpack.c.l.b16 %v145
    %v722 = vunpack.c.h.b16 %v145
    %v723 = vunpack.c.l.b16 %v146
    %v724 = vunpack.c.h.b16 %v146
    %v725 = vunpack.c.l.b16 %v147
    %v726 = vunpack.c.h.b16 %v147
    %v727 = vunpack.c.l.b16 %v148
    %v728 = vunpack.c.h.b16 %v148
    %v729 = vunpack.c.l.b16 %v149
    %v730 = vunpack.c.h.b16 %v149
    %v731 = vunpack.c.l.b16 %v150
    %v732 = vunpack.c.h.b16 %v150
    %v733 = vunpack.c.l.b16 %v151
    %v734 = vunpack.c.h.b16 %v151
    %v735 = vunpack.c.l.b16 %v152
    %v736 = vunpack.c.h.b16 %v152
    %v737 = vunpack.c.l.b16 %v153
    %v738 = vunpack.c.h.b16 %v153
    %v739 = vunpack.c.l.b16 %v154
    %v740 = vunpack.c.h.b16 %v154
    %v741 = vunpack.c.l.b16 %v155
    %v742 = vunpack.c.h.b16 %v155
    %v743 = vunpack.c.l.b16 %v156
    %v744 = vunpack.c.h.b16 %v156
    %v745 = vunpack.c.l.b16 %v157
    %v746 = vunpack.c.h.b16 %v157
    %v747 = vunpack.c.l.b16 %v158
    %v748 = vunpack.c.h.b16 %v158
    %v749 = vunpack.c.l.b16 %v159
    %v750 = vunpack.c.h.b16 %v159
    %v751 = vunpack.c.l.b16 %v160
    %v752 = vunpack.c.h.b16 %v160
    %v753 = vunpack.c.l.b16 %v161
    %v754 = vunpack.c.h.b16 %v161
    %v755 = vunpack.c.l.b16 %v162
    %v756 = vunpack.c.h.b16 %v162
    %v757 = vunpack.c.l.b16 %v163
    %v758 = vunpack.c.h.b16 %v163
    %v759 = vunpack.c.l.b16 %v164
    %v760 = vunpack.c.h.b16 %v164
    %v761 = vunpack.c.l.b16 %v165
    %v762 = vunpack.c.h.b16 %v165
    %v763 = vunpack.c.l.b16 %v166
    %v764 = vunpack.c.h.b16 %v166
    %v765 = vunpack.c.l.b16 %v167
    %v766 = vunpack.c.h.b16 %v167
    %v767 = vunpack.c.l.b16 %v168
    %v768 = vunpack.c.h.b16 %v168
    %v769 = vunpack.c.l.b16 %v169
    %v770 = vunpack.c.h.b16 %v169
    %v771 = vunpack.c.l.b16 %v170
    %v772 = vunpack.c.h.b16 %v170
    %v773 = vunpack.c.l.b16 %v171
    %v774 = vunpack.c.h.b16 %v171
    %v775 = vunpack.c.l.b16 %v172
    %v776 = vunpack.c.h.b16 %v172
    %v777 = vunpack.c.l.b16 %v173
    %v778 = vunpack.c.h.b16 %v173
    %v779 = vunpack.c.l.b16 %v174
    %v780 = vunpack.c.h.b16 %v174
    %v781 = vunpack.c.l.b16 %v175
    %v782 = vunpack.c.h.b16 %v175
    %v783 = vunpack.c.l.b16 %v176
    %v784 = vunpack.c.h.b16 %v176
    %v785 = vunpack.c.l.b16 %v177
    %v786 = vunpack.c.h.b16 %v177
    %v787 = vunpack.c.l.b16 %v178
    %v788 = vunpack.c.h.b16 %v178
    %v789 = vunpack.c.l.b16 %v179
    %v790 = vunpack.c.h.b16 %v179
    %v791 = vunpack.c.l.b16 %v180
    %v792 = vunpack.c.h.b16 %v180
    %v793 = vunpack.c.l.b16 %v181
    %v794 = vunpack.c.h.b16 %v181
    %v795 = vunpack.c.l.b16 %v182
    %v796 = vunpack.c.h.b16 %v182
    %v797 = vunpack.c.l.b16 %v183
    %v798 = vunpack.c.h.b16 %v183
    %v799 = vunpack.c.l.b16 %v184
    %v800 = vunpack.c.h.b16 %v184
    %v801 = vunpack.c.l.b16 %v185
    %v802 = vunpack.c.h.b16 %v185
    %v803 = vunpack.c.l.b16 %v186
    %v804 = vunpack.c.h.b16 %v186
    %v805 = vunpack.c.l.b16 %v187
    %v806 = vunpack.c.h.b16 %v187
    %v807 = vunpack.c.l.b16 %v188
    %v808 = vunpack.c.h.b16 %v188
    %v809 = vunpack.c.l.b16 %v189
    %v810 = vunpack.c.h.b16 %v189
    %v811 = vunpack.c.l.b16 %v190
    %v812 = vunpack.c.h.b16 %v190
    %v813 = vunpack.c.l.b16 %v191
    %v814 = vunpack.c.h.b16 %v191
    %v815 = vunpack.c.l.b16 %v192
    %v816 = vunpack.c.h.b16 %v192
    %v817 = vunpack.c.l.b16 %v193
    %v818 = vunpack.c.h.b16 %v193
    %v819 = vunpack.c.l.b16 %v194
    %v820 = vunpack.c.h.b16 %v194
    %v821 = vunpack.c.l.b16 %v195
    %v822 = vunpack.c.h.b16 %v195
    %v823 = vunpack.c.l.b16 %v196
    %v824 = vunpack.c.h.b16 %v196
    %v825 = vunpack.c.l.b16 %v197
    %v826 = vunpack.c.h.b16 %v197
    %v827 = vunpack.c.l.b16 %v198
    %v828 = vunpack.c.h.b16 %v198
    %v829 = vunpack.c.l.b16 %v199
    %v830 = vunpack.c.h.b16 %v199
    %v831 = vunpack.c.l.b16 %v200
    %v832 = vunpack.c.h.b16 %v200
    %v833 = vunpack.c.l.b16 %v201
    %v834 = vunpack.c.h.b16 %v201
    %v835 = vunpack.c.l.b16 %v202
    %v836 = vunpack.c.h.b16 %v202
    %v837 = vunpack.c.l.b16 %v203
    %v838 = vunpack.c.h.b16 %v203
    %v839 = vunpack.c.l.b16 %v204
    %v840 = vunpack.c.h.b16 %v204
    %v841 = vunpack.c.l.b16 %v205
    %v842 = vunpack.c.h.b16 %v205
    %v843 = vunpack.c.l.b16 %v206
    %v844 = vunpack.c.h.b16 %v206
    %v845 = vunpack.c.l.b16 %v207
    %v846 = vunpack.c.h.b16 %v207
    %v847 = vunpack.c.l.b16 %v208
    %v848 = vunpack.c.h.b16 %v208
    %v849 = vunpack.c.l.b16 %v209
    %v850 = vunpack.c.h.b16 %v209
    %v851 = vunpack.c.l.b16 %v210
    %v852 = vunpack.c.h.b16 %v210
    %v853 = vunpack.c.l.b16 %v211
    %v854 = vunpack.c.h.b16 %v211
    %v855 = vunpack.c.l.b16 %v212
    %v856 = vunpack.c.h.b16 %v212
    %v857 = vunpack.c.l.b16 %v213
    %v858 = vunpack.c.h.b16 %v213
    %v859 = vunpack.c.l.b16 %v214
    %v860 = vunpack.c.h.b16 %v214
    %v861 = vunpack.c.l.b16 %v215
    %v862 = vunpack.c.h.b16 %v215
    %v863 = vunpack.c.l.b16 %v216
    %v864 = vunpack.c.h.b16 %v216
    %v865 = vunpack.c.l.b16 %v217
    %v866 = vunpack.c.h.b16 %v217
    %v867 = vunpack.c.l.b16 %v218
    %v868 = vunpack.c.h.b16 %v218
    %v869 = vunpack.c.l.b16 %v219
    %v870 = vunpack.c.h.b16 %v219
    %v871 = vunpack.c.l.b16 %v220
    %v872 = vunpack.c.h.b16 %v220
    %v873 = vunpack.c.l.b16 %v221
    %v874 = vunpack.c.h.b16 %v221
    %v875 = vunpack.c.l.b16 %v222
    %v876 = vunpack.c.h.b16 %v222
    %v877 = vunpack.c.l.b16 %v223
    %v878 = vunpack.c.h.b16 %v223
    %v879 = vunpack.c.l.b16 %v224
    %v880 = vunpack.c.h.b16 %v224
    %v881 = vunpack.c.l.b16 %v225
    %v882 = vunpack.c.h.b16 %v225
    %v883 = vunpack.c.l.b16 %v226
    %v884 = vunpack.c.h.b16 %v226
    %v885 = vunpack.c.l.b16 %v227
    %v886 = vunpack.c.h.b16 %v227
    %v887 = vunpack.c.l.b16 %v228
    %v888 = vunpack.c.h.b16 %v228
    %v889 = vunpack.c.l.b16 %v229
    %v890 = vunpack.c.h.b16 %v229
    %v891 = vunpack.c.l.b16 %v230
    %v892 = vunpack.c.h.b16 %v230
    %v893 = vunpack.c.l.b16 %v231
    %v894 = vunpack.c.h.b16 %v231
    %v895 = vunpack.c.l.b16 %v232
    %v896 = vunpack.c.h.b16 %v232
    %v897 = vunpack.c.l.b16 %v233
    %v898 = vunpack.c.h.b16 %v233
    %v899 = vunpack.c.l.b16 %v234
    %v900 = vunpack.c.h.b16 %v234
    %v901 = vunpack.c.l.b16 %v235
    %v902 = vunpack.c.h.b16 %v235
    %v903 = vunpack.c.l.b16 %v236
    %v904 = vunpack.c.h.b16 %v236
    %v905 = vunpack.c.l.b16 %v237
    %v906 = vunpack.c.h.b16 %v237
    %v907 = vunpack.c.l.b16 %v238
    %v908 = vunpack.c.h.b16 %v238
    %v909 = vunpack.c.l.b16 %v239
    %v910 = vunpack.c.h.b16 %v239
    %v911 = vunpack.c.l.b16 %v240
    %v912 = vunpack.c.h.b16 %v240
    %v913 = vunpack.c.l.b16 %v241
    %v914 = vunpack.c.h.b16 %v241
    %v915 = vunpack.c.l.b16 %v242
    %v916 = vunpack.c.h.b16 %v242
    %v917 = vunpack.c.l.b16 %v243
    %v918 = vunpack.c.h.b16 %v243
    %v919 = vunpack.c.l.b16 %v244
    %v920 = vunpack.c.h.b16 %v244
    %v921 = vunpack.c.l.b16 %v245
    %v922 = vunpack.c.h.b16 %v245
    %v923 = vunpack.c.l.b16 %v246
    %v924 = vunpack.c.h.b16 %v246
    %v925 = vunpack.c.l.b16 %v247
    %v926 = vunpack.c.h.b16 %v247
    %v927 = vunpack.c.l.b16 %v248
    %v928 = vunpack.c.h.b16 %v248
    %v929 = vunpack.c.l.b16 %v249
    %v930 = vunpack.c.h.b16 %v249
    %v931 = vunpack.c.l.b16 %v250
    %v932 = vunpack.c.h.b16 %v250
    %v933 = vunpack.c.l.b16 %v251
    %v934 = vunpack.c.h.b16 %v251
    %v935 = vunpack.c.l.b16 %v252
    %v936 = vunpack.c.h.b16 %v252
    %v937 = vunpack.c.l.b16 %v253
    %v938 = vunpack.c.h.b16 %v253
    %v939 = vunpack.c.l.b16 %v254
    %v940 = vunpack.c.h.b16 %v254
    %v941 = vunpack.c.l.b16 %v255
    %v942 = vunpack.c.h.b16 %v255
    %v943 = vunpack.c.l.b16 %v256
    %v944 = vunpack.c.h.b16 %v256
    %v945 = vunpack.c.l.b16 %v257
    %v946 = vunpack.c.h.b16 %v257
    %v947 = vunpack.c.l.b16 %v258
    %v948 = vunpack.c.h.b16 %v258
    %v949 = vunpack.c.l.b16 %v259
    %v950 = vunpack.c.h.b16 %v259
    %v951 = vunpack.c.l.b16 %v260
    %v952 = vunpack.c.h.b16 %v260
    %v953 = vunpack.c.l.b16 %v261
    %v954 = vunpack.c.h.b16 %v261
    %v955 = vunpack.c.l.b16 %v262
    %v956 = vunpack.c.h.b16 %v262
    %v957 = vunpack.c.l.b16 %v263
    %v958 = vunpack.c.h.b16 %v263
    %v959 = vunpack.c.l.b16 %v264
    %v960 = vunpack.c.h.b16 %v264
    %v961 = vunpack.c.l.b16 %v265
    %v962 = vunpack.c.h.b16 %v265
    %v963 = vunpack.c.l.b16 %v266
    %v964 = vunpack.c.h.b16 %v266
    %v965 = vunpack.c.l.b16 %v267
    %v966 = vunpack.c.h.b16 %v267
    %v967 = vunpack.c.l.b16 %v268
    %v968 = vunpack.c.h.b16 %v268
    %v969 = vunpack.c.l.b16 %v269
    %v970 = vunpack.c.h.b16 %v269
    %v971 = vunpack.c.l.b16 %v270
    %v972 = vunpack.c.h.b16 %v270
    %v973 = vunpack.c.l.b16 %v271
    %v974 = vunpack.c.h.b16 %v271
    %v975 = vunpack.c.l.b16 %v272
    %v976 = vunpack.c.h.b16 %v272
    %v977 = vunpack.c.l.b16 %v273
    %v978 = vunpack.c.h.b16 %v273
    %v979 = vunpack.c.l.b16 %v274
    %v980 = vunpack.c.h.b16 %v274
    %v981 = vunpack.c.l.b16 %v275
    %v982 = vunpack.c.h.b16 %v275
    %v983 = vunpack.c.l.b16 %v276
    %v984 = vunpack.c.h.b16 %v276
    %v985 = vunpack.c.l.b16 %v277
    %v986 = vunpack.c.h.b16 %v277
    %v987 = vunpack.c.l.b16 %v278
    %v988 = vunpack.c.h.b16 %v278
    %v989 = vunpack.c.l.b16 %v279
    %v990 = vunpack.c.h.b16 %v279
    %v991 = vunpack.c.l.b16 %v280
    %v992 = vunpack.c.h.b16 %v280
    %v993 = vunpack.c.l.b16 %v281
    %v994 = vunpack.c.h.b16 %v281
    %v995 = vunpack.c.l.b16 %v282
    %v996 = vunpack.c.h.b16 %v282
    %v997 = vunpack.c.l.b16 %v283
    %v998 = vunpack.c.h.b16 %v283
    %v999 = vunpack.c.l.b16 %v284
    %v1000 = vunpack.c.h.b16 %v284
    %v1001 = vunpack.c.l.b16 %v285
    %v1002 = vunpack.c.h.b16 %v285
    %v1003 = vunpack.c.l.b16 %v286
    %v1004 = vunpack.c.h.b16 %v286
    %v1005 = vunpack.c.l.b16 %v287
    %v1006 = vunpack.c.h.b16 %v287
    %v1007 = vunpack.c.l.b16 %v288
    %v1008 = vunpack.c.h.b16 %v288
    %v1009 = vunpack.c.l.b16 %v289
    %v1010 = vunpack.c.h.b16 %v289
    %v1011 = vunpack.c.l.b16 %v290
    %v1012 = vunpack.c.h.b16 %v290
    %v1013 = vunpack.c.l.b16 %v291
    %v1014 = vunpack.c.h.b16 %v291
    %v1015 = vunpack.c.l.b16 %v292
    %v1016 = vunpack.c.h.b16 %v292
    %v1017 = vunpack.c.l.b16 %v293
    %v1018 = vunpack.c.h.b16 %v293
    %v1019 = vunpack.c.l.b16 %v294
    %v1020 = vunpack.c.h.b16 %v294
    %v1021 = vunpack.c.l.b16 %v295
    %v1022 = vunpack.c.h.b16 %v295
    %v1023 = vunpack.c.l.b16 %v296
    %v1024 = vunpack.c.h.b16 %v296
    %v1025 = vunpack.c.l.b16 %v297
    %v1026 = vunpack.c.h.b16 %v297
    %v1027 = vunpack.c.l.b16 %v298
    %v1028 = vunpack.c.h.b16 %v298
    %v1029 = vunpack.c.l.b16 %v299
    %v1030 = vunpack.c.h.b16 %v299
    %v1031 = vunpack.c.l.b16 %v300
    %v1032 = vunpack.c.h.b16 %v300
    %v1033 = vunpack.c.l.b16 %v301
    %v1034 = vunpack.c.h.b16 %v301
    %v1035 = vunpack.c.l.b16 %v302
    %v1036 = vunpack.c.h.b16 %v302
    %v1037 = vunpack.c.l.b16 %v303
    %v1038 = vunpack.c.h.b16 %v303
    %v1039 = vunpack.c.l.b16 %v304
    %v1040 = vunpack.c.h.b16 %v304
    %v1041 = vunpack.c.l.b16 %v305
    %v1042 = vunpack.c.h.b16 %v305
    %v1043 = vunpack.c.l.b16 %v306
    %v1044 = vunpack.c.h.b16 %v306
    %v1045 = vunpack.c.l.b16 %v307
    %v1046 = vunpack.c.h.b16 %v307
    %v1047 = vunpack.c.l.b16 %v308
    %v1048 = vunpack.c.h.b16 %v308
    %v1049 = vunpack.c.l.b16 %v309
    %v1050 = vunpack.c.h.b16 %v309
    %v1051 = vunpack.c.l.b16 %v310
    %v1052 = vunpack.c.h.b16 %v310
    %v1053 = vunpack.c.l.b16 %v311
    %v1054 = vunpack.c.h.b16 %v311
    %v1055 = vunpack.c.l.b16 %v312
    %v1056 = vunpack.c.h.b16 %v312
    %v1057 = vunpack.c.l.b16 %v313
    %v1058 = vunpack.c.h.b16 %v313
    %v1059 = vunpack.c.l.b16 %v314
    %v1060 = vunpack.c.h.b16 %v314
    %v1061 = vunpack.c.l.b16 %v315
    %v1062 = vunpack.c.h.b16 %v315
    %v1063 = vunpack.c.l.b16 %v316
    %v1064 = vunpack.c.h.b16 %v316
    %v1065 = vunpack.c.l.b16 %v317
    %v1066 = vunpack.c.h.b16 %v317
    %v1067 = vunpack.c.l.b16 %v318
    %v1068 = vunpack.c.h.b16 %v318
    %v1069 = vunpack.c.l.b16 %v319
    %v1070 = vunpack.c.h.b16 %v319
    %v1071 = vunpack.c.l.b16 %v320
    %v1072 = vunpack.c.h.b16 %v320
    %v1073 = vunpack.c.l.b16 %v321
    %v1074 = vunpack.c.h.b16 %v321
    %v1075 = vunpack.c.l.b16 %v322
    %v1076 = vunpack.c.h.b16 %v322
    %v1077 = vunpack.c.l.b16 %v323
    %v1078 = vunpack.c.h.b16 %v323
    %v1079 = vunpack.c.l.b16 %v324
    %v1080 = vunpack.c.h.b16 %v324
    %v1081 = vunpack.c.l.b16 %v325
    %v1082 = vunpack.c.h.b16 %v325
    %v1083 = vunpack.c.l.b16 %v326
    %v1084 = vunpack.c.h.b16 %v326
    %v1085 = vunpack.c.l.b16 %v327
    %v1086 = vunpack.c.h.b16 %v327
    %v1087 = vunpack.c.l.b16 %v328
    %v1088 = vunpack.c.h.b16 %v328
    %v1089 = vunpack.c.l.b16 %v329
    %v1090 = vunpack.c.h.b16 %v329
    %v1091 = vunpack.c.l.b16 %v330
    %v1092 = vunpack.c.h.b16 %v330
    %v1093 = vunpack.c.l.b16 %v331
    %v1094 = vunpack.c.h.b16 %v331
    %v1095 = vunpack.c.l.b16 %v332
    %v1096 = vunpack.c.h.b16 %v332
    %v1097 = vunpack.c.l.b16 %v333
    %v1098 = vunpack.c.h.b16 %v333
    %v1099 = vunpack.c.l.b16 %v334
    %v1100 = vunpack.c.h.b16 %v334
    %v1101 = vunpack.c.l.b16 %v335
    %v1102 = vunpack.c.h.b16 %v335
    %v1103 = vunpack.c.l.b16 %v336
    %v1104 = vunpack.c.h.b16 %v336
    %v1105 = vunpack.c.l.b16 %v337
    %v1106 = vunpack.c.h.b16 %v337
    %v1107 = vunpack.c.l.b16 %v338
    %v1108 = vunpack.c.h.b16 %v338
    %v1109 = vunpack.c.l.b16 %v339
    %v1110 = vunpack.c.h.b16 %v339
    %v1111 = vunpack.c.l.b16 %v340
    %v1112 = vunpack.c.h.b16 %v340
    %v1113 = vunpack.c.l.b16 %v341
    %v1114 = vunpack.c.h.b16 %v341
    %v1115 = vunpack.c.l.b16 %v342
    %v1116 = vunpack.c.h.b16 %v342
    %v1117 = vunpack.c.l.b16 %v343
    %v1118 = vunpack.c.h.b16 %v343
    %v1119 = vunpack.c.l.b16 %v344
    %v1120 = vunpack.c.h.b16 %v344
    %v1121 = vunpack.c.l.b16 %v345
    %v1122 = vunpack.c.h.b16 %v345
    %v1123 = vunpack.c.l.b16 %v346
    %v1124 = vunpack.c.h.b16 %v346
    %v1125 = vunpack.c.l.b16 %v347
    %v1126 = vunpack.c.h.b16 %v347
    %v1127 = vunpack.c.l.b16 %v348
    %v1128 = vunpack.c.h.b16 %v348
    %v1129 = vunpack.c.l.b16 %v349
    %v1130 = vunpack.c.h.b16 %v349
    %v1131 = vunpack.c.l.b16 %v350
    %v1132 = vunpack.c.h.b16 %v350
    %v1133 = vunpack.c.l.b16 %v351
    %v1134 = vunpack.c.h.b16 %v351
    %v1135 = vunpack.c.l.b16 %v352
    %v1136 = vunpack.c.h.b16 %v352
    %v1137 = vunpack.c.l.b16 %v353
    %v1138 = vunpack.c.h.b16 %v353
    %v1139 = vunpack.c.l.b16 %v354
    %v1140 = vunpack.c.h.b16 %v354
    %v1141 = vunpack.c.l.b16 %v355
    %v1142 = vunpack.c.h.b16 %v355
    %v1143 = vunpack.c.l.b16 %v356
    %v1144 = vunpack.c.h.b16 %v356
    %v1145 = vunpack.c.l.b16 %v357
    %v1146 = vunpack.c.h.b16 %v357
    %v1147 = vunpack.c.l.b16 %v358
    %v1148 = vunpack.c.h.b16 %v358
    %v1149 = vunpack.c.l.b16 %v359
    %v1150 = vunpack.c.h.b16 %v359
    %v1151 = vunpack.c.l.b16 %v360
    %v1152 = vunpack.c.h.b16 %v360
    %v1153 = vunpack.c.l.b16 %v361
    %v1154 = vunpack.c.h.b16 %v361
    %v1155 = vpack.c.b16 %v659, %v643
    %v1156 = vpack.c.b16 %v660, %v644
    %v1157 = vpack.c.b16 %v661, %v645
    %v1158 = vpack.c.b16 %v662, %v646
    %v1159 = vpack.c.b16 %v663, %v647
    %v1160 = vpack.c.b16 %v664, %v648
    %v1161 = vpack.c.b16 %v665, %v649
    %v1162 = vpack.c.b16 %v666, %v650
    %v1163 = vpack.c.b16 %v667, %v651
    %v1164 = vpack.c.b16 %v668, %v652
    %v1165 = vpack.c.b16 %v669, %v653
    %v1166 = vpack.c.b16 %v670, %v654
    %v1167 = vpack.c.b16 %v671, %v655
    %v1168 = vpack.c.b16 %v672, %v656
    %v1169 = vpack.c.b16 %v673, %v657
    %v1170 = vpack.c.b16 %v674, %v658
    %v1171 = vpack.c.b16 %v691, %v675
    %v1172 = vpack.c.b16 %v692, %v676
    %v1173 = vpack.c.b16 %v693, %v677
    %v1174 = vpack.c.b16 %v694, %v678
    %v1175 = vpack.c.b16 %v695, %v679
    %v1176 = vpack.c.b16 %v696, %v680
    %v1177 = vpack.c.b16 %v697, %v681
    %v1178 = vpack.c.b16 %v698, %v682
    %v1179 = vpack.c.b16 %v699, %v683
    %v1180 = vpack.c.b16 %v700, %v684
    %v1181 = vpack.c.b16 %v701, %v685
    %v1182 = vpack.c.b16 %v702, %v686
    %v1183 = vpack.c.b16 %v703, %v687
    %v1184 = vpack.c.b16 %v704, %v688
    %v1185 = vpack.c.b16 %v705, %v689
    %v1186 = vpack.c.b16 %v706, %v690
    %v1187 = vpack.c.b16 %v723, %v707
    %v1188 = vpack.c.b16 %v724, %v708
    %v1189 = vpack.c.b16 %v725, %v709
    %v1190 = vpack.c.b16 %v726, %v710
    %v1191 = vpack.c.b16 %v727, %v711
    %v1192 = vpack.c.b16 %v728, %v712
    %v1193 = vpack.c.b16 %v729, %v713
    %v1194 = vpack.c.b16 %v730, %v714
    %v1195 = vpack.c.b16 %v731, %v715
    %v1196 = vpack.c.b16 %v732, %v716
    %v1197 = vpack.c.b16 %v733, %v717
    %v1198 = vpack.c.b16 %v734, %v718
    %v1199 = vpack.c.b16 %v735, %v719
    %v1200 = vpack.c.b16 %v736, %v720
    %v1201 = vpack.c.b16 %v737, %v721
    %v1202 = vpack.c.b16 %v738, %v722
    %v1203 = vpack.c.b16 %v755, %v739
    %v1204 = vpack.c.b16 %v756, %v740
    %v1205 = vpack.c.b16 %v757, %v741
    %v1206 = vpack.c.b16 %v758, %v742
    %v1207 = vpack.c.b16 %v759, %v743
    %v1208 = vpack.c.b16 %v760, %v744
    %v1209 = vpack.c.b16 %v761, %v745
    %v1210 = vpack.c.b16 %v762, %v746
    %v1211 = vpack.c.b16 %v763, %v747
    %v1212 = vpack.c.b16 %v764, %v748
    %v1213 = vpack.c.b16 %v765, %v749
    %v1214 = vpack.c.b16 %v766, %v750
    %v1215 = vpack.c.b16 %v767, %v751
    %v1216 = vpack.c.b16 %v768, %v752
    %v1217 = vpack.c.b16 %v769, %v753
    %v1218 = vpack.c.b16 %v770, %v754
    %v1219 = vpack.c.b16 %v787, %v771
    %v1220 = vpack.c.b16 %v788, %v772
    %v1221 = vpack.c.b16 %v789, %v773
    %v1222 = vpack.c.b16 %v790, %v774
    %v1223 = vpack.c.b16 %v791, %v775
    %v1224 = vpack.c.b16 %v792, %v776
    %v1225 = vpack.c.b16 %v793, %v777
    %v1226 = vpack.c.b16 %v794, %v778
    %v1227 = vpack.c.b16 %v795, %v779
    %v1228 = vpack.c.b16 %v796, %v780
    %v1229 = vpack.c.b16 %v797, %v781
    %v1230 = vpack.c.b16 %v798, %v782
    %v1231 = vpack.c.b16 %v799, %v783
    %v1232 = vpack.c.b16 %v800, %v784
    %v1233 = vpack.c.b16 %v801, %v785
    %v1234 = vpack.c.b16 %v802, %v786
    %v1235 = vpack.c.b16 %v819, %v803
    %v1236 = vpack.c.b16 %v820, %v804
    %v1237 = vpack.c.b16 %v821, %v805
    %v1238 = vpack.c.b16 %v822, %v806
    %v1239 = vpack.c.b16 %v823, %v807
    %v1240 = vpack.c.b16 %v824, %v808
    %v1241 = vpack.c.b16 %v825, %v809
    %v1242 = vpack.c.b16 %v826, %v810
    %v1243 = vpack.c.b16 %v827, %v811
    %v1244 = vpack.c.b16 %v828, %v812
    %v1245 = vpack.c.b16 %v829, %v813
    %v1246 = vpack.c.b16 %v830, %v814
    %v1247 = vpack.c.b16 %v831, %v815
    %v1248 = vpack.c.b16 %v832, %v816
    %v1249 = vpack.c.b16 %v833, %v817
    %v1250 = vpack.c.b16 %v834, %v818
    %v1251 = vpack.c.b16 %v851, %v835
    %v1252 = vpack.c.b16 %v852, %v836
    %v1253 = vpack.c.b16 %v853, %v837
    %v1254 = vpack.c.b16 %v854, %v838
    %v1255 = vpack.c.b16 %v855, %v839
    %v1256 = vpack.c.b16 %v856, %v840
    %v1257 = vpack.c.b16 %v857, %v841
    %v1258 = vpack.c.b16 %v858, %v842
    %v1259 = vpack.c.b16 %v859, %v843
    %v1260 = vpack.c.b16 %v860, %v844
    %v1261 = vpack.c.b16 %v861, %v845
    %v1262 = vpack.c.b16 %v862, %v846
    %v1263 = vpack.c.b16 %v863, %v847
    %v1264 = vpack.c.b16 %v864, %v848
    %v1265 = vpack.c.b16 %v865, %v849
    %v1266 = vpack.c.b16 %v866, %v850
    %v1267 = vpack.c.b16 %v883, %v867
    %v1268 = vpack.c.b16 %v884, %v868
    %v1269 = vpack.c.b16 %v885, %v869
    %v1270 = vpack.c.b16 %v886, %v870
    %v1271 = vpack.c.b16 %v887, %v871
    %v1272 = vpack.c.b16 %v888, %v872
    %v1273 = vpack.c.b16 %v889, %v873
    %v1274 = vpack.c.b16 %v890, %v874
    %v1275 = vpack.c.b16 %v891, %v875
    %v1276 = vpack.c.b16 %v892, %v876
    %v1277 = vpack.c.b16 %v893, %v877
    %v1278 = vpack.c.b16 %v894, %v878
    %v1279 = vpack.c.b16 %v895, %v879
    %v1280 = vpack.c.b16 %v896, %v880
    %v1281 = vpack.c.b16 %v897, %v881
    %v1282 = vpack.c.b16 %v898, %v882
    %v1283 = vpack.c.b16 %v915, %v899
    %v1284 = vpack.c.b16 %v916, %v900
    %v1285 = vpack.c.b16 %v917, %v901
    %v1286 = vpack.c.b16 %v918, %v902
    %v1287 = vpack.c.b16 %v919, %v903
    %v1288 = vpack.c.b16 %v920, %v904
    %v1289 = vpack.c.b16 %v921, %v905
    %v1290 = vpack.c.b16 %v922, %v906
    %v1291 = vpack.c.b16 %v923, %v907
    %v1292 = vpack.c.b16 %v924, %v908
    %v1293 = vpack.c.b16 %v925, %v909
    %v1294 = vpack.c.b16 %v926, %v910
    %v1295 = vpack.c.b16 %v927, %v911
    %v1296 = vpack.c.b16 %v928, %v912
    %v1297 = vpack.c.b16 %v929, %v913
    %v1298 = vpack.c.b16 %v930, %v914
    %v1299 = vpack.c.b16 %v947, %v931
    %v1300 = vpack.c.b16 %v948, %v932
    %v1301 = vpack.c.b16 %v949, %v933
    %v1302 = vpack.c.b16 %v950, %v934
    %v1303 = vpack.c.b16 %v951, %v935
    %v1304 = vpack.c.b16 %v952, %v936
    %v1305 = vpack.c.b16 %v953, %v937
    %v1306 = vpack.c.b16 %v954, %v938
    %v1307 = vpack.c.b16 %v955, %v939
    %v1308 = vpack.c.b16 %v956, %v940
    %v1309 = vpack.c.b16 %v957, %v941
    %v1310 = vpack.c.b16 %v958, %v942
    %v1311 = vpack.c.b16 %v959, %v943
    %v1312 = vpack.c.b16 %v960, %v944
    %v1313 = vpack.c.b16 %v961, %v945
    %v1314 = vpack.c.b16 %v962, %v946
    %v1315 = vpack.c.b16 %v979, %v963
    %v1316 = vpack.c.b16 %v980, %v964
    %v1317 = vpack.c.b16 %v981, %v965
    %v1318 = vpack.c.b16 %v982, %v966
    %v1319 = vpack.c.b16 %v983, %v967
    %v1320 = vpack.c.b16 %v984, %v968
    %v1321 = vpack.c.b16 %v985, %v969
    %v1322 = vpack.c.b16 %v986, %v970
    %v1323 = vpack.c.b16 %v987, %v971
    %v1324 = vpack.c.b16 %v988, %v972
    %v1325 = vpack.c.b16 %v989, %v973
    %v1326 = vpack.c.b16 %v990, %v974
    %v1327 = vpack.c.b16 %v991, %v975
    %v1328 = vpack.c.b16 %v992, %v976
    %v1329 = vpack.c.b16 %v993, %v977
    %v1330 = vpack.c.b16 %v994, %v978
    %v1331 = vpack.c.b16 %v1011, %v995
    %v1332 = vpack.c.b16 %v1012, %v996
    %v1333 = vpack.c.b16 %v1013, %v997
    %v1334 = vpack.c.b16 %v1014, %v998
    %v1335 = vpack.c.b16 %v1015, %v999
    %v1336 = vpack.c.b16 %v1016, %v1000
    %v1337 = vpack.c.b16 %v1017, %v1001
    %v1338 = vpack.c.b16 %v1018, %v1002
    %v1339 = vpack.c.b16 %v1019, %v1003
    %v1340 = vpack.c.b16 %v1020, %v1004
    %v1341 = vpack.c.b16 %v1021, %v1005
    %v1342 = vpack.c.b16 %v1022, %v1006
    %v1343 = vpack.c.b16 %v1023, %v1007
    %v1344 = vpack.c.b16 %v1024, %v1008
    %v1345 = vpack.c.b16 %v1025, %v1009
    %v1346 = vpack.c.b16 %v1026, %v1010
    %v1347 = vpack.c.b16 %v1043, %v1027
    %v1348 = vpack.c.b16 %v1044, %v1028
    %v1349 = vpack.c.b16 %v1045, %v1029
    %v1350 = vpack.c.b16 %v1046, %v1030
    %v1351 = vpack.c.b16 %v1047, %v1031
    %v1352 = vpack.c.b16 %v1048, %v1032
    %v1353 = vpack.c.b16 %v1049, %v1033
    %v1354 = vpack.c.b16 %v1050, %v1034
    %v1355 = vpack.c.b16 %v1051, %v1035
    %v1356 = vpack.c.b16 %v1052, %v1036
    %v1357 = vpack.c.b16 %v1053, %v1037
    %v1358 = vpack.c.b16 %v1054, %v1038
    %v1359 = vpack.c.b16 %v1055, %v1039
    %v1360 = vpack.c.b16 %v1056, %v1040
    %v1361 = vpack.c.b16 %v1057, %v1041
    %v1362 = vpack.c.b16 %v1058, %v1042
    %v1363 = vpack.c.b16 %v1075, %v1059
    %v1364 = vpack.c.b16 %v1076, %v1060
    %v1365 = vpack.c.b16 %v1077, %v1061
    %v1366 = vpack.c.b16 %v1078, %v1062
    %v1367 = vpack.c.b16 %v1079, %v1063
    %v1368 = vpack.c.b16 %v1080, %v1064
    %v1369 = vpack.c.b16 %v1081, %v1065
    %v1370 = vpack.c.b16 %v1082, %v1066
    %v1371 = vpack.c.b16 %v1083, %v1067
    %v1372 = vpack.c.b16 %v1084, %v1068
    %v1373 = vpack.c.b16 %v1085, %v1069
    %v1374 = vpack.c.b16 %v1086, %v1070
    %v1375 = vpack.c.b16 %v1087, %v1071
    %v1376 = vpack.c.b16 %v1088, %v1072
    %v1377 = vpack.c.b16 %v1089, %v1073
    %v1378 = vpack.c.b16 %v1090, %v1074
    %v1379 = vpack.c.b16 %v1107, %v1091
    %v1380 = vpack.c.b16 %v1108, %v1092
    %v1381 = vpack.c.b16 %v1109, %v1093
    %v1382 = vpack.c.b16 %v1110, %v1094
    %v1383 = vpack.c.b16 %v1111, %v1095
    %v1384 = vpack.c.b16 %v1112, %v1096
    %v1385 = vpack.c.b16 %v1113, %v1097
    %v1386 = vpack.c.b16 %v1114, %v1098
    %v1387 = vpack.c.b16 %v1115, %v1099
    %v1388 = vpack.c.b16 %v1116, %v1100
    %v1389 = vpack.c.b16 %v1117, %v1101
    %v1390 = vpack.c.b16 %v1118, %v1102
    %v1391 = vpack.c.b16 %v1119, %v1103
    %v1392 = vpack.c.b16 %v1120, %v1104
    %v1393 = vpack.c.b16 %v1121, %v1105
    %v1394 = vpack.c.b16 %v1122, %v1106
    %v1395 = vpack.c.b16 %v1139, %v1123
    %v1396 = vpack.c.b16 %v1140, %v1124
    %v1397 = vpack.c.b16 %v1141, %v1125
    %v1398 = vpack.c.b16 %v1142, %v1126
    %v1399 = vpack.c.b16 %v1143, %v1127
    %v1400 = vpack.c.b16 %v1144, %v1128
    %v1401 = vpack.c.b16 %v1145, %v1129
    %v1402 = vpack.c.b16 %v1146, %v1130
    %v1403 = vpack.c.b16 %v1147, %v1131
    %v1404 = vpack.c.b16 %v1148, %v1132
    %v1405 = vpack.c.b16 %v1149, %v1133
    %v1406 = vpack.c.b16 %v1150, %v1134
    %v1407 = vpack.c.b16 %v1151, %v1135
    %v1408 = vpack.c.b16 %v1152, %v1136
    %v1409 = vpack.c.b16 %v1153, %v1137
    %v1410 = vpack.c.b16 %v1154, %v1138
    %1667 = vmatprep.subr.bf16.mxu0 %v1156
    %1668 = vmatpush1.bf16.msra.mxu0 %v1155
    %1669 = vmatprep.subr.bf16.mxu0 %v1172
    %1670 = vmatpush1.bf16.msra.mxu0 %v1171
    %1671 = vmatprep.subr.bf16.mxu0 %v1188
    %1672 = vmatpush1.bf16.msra.mxu0 %v1187
    %1673 = vmatprep.subr.bf16.mxu0 %v1204
    %1674 = vmatpush1.bf16.msra.mxu0 %v1203
    %1675 = vmatprep.subr.bf16.mxu0 %v1220
    %1676 = vmatpush1.bf16.msra.mxu0 %v1219
    %1677 = vmatprep.subr.bf16.mxu0 %v1236
    %1678 = vmatpush1.bf16.msra.mxu0 %v1235
    %1679 = vmatprep.subr.bf16.mxu0 %v1252
    %1680 = vmatpush1.bf16.msra.mxu0 %v1251
    %1681 = vmatprep.subr.bf16.mxu0 %v1268
    %1682 = vmatpush1.bf16.msra.mxu0 %v1267
    %1683 = vmatprep.subr.bf16.mxu0 %v1284
    %1684 = vmatpush1.bf16.msra.mxu0 %v1283
    %1685 = vmatprep.subr.bf16.mxu0 %v1300
    %1686 = vmatpush1.bf16.msra.mxu0 %v1299
    %1687 = vmatprep.subr.bf16.mxu0 %v1316
    %1688 = vmatpush1.bf16.msra.mxu0 %v1315
    %1689 = vmatprep.subr.bf16.mxu0 %v1332
    %1690 = vmatpush1.bf16.msra.mxu0 %v1331
    %1691 = vmatprep.subr.bf16.mxu0 %v1348
    %1692 = vmatpush1.bf16.msra.mxu0 %v1347
    %1693 = vmatprep.subr.bf16.mxu0 %v1364
    %1694 = vmatpush1.bf16.msra.mxu0 %v1363
    %1695 = vmatprep.subr.bf16.mxu0 %v1380
    %1696 = vmatpush1.bf16.msra.mxu0 %v1379
    %1697 = vmatprep.subr.bf16.mxu0 %v1396
    %1698 = vmatpush1.bf16.msra.mxu0 %v1395
    %1699 = vmatprep.mubr.bf16.mxu0 %v384
    %1700 = vmatmul.mubr.bf16.gmra.mrb[0].mxu0 %v377
    %v1701 = vpop.f32.mrb[0].mxu0
    %v1702 = vadd.f32 0.0, %v1701
    %v1703 = vpop.f32.mrb[0].mxu0
    %v1704 = vadd.f32 0.0, %v1703
    %v1705 = vpop.f32.mrb[0].mxu0
    %v1706 = vpop.f32.mrb[0].mxu0
    %1707 = vdwg.mxu0
    %1708 = vmatprep.subr.bf16.mxu0 %v1158
    %1709 = vmatpush1.bf16.msra.mxu0 %v1157
    %1710 = vmatprep.subr.bf16.mxu0 %v1174
    %1711 = vmatpush1.bf16.msra.mxu0 %v1173
    %1712 = vmatprep.subr.bf16.mxu0 %v1190
    %1713 = vmatpush1.bf16.msra.mxu0 %v1189
    %1714 = vmatprep.subr.bf16.mxu0 %v1206
    %1715 = vmatpush1.bf16.msra.mxu0 %v1205
    %1716 = vmatprep.subr.bf16.mxu0 %v1222
    %1717 = vmatpush1.bf16.msra.mxu0 %v1221
    %1718 = vmatprep.subr.bf16.mxu0 %v1238
    %1719 = vmatpush1.bf16.msra.mxu0 %v1237
    %1720 = vmatprep.subr.bf16.mxu0 %v1254
    %1721 = vmatpush1.bf16.msra.mxu0 %v1253
    %1722 = vmatprep.subr.bf16.mxu0 %v1270
    %1723 = vmatpush1.bf16.msra.mxu0 %v1269
    %1724 = vmatprep.subr.bf16.mxu0 %v1286
    %1725 = vmatpush1.bf16.msra.mxu0 %v1285
    %1726 = vmatprep.subr.bf16.mxu0 %v1302
    %1727 = vmatpush1.bf16.msra.mxu0 %v1301
    %1728 = vmatprep.subr.bf16.mxu0 %v1318
    %1729 = vmatpush1.bf16.msra.mxu0 %v1317
    %1730 = vmatprep.subr.bf16.mxu0 %v1334
    %1731 = vmatpush1.bf16.msra.mxu0 %v1333
    %1732 = vmatprep.subr.bf16.mxu0 %v1350
    %1733 = vmatpush1.bf16.msra.mxu0 %v1349
    %1734 = vmatprep.subr.bf16.mxu0 %v1366
    %1735 = vmatpush1.bf16.msra.mxu0 %v1365
    %1736 = vmatprep.subr.bf16.mxu0 %v1382
    %1737 = vmatpush1.bf16.msra.mxu0 %v1381
    %1738 = vmatprep.subr.bf16.mxu0 %v1398
    %1739 = vmatpush1.bf16.msra.mxu0 %v1397
    %1740 = vmatprep.mubr.bf16.mxu0 %v384
    %1741 = vmatmul.mubr.bf16.gmra.mrb[0].mxu0 %v377
    %v1742 = vpop.f32.mrb[0].mxu0
    %v1743 = vadd.f32 0.0, %v1742
    %v1744 = vpop.f32.mrb[0].mxu0
    %v1745 = vadd.f32 0.0, %v1744
    %v1746 = vpop.f32.mrb[0].mxu0
    %v1747 = vpop.f32.mrb[0].mxu0
    %1748 = vdwg.mxu0
    %1749 = vmatprep.subr.bf16.mxu0 %v1160
    %1750 = vmatpush1.bf16.msra.mxu0 %v1159
    %1751 = vmatprep.subr.bf16.mxu0 %v1176
    %1752 = vmatpush1.bf16.msra.mxu0 %v1175
    %1753 = vmatprep.subr.bf16.mxu0 %v1192
    %1754 = vmatpush1.bf16.msra.mxu0 %v1191
    %1755 = vmatprep.subr.bf16.mxu0 %v1208
    %1756 = vmatpush1.bf16.msra.mxu0 %v1207
    %1757 = vmatprep.subr.bf16.mxu0 %v1224
    %1758 = vmatpush1.bf16.msra.mxu0 %v1223
    %1759 = vmatprep.subr.bf16.mxu0 %v1240
    %1760 = vmatpush1.bf16.msra.mxu0 %v1239
    %1761 = vmatprep.subr.bf16.mxu0 %v1256
    %1762 = vmatpush1.bf16.msra.mxu0 %v1255
    %1763 = vmatprep.subr.bf16.mxu0 %v1272
    %1764 = vmatpush1.bf16.msra.mxu0 %v1271
    %1765 = vmatprep.subr.bf16.mxu0 %v1288
    %1766 = vmatpush1.bf16.msra.mxu0 %v1287
    %1767 = vmatprep.subr.bf16.mxu0 %v1304
    %1768 = vmatpush1.bf16.msra.mxu0 %v1303
    %1769 = vmatprep.subr.bf16.mxu0 %v1320
    %1770 = vmatpush1.bf16.msra.mxu0 %v1319
    %1771 = vmatprep.subr.bf16.mxu0 %v1336
    %1772 = vmatpush1.bf16.msra.mxu0 %v1335
    %1773 = vmatprep.subr.bf16.mxu0 %v1352
    %1774 = vmatpush1.bf16.msra.mxu0 %v1351
    %1775 = vmatprep.subr.bf16.mxu0 %v1368
    %1776 = vmatpush1.bf16.msra.mxu0 %v1367
    %1777 = vmatprep.subr.bf16.mxu0 %v1384
    %1778 = vmatpush1.bf16.msra.mxu0 %v1383
    %1779 = vmatprep.subr.bf16.mxu0 %v1400
    %1780 = vmatpush1.bf16.msra.mxu0 %v1399
    %1781 = vmatprep.mubr.bf16.mxu0 %v384
    %1782 = vmatmul.mubr.bf16.gmra.mrb[0].mxu0 %v377
    %v1783 = vpop.f32.mrb[0].mxu0
    %v1784 = vadd.f32 0.0, %v1783
    %v1785 = vpop.f32.mrb[0].mxu0
    %v1786 = vadd.f32 0.0, %v1785
    %v1787 = vpop.f32.mrb[0].mxu0
    %v1788 = vpop.f32.mrb[0].mxu0
    %1789 = vdwg.mxu0
    %1790 = vmatprep.subr.bf16.mxu0 %v1162
    %1791 = vmatpush1.bf16.msra.mxu0 %v1161
    %1792 = vmatprep.subr.bf16.mxu0 %v1178
    %1793 = vmatpush1.bf16.msra.mxu0 %v1177
    %1794 = vmatprep.subr.bf16.mxu0 %v1194
    %1795 = vmatpush1.bf16.msra.mxu0 %v1193
    %1796 = vmatprep.subr.bf16.mxu0 %v1210
    %1797 = vmatpush1.bf16.msra.mxu0 %v1209
    %1798 = vmatprep.subr.bf16.mxu0 %v1226
    %1799 = vmatpush1.bf16.msra.mxu0 %v1225
    %1800 = vmatprep.subr.bf16.mxu0 %v1242
    %1801 = vmatpush1.bf16.msra.mxu0 %v1241
    %1802 = vmatprep.subr.bf16.mxu0 %v1258
    %1803 = vmatpush1.bf16.msra.mxu0 %v1257
    %1804 = vmatprep.subr.bf16.mxu0 %v1274
    %1805 = vmatpush1.bf16.msra.mxu0 %v1273
    %1806 = vmatprep.subr.bf16.mxu0 %v1290
    %1807 = vmatpush1.bf16.msra.mxu0 %v1289
    %1808 = vmatprep.subr.bf16.mxu0 %v1306
    %1809 = vmatpush1.bf16.msra.mxu0 %v1305
    %1810 = vmatprep.subr.bf16.mxu0 %v1322
    %1811 = vmatpush1.bf16.msra.mxu0 %v1321
    %1812 = vmatprep.subr.bf16.mxu0 %v1338
    %1813 = vmatpush1.bf16.msra.mxu0 %v1337
    %1814 = vmatprep.subr.bf16.mxu0 %v1354
    %1815 = vmatpush1.bf16.msra.mxu0 %v1353
    %1816 = vmatprep.subr.bf16.mxu0 %v1370
    %1817 = vmatpush1.bf16.msra.mxu0 %v1369
    %1818 = vmatprep.subr.bf16.mxu0 %v1386
    %1819 = vmatpush1.bf16.msra.mxu0 %v1385
    %1820 = vmatprep.subr.bf16.mxu0 %v1402
    %1821 = vmatpush1.bf16.msra.mxu0 %v1401
    %1822 = vmatprep.mubr.bf16.mxu0 %v384
    %1823 = vmatmul.mubr.bf16.gmra.mrb[0].mxu0 %v377
    %v1824 = vpop.f32.mrb[0].mxu0
    %v1825 = vadd.f32 0.0, %v1824
    %v1826 = vpop.f32.mrb[0].mxu0
    %v1827 = vadd.f32 0.0, %v1826
    %v1828 = vpop.f32.mrb[0].mxu0
    %v1829 = vpop.f32.mrb[0].mxu0
    %1830 = vdwg.mxu0
    %1831 = vmatprep.subr.bf16.mxu0 %v1164
    %1832 = vmatpush1.bf16.msra.mxu0 %v1163
    %1833 = vmatprep.subr.bf16.mxu0 %v1180
    %1834 = vmatpush1.bf16.msra.mxu0 %v1179
    %1835 = vmatprep.subr.bf16.mxu0 %v1196
    %1836 = vmatpush1.bf16.msra.mxu0 %v1195
    %1837 = vmatprep.subr.bf16.mxu0 %v1212
    %1838 = vmatpush1.bf16.msra.mxu0 %v1211
    %1839 = vmatprep.subr.bf16.mxu0 %v1228
    %1840 = vmatpush1.bf16.msra.mxu0 %v1227
    %1841 = vmatprep.subr.bf16.mxu0 %v1244
    %1842 = vmatpush1.bf16.msra.mxu0 %v1243
    %1843 = vmatprep.subr.bf16.mxu0 %v1260
    %1844 = vmatpush1.bf16.msra.mxu0 %v1259
    %1845 = vmatprep.subr.bf16.mxu0 %v1276
    %1846 = vmatpush1.bf16.msra.mxu0 %v1275
    %1847 = vmatprep.subr.bf16.mxu0 %v1292
    %1848 = vmatpush1.bf16.msra.mxu0 %v1291
    %1849 = vmatprep.subr.bf16.mxu0 %v1308
    %1850 = vmatpush1.bf16.msra.mxu0 %v1307
    %1851 = vmatprep.subr.bf16.mxu0 %v1324
    %1852 = vmatpush1.bf16.msra.mxu0 %v1323
    %1853 = vmatprep.subr.bf16.mxu0 %v1340
    %1854 = vmatpush1.bf16.msra.mxu0 %v1339
    %1855 = vmatprep.subr.bf16.mxu0 %v1356
    %1856 = vmatpush1.bf16.msra.mxu0 %v1355
    %1857 = vmatprep.subr.bf16.mxu0 %v1372
    %1858 = vmatpush1.bf16.msra.mxu0 %v1371
    %1859 = vmatprep.subr.bf16.mxu0 %v1388
    %1860 = vmatpush1.bf16.msra.mxu0 %v1387
    %1861 = vmatprep.subr.bf16.mxu0 %v1404
    %1862 = vmatpush1.bf16.msra.mxu0 %v1403
    %1863 = vmatprep.mubr.bf16.mxu0 %v384
    %1864 = vmatmul.mubr.bf16.gmra.mrb[0].mxu0 %v377
    %v1865 = vpop.f32.mrb[0].mxu0
    %v1866 = vadd.f32 0.0, %v1865
    %v1867 = vpop.f32.mrb[0].mxu0
    %v1868 = vadd.f32 0.0, %v1867
    %v1869 = vpop.f32.mrb[0].mxu0
    %v1870 = vpop.f32.mrb[0].mxu0
    %1871 = vdwg.mxu0
    %1872 = vmatprep.subr.bf16.mxu0 %v1166
    %1873 = vmatpush1.bf16.msra.mxu0 %v1165
    %1874 = vmatprep.subr.bf16.mxu0 %v1182
    %1875 = vmatpush1.bf16.msra.mxu0 %v1181
    %1876 = vmatprep.subr.bf16.mxu0 %v1198
    %1877 = vmatpush1.bf16.msra.mxu0 %v1197
    %1878 = vmatprep.subr.bf16.mxu0 %v1214
    %1879 = vmatpush1.bf16.msra.mxu0 %v1213
    %1880 = vmatprep.subr.bf16.mxu0 %v1230
    %1881 = vmatpush1.bf16.msra.mxu0 %v1229
    %1882 = vmatprep.subr.bf16.mxu0 %v1246
    %1883 = vmatpush1.bf16.msra.mxu0 %v1245
    %1884 = vmatprep.subr.bf16.mxu0 %v1262
    %1885 = vmatpush1.bf16.msra.mxu0 %v1261
    %1886 = vmatprep.subr.bf16.mxu0 %v1278
    %1887 = vmatpush1.bf16.msra.mxu0 %v1277
    %1888 = vmatprep.subr.bf16.mxu0 %v1294
    %1889 = vmatpush1.bf16.msra.mxu0 %v1293
    %1890 = vmatprep.subr.bf16.mxu0 %v1310
    %1891 = vmatpush1.bf16.msra.mxu0 %v1309
    %1892 = vmatprep.subr.bf16.mxu0 %v1326
    %1893 = vmatpush1.bf16.msra.mxu0 %v1325
    %1894 = vmatprep.subr.bf16.mxu0 %v1342
    %1895 = vmatpush1.bf16.msra.mxu0 %v1341
    %1896 = vmatprep.subr.bf16.mxu0 %v1358
    %1897 = vmatpush1.bf16.msra.mxu0 %v1357
    %1898 = vmatprep.subr.bf16.mxu0 %v1374
    %1899 = vmatpush1.bf16.msra.mxu0 %v1373
    %1900 = vmatprep.subr.bf16.mxu0 %v1390
    %1901 = vmatpush1.bf16.msra.mxu0 %v1389
    %1902 = vmatprep.subr.bf16.mxu0 %v1406
    %1903 = vmatpush1.bf16.msra.mxu0 %v1405
    %1904 = vmatprep.mubr.bf16.mxu0 %v384
    %1905 = vmatmul.mubr.bf16.gmra.mrb[0].mxu0 %v377
    %v1906 = vpop.f32.mrb[0].mxu0
    %v1907 = vadd.f32 0.0, %v1906
    %v1908 = vpop.f32.mrb[0].mxu0
    %v1909 = vadd.f32 0.0, %v1908
    %v1910 = vpop.f32.mrb[0].mxu0
    %v1911 = vpop.f32.mrb[0].mxu0
    %1912 = vdwg.mxu0
    %1913 = vmatprep.subr.bf16.mxu0 %v1168
    %1914 = vmatpush1.bf16.msra.mxu0 %v1167
    %1915 = vmatprep.subr.bf16.mxu0 %v1184
    %1916 = vmatpush1.bf16.msra.mxu0 %v1183
    %1917 = vmatprep.subr.bf16.mxu0 %v1200
    %1918 = vmatpush1.bf16.msra.mxu0 %v1199
    %1919 = vmatprep.subr.bf16.mxu0 %v1216
    %1920 = vmatpush1.bf16.msra.mxu0 %v1215
    %1921 = vmatprep.subr.bf16.mxu0 %v1232
    %1922 = vmatpush1.bf16.msra.mxu0 %v1231
    %1923 = vmatprep.subr.bf16.mxu0 %v1248
    %1924 = vmatpush1.bf16.msra.mxu0 %v1247
    %1925 = vmatprep.subr.bf16.mxu0 %v1264
    %1926 = vmatpush1.bf16.msra.mxu0 %v1263
    %1927 = vmatprep.subr.bf16.mxu0 %v1280
    %1928 = vmatpush1.bf16.msra.mxu0 %v1279
    %1929 = vmatprep.subr.bf16.mxu0 %v1296
    %1930 = vmatpush1.bf16.msra.mxu0 %v1295
    %1931 = vmatprep.subr.bf16.mxu0 %v1312
    %1932 = vmatpush1.bf16.msra.mxu0 %v1311
    %1933 = vmatprep.subr.bf16.mxu0 %v1328
    %1934 = vmatpush1.bf16.msra.mxu0 %v1327
    %1935 = vmatprep.subr.bf16.mxu0 %v1344
    %1936 = vmatpush1.bf16.msra.mxu0 %v1343
    %1937 = vmatprep.subr.bf16.mxu0 %v1360
    %1938 = vmatpush1.bf16.msra.mxu0 %v1359
    %1939 = vmatprep.subr.bf16.mxu0 %v1376
    %1940 = vmatpush1.bf16.msra.mxu0 %v1375
    %1941 = vmatprep.subr.bf16.mxu0 %v1392
    %1942 = vmatpush1.bf16.msra.mxu0 %v1391
    %1943 = vmatprep.subr.bf16.mxu0 %v1408
    %1944 = vmatpush1.bf16.msra.mxu0 %v1407
    %1945 = vmatprep.mubr.bf16.mxu0 %v384
    %1946 = vmatmul.mubr.bf16.gmra.mrb[0].mxu0 %v377
    %v1947 = vpop.f32.mrb[0].mxu0
    %v1948 = vadd.f32 0.0, %v1947
    %v1949 = vpop.f32.mrb[0].mxu0
    %v1950 = vadd.f32 0.0, %v1949
    %v1951 = vpop.f32.mrb[0].mxu0
    %v1952 = vpop.f32.mrb[0].mxu0
    %1953 = vdwg.mxu0
    %1954 = vmatprep.subr.bf16.mxu0 %v1170
    %1955 = vmatpush1.bf16.msra.mxu0 %v1169
    %1956 = vmatprep.subr.bf16.mxu0 %v1186
    %1957 = vmatpush1.bf16.msra.mxu0 %v1185
    %1958 = vmatprep.subr.bf16.mxu0 %v1202
    %1959 = vmatpush1.bf16.msra.mxu0 %v1201
    %1960 = vmatprep.subr.bf16.mxu0 %v1218
    %1961 = vmatpush1.bf16.msra.mxu0 %v1217
    %1962 = vmatprep.subr.bf16.mxu0 %v1234
    %1963 = vmatpush1.bf16.msra.mxu0 %v1233
    %1964 = vmatprep.subr.bf16.mxu0 %v1250
    %1965 = vmatpush1.bf16.msra.mxu0 %v1249
    %1966 = vmatprep.subr.bf16.mxu0 %v1266
    %1967 = vmatpush1.bf16.msra.mxu0 %v1265
    %1968 = vmatprep.subr.bf16.mxu0 %v1282
    %1969 = vmatpush1.bf16.msra.mxu0 %v1281
    %1970 = vmatprep.subr.bf16.mxu0 %v1298
    %1971 = vmatpush1.bf16.msra.mxu0 %v1297
    %1972 = vmatprep.subr.bf16.mxu0 %v1314
    %1973 = vmatpush1.bf16.msra.mxu0 %v1313
    %1974 = vmatprep.subr.bf16.mxu0 %v1330
    %1975 = vmatpush1.bf16.msra.mxu0 %v1329
    %1976 = vmatprep.subr.bf16.mxu0 %v1346
    %1977 = vmatpush1.bf16.msra.mxu0 %v1345
    %1978 = vmatprep.subr.bf16.mxu0 %v1362
    %1979 = vmatpush1.bf16.msra.mxu0 %v1361
    %1980 = vmatprep.subr.bf16.mxu0 %v1378
    %1981 = vmatpush1.bf16.msra.mxu0 %v1377
    %1982 = vmatprep.subr.bf16.mxu0 %v1394
    %1983 = vmatpush1.bf16.msra.mxu0 %v1393
    %1984 = vmatprep.subr.bf16.mxu0 %v1410
    %1985 = vmatpush1.bf16.msra.mxu0 %v1409
    %1986 = vmatprep.mubr.bf16.mxu0 %v384
    %1987 = vmatmul.mubr.bf16.gmra.mrb[0].mxu0 %v377
    %v1988 = vpop.f32.mrb[0].mxu0
    %v1989 = vadd.f32 0.0, %v1988
    %v1990 = vpop.f32.mrb[0].mxu0
    %v1991 = vadd.f32 0.0, %v1990
    %v1992 = vpop.f32.mrb[0].mxu0
    %v1993 = vpop.f32.mrb[0].mxu0
    %1994 = vdwg.mxu0
    %vm1995 = vcmp.gt.f32.partialorder %v1702, 0.0
    %vm1996 = vcmp.gt.f32.partialorder %v1704, 0.0
    %vm1997 = vcmp.gt.f32.partialorder %v1743, 0.0
    %vm1998 = vcmp.gt.f32.partialorder %v1745, 0.0
    %vm1999 = vcmp.gt.f32.partialorder %v1784, 0.0
    %vm2000 = vcmp.gt.f32.partialorder %v1786, 0.0
    %vm2001 = vcmp.gt.f32.partialorder %v1825, 0.0
    %vm2002 = vcmp.gt.f32.partialorder %v1827, 0.0
    %vm2003 = vcmp.gt.f32.partialorder %v1866, 0.0
    %vm2004 = vcmp.gt.f32.partialorder %v1868, 0.0
    %vm2005 = vcmp.gt.f32.partialorder %v1907, 0.0
    %vm2006 = vcmp.gt.f32.partialorder %v1909, 0.0
    %vm2007 = vcmp.gt.f32.partialorder %v1948, 0.0
    %vm2008 = vcmp.gt.f32.partialorder %v1950, 0.0
    %vm2009 = vcmp.gt.f32.partialorder %v1989, 0.0
    %vm2010 = vcmp.gt.f32.partialorder %v1991, 0.0
    %v2011 = vmul.f32 %v1702, 0.2
    %v2012 = vmul.f32 %v1704, 0.2
    %v2013 = vmul.f32 %v1743, 0.2
    %v2014 = vmul.f32 %v1745, 0.2
    %v2015 = vmul.f32 %v1784, 0.2
    %v2016 = vmul.f32 %v1786, 0.2
    %v2017 = vmul.f32 %v1825, 0.2
    %v2018 = vmul.f32 %v1827, 0.2
    %v2019 = vmul.f32 %v1866, 0.2
    %v2020 = vmul.f32 %v1868, 0.2
    %v2021 = vmul.f32 %v1907, 0.2
    %v2022 = vmul.f32 %v1909, 0.2
    %v2023 = vmul.f32 %v1948, 0.2
    %v2024 = vmul.f32 %v1950, 0.2
    %v2025 = vmul.f32 %v1989, 0.2
    %v2026 = vmul.f32 %v1991, 0.2
    %v2027 = vsel %vm1995, %v1702, %v2011
    %v2028 = vsel %vm1996, %v1704, %v2012
    %v2029 = vsel %vm1997, %v1743, %v2013
    %v2030 = vsel %vm1998, %v1745, %v2014
    %v2031 = vsel %vm1999, %v1784, %v2015
    %v2032 = vsel %vm2000, %v1786, %v2016
    %v2033 = vsel %vm2001, %v1825, %v2017
    %v2034 = vsel %vm2002, %v1827, %v2018
    %v2035 = vsel %vm2003, %v1866, %v2019
    %v2036 = vsel %vm2004, %v1868, %v2020
    %v2037 = vsel %vm2005, %v1907, %v2021
    %v2038 = vsel %vm2006, %v1909, %v2022
    %v2039 = vsel %vm2007, %v1948, %v2023
    %v2040 = vsel %vm2008, %v1950, %v2024
    %v2041 = vsel %vm2009, %v1989, %v2025
    %v2042 = vsel %vm2010, %v1991, %v2026
    %v2043 = vpack.c.bf16 %v2027, %v2027
    %v2044 = vpack.c.bf16 %v2028, %v2028
    %v2045 = vpack.c.bf16 %v2029, %v2029
    %v2046 = vpack.c.bf16 %v2030, %v2030
    %v2047 = vpack.c.bf16 %v2031, %v2031
    %v2048 = vpack.c.bf16 %v2032, %v2032
    %v2049 = vpack.c.bf16 %v2033, %v2033
    %v2050 = vpack.c.bf16 %v2034, %v2034
    %v2051 = vpack.c.bf16 %v2035, %v2035
    %v2052 = vpack.c.bf16 %v2036, %v2036
    %v2053 = vpack.c.bf16 %v2037, %v2037
    %v2054 = vpack.c.bf16 %v2038, %v2038
    %v2055 = vpack.c.bf16 %v2039, %v2039
    %v2056 = vpack.c.bf16 %v2040, %v2040
    %v2057 = vpack.c.bf16 %v2041, %v2041
    %v2058 = vpack.c.bf16 %v2042, %v2042
    %v2059 = vld [vmem:[#allocation4] sm:$0xff]
    %v2060 = vld [vmem:[#allocation4 + $0x8] sm:$0xff]
    %v2061 = vld [vmem:[#allocation4 + $0x10] sm:$0xff]
    %v2062 = vld [vmem:[#allocation4 + $0x18] sm:$0xff]
    %v2063 = vld [vmem:[#allocation4 + $0x20] sm:$0xff]
    %v2064 = vld [vmem:[#allocation4 + $0x28] sm:$0xff]
    %v2065 = vld [vmem:[#allocation4 + $0x30] sm:$0xff]
    %v2066 = vld [vmem:[#allocation4 + $0x38] sm:$0xff]
    %v2067 = vld [vmem:[#allocation4 + $0x40] sm:$0xff]
    %v2068 = vld [vmem:[#allocation4 + $0x48] sm:$0xff]
    %v2069 = vld [vmem:[#allocation4 + $0x50] sm:$0xff]
    %v2070 = vld [vmem:[#allocation4 + $0x58] sm:$0xff]
    %v2071 = vld [vmem:[#allocation4 + $0x60] sm:$0xff]
    %v2072 = vld [vmem:[#allocation4 + $0x68] sm:$0xff]
    %v2073 = vld [vmem:[#allocation4 + $0x70] sm:$0xff]
    %v2074 = vld [vmem:[#allocation4 + $0x78] sm:$0xff]
    %v2075 = vld [vmem:[#allocation4 + $0x80] sm:$0xff]
    %v2076 = vld [vmem:[#allocation4 + $0x88] sm:$0xff]
    %v2077 = vld [vmem:[#allocation4 + $0x90] sm:$0xff]
    %v2078 = vld [vmem:[#allocation4 + $0x98] sm:$0xff]
    %v2079 = vld [vmem:[#allocation4 + $0xa0] sm:$0xff]
    %v2080 = vld [vmem:[#allocation4 + $0xa8] sm:$0xff]
    %v2081 = vld [vmem:[#allocation4 + $0xb0] sm:$0xff]
    %v2082 = vld [vmem:[#allocation4 + $0xb8] sm:$0xff]
    %v2083 = vld [vmem:[#allocation4 + $0xc0] sm:$0xff]
    %v2084 = vld [vmem:[#allocation4 + $0xc8] sm:$0xff]
    %v2085 = vld [vmem:[#allocation4 + $0xd0] sm:$0xff]
    %v2086 = vld [vmem:[#allocation4 + $0xd8] sm:$0xff]
    %v2087 = vld [vmem:[#allocation4 + $0xe0] sm:$0xff]
    %v2088 = vld [vmem:[#allocation4 + $0xe8] sm:$0xff]
    %v2089 = vld [vmem:[#allocation4 + $0xf0] sm:$0xff]
    %v2090 = vld [vmem:[#allocation4 + $0xf8] sm:$0xff]
    %v2091 = vld [vmem:[#allocation4 + $0x100] sm:$0xff]
    %v2092 = vld [vmem:[#allocation4 + $0x108] sm:$0xff]
    %v2093 = vld [vmem:[#allocation4 + $0x110] sm:$0xff]
    %v2094 = vld [vmem:[#allocation4 + $0x118] sm:$0xff]
    %v2095 = vld [vmem:[#allocation4 + $0x120] sm:$0xff]
    %v2096 = vld [vmem:[#allocation4 + $0x128] sm:$0xff]
    %v2097 = vld [vmem:[#allocation4 + $0x130] sm:$0xff]
    %v2098 = vld [vmem:[#allocation4 + $0x138] sm:$0xff]
    %v2099 = vld [vmem:[#allocation4 + $0x140] sm:$0xff]
    %v2100 = vld [vmem:[#allocation4 + $0x148] sm:$0xff]
    %v2101 = vld [vmem:[#allocation4 + $0x150] sm:$0xff]
    %v2102 = vld [vmem:[#allocation4 + $0x158] sm:$0xff]
    %v2103 = vld [vmem:[#allocation4 + $0x160] sm:$0xff]
    %v2104 = vld [vmem:[#allocation4 + $0x168] sm:$0xff]
    %v2105 = vld [vmem:[#allocation4 + $0x170] sm:$0xff]
    %v2106 = vld [vmem:[#allocation4 + $0x178] sm:$0xff]
    %v2107 = vld [vmem:[#allocation4 + $0x180] sm:$0xff]
    %v2108 = vld [vmem:[#allocation4 + $0x188] sm:$0xff]
    %v2109 = vld [vmem:[#allocation4 + $0x190] sm:$0xff]
    %v2110 = vld [vmem:[#allocation4 + $0x198] sm:$0xff]
    %v2111 = vld [vmem:[#allocation4 + $0x1a0] sm:$0xff]
    %v2112 = vld [vmem:[#allocation4 + $0x1a8] sm:$0xff]
    %v2113 = vld [vmem:[#allocation4 + $0x1b0] sm:$0xff]
    %v2114 = vld [vmem:[#allocation4 + $0x1b8] sm:$0xff]
    %v2115 = vld [vmem:[#allocation4 + $0x1c0] sm:$0xff]
    %v2116 = vld [vmem:[#allocation4 + $0x1c8] sm:$0xff]
    %v2117 = vld [vmem:[#allocation4 + $0x1d0] sm:$0xff]
    %v2118 = vld [vmem:[#allocation4 + $0x1d8] sm:$0xff]
    %v2119 = vld [vmem:[#allocation4 + $0x1e0] sm:$0xff]
    %v2120 = vld [vmem:[#allocation4 + $0x1e8] sm:$0xff]
    %v2121 = vld [vmem:[#allocation4 + $0x1f0] sm:$0xff]
    %v2122 = vld [vmem:[#allocation4 + $0x1f8] sm:$0xff]
    %v2123 = vld [vmem:[#allocation4 + $0x200] sm:$0xff]
    %v2124 = vld [vmem:[#allocation4 + $0x208] sm:$0xff]
    %v2125 = vld [vmem:[#allocation4 + $0x210] sm:$0xff]
    %v2126 = vld [vmem:[#allocation4 + $0x218] sm:$0xff]
    %v2127 = vld [vmem:[#allocation4 + $0x220] sm:$0xff]
    %v2128 = vld [vmem:[#allocation4 + $0x228] sm:$0xff]
    %v2129 = vld [vmem:[#allocation4 + $0x230] sm:$0xff]
    %v2130 = vld [vmem:[#allocation4 + $0x238] sm:$0xff]
    %v2131 = vld [vmem:[#allocation4 + $0x240] sm:$0xff]
    %v2132 = vld [vmem:[#allocation4 + $0x248] sm:$0xff]
    %v2133 = vld [vmem:[#allocation4 + $0x250] sm:$0xff]
    %v2134 = vld [vmem:[#allocation4 + $0x258] sm:$0xff]
    %v2135 = vld [vmem:[#allocation4 + $0x260] sm:$0xff]
    %v2136 = vld [vmem:[#allocation4 + $0x268] sm:$0xff]
    %v2137 = vld [vmem:[#allocation4 + $0x270] sm:$0xff]
    %v2138 = vld [vmem:[#allocation4 + $0x278] sm:$0xff]
    %v2139 = vld [vmem:[#allocation4 + $0x280] sm:$0xff]
    %v2140 = vld [vmem:[#allocation4 + $0x288] sm:$0xff]
    %v2141 = vld [vmem:[#allocation4 + $0x290] sm:$0xff]
    %v2142 = vld [vmem:[#allocation4 + $0x298] sm:$0xff]
    %v2143 = vld [vmem:[#allocation4 + $0x2a0] sm:$0xff]
    %v2144 = vld [vmem:[#allocation4 + $0x2a8] sm:$0xff]
    %v2145 = vld [vmem:[#allocation4 + $0x2b0] sm:$0xff]
    %v2146 = vld [vmem:[#allocation4 + $0x2b8] sm:$0xff]
    %v2147 = vld [vmem:[#allocation4 + $0x2c0] sm:$0xff]
    %v2148 = vld [vmem:[#allocation4 + $0x2c8] sm:$0xff]
    %v2149 = vld [vmem:[#allocation4 + $0x2d0] sm:$0xff]
    %v2150 = vld [vmem:[#allocation4 + $0x2d8] sm:$0xff]
    %v2151 = vld [vmem:[#allocation4 + $0x2e0] sm:$0xff]
    %v2152 = vld [vmem:[#allocation4 + $0x2e8] sm:$0xff]
    %v2153 = vld [vmem:[#allocation4 + $0x2f0] sm:$0xff]
    %v2154 = vld [vmem:[#allocation4 + $0x2f8] sm:$0xff]
    %v2155 = vld [vmem:[#allocation4 + $0x300] sm:$0xff]
    %v2156 = vld [vmem:[#allocation4 + $0x308] sm:$0xff]
    %v2157 = vld [vmem:[#allocation4 + $0x310] sm:$0xff]
    %v2158 = vld [vmem:[#allocation4 + $0x318] sm:$0xff]
    %v2159 = vld [vmem:[#allocation4 + $0x320] sm:$0xff]
    %v2160 = vld [vmem:[#allocation4 + $0x328] sm:$0xff]
    %v2161 = vld [vmem:[#allocation4 + $0x330] sm:$0xff]
    %v2162 = vld [vmem:[#allocation4 + $0x338] sm:$0xff]
    %v2163 = vld [vmem:[#allocation4 + $0x340] sm:$0xff]
    %v2164 = vld [vmem:[#allocation4 + $0x348] sm:$0xff]
    %v2165 = vld [vmem:[#allocation4 + $0x350] sm:$0xff]
    %v2166 = vld [vmem:[#allocation4 + $0x358] sm:$0xff]
    %v2167 = vld [vmem:[#allocation4 + $0x360] sm:$0xff]
    %v2168 = vld [vmem:[#allocation4 + $0x368] sm:$0xff]
    %v2169 = vld [vmem:[#allocation4 + $0x370] sm:$0xff]
    %v2170 = vld [vmem:[#allocation4 + $0x378] sm:$0xff]
    %v2171 = vld [vmem:[#allocation4 + $0x380] sm:$0xff]
    %v2172 = vld [vmem:[#allocation4 + $0x388] sm:$0xff]
    %v2173 = vld [vmem:[#allocation4 + $0x390] sm:$0xff]
    %v2174 = vld [vmem:[#allocation4 + $0x398] sm:$0xff]
    %v2175 = vld [vmem:[#allocation4 + $0x3a0] sm:$0xff]
    %v2176 = vld [vmem:[#allocation4 + $0x3a8] sm:$0xff]
    %v2177 = vld [vmem:[#allocation4 + $0x3b0] sm:$0xff]
    %v2178 = vld [vmem:[#allocation4 + $0x3b8] sm:$0xff]
    %v2179 = vld [vmem:[#allocation4 + $0x3c0] sm:$0xff]
    %v2180 = vld [vmem:[#allocation4 + $0x3c8] sm:$0xff]
    %v2181 = vld [vmem:[#allocation4 + $0x3d0] sm:$0xff]
    %v2182 = vld [vmem:[#allocation4 + $0x3d8] sm:$0xff]
    %v2183 = vld [vmem:[#allocation4 + $0x3e0] sm:$0xff]
    %v2184 = vld [vmem:[#allocation4 + $0x3e8] sm:$0xff]
    %v2185 = vld [vmem:[#allocation4 + $0x3f0] sm:$0xff]
    %v2186 = vld [vmem:[#allocation4 + $0x3f8] sm:$0xff]
    %v2187 = vld [vmem:[#allocation4 + $0x400] sm:$0xff]
    %v2188 = vld [vmem:[#allocation4 + $0x408] sm:$0xff]
    %v2189 = vld [vmem:[#allocation4 + $0x410] sm:$0xff]
    %v2190 = vld [vmem:[#allocation4 + $0x418] sm:$0xff]
    %v2191 = vld [vmem:[#allocation4 + $0x420] sm:$0xff]
    %v2192 = vld [vmem:[#allocation4 + $0x428] sm:$0xff]
    %v2193 = vld [vmem:[#allocation4 + $0x430] sm:$0xff]
    %v2194 = vld [vmem:[#allocation4 + $0x438] sm:$0xff]
    %v2195 = vld [vmem:[#allocation4 + $0x440] sm:$0xff]
    %v2196 = vld [vmem:[#allocation4 + $0x448] sm:$0xff]
    %v2197 = vld [vmem:[#allocation4 + $0x450] sm:$0xff]
    %v2198 = vld [vmem:[#allocation4 + $0x458] sm:$0xff]
    %v2199 = vld [vmem:[#allocation4 + $0x460] sm:$0xff]
    %v2200 = vld [vmem:[#allocation4 + $0x468] sm:$0xff]
    %v2201 = vld [vmem:[#allocation4 + $0x470] sm:$0xff]
    %v2202 = vld [vmem:[#allocation4 + $0x478] sm:$0xff]
    %v2203 = vld [vmem:[#allocation4 + $0x480] sm:$0xff]
    %v2204 = vld [vmem:[#allocation4 + $0x488] sm:$0xff]
    %v2205 = vld [vmem:[#allocation4 + $0x490] sm:$0xff]
    %v2206 = vld [vmem:[#allocation4 + $0x498] sm:$0xff]
    %v2207 = vld [vmem:[#allocation4 + $0x4a0] sm:$0xff]
    %v2208 = vld [vmem:[#allocation4 + $0x4a8] sm:$0xff]
    %v2209 = vld [vmem:[#allocation4 + $0x4b0] sm:$0xff]
    %v2210 = vld [vmem:[#allocation4 + $0x4b8] sm:$0xff]
    %v2211 = vld [vmem:[#allocation4 + $0x4c0] sm:$0xff]
    %v2212 = vld [vmem:[#allocation4 + $0x4c8] sm:$0xff]
    %v2213 = vld [vmem:[#allocation4 + $0x4d0] sm:$0xff]
    %v2214 = vld [vmem:[#allocation4 + $0x4d8] sm:$0xff]
    %v2215 = vld [vmem:[#allocation4 + $0x4e0] sm:$0xff]
    %v2216 = vld [vmem:[#allocation4 + $0x4e8] sm:$0xff]
    %v2217 = vld [vmem:[#allocation4 + $0x4f0] sm:$0xff]
    %v2218 = vld [vmem:[#allocation4 + $0x4f8] sm:$0xff]
    %v2219 = vld [vmem:[#allocation4 + $0x500] sm:$0xff]
    %v2220 = vld [vmem:[#allocation4 + $0x508] sm:$0xff]
    %v2221 = vld [vmem:[#allocation4 + $0x510] sm:$0xff]
    %v2222 = vld [vmem:[#allocation4 + $0x518] sm:$0xff]
    %v2223 = vld [vmem:[#allocation4 + $0x520] sm:$0xff]
    %v2224 = vld [vmem:[#allocation4 + $0x528] sm:$0xff]
    %v2225 = vld [vmem:[#allocation4 + $0x530] sm:$0xff]
    %v2226 = vld [vmem:[#allocation4 + $0x538] sm:$0xff]
    %v2227 = vld [vmem:[#allocation4 + $0x540] sm:$0xff]
    %v2228 = vld [vmem:[#allocation4 + $0x548] sm:$0xff]
    %v2229 = vld [vmem:[#allocation4 + $0x550] sm:$0xff]
    %v2230 = vld [vmem:[#allocation4 + $0x558] sm:$0xff]
    %v2231 = vld [vmem:[#allocation4 + $0x560] sm:$0xff]
    %v2232 = vld [vmem:[#allocation4 + $0x568] sm:$0xff]
    %v2233 = vld [vmem:[#allocation4 + $0x570] sm:$0xff]
    %v2234 = vld [vmem:[#allocation4 + $0x578] sm:$0xff]
    %v2235 = vld [vmem:[#allocation4 + $0x580] sm:$0xff]
    %v2236 = vld [vmem:[#allocation4 + $0x588] sm:$0xff]
    %v2237 = vld [vmem:[#allocation4 + $0x590] sm:$0xff]
    %v2238 = vld [vmem:[#allocation4 + $0x598] sm:$0xff]
    %v2239 = vld [vmem:[#allocation4 + $0x5a0] sm:$0xff]
    %v2240 = vld [vmem:[#allocation4 + $0x5a8] sm:$0xff]
    %v2241 = vld [vmem:[#allocation4 + $0x5b0] sm:$0xff]
    %v2242 = vld [vmem:[#allocation4 + $0x5b8] sm:$0xff]
    %v2243 = vld [vmem:[#allocation4 + $0x5c0] sm:$0xff]
    %v2244 = vld [vmem:[#allocation4 + $0x5c8] sm:$0xff]
    %v2245 = vld [vmem:[#allocation4 + $0x5d0] sm:$0xff]
    %v2246 = vld [vmem:[#allocation4 + $0x5d8] sm:$0xff]
    %v2247 = vld [vmem:[#allocation4 + $0x5e0] sm:$0xff]
    %v2248 = vld [vmem:[#allocation4 + $0x5e8] sm:$0xff]
    %v2249 = vld [vmem:[#allocation4 + $0x5f0] sm:$0xff]
    %v2250 = vld [vmem:[#allocation4 + $0x5f8] sm:$0xff]
    %v2251 = vld [vmem:[#allocation4 + $0x600] sm:$0xff]
    %v2252 = vld [vmem:[#allocation4 + $0x608] sm:$0xff]
    %v2253 = vld [vmem:[#allocation4 + $0x610] sm:$0xff]
    %v2254 = vld [vmem:[#allocation4 + $0x618] sm:$0xff]
    %v2255 = vld [vmem:[#allocation4 + $0x620] sm:$0xff]
    %v2256 = vld [vmem:[#allocation4 + $0x628] sm:$0xff]
    %v2257 = vld [vmem:[#allocation4 + $0x630] sm:$0xff]
    %v2258 = vld [vmem:[#allocation4 + $0x638] sm:$0xff]
    %v2259 = vld [vmem:[#allocation4 + $0x640] sm:$0xff]
    %v2260 = vld [vmem:[#allocation4 + $0x648] sm:$0xff]
    %v2261 = vld [vmem:[#allocation4 + $0x650] sm:$0xff]
    %v2262 = vld [vmem:[#allocation4 + $0x658] sm:$0xff]
    %v2263 = vld [vmem:[#allocation4 + $0x660] sm:$0xff]
    %v2264 = vld [vmem:[#allocation4 + $0x668] sm:$0xff]
    %v2265 = vld [vmem:[#allocation4 + $0x670] sm:$0xff]
    %v2266 = vld [vmem:[#allocation4 + $0x678] sm:$0xff]
    %v2267 = vld [vmem:[#allocation4 + $0x680] sm:$0xff]
    %v2268 = vld [vmem:[#allocation4 + $0x688] sm:$0xff]
    %v2269 = vld [vmem:[#allocation4 + $0x690] sm:$0xff]
    %v2270 = vld [vmem:[#allocation4 + $0x698] sm:$0xff]
    %v2271 = vld [vmem:[#allocation4 + $0x6a0] sm:$0xff]
    %v2272 = vld [vmem:[#allocation4 + $0x6a8] sm:$0xff]
    %v2273 = vld [vmem:[#allocation4 + $0x6b0] sm:$0xff]
    %v2274 = vld [vmem:[#allocation4 + $0x6b8] sm:$0xff]
    %v2275 = vld [vmem:[#allocation4 + $0x6c0] sm:$0xff]
    %v2276 = vld [vmem:[#allocation4 + $0x6c8] sm:$0xff]
    %v2277 = vld [vmem:[#allocation4 + $0x6d0] sm:$0xff]
    %v2278 = vld [vmem:[#allocation4 + $0x6d8] sm:$0xff]
    %v2279 = vld [vmem:[#allocation4 + $0x6e0] sm:$0xff]
    %v2280 = vld [vmem:[#allocation4 + $0x6e8] sm:$0xff]
    %v2281 = vld [vmem:[#allocation4 + $0x6f0] sm:$0xff]
    %v2282 = vld [vmem:[#allocation4 + $0x6f8] sm:$0xff]
    %v2283 = vld [vmem:[#allocation4 + $0x700] sm:$0xff]
    %v2284 = vld [vmem:[#allocation4 + $0x708] sm:$0xff]
    %v2285 = vld [vmem:[#allocation4 + $0x710] sm:$0xff]
    %v2286 = vld [vmem:[#allocation4 + $0x718] sm:$0xff]
    %v2287 = vld [vmem:[#allocation4 + $0x720] sm:$0xff]
    %v2288 = vld [vmem:[#allocation4 + $0x728] sm:$0xff]
    %v2289 = vld [vmem:[#allocation4 + $0x730] sm:$0xff]
    %v2290 = vld [vmem:[#allocation4 + $0x738] sm:$0xff]
    %v2291 = vld [vmem:[#allocation4 + $0x740] sm:$0xff]
    %v2292 = vld [vmem:[#allocation4 + $0x748] sm:$0xff]
    %v2293 = vld [vmem:[#allocation4 + $0x750] sm:$0xff]
    %v2294 = vld [vmem:[#allocation4 + $0x758] sm:$0xff]
    %v2295 = vld [vmem:[#allocation4 + $0x760] sm:$0xff]
    %v2296 = vld [vmem:[#allocation4 + $0x768] sm:$0xff]
    %v2297 = vld [vmem:[#allocation4 + $0x770] sm:$0xff]
    %v2298 = vld [vmem:[#allocation4 + $0x778] sm:$0xff]
    %v2299 = vld [vmem:[#allocation4 + $0x780] sm:$0xff]
    %v2300 = vld [vmem:[#allocation4 + $0x788] sm:$0xff]
    %v2301 = vld [vmem:[#allocation4 + $0x790] sm:$0xff]
    %v2302 = vld [vmem:[#allocation4 + $0x798] sm:$0xff]
    %v2303 = vld [vmem:[#allocation4 + $0x7a0] sm:$0xff]
    %v2304 = vld [vmem:[#allocation4 + $0x7a8] sm:$0xff]
    %v2305 = vld [vmem:[#allocation4 + $0x7b0] sm:$0xff]
    %v2306 = vld [vmem:[#allocation4 + $0x7b8] sm:$0xff]
    %v2307 = vld [vmem:[#allocation4 + $0x7c0] sm:$0xff]
    %v2308 = vld [vmem:[#allocation4 + $0x7c8] sm:$0xff]
    %v2309 = vld [vmem:[#allocation4 + $0x7d0] sm:$0xff]
    %v2310 = vld [vmem:[#allocation4 + $0x7d8] sm:$0xff]
    %v2311 = vld [vmem:[#allocation4 + $0x7e0] sm:$0xff]
    %v2312 = vld [vmem:[#allocation4 + $0x7e8] sm:$0xff]
    %v2313 = vld [vmem:[#allocation4 + $0x7f0] sm:$0xff]
    %v2314 = vld [vmem:[#allocation4 + $0x7f8] sm:$0xff]
    %v2315 = vld [vmem:[#allocation4 + $0x800] sm:$0xff]
    %v2316 = vld [vmem:[#allocation4 + $0x808] sm:$0xff]
    %v2317 = vld [vmem:[#allocation4 + $0x810] sm:$0xff]
    %v2318 = vld [vmem:[#allocation4 + $0x818] sm:$0xff]
    %v2319 = vld [vmem:[#allocation4 + $0x820] sm:$0xff]
    %v2320 = vld [vmem:[#allocation4 + $0x828] sm:$0xff]
    %v2321 = vld [vmem:[#allocation4 + $0x830] sm:$0xff]
    %v2322 = vld [vmem:[#allocation4 + $0x838] sm:$0xff]
    %v2323 = vld [vmem:[#allocation4 + $0x840] sm:$0xff]
    %v2324 = vld [vmem:[#allocation4 + $0x848] sm:$0xff]
    %v2325 = vld [vmem:[#allocation4 + $0x850] sm:$0xff]
    %v2326 = vld [vmem:[#allocation4 + $0x858] sm:$0xff]
    %v2327 = vld [vmem:[#allocation4 + $0x860] sm:$0xff]
    %v2328 = vld [vmem:[#allocation4 + $0x868] sm:$0xff]
    %v2329 = vld [vmem:[#allocation4 + $0x870] sm:$0xff]
    %v2330 = vld [vmem:[#allocation4 + $0x878] sm:$0xff]
    %v2331 = vld [vmem:[#allocation4 + $0x880] sm:$0xff]
    %v2332 = vld [vmem:[#allocation4 + $0x888] sm:$0xff]
    %v2333 = vld [vmem:[#allocation4 + $0x890] sm:$0xff]
    %v2334 = vld [vmem:[#allocation4 + $0x898] sm:$0xff]
    %v2335 = vld [vmem:[#allocation4 + $0x8a0] sm:$0xff]
    %v2336 = vld [vmem:[#allocation4 + $0x8a8] sm:$0xff]
    %v2337 = vld [vmem:[#allocation4 + $0x8b0] sm:$0xff]
    %v2338 = vld [vmem:[#allocation4 + $0x8b8] sm:$0xff]
    %v2339 = vld [vmem:[#allocation4 + $0x8c0] sm:$0xff]
    %v2340 = vld [vmem:[#allocation4 + $0x8c8] sm:$0xff]
    %v2341 = vld [vmem:[#allocation4 + $0x8d0] sm:$0xff]
    %v2342 = vld [vmem:[#allocation4 + $0x8d8] sm:$0xff]
    %v2343 = vld [vmem:[#allocation4 + $0x8e0] sm:$0xff]
    %v2344 = vld [vmem:[#allocation4 + $0x8e8] sm:$0xff]
    %v2345 = vld [vmem:[#allocation4 + $0x8f0] sm:$0xff]
    %v2346 = vld [vmem:[#allocation4 + $0x8f8] sm:$0xff]
    %v2347 = vld [vmem:[#allocation4 + $0x900] sm:$0xff]
    %v2348 = vld [vmem:[#allocation4 + $0x908] sm:$0xff]
    %v2349 = vld [vmem:[#allocation4 + $0x910] sm:$0xff]
    %v2350 = vld [vmem:[#allocation4 + $0x918] sm:$0xff]
    %v2351 = vld [vmem:[#allocation4 + $0x920] sm:$0xff]
    %v2352 = vld [vmem:[#allocation4 + $0x928] sm:$0xff]
    %v2353 = vld [vmem:[#allocation4 + $0x930] sm:$0xff]
    %v2354 = vld [vmem:[#allocation4 + $0x938] sm:$0xff]
    %v2355 = vld [vmem:[#allocation4 + $0x940] sm:$0xff]
    %v2356 = vld [vmem:[#allocation4 + $0x948] sm:$0xff]
    %v2357 = vld [vmem:[#allocation4 + $0x950] sm:$0xff]
    %v2358 = vld [vmem:[#allocation4 + $0x958] sm:$0xff]
    %v2359 = vld [vmem:[#allocation4 + $0x960] sm:$0xff]
    %v2360 = vld [vmem:[#allocation4 + $0x968] sm:$0xff]
    %v2361 = vld [vmem:[#allocation4 + $0x970] sm:$0xff]
    %v2362 = vld [vmem:[#allocation4 + $0x978] sm:$0xff]
    %v2363 = vld [vmem:[#allocation4 + $0x980] sm:$0xff]
    %v2364 = vld [vmem:[#allocation4 + $0x988] sm:$0xff]
    %v2365 = vld [vmem:[#allocation4 + $0x990] sm:$0xff]
    %v2366 = vld [vmem:[#allocation4 + $0x998] sm:$0xff]
    %v2367 = vld [vmem:[#allocation4 + $0x9a0] sm:$0xff]
    %v2368 = vld [vmem:[#allocation4 + $0x9a8] sm:$0xff]
    %v2369 = vld [vmem:[#allocation4 + $0x9b0] sm:$0xff]
    %v2370 = vld [vmem:[#allocation4 + $0x9b8] sm:$0xff]
    %v2371 = vld [vmem:[#allocation4 + $0x9c0] sm:$0xff]
    %v2372 = vld [vmem:[#allocation4 + $0x9c8] sm:$0xff]
    %v2373 = vld [vmem:[#allocation4 + $0x9d0] sm:$0xff]
    %v2374 = vld [vmem:[#allocation4 + $0x9d8] sm:$0xff]
    %v2375 = vld [vmem:[#allocation4 + $0x9e0] sm:$0xff]
    %v2376 = vld [vmem:[#allocation4 + $0x9e8] sm:$0xff]
    %v2377 = vld [vmem:[#allocation4 + $0x9f0] sm:$0xff]
    %v2378 = vld [vmem:[#allocation4 + $0x9f8] sm:$0xff]
    %v2379 = vld [vmem:[#allocation4 + $0xa00] sm:$0xff]
    %v2380 = vld [vmem:[#allocation4 + $0xa08] sm:$0xff]
    %v2381 = vld [vmem:[#allocation4 + $0xa10] sm:$0xff]
    %v2382 = vld [vmem:[#allocation4 + $0xa18] sm:$0xff]
    %v2383 = vld [vmem:[#allocation4 + $0xa20] sm:$0xff]
    %v2384 = vld [vmem:[#allocation4 + $0xa28] sm:$0xff]
    %v2385 = vld [vmem:[#allocation4 + $0xa30] sm:$0xff]
    %v2386 = vld [vmem:[#allocation4 + $0xa38] sm:$0xff]
    %v2387 = vld [vmem:[#allocation4 + $0xa40] sm:$0xff]
    %v2388 = vld [vmem:[#allocation4 + $0xa48] sm:$0xff]
    %v2389 = vld [vmem:[#allocation4 + $0xa50] sm:$0xff]
    %v2390 = vld [vmem:[#allocation4 + $0xa58] sm:$0xff]
    %v2391 = vld [vmem:[#allocation4 + $0xa60] sm:$0xff]
    %v2392 = vld [vmem:[#allocation4 + $0xa68] sm:$0xff]
    %v2393 = vld [vmem:[#allocation4 + $0xa70] sm:$0xff]
    %v2394 = vld [vmem:[#allocation4 + $0xa78] sm:$0xff]
    %v2395 = vld [vmem:[#allocation4 + $0xa80] sm:$0xff]
    %v2396 = vld [vmem:[#allocation4 + $0xa88] sm:$0xff]
    %v2397 = vld [vmem:[#allocation4 + $0xa90] sm:$0xff]
    %v2398 = vld [vmem:[#allocation4 + $0xa98] sm:$0xff]
    %v2399 = vld [vmem:[#allocation4 + $0xaa0] sm:$0xff]
    %v2400 = vld [vmem:[#allocation4 + $0xaa8] sm:$0xff]
    %v2401 = vld [vmem:[#allocation4 + $0xab0] sm:$0xff]
    %v2402 = vld [vmem:[#allocation4 + $0xab8] sm:$0xff]
    %v2403 = vld [vmem:[#allocation4 + $0xac0] sm:$0xff]
    %v2404 = vld [vmem:[#allocation4 + $0xac8] sm:$0xff]
    %v2405 = vld [vmem:[#allocation4 + $0xad0] sm:$0xff]
    %v2406 = vld [vmem:[#allocation4 + $0xad8] sm:$0xff]
    %v2407 = vld [vmem:[#allocation4 + $0xae0] sm:$0xff]
    %v2408 = vld [vmem:[#allocation4 + $0xae8] sm:$0xff]
    %v2409 = vld [vmem:[#allocation4 + $0xaf0] sm:$0xff]
    %v2410 = vld [vmem:[#allocation4 + $0xaf8] sm:$0xff]
    %v2411 = vld [vmem:[#allocation4 + $0xb00] sm:$0xff]
    %v2412 = vld [vmem:[#allocation4 + $0xb08] sm:$0xff]
    %v2413 = vld [vmem:[#allocation4 + $0xb10] sm:$0xff]
    %v2414 = vld [vmem:[#allocation4 + $0xb18] sm:$0xff]
    %v2415 = vld [vmem:[#allocation4 + $0xb20] sm:$0xff]
    %v2416 = vld [vmem:[#allocation4 + $0xb28] sm:$0xff]
    %v2417 = vld [vmem:[#allocation4 + $0xb30] sm:$0xff]
    %v2418 = vld [vmem:[#allocation4 + $0xb38] sm:$0xff]
    %v2419 = vld [vmem:[#allocation4 + $0xb40] sm:$0xff]
    %v2420 = vld [vmem:[#allocation4 + $0xb48] sm:$0xff]
    %v2421 = vld [vmem:[#allocation4 + $0xb50] sm:$0xff]
    %v2422 = vld [vmem:[#allocation4 + $0xb58] sm:$0xff]
    %v2423 = vld [vmem:[#allocation4 + $0xb60] sm:$0xff]
    %v2424 = vld [vmem:[#allocation4 + $0xb68] sm:$0xff]
    %v2425 = vld [vmem:[#allocation4 + $0xb70] sm:$0xff]
    %v2426 = vld [vmem:[#allocation4 + $0xb78] sm:$0xff]
    %v2427 = vld [vmem:[#allocation4 + $0xb80] sm:$0xff]
    %v2428 = vld [vmem:[#allocation4 + $0xb88] sm:$0xff]
    %v2429 = vld [vmem:[#allocation4 + $0xb90] sm:$0xff]
    %v2430 = vld [vmem:[#allocation4 + $0xb98] sm:$0xff]
    %v2431 = vld [vmem:[#allocation4 + $0xba0] sm:$0xff]
    %v2432 = vld [vmem:[#allocation4 + $0xba8] sm:$0xff]
    %v2433 = vld [vmem:[#allocation4 + $0xbb0] sm:$0xff]
    %v2434 = vld [vmem:[#allocation4 + $0xbb8] sm:$0xff]
    %v2435 = vld [vmem:[#allocation4 + $0xbc0] sm:$0xff]
    %v2436 = vld [vmem:[#allocation4 + $0xbc8] sm:$0xff]
    %v2437 = vld [vmem:[#allocation4 + $0xbd0] sm:$0xff]
    %v2438 = vld [vmem:[#allocation4 + $0xbd8] sm:$0xff]
    %v2439 = vld [vmem:[#allocation4 + $0xbe0] sm:$0xff]
    %v2440 = vld [vmem:[#allocation4 + $0xbe8] sm:$0xff]
    %v2441 = vld [vmem:[#allocation4 + $0xbf0] sm:$0xff]
    %v2442 = vld [vmem:[#allocation4 + $0xbf8] sm:$0xff]
    %v2443 = vld [vmem:[#allocation4 + $0xc00] sm:$0xff]
    %v2444 = vld [vmem:[#allocation4 + $0xc08] sm:$0xff]
    %v2445 = vld [vmem:[#allocation4 + $0xc10] sm:$0xff]
    %v2446 = vld [vmem:[#allocation4 + $0xc18] sm:$0xff]
    %v2447 = vld [vmem:[#allocation4 + $0xc20] sm:$0xff]
    %v2448 = vld [vmem:[#allocation4 + $0xc28] sm:$0xff]
    %v2449 = vld [vmem:[#allocation4 + $0xc30] sm:$0xff]
    %v2450 = vld [vmem:[#allocation4 + $0xc38] sm:$0xff]
    %v2451 = vld [vmem:[#allocation4 + $0xc40] sm:$0xff]
    %v2452 = vld [vmem:[#allocation4 + $0xc48] sm:$0xff]
    %v2453 = vld [vmem:[#allocation4 + $0xc50] sm:$0xff]
    %v2454 = vld [vmem:[#allocation4 + $0xc58] sm:$0xff]
    %v2455 = vld [vmem:[#allocation4 + $0xc60] sm:$0xff]
    %v2456 = vld [vmem:[#allocation4 + $0xc68] sm:$0xff]
    %v2457 = vld [vmem:[#allocation4 + $0xc70] sm:$0xff]
    %v2458 = vld [vmem:[#allocation4 + $0xc78] sm:$0xff]
    %v2459 = vld [vmem:[#allocation4 + $0xc80] sm:$0xff]
    %v2460 = vld [vmem:[#allocation4 + $0xc88] sm:$0xff]
    %v2461 = vld [vmem:[#allocation4 + $0xc90] sm:$0xff]
    %v2462 = vld [vmem:[#allocation4 + $0xc98] sm:$0xff]
    %v2463 = vld [vmem:[#allocation4 + $0xca0] sm:$0xff]
    %v2464 = vld [vmem:[#allocation4 + $0xca8] sm:$0xff]
    %v2465 = vld [vmem:[#allocation4 + $0xcb0] sm:$0xff]
    %v2466 = vld [vmem:[#allocation4 + $0xcb8] sm:$0xff]
    %v2467 = vld [vmem:[#allocation4 + $0xcc0] sm:$0xff]
    %v2468 = vld [vmem:[#allocation4 + $0xcc8] sm:$0xff]
    %v2469 = vld [vmem:[#allocation4 + $0xcd0] sm:$0xff]
    %v2470 = vld [vmem:[#allocation4 + $0xcd8] sm:$0xff]
    %v2471 = vld [vmem:[#allocation4 + $0xce0] sm:$0xff]
    %v2472 = vld [vmem:[#allocation4 + $0xce8] sm:$0xff]
    %v2473 = vld [vmem:[#allocation4 + $0xcf0] sm:$0xff]
    %v2474 = vld [vmem:[#allocation4 + $0xcf8] sm:$0xff]
    %v2475 = vld [vmem:[#allocation4 + $0xd00] sm:$0xff]
    %v2476 = vld [vmem:[#allocation4 + $0xd08] sm:$0xff]
    %v2477 = vld [vmem:[#allocation4 + $0xd10] sm:$0xff]
    %v2478 = vld [vmem:[#allocation4 + $0xd18] sm:$0xff]
    %v2479 = vld [vmem:[#allocation4 + $0xd20] sm:$0xff]
    %v2480 = vld [vmem:[#allocation4 + $0xd28] sm:$0xff]
    %v2481 = vld [vmem:[#allocation4 + $0xd30] sm:$0xff]
    %v2482 = vld [vmem:[#allocation4 + $0xd38] sm:$0xff]
    %v2483 = vld [vmem:[#allocation4 + $0xd40] sm:$0xff]
    %v2484 = vld [vmem:[#allocation4 + $0xd48] sm:$0xff]
    %v2485 = vld [vmem:[#allocation4 + $0xd50] sm:$0xff]
    %v2486 = vld [vmem:[#allocation4 + $0xd58] sm:$0xff]
    %v2487 = vld [vmem:[#allocation4 + $0xd60] sm:$0xff]
    %v2488 = vld [vmem:[#allocation4 + $0xd68] sm:$0xff]
    %v2489 = vld [vmem:[#allocation4 + $0xd70] sm:$0xff]
    %v2490 = vld [vmem:[#allocation4 + $0xd78] sm:$0xff]
    %v2491 = vld [vmem:[#allocation4 + $0xd80] sm:$0xff]
    %v2492 = vld [vmem:[#allocation4 + $0xd88] sm:$0xff]
    %v2493 = vld [vmem:[#allocation4 + $0xd90] sm:$0xff]
    %v2494 = vld [vmem:[#allocation4 + $0xd98] sm:$0xff]
    %v2495 = vld [vmem:[#allocation4 + $0xda0] sm:$0xff]
    %v2496 = vld [vmem:[#allocation4 + $0xda8] sm:$0xff]
    %v2497 = vld [vmem:[#allocation4 + $0xdb0] sm:$0xff]
    %v2498 = vld [vmem:[#allocation4 + $0xdb8] sm:$0xff]
    %v2499 = vld [vmem:[#allocation4 + $0xdc0] sm:$0xff]
    %v2500 = vld [vmem:[#allocation4 + $0xdc8] sm:$0xff]
    %v2501 = vld [vmem:[#allocation4 + $0xdd0] sm:$0xff]
    %v2502 = vld [vmem:[#allocation4 + $0xdd8] sm:$0xff]
    %v2503 = vld [vmem:[#allocation4 + $0xde0] sm:$0xff]
    %v2504 = vld [vmem:[#allocation4 + $0xde8] sm:$0xff]
    %v2505 = vld [vmem:[#allocation4 + $0xdf0] sm:$0xff]
    %v2506 = vld [vmem:[#allocation4 + $0xdf8] sm:$0xff]
    %v2507 = vld [vmem:[#allocation4 + $0xe00] sm:$0xff]
    %v2508 = vld [vmem:[#allocation4 + $0xe08] sm:$0xff]
    %v2509 = vld [vmem:[#allocation4 + $0xe10] sm:$0xff]
    %v2510 = vld [vmem:[#allocation4 + $0xe18] sm:$0xff]
    %v2511 = vld [vmem:[#allocation4 + $0xe20] sm:$0xff]
    %v2512 = vld [vmem:[#allocation4 + $0xe28] sm:$0xff]
    %v2513 = vld [vmem:[#allocation4 + $0xe30] sm:$0xff]
    %v2514 = vld [vmem:[#allocation4 + $0xe38] sm:$0xff]
    %v2515 = vld [vmem:[#allocation4 + $0xe40] sm:$0xff]
    %v2516 = vld [vmem:[#allocation4 + $0xe48] sm:$0xff]
    %v2517 = vld [vmem:[#allocation4 + $0xe50] sm:$0xff]
    %v2518 = vld [vmem:[#allocation4 + $0xe58] sm:$0xff]
    %v2519 = vld [vmem:[#allocation4 + $0xe60] sm:$0xff]
    %v2520 = vld [vmem:[#allocation4 + $0xe68] sm:$0xff]
    %v2521 = vld [vmem:[#allocation4 + $0xe70] sm:$0xff]
    %v2522 = vld [vmem:[#allocation4 + $0xe78] sm:$0xff]
    %v2523 = vld [vmem:[#allocation4 + $0xe80] sm:$0xff]
    %v2524 = vld [vmem:[#allocation4 + $0xe88] sm:$0xff]
    %v2525 = vld [vmem:[#allocation4 + $0xe90] sm:$0xff]
    %v2526 = vld [vmem:[#allocation4 + $0xe98] sm:$0xff]
    %v2527 = vld [vmem:[#allocation4 + $0xea0] sm:$0xff]
    %v2528 = vld [vmem:[#allocation4 + $0xea8] sm:$0xff]
    %v2529 = vld [vmem:[#allocation4 + $0xeb0] sm:$0xff]
    %v2530 = vld [vmem:[#allocation4 + $0xeb8] sm:$0xff]
    %v2531 = vld [vmem:[#allocation4 + $0xec0] sm:$0xff]
    %v2532 = vld [vmem:[#allocation4 + $0xec8] sm:$0xff]
    %v2533 = vld [vmem:[#allocation4 + $0xed0] sm:$0xff]
    %v2534 = vld [vmem:[#allocation4 + $0xed8] sm:$0xff]
    %v2535 = vld [vmem:[#allocation4 + $0xee0] sm:$0xff]
    %v2536 = vld [vmem:[#allocation4 + $0xee8] sm:$0xff]
    %v2537 = vld [vmem:[#allocation4 + $0xef0] sm:$0xff]
    %v2538 = vld [vmem:[#allocation4 + $0xef8] sm:$0xff]
    %v2539 = vld [vmem:[#allocation4 + $0xf00] sm:$0xff]
    %v2540 = vld [vmem:[#allocation4 + $0xf08] sm:$0xff]
    %v2541 = vld [vmem:[#allocation4 + $0xf10] sm:$0xff]
    %v2542 = vld [vmem:[#allocation4 + $0xf18] sm:$0xff]
    %v2543 = vld [vmem:[#allocation4 + $0xf20] sm:$0xff]
    %v2544 = vld [vmem:[#allocation4 + $0xf28] sm:$0xff]
    %v2545 = vld [vmem:[#allocation4 + $0xf30] sm:$0xff]
    %v2546 = vld [vmem:[#allocation4 + $0xf38] sm:$0xff]
    %v2547 = vld [vmem:[#allocation4 + $0xf40] sm:$0xff]
    %v2548 = vld [vmem:[#allocation4 + $0xf48] sm:$0xff]
    %v2549 = vld [vmem:[#allocation4 + $0xf50] sm:$0xff]
    %v2550 = vld [vmem:[#allocation4 + $0xf58] sm:$0xff]
    %v2551 = vld [vmem:[#allocation4 + $0xf60] sm:$0xff]
    %v2552 = vld [vmem:[#allocation4 + $0xf68] sm:$0xff]
    %v2553 = vld [vmem:[#allocation4 + $0xf70] sm:$0xff]
    %v2554 = vld [vmem:[#allocation4 + $0xf78] sm:$0xff]
    %v2555 = vld [vmem:[#allocation4 + $0xf80] sm:$0xff]
    %v2556 = vld [vmem:[#allocation4 + $0xf88] sm:$0xff]
    %v2557 = vld [vmem:[#allocation4 + $0xf90] sm:$0xff]
    %v2558 = vld [vmem:[#allocation4 + $0xf98] sm:$0xff]
    %v2559 = vld [vmem:[#allocation4 + $0xfa0] sm:$0xff]
    %v2560 = vld [vmem:[#allocation4 + $0xfa8] sm:$0xff]
    %v2561 = vld [vmem:[#allocation4 + $0xfb0] sm:$0xff]
    %v2562 = vld [vmem:[#allocation4 + $0xfb8] sm:$0xff]
    %v2563 = vld [vmem:[#allocation4 + $0xfc0] sm:$0xff]
    %v2564 = vld [vmem:[#allocation4 + $0xfc8] sm:$0xff]
    %v2565 = vld [vmem:[#allocation4 + $0xfd0] sm:$0xff]
    %v2566 = vld [vmem:[#allocation4 + $0xfd8] sm:$0xff]
    %v2567 = vld [vmem:[#allocation4 + $0xfe0] sm:$0xff]
    %v2568 = vld [vmem:[#allocation4 + $0xfe8] sm:$0xff]
    %v2569 = vld [vmem:[#allocation4 + $0xff0] sm:$0xff]
    %v2570 = vld [vmem:[#allocation4 + $0xff8] sm:$0xff]
    %v2571 = vld [vmem:[#allocation4 + $0x1000] sm:$0xff]
    %v2572 = vld [vmem:[#allocation4 + $0x1008] sm:$0xff]
    %v2573 = vld [vmem:[#allocation4 + $0x1010] sm:$0xff]
    %v2574 = vld [vmem:[#allocation4 + $0x1018] sm:$0xff]
    %v2575 = vld [vmem:[#allocation4 + $0x1020] sm:$0xff]
    %v2576 = vld [vmem:[#allocation4 + $0x1028] sm:$0xff]
    %v2577 = vld [vmem:[#allocation4 + $0x1030] sm:$0xff]
    %v2578 = vld [vmem:[#allocation4 + $0x1038] sm:$0xff]
    %v2579 = vld [vmem:[#allocation4 + $0x1040] sm:$0xff]
    %v2580 = vld [vmem:[#allocation4 + $0x1048] sm:$0xff]
    %v2581 = vld [vmem:[#allocation4 + $0x1050] sm:$0xff]
    %v2582 = vld [vmem:[#allocation4 + $0x1058] sm:$0xff]
    %v2583 = vld [vmem:[#allocation4 + $0x1060] sm:$0xff]
    %v2584 = vld [vmem:[#allocation4 + $0x1068] sm:$0xff]
    %v2585 = vld [vmem:[#allocation4 + $0x1070] sm:$0xff]
    %v2586 = vld [vmem:[#allocation4 + $0x1078] sm:$0xff]
    %v2587 = vld [vmem:[#allocation4 + $0x1080] sm:$0xff]
    %v2588 = vld [vmem:[#allocation4 + $0x1088] sm:$0xff]
    %v2589 = vld [vmem:[#allocation4 + $0x1090] sm:$0xff]
    %v2590 = vld [vmem:[#allocation4 + $0x1098] sm:$0xff]
    %v2591 = vld [vmem:[#allocation4 + $0x10a0] sm:$0xff]
    %v2592 = vld [vmem:[#allocation4 + $0x10a8] sm:$0xff]
    %v2593 = vld [vmem:[#allocation4 + $0x10b0] sm:$0xff]
    %v2594 = vld [vmem:[#allocation4 + $0x10b8] sm:$0xff]
    %v2595 = vld [vmem:[#allocation4 + $0x10c0] sm:$0xff]
    %v2596 = vld [vmem:[#allocation4 + $0x10c8] sm:$0xff]
    %v2597 = vld [vmem:[#allocation4 + $0x10d0] sm:$0xff]
    %v2598 = vld [vmem:[#allocation4 + $0x10d8] sm:$0xff]
    %v2599 = vld [vmem:[#allocation4 + $0x10e0] sm:$0xff]
    %v2600 = vld [vmem:[#allocation4 + $0x10e8] sm:$0xff]
    %v2601 = vld [vmem:[#allocation4 + $0x10f0] sm:$0xff]
    %v2602 = vld [vmem:[#allocation4 + $0x10f8] sm:$0xff]
    %v2603 = vld [vmem:[#allocation4 + $0x1100] sm:$0xff]
    %v2604 = vld [vmem:[#allocation4 + $0x1108] sm:$0xff]
    %v2605 = vld [vmem:[#allocation4 + $0x1110] sm:$0xff]
    %v2606 = vld [vmem:[#allocation4 + $0x1118] sm:$0xff]
    %v2607 = vld [vmem:[#allocation4 + $0x1120] sm:$0xff]
    %v2608 = vld [vmem:[#allocation4 + $0x1128] sm:$0xff]
    %v2609 = vld [vmem:[#allocation4 + $0x1130] sm:$0xff]
    %v2610 = vld [vmem:[#allocation4 + $0x1138] sm:$0xff]
    %v2611 = vld [vmem:[#allocation4 + $0x1140] sm:$0xff]
    %v2612 = vld [vmem:[#allocation4 + $0x1148] sm:$0xff]
    %v2613 = vld [vmem:[#allocation4 + $0x1150] sm:$0xff]
    %v2614 = vld [vmem:[#allocation4 + $0x1158] sm:$0xff]
    %v2615 = vld [vmem:[#allocation4 + $0x1160] sm:$0xff]
    %v2616 = vld [vmem:[#allocation4 + $0x1168] sm:$0xff]
    %v2617 = vld [vmem:[#allocation4 + $0x1170] sm:$0xff]
    %v2618 = vld [vmem:[#allocation4 + $0x1178] sm:$0xff]
    %v2619 = vld [vmem:[#allocation4 + $0x1180] sm:$0xff]
    %v2620 = vld [vmem:[#allocation4 + $0x1188] sm:$0xff]
    %v2621 = vld [vmem:[#allocation4 + $0x1190] sm:$0xff]
    %v2622 = vld [vmem:[#allocation4 + $0x1198] sm:$0xff]
    %v2623 = vld [vmem:[#allocation4 + $0x11a0] sm:$0xff]
    %v2624 = vld [vmem:[#allocation4 + $0x11a8] sm:$0xff]
    %v2625 = vld [vmem:[#allocation4 + $0x11b0] sm:$0xff]
    %v2626 = vld [vmem:[#allocation4 + $0x11b8] sm:$0xff]
    %v2627 = vld [vmem:[#allocation4 + $0x11c0] sm:$0xff]
    %v2628 = vld [vmem:[#allocation4 + $0x11c8] sm:$0xff]
    %v2629 = vld [vmem:[#allocation4 + $0x11d0] sm:$0xff]
    %v2630 = vld [vmem:[#allocation4 + $0x11d8] sm:$0xff]
    %v2631 = vld [vmem:[#allocation4 + $0x11e0] sm:$0xff]
    %v2632 = vld [vmem:[#allocation4 + $0x11e8] sm:$0xff]
    %v2633 = vld [vmem:[#allocation4 + $0x11f0] sm:$0xff]
    %v2634 = vld [vmem:[#allocation4 + $0x11f8] sm:$0xff]
    %v2635 = vld [vmem:[#allocation4 + $0x1200] sm:$0xff]
    %v2636 = vld [vmem:[#allocation4 + $0x1208] sm:$0xff]
    %v2637 = vld [vmem:[#allocation4 + $0x1210] sm:$0xff]
    %v2638 = vld [vmem:[#allocation4 + $0x1218] sm:$0xff]
    %v2639 = vld [vmem:[#allocation4 + $0x1220] sm:$0xff]
    %v2640 = vld [vmem:[#allocation4 + $0x1228] sm:$0xff]
    %v2641 = vld [vmem:[#allocation4 + $0x1230] sm:$0xff]
    %v2642 = vld [vmem:[#allocation4 + $0x1238] sm:$0xff]
    %v2643 = vld [vmem:[#allocation4 + $0x1240] sm:$0xff]
    %v2644 = vld [vmem:[#allocation4 + $0x1248] sm:$0xff]
    %v2645 = vld [vmem:[#allocation4 + $0x1250] sm:$0xff]
    %v2646 = vld [vmem:[#allocation4 + $0x1258] sm:$0xff]
    %v2647 = vld [vmem:[#allocation4 + $0x1260] sm:$0xff]
    %v2648 = vld [vmem:[#allocation4 + $0x1268] sm:$0xff]
    %v2649 = vld [vmem:[#allocation4 + $0x1270] sm:$0xff]
    %v2650 = vld [vmem:[#allocation4 + $0x1278] sm:$0xff]
    %v2651 = vld [vmem:[#allocation4 + $0x1280] sm:$0xff]
    %v2652 = vld [vmem:[#allocation4 + $0x1288] sm:$0xff]
    %v2653 = vld [vmem:[#allocation4 + $0x1290] sm:$0xff]
    %v2654 = vld [vmem:[#allocation4 + $0x1298] sm:$0xff]
    %v2655 = vld [vmem:[#allocation4 + $0x12a0] sm:$0xff]
    %v2656 = vld [vmem:[#allocation4 + $0x12a8] sm:$0xff]
    %v2657 = vld [vmem:[#allocation4 + $0x12b0] sm:$0xff]
    %v2658 = vld [vmem:[#allocation4 + $0x12b8] sm:$0xff]
    %v2659 = vld [vmem:[#allocation4 + $0x12c0] sm:$0xff]
    %v2660 = vld [vmem:[#allocation4 + $0x12c8] sm:$0xff]
    %v2661 = vld [vmem:[#allocation4 + $0x12d0] sm:$0xff]
    %v2662 = vld [vmem:[#allocation4 + $0x12d8] sm:$0xff]
    %v2663 = vld [vmem:[#allocation4 + $0x12e0] sm:$0xff]
    %v2664 = vld [vmem:[#allocation4 + $0x12e8] sm:$0xff]
    %v2665 = vld [vmem:[#allocation4 + $0x12f0] sm:$0xff]
    %v2666 = vld [vmem:[#allocation4 + $0x12f8] sm:$0xff]
    %v2667 = vld [vmem:[#allocation4 + $0x1300] sm:$0xff]
    %v2668 = vld [vmem:[#allocation4 + $0x1308] sm:$0xff]
    %v2669 = vld [vmem:[#allocation4 + $0x1310] sm:$0xff]
    %v2670 = vld [vmem:[#allocation4 + $0x1318] sm:$0xff]
    %v2671 = vld [vmem:[#allocation4 + $0x1320] sm:$0xff]
    %v2672 = vld [vmem:[#allocation4 + $0x1328] sm:$0xff]
    %v2673 = vld [vmem:[#allocation4 + $0x1330] sm:$0xff]
    %v2674 = vld [vmem:[#allocation4 + $0x1338] sm:$0xff]
    %v2675 = vld [vmem:[#allocation4 + $0x1340] sm:$0xff]
    %v2676 = vld [vmem:[#allocation4 + $0x1348] sm:$0xff]
    %v2677 = vld [vmem:[#allocation4 + $0x1350] sm:$0xff]
    %v2678 = vld [vmem:[#allocation4 + $0x1358] sm:$0xff]
    %v2679 = vld [vmem:[#allocation4 + $0x1360] sm:$0xff]
    %v2680 = vld [vmem:[#allocation4 + $0x1368] sm:$0xff]
    %v2681 = vld [vmem:[#allocation4 + $0x1370] sm:$0xff]
    %v2682 = vld [vmem:[#allocation4 + $0x1378] sm:$0xff]
    %v2683 = vld [vmem:[#allocation4 + $0x1380] sm:$0xff]
    %v2684 = vld [vmem:[#allocation4 + $0x1388] sm:$0xff]
    %v2685 = vld [vmem:[#allocation4 + $0x1390] sm:$0xff]
    %v2686 = vld [vmem:[#allocation4 + $0x1398] sm:$0xff]
    %v2687 = vld [vmem:[#allocation4 + $0x13a0] sm:$0xff]
    %v2688 = vld [vmem:[#allocation4 + $0x13a8] sm:$0xff]
    %v2689 = vld [vmem:[#allocation4 + $0x13b0] sm:$0xff]
    %v2690 = vld [vmem:[#allocation4 + $0x13b8] sm:$0xff]
    %v2691 = vld [vmem:[#allocation4 + $0x13c0] sm:$0xff]
    %v2692 = vld [vmem:[#allocation4 + $0x13c8] sm:$0xff]
    %v2693 = vld [vmem:[#allocation4 + $0x13d0] sm:$0xff]
    %v2694 = vld [vmem:[#allocation4 + $0x13d8] sm:$0xff]
    %v2695 = vld [vmem:[#allocation4 + $0x13e0] sm:$0xff]
    %v2696 = vld [vmem:[#allocation4 + $0x13e8] sm:$0xff]
    %v2697 = vld [vmem:[#allocation4 + $0x13f0] sm:$0xff]
    %v2698 = vld [vmem:[#allocation4 + $0x13f8] sm:$0xff]
    %v2699 = vld [vmem:[#allocation4 + $0x1400] sm:$0xff]
    %v2700 = vld [vmem:[#allocation4 + $0x1408] sm:$0xff]
    %v2701 = vld [vmem:[#allocation4 + $0x1410] sm:$0xff]
    %v2702 = vld [vmem:[#allocation4 + $0x1418] sm:$0xff]
    %v2703 = vld [vmem:[#allocation4 + $0x1420] sm:$0xff]
    %v2704 = vld [vmem:[#allocation4 + $0x1428] sm:$0xff]
    %v2705 = vld [vmem:[#allocation4 + $0x1430] sm:$0xff]
    %v2706 = vld [vmem:[#allocation4 + $0x1438] sm:$0xff]
    %v2707 = vld [vmem:[#allocation4 + $0x1440] sm:$0xff]
    %v2708 = vld [vmem:[#allocation4 + $0x1448] sm:$0xff]
    %v2709 = vld [vmem:[#allocation4 + $0x1450] sm:$0xff]
    %v2710 = vld [vmem:[#allocation4 + $0x1458] sm:$0xff]
    %v2711 = vld [vmem:[#allocation4 + $0x1460] sm:$0xff]
    %v2712 = vld [vmem:[#allocation4 + $0x1468] sm:$0xff]
    %v2713 = vld [vmem:[#allocation4 + $0x1470] sm:$0xff]
    %v2714 = vld [vmem:[#allocation4 + $0x1478] sm:$0xff]
    %v2715 = vld [vmem:[#allocation4 + $0x1480] sm:$0xff]
    %v2716 = vld [vmem:[#allocation4 + $0x1488] sm:$0xff]
    %v2717 = vld [vmem:[#allocation4 + $0x1490] sm:$0xff]
    %v2718 = vld [vmem:[#allocation4 + $0x1498] sm:$0xff]
    %v2719 = vld [vmem:[#allocation4 + $0x14a0] sm:$0xff]
    %v2720 = vld [vmem:[#allocation4 + $0x14a8] sm:$0xff]
    %v2721 = vld [vmem:[#allocation4 + $0x14b0] sm:$0xff]
    %v2722 = vld [vmem:[#allocation4 + $0x14b8] sm:$0xff]
    %v2723 = vld [vmem:[#allocation4 + $0x14c0] sm:$0xff]
    %v2724 = vld [vmem:[#allocation4 + $0x14c8] sm:$0xff]
    %v2725 = vld [vmem:[#allocation4 + $0x14d0] sm:$0xff]
    %v2726 = vld [vmem:[#allocation4 + $0x14d8] sm:$0xff]
    %v2727 = vld [vmem:[#allocation4 + $0x14e0] sm:$0xff]
    %v2728 = vld [vmem:[#allocation4 + $0x14e8] sm:$0xff]
    %v2729 = vld [vmem:[#allocation4 + $0x14f0] sm:$0xff]
    %v2730 = vld [vmem:[#allocation4 + $0x14f8] sm:$0xff]
    %v2731 = vld [vmem:[#allocation4 + $0x1500] sm:$0xff]
    %v2732 = vld [vmem:[#allocation4 + $0x1508] sm:$0xff]
    %v2733 = vld [vmem:[#allocation4 + $0x1510] sm:$0xff]
    %v2734 = vld [vmem:[#allocation4 + $0x1518] sm:$0xff]
    %v2735 = vld [vmem:[#allocation4 + $0x1520] sm:$0xff]
    %v2736 = vld [vmem:[#allocation4 + $0x1528] sm:$0xff]
    %v2737 = vld [vmem:[#allocation4 + $0x1530] sm:$0xff]
    %v2738 = vld [vmem:[#allocation4 + $0x1538] sm:$0xff]
    %v2739 = vld [vmem:[#allocation4 + $0x1540] sm:$0xff]
    %v2740 = vld [vmem:[#allocation4 + $0x1548] sm:$0xff]
    %v2741 = vld [vmem:[#allocation4 + $0x1550] sm:$0xff]
    %v2742 = vld [vmem:[#allocation4 + $0x1558] sm:$0xff]
    %v2743 = vld [vmem:[#allocation4 + $0x1560] sm:$0xff]
    %v2744 = vld [vmem:[#allocation4 + $0x1568] sm:$0xff]
    %v2745 = vld [vmem:[#allocation4 + $0x1570] sm:$0xff]
    %v2746 = vld [vmem:[#allocation4 + $0x1578] sm:$0xff]
    %v2747 = vld [vmem:[#allocation4 + $0x1580] sm:$0xff]
    %v2748 = vld [vmem:[#allocation4 + $0x1588] sm:$0xff]
    %v2749 = vld [vmem:[#allocation4 + $0x1590] sm:$0xff]
    %v2750 = vld [vmem:[#allocation4 + $0x1598] sm:$0xff]
    %v2751 = vld [vmem:[#allocation4 + $0x15a0] sm:$0xff]
    %v2752 = vld [vmem:[#allocation4 + $0x15a8] sm:$0xff]
    %v2753 = vld [vmem:[#allocation4 + $0x15b0] sm:$0xff]
    %v2754 = vld [vmem:[#allocation4 + $0x15b8] sm:$0xff]
    %v2755 = vld [vmem:[#allocation4 + $0x15c0] sm:$0xff]
    %v2756 = vld [vmem:[#allocation4 + $0x15c8] sm:$0xff]
    %v2757 = vld [vmem:[#allocation4 + $0x15d0] sm:$0xff]
    %v2758 = vld [vmem:[#allocation4 + $0x15d8] sm:$0xff]
    %v2759 = vld [vmem:[#allocation4 + $0x15e0] sm:$0xff]
    %v2760 = vld [vmem:[#allocation4 + $0x15e8] sm:$0xff]
    %v2761 = vld [vmem:[#allocation4 + $0x15f0] sm:$0xff]
    %v2762 = vld [vmem:[#allocation4 + $0x15f8] sm:$0xff]
    %v2763 = vld [vmem:[#allocation4 + $0x1600] sm:$0xff]
    %v2764 = vld [vmem:[#allocation4 + $0x1608] sm:$0xff]
    %v2765 = vld [vmem:[#allocation4 + $0x1610] sm:$0xff]
    %v2766 = vld [vmem:[#allocation4 + $0x1618] sm:$0xff]
    %v2767 = vld [vmem:[#allocation4 + $0x1620] sm:$0xff]
    %v2768 = vld [vmem:[#allocation4 + $0x1628] sm:$0xff]
    %v2769 = vld [vmem:[#allocation4 + $0x1630] sm:$0xff]
    %v2770 = vld [vmem:[#allocation4 + $0x1638] sm:$0xff]
    %v2771 = vld [vmem:[#allocation4 + $0x1640] sm:$0xff]
    %v2772 = vld [vmem:[#allocation4 + $0x1648] sm:$0xff]
    %v2773 = vld [vmem:[#allocation4 + $0x1650] sm:$0xff]
    %v2774 = vld [vmem:[#allocation4 + $0x1658] sm:$0xff]
    %v2775 = vld [vmem:[#allocation4 + $0x1660] sm:$0xff]
    %v2776 = vld [vmem:[#allocation4 + $0x1668] sm:$0xff]
    %v2777 = vld [vmem:[#allocation4 + $0x1670] sm:$0xff]
    %v2778 = vld [vmem:[#allocation4 + $0x1678] sm:$0xff]
    %v2779 = vld [vmem:[#allocation4 + $0x1680] sm:$0xff]
    %v2780 = vld [vmem:[#allocation4 + $0x1688] sm:$0xff]
    %v2781 = vld [vmem:[#allocation4 + $0x1690] sm:$0xff]
    %v2782 = vld [vmem:[#allocation4 + $0x1698] sm:$0xff]
    %v2783 = vld [vmem:[#allocation4 + $0x16a0] sm:$0xff]
    %v2784 = vld [vmem:[#allocation4 + $0x16a8] sm:$0xff]
    %v2785 = vld [vmem:[#allocation4 + $0x16b0] sm:$0xff]
    %v2786 = vld [vmem:[#allocation4 + $0x16b8] sm:$0xff]
    %v2787 = vld [vmem:[#allocation4 + $0x16c0] sm:$0xff]
    %v2788 = vld [vmem:[#allocation4 + $0x16c8] sm:$0xff]
    %v2789 = vld [vmem:[#allocation4 + $0x16d0] sm:$0xff]
    %v2790 = vld [vmem:[#allocation4 + $0x16d8] sm:$0xff]
    %v2791 = vld [vmem:[#allocation4 + $0x16e0] sm:$0xff]
    %v2792 = vld [vmem:[#allocation4 + $0x16e8] sm:$0xff]
    %v2793 = vld [vmem:[#allocation4 + $0x16f0] sm:$0xff]
    %v2794 = vld [vmem:[#allocation4 + $0x16f8] sm:$0xff]
    %v2795 = vld [vmem:[#allocation4 + $0x1700] sm:$0xff]
    %v2796 = vld [vmem:[#allocation4 + $0x1708] sm:$0xff]
    %v2797 = vld [vmem:[#allocation4 + $0x1710] sm:$0xff]
    %v2798 = vld [vmem:[#allocation4 + $0x1718] sm:$0xff]
    %v2799 = vld [vmem:[#allocation4 + $0x1720] sm:$0xff]
    %v2800 = vld [vmem:[#allocation4 + $0x1728] sm:$0xff]
    %v2801 = vld [vmem:[#allocation4 + $0x1730] sm:$0xff]
    %v2802 = vld [vmem:[#allocation4 + $0x1738] sm:$0xff]
    %v2803 = vld [vmem:[#allocation4 + $0x1740] sm:$0xff]
    %v2804 = vld [vmem:[#allocation4 + $0x1748] sm:$0xff]
    %v2805 = vld [vmem:[#allocation4 + $0x1750] sm:$0xff]
    %v2806 = vld [vmem:[#allocation4 + $0x1758] sm:$0xff]
    %v2807 = vld [vmem:[#allocation4 + $0x1760] sm:$0xff]
    %v2808 = vld [vmem:[#allocation4 + $0x1768] sm:$0xff]
    %v2809 = vld [vmem:[#allocation4 + $0x1770] sm:$0xff]
    %v2810 = vld [vmem:[#allocation4 + $0x1778] sm:$0xff]
    %v2811 = vld [vmem:[#allocation4 + $0x1780] sm:$0xff]
    %v2812 = vld [vmem:[#allocation4 + $0x1788] sm:$0xff]
    %v2813 = vld [vmem:[#allocation4 + $0x1790] sm:$0xff]
    %v2814 = vld [vmem:[#allocation4 + $0x1798] sm:$0xff]
    %v2815 = vld [vmem:[#allocation4 + $0x17a0] sm:$0xff]
    %v2816 = vld [vmem:[#allocation4 + $0x17a8] sm:$0xff]
    %v2817 = vld [vmem:[#allocation4 + $0x17b0] sm:$0xff]
    %v2818 = vld [vmem:[#allocation4 + $0x17b8] sm:$0xff]
    %v2819 = vld [vmem:[#allocation4 + $0x17c0] sm:$0xff]
    %v2820 = vld [vmem:[#allocation4 + $0x17c8] sm:$0xff]
    %v2821 = vld [vmem:[#allocation4 + $0x17d0] sm:$0xff]
    %v2822 = vld [vmem:[#allocation4 + $0x17d8] sm:$0xff]
    %v2823 = vld [vmem:[#allocation4 + $0x17e0] sm:$0xff]
    %v2824 = vld [vmem:[#allocation4 + $0x17e8] sm:$0xff]
    %v2825 = vld [vmem:[#allocation4 + $0x17f0] sm:$0xff]
    %v2826 = vld [vmem:[#allocation4 + $0x17f8] sm:$0xff]
    %v2827 = vld [vmem:[#allocation4 + $0x1800] sm:$0xff]
    %v2828 = vld [vmem:[#allocation4 + $0x1808] sm:$0xff]
    %v2829 = vld [vmem:[#allocation4 + $0x1810] sm:$0xff]
    %v2830 = vld [vmem:[#allocation4 + $0x1818] sm:$0xff]
    %v2831 = vld [vmem:[#allocation4 + $0x1820] sm:$0xff]
    %v2832 = vld [vmem:[#allocation4 + $0x1828] sm:$0xff]
    %v2833 = vld [vmem:[#allocation4 + $0x1830] sm:$0xff]
    %v2834 = vld [vmem:[#allocation4 + $0x1838] sm:$0xff]
    %v2835 = vld [vmem:[#allocation4 + $0x1840] sm:$0xff]
    %v2836 = vld [vmem:[#allocation4 + $0x1848] sm:$0xff]
    %v2837 = vld [vmem:[#allocation4 + $0x1850] sm:$0xff]
    %v2838 = vld [vmem:[#allocation4 + $0x1858] sm:$0xff]
    %v2839 = vld [vmem:[#allocation4 + $0x1860] sm:$0xff]
    %v2840 = vld [vmem:[#allocation4 + $0x1868] sm:$0xff]
    %v2841 = vld [vmem:[#allocation4 + $0x1870] sm:$0xff]
    %v2842 = vld [vmem:[#allocation4 + $0x1878] sm:$0xff]
    %v2843 = vld [vmem:[#allocation4 + $0x1880] sm:$0xff]
    %v2844 = vld [vmem:[#allocation4 + $0x1888] sm:$0xff]
    %v2845 = vld [vmem:[#allocation4 + $0x1890] sm:$0xff]
    %v2846 = vld [vmem:[#allocation4 + $0x1898] sm:$0xff]
    %v2847 = vld [vmem:[#allocation4 + $0x18a0] sm:$0xff]
    %v2848 = vld [vmem:[#allocation4 + $0x18a8] sm:$0xff]
    %v2849 = vld [vmem:[#allocation4 + $0x18b0] sm:$0xff]
    %v2850 = vld [vmem:[#allocation4 + $0x18b8] sm:$0xff]
    %v2851 = vld [vmem:[#allocation4 + $0x18c0] sm:$0xff]
    %v2852 = vld [vmem:[#allocation4 + $0x18c8] sm:$0xff]
    %v2853 = vld [vmem:[#allocation4 + $0x18d0] sm:$0xff]
    %v2854 = vld [vmem:[#allocation4 + $0x18d8] sm:$0xff]
    %v2855 = vld [vmem:[#allocation4 + $0x18e0] sm:$0xff]
    %v2856 = vld [vmem:[#allocation4 + $0x18e8] sm:$0xff]
    %v2857 = vld [vmem:[#allocation4 + $0x18f0] sm:$0xff]
    %v2858 = vld [vmem:[#allocation4 + $0x18f8] sm:$0xff]
    %v2859 = vld [vmem:[#allocation4 + $0x1900] sm:$0xff]
    %v2860 = vld [vmem:[#allocation4 + $0x1908] sm:$0xff]
    %v2861 = vld [vmem:[#allocation4 + $0x1910] sm:$0xff]
    %v2862 = vld [vmem:[#allocation4 + $0x1918] sm:$0xff]
    %v2863 = vld [vmem:[#allocation4 + $0x1920] sm:$0xff]
    %v2864 = vld [vmem:[#allocation4 + $0x1928] sm:$0xff]
    %v2865 = vld [vmem:[#allocation4 + $0x1930] sm:$0xff]
    %v2866 = vld [vmem:[#allocation4 + $0x1938] sm:$0xff]
    %v2867 = vld [vmem:[#allocation4 + $0x1940] sm:$0xff]
    %v2868 = vld [vmem:[#allocation4 + $0x1948] sm:$0xff]
    %v2869 = vld [vmem:[#allocation4 + $0x1950] sm:$0xff]
    %v2870 = vld [vmem:[#allocation4 + $0x1958] sm:$0xff]
    %v2871 = vld [vmem:[#allocation4 + $0x1960] sm:$0xff]
    %v2872 = vld [vmem:[#allocation4 + $0x1968] sm:$0xff]
    %v2873 = vld [vmem:[#allocation4 + $0x1970] sm:$0xff]
    %v2874 = vld [vmem:[#allocation4 + $0x1978] sm:$0xff]
    %v2875 = vld [vmem:[#allocation4 + $0x1980] sm:$0xff]
    %v2876 = vld [vmem:[#allocation4 + $0x1988] sm:$0xff]
    %v2877 = vld [vmem:[#allocation4 + $0x1990] sm:$0xff]
    %v2878 = vld [vmem:[#allocation4 + $0x1998] sm:$0xff]
    %v2879 = vld [vmem:[#allocation4 + $0x19a0] sm:$0xff]
    %v2880 = vld [vmem:[#allocation4 + $0x19a8] sm:$0xff]
    %v2881 = vld [vmem:[#allocation4 + $0x19b0] sm:$0xff]
    %v2882 = vld [vmem:[#allocation4 + $0x19b8] sm:$0xff]
    %v2883 = vld [vmem:[#allocation4 + $0x19c0] sm:$0xff]
    %v2884 = vld [vmem:[#allocation4 + $0x19c8] sm:$0xff]
    %v2885 = vld [vmem:[#allocation4 + $0x19d0] sm:$0xff]
    %v2886 = vld [vmem:[#allocation4 + $0x19d8] sm:$0xff]
    %v2887 = vld [vmem:[#allocation4 + $0x19e0] sm:$0xff]
    %v2888 = vld [vmem:[#allocation4 + $0x19e8] sm:$0xff]
    %v2889 = vld [vmem:[#allocation4 + $0x19f0] sm:$0xff]
    %v2890 = vld [vmem:[#allocation4 + $0x19f8] sm:$0xff]
    %v2891 = vld [vmem:[#allocation4 + $0x1a00] sm:$0xff]
    %v2892 = vld [vmem:[#allocation4 + $0x1a08] sm:$0xff]
    %v2893 = vld [vmem:[#allocation4 + $0x1a10] sm:$0xff]
    %v2894 = vld [vmem:[#allocation4 + $0x1a18] sm:$0xff]
    %v2895 = vld [vmem:[#allocation4 + $0x1a20] sm:$0xff]
    %v2896 = vld [vmem:[#allocation4 + $0x1a28] sm:$0xff]
    %v2897 = vld [vmem:[#allocation4 + $0x1a30] sm:$0xff]
    %v2898 = vld [vmem:[#allocation4 + $0x1a38] sm:$0xff]
    %v2899 = vld [vmem:[#allocation4 + $0x1a40] sm:$0xff]
    %v2900 = vld [vmem:[#allocation4 + $0x1a48] sm:$0xff]
    %v2901 = vld [vmem:[#allocation4 + $0x1a50] sm:$0xff]
    %v2902 = vld [vmem:[#allocation4 + $0x1a58] sm:$0xff]
    %v2903 = vld [vmem:[#allocation4 + $0x1a60] sm:$0xff]
    %v2904 = vld [vmem:[#allocation4 + $0x1a68] sm:$0xff]
    %v2905 = vld [vmem:[#allocation4 + $0x1a70] sm:$0xff]
    %v2906 = vld [vmem:[#allocation4 + $0x1a78] sm:$0xff]
    %v2907 = vld [vmem:[#allocation4 + $0x1a80] sm:$0xff]
    %v2908 = vld [vmem:[#allocation4 + $0x1a88] sm:$0xff]
    %v2909 = vld [vmem:[#allocation4 + $0x1a90] sm:$0xff]
    %v2910 = vld [vmem:[#allocation4 + $0x1a98] sm:$0xff]
    %v2911 = vld [vmem:[#allocation4 + $0x1aa0] sm:$0xff]
    %v2912 = vld [vmem:[#allocation4 + $0x1aa8] sm:$0xff]
    %v2913 = vld [vmem:[#allocation4 + $0x1ab0] sm:$0xff]
    %v2914 = vld [vmem:[#allocation4 + $0x1ab8] sm:$0xff]
    %v2915 = vld [vmem:[#allocation4 + $0x1ac0] sm:$0xff]
    %v2916 = vld [vmem:[#allocation4 + $0x1ac8] sm:$0xff]
    %v2917 = vld [vmem:[#allocation4 + $0x1ad0] sm:$0xff]
    %v2918 = vld [vmem:[#allocation4 + $0x1ad8] sm:$0xff]
    %v2919 = vld [vmem:[#allocation4 + $0x1ae0] sm:$0xff]
    %v2920 = vld [vmem:[#allocation4 + $0x1ae8] sm:$0xff]
    %v2921 = vld [vmem:[#allocation4 + $0x1af0] sm:$0xff]
    %v2922 = vld [vmem:[#allocation4 + $0x1af8] sm:$0xff]
    %v2923 = vld [vmem:[#allocation4 + $0x1b00] sm:$0xff]
    %v2924 = vld [vmem:[#allocation4 + $0x1b08] sm:$0xff]
    %v2925 = vld [vmem:[#allocation4 + $0x1b10] sm:$0xff]
    %v2926 = vld [vmem:[#allocation4 + $0x1b18] sm:$0xff]
    %v2927 = vld [vmem:[#allocation4 + $0x1b20] sm:$0xff]
    %v2928 = vld [vmem:[#allocation4 + $0x1b28] sm:$0xff]
    %v2929 = vld [vmem:[#allocation4 + $0x1b30] sm:$0xff]
    %v2930 = vld [vmem:[#allocation4 + $0x1b38] sm:$0xff]
    %v2931 = vld [vmem:[#allocation4 + $0x1b40] sm:$0xff]
    %v2932 = vld [vmem:[#allocation4 + $0x1b48] sm:$0xff]
    %v2933 = vld [vmem:[#allocation4 + $0x1b50] sm:$0xff]
    %v2934 = vld [vmem:[#allocation4 + $0x1b58] sm:$0xff]
    %v2935 = vld [vmem:[#allocation4 + $0x1b60] sm:$0xff]
    %v2936 = vld [vmem:[#allocation4 + $0x1b68] sm:$0xff]
    %v2937 = vld [vmem:[#allocation4 + $0x1b70] sm:$0xff]
    %v2938 = vld [vmem:[#allocation4 + $0x1b78] sm:$0xff]
    %v2939 = vld [vmem:[#allocation4 + $0x1b80] sm:$0xff]
    %v2940 = vld [vmem:[#allocation4 + $0x1b88] sm:$0xff]
    %v2941 = vld [vmem:[#allocation4 + $0x1b90] sm:$0xff]
    %v2942 = vld [vmem:[#allocation4 + $0x1b98] sm:$0xff]
    %v2943 = vld [vmem:[#allocation4 + $0x1ba0] sm:$0xff]
    %v2944 = vld [vmem:[#allocation4 + $0x1ba8] sm:$0xff]
    %v2945 = vld [vmem:[#allocation4 + $0x1bb0] sm:$0xff]
    %v2946 = vld [vmem:[#allocation4 + $0x1bb8] sm:$0xff]
    %v2947 = vld [vmem:[#allocation4 + $0x1bc0] sm:$0xff]
    %v2948 = vld [vmem:[#allocation4 + $0x1bc8] sm:$0xff]
    %v2949 = vld [vmem:[#allocation4 + $0x1bd0] sm:$0xff]
    %v2950 = vld [vmem:[#allocation4 + $0x1bd8] sm:$0xff]
    %v2951 = vld [vmem:[#allocation4 + $0x1be0] sm:$0xff]
    %v2952 = vld [vmem:[#allocation4 + $0x1be8] sm:$0xff]
    %v2953 = vld [vmem:[#allocation4 + $0x1bf0] sm:$0xff]
    %v2954 = vld [vmem:[#allocation4 + $0x1bf8] sm:$0xff]
    %v2955 = vld [vmem:[#allocation4 + $0x1c00] sm:$0xff]
    %v2956 = vld [vmem:[#allocation4 + $0x1c08] sm:$0xff]
    %v2957 = vld [vmem:[#allocation4 + $0x1c10] sm:$0xff]
    %v2958 = vld [vmem:[#allocation4 + $0x1c18] sm:$0xff]
    %v2959 = vld [vmem:[#allocation4 + $0x1c20] sm:$0xff]
    %v2960 = vld [vmem:[#allocation4 + $0x1c28] sm:$0xff]
    %v2961 = vld [vmem:[#allocation4 + $0x1c30] sm:$0xff]
    %v2962 = vld [vmem:[#allocation4 + $0x1c38] sm:$0xff]
    %v2963 = vld [vmem:[#allocation4 + $0x1c40] sm:$0xff]
    %v2964 = vld [vmem:[#allocation4 + $0x1c48] sm:$0xff]
    %v2965 = vld [vmem:[#allocation4 + $0x1c50] sm:$0xff]
    %v2966 = vld [vmem:[#allocation4 + $0x1c58] sm:$0xff]
    %v2967 = vld [vmem:[#allocation4 + $0x1c60] sm:$0xff]
    %v2968 = vld [vmem:[#allocation4 + $0x1c68] sm:$0xff]
    %v2969 = vld [vmem:[#allocation4 + $0x1c70] sm:$0xff]
    %v2970 = vld [vmem:[#allocation4 + $0x1c78] sm:$0xff]
    %v2971 = vld [vmem:[#allocation4 + $0x1c80] sm:$0xff]
    %v2972 = vld [vmem:[#allocation4 + $0x1c88] sm:$0xff]
    %v2973 = vld [vmem:[#allocation4 + $0x1c90] sm:$0xff]
    %v2974 = vld [vmem:[#allocation4 + $0x1c98] sm:$0xff]
    %v2975 = vld [vmem:[#allocation4 + $0x1ca0] sm:$0xff]
    %v2976 = vld [vmem:[#allocation4 + $0x1ca8] sm:$0xff]
    %v2977 = vld [vmem:[#allocation4 + $0x1cb0] sm:$0xff]
    %v2978 = vld [vmem:[#allocation4 + $0x1cb8] sm:$0xff]
    %v2979 = vld [vmem:[#allocation4 + $0x1cc0] sm:$0xff]
    %v2980 = vld [vmem:[#allocation4 + $0x1cc8] sm:$0xff]
    %v2981 = vld [vmem:[#allocation4 + $0x1cd0] sm:$0xff]
    %v2982 = vld [vmem:[#allocation4 + $0x1cd8] sm:$0xff]
    %v2983 = vld [vmem:[#allocation4 + $0x1ce0] sm:$0xff]
    %v2984 = vld [vmem:[#allocation4 + $0x1ce8] sm:$0xff]
    %v2985 = vld [vmem:[#allocation4 + $0x1cf0] sm:$0xff]
    %v2986 = vld [vmem:[#allocation4 + $0x1cf8] sm:$0xff]
    %v2987 = vld [vmem:[#allocation4 + $0x1d00] sm:$0xff]
    %v2988 = vld [vmem:[#allocation4 + $0x1d08] sm:$0xff]
    %v2989 = vld [vmem:[#allocation4 + $0x1d10] sm:$0xff]
    %v2990 = vld [vmem:[#allocation4 + $0x1d18] sm:$0xff]
    %v2991 = vld [vmem:[#allocation4 + $0x1d20] sm:$0xff]
    %v2992 = vld [vmem:[#allocation4 + $0x1d28] sm:$0xff]
    %v2993 = vld [vmem:[#allocation4 + $0x1d30] sm:$0xff]
    %v2994 = vld [vmem:[#allocation4 + $0x1d38] sm:$0xff]
    %v2995 = vld [vmem:[#allocation4 + $0x1d40] sm:$0xff]
    %v2996 = vld [vmem:[#allocation4 + $0x1d48] sm:$0xff]
    %v2997 = vld [vmem:[#allocation4 + $0x1d50] sm:$0xff]
    %v2998 = vld [vmem:[#allocation4 + $0x1d58] sm:$0xff]
    %v2999 = vld [vmem:[#allocation4 + $0x1d60] sm:$0xff]
    %v3000 = vld [vmem:[#allocation4 + $0x1d68] sm:$0xff]
    %v3001 = vld [vmem:[#allocation4 + $0x1d70] sm:$0xff]
    %v3002 = vld [vmem:[#allocation4 + $0x1d78] sm:$0xff]
    %v3003 = vld [vmem:[#allocation4 + $0x1d80] sm:$0xff]
    %v3004 = vld [vmem:[#allocation4 + $0x1d88] sm:$0xff]
    %v3005 = vld [vmem:[#allocation4 + $0x1d90] sm:$0xff]
    %v3006 = vld [vmem:[#allocation4 + $0x1d98] sm:$0xff]
    %v3007 = vld [vmem:[#allocation4 + $0x1da0] sm:$0xff]
    %v3008 = vld [vmem:[#allocation4 + $0x1da8] sm:$0xff]
    %v3009 = vld [vmem:[#allocation4 + $0x1db0] sm:$0xff]
    %v3010 = vld [vmem:[#allocation4 + $0x1db8] sm:$0xff]
    %v3011 = vld [vmem:[#allocation4 + $0x1dc0] sm:$0xff]
    %v3012 = vld [vmem:[#allocation4 + $0x1dc8] sm:$0xff]
    %v3013 = vld [vmem:[#allocation4 + $0x1dd0] sm:$0xff]
    %v3014 = vld [vmem:[#allocation4 + $0x1dd8] sm:$0xff]
    %v3015 = vld [vmem:[#allocation4 + $0x1de0] sm:$0xff]
    %v3016 = vld [vmem:[#allocation4 + $0x1de8] sm:$0xff]
    %v3017 = vld [vmem:[#allocation4 + $0x1df0] sm:$0xff]
    %v3018 = vld [vmem:[#allocation4 + $0x1df8] sm:$0xff]
    %v3019 = vld [vmem:[#allocation4 + $0x1e00] sm:$0xff]
    %v3020 = vld [vmem:[#allocation4 + $0x1e08] sm:$0xff]
    %v3021 = vld [vmem:[#allocation4 + $0x1e10] sm:$0xff]
    %v3022 = vld [vmem:[#allocation4 + $0x1e18] sm:$0xff]
    %v3023 = vld [vmem:[#allocation4 + $0x1e20] sm:$0xff]
    %v3024 = vld [vmem:[#allocation4 + $0x1e28] sm:$0xff]
    %v3025 = vld [vmem:[#allocation4 + $0x1e30] sm:$0xff]
    %v3026 = vld [vmem:[#allocation4 + $0x1e38] sm:$0xff]
    %v3027 = vld [vmem:[#allocation4 + $0x1e40] sm:$0xff]
    %v3028 = vld [vmem:[#allocation4 + $0x1e48] sm:$0xff]
    %v3029 = vld [vmem:[#allocation4 + $0x1e50] sm:$0xff]
    %v3030 = vld [vmem:[#allocation4 + $0x1e58] sm:$0xff]
    %v3031 = vld [vmem:[#allocation4 + $0x1e60] sm:$0xff]
    %v3032 = vld [vmem:[#allocation4 + $0x1e68] sm:$0xff]
    %v3033 = vld [vmem:[#allocation4 + $0x1e70] sm:$0xff]
    %v3034 = vld [vmem:[#allocation4 + $0x1e78] sm:$0xff]
    %v3035 = vld [vmem:[#allocation4 + $0x1e80] sm:$0xff]
    %v3036 = vld [vmem:[#allocation4 + $0x1e88] sm:$0xff]
    %v3037 = vld [vmem:[#allocation4 + $0x1e90] sm:$0xff]
    %v3038 = vld [vmem:[#allocation4 + $0x1e98] sm:$0xff]
    %v3039 = vld [vmem:[#allocation4 + $0x1ea0] sm:$0xff]
    %v3040 = vld [vmem:[#allocation4 + $0x1ea8] sm:$0xff]
    %v3041 = vld [vmem:[#allocation4 + $0x1eb0] sm:$0xff]
    %v3042 = vld [vmem:[#allocation4 + $0x1eb8] sm:$0xff]
    %v3043 = vld [vmem:[#allocation4 + $0x1ec0] sm:$0xff]
    %v3044 = vld [vmem:[#allocation4 + $0x1ec8] sm:$0xff]
    %v3045 = vld [vmem:[#allocation4 + $0x1ed0] sm:$0xff]
    %v3046 = vld [vmem:[#allocation4 + $0x1ed8] sm:$0xff]
    %v3047 = vld [vmem:[#allocation4 + $0x1ee0] sm:$0xff]
    %v3048 = vld [vmem:[#allocation4 + $0x1ee8] sm:$0xff]
    %v3049 = vld [vmem:[#allocation4 + $0x1ef0] sm:$0xff]
    %v3050 = vld [vmem:[#allocation4 + $0x1ef8] sm:$0xff]
    %v3051 = vld [vmem:[#allocation4 + $0x1f00] sm:$0xff]
    %v3052 = vld [vmem:[#allocation4 + $0x1f08] sm:$0xff]
    %v3053 = vld [vmem:[#allocation4 + $0x1f10] sm:$0xff]
    %v3054 = vld [vmem:[#allocation4 + $0x1f18] sm:$0xff]
    %v3055 = vld [vmem:[#allocation4 + $0x1f20] sm:$0xff]
    %v3056 = vld [vmem:[#allocation4 + $0x1f28] sm:$0xff]
    %v3057 = vld [vmem:[#allocation4 + $0x1f30] sm:$0xff]
    %v3058 = vld [vmem:[#allocation4 + $0x1f38] sm:$0xff]
    %v3059 = vld [vmem:[#allocation4 + $0x1f40] sm:$0xff]
    %v3060 = vld [vmem:[#allocation4 + $0x1f48] sm:$0xff]
    %v3061 = vld [vmem:[#allocation4 + $0x1f50] sm:$0xff]
    %v3062 = vld [vmem:[#allocation4 + $0x1f58] sm:$0xff]
    %v3063 = vld [vmem:[#allocation4 + $0x1f60] sm:$0xff]
    %v3064 = vld [vmem:[#allocation4 + $0x1f68] sm:$0xff]
    %v3065 = vld [vmem:[#allocation4 + $0x1f70] sm:$0xff]
    %v3066 = vld [vmem:[#allocation4 + $0x1f78] sm:$0xff]
    %v3067 = vld [vmem:[#allocation4 + $0x1f80] sm:$0xff]
    %v3068 = vld [vmem:[#allocation4 + $0x1f88] sm:$0xff]
    %v3069 = vld [vmem:[#allocation4 + $0x1f90] sm:$0xff]
    %v3070 = vld [vmem:[#allocation4 + $0x1f98] sm:$0xff]
    %v3071 = vld [vmem:[#allocation4 + $0x1fa0] sm:$0xff]
    %v3072 = vld [vmem:[#allocation4 + $0x1fa8] sm:$0xff]
    %v3073 = vld [vmem:[#allocation4 + $0x1fb0] sm:$0xff]
    %v3074 = vld [vmem:[#allocation4 + $0x1fb8] sm:$0xff]
    %v3075 = vld [vmem:[#allocation4 + $0x1fc0] sm:$0xff]
    %v3076 = vld [vmem:[#allocation4 + $0x1fc8] sm:$0xff]
    %v3077 = vld [vmem:[#allocation4 + $0x1fd0] sm:$0xff]
    %v3078 = vld [vmem:[#allocation4 + $0x1fd8] sm:$0xff]
    %v3079 = vld [vmem:[#allocation4 + $0x1fe0] sm:$0xff]
    %v3080 = vld [vmem:[#allocation4 + $0x1fe8] sm:$0xff]
    %v3081 = vld [vmem:[#allocation4 + $0x1ff0] sm:$0xff]
    %v3082 = vld [vmem:[#allocation4 + $0x1ff8] sm:$0xff]
    %v4107 = vunpack.c.l.b16 %v2059
    %v4108 = vunpack.c.h.b16 %v2059
    %v4109 = vunpack.c.l.b16 %v2060
    %v4110 = vunpack.c.h.b16 %v2060
    %v4111 = vunpack.c.l.b16 %v2061
    %v4112 = vunpack.c.h.b16 %v2061
    %v4113 = vunpack.c.l.b16 %v2062
    %v4114 = vunpack.c.h.b16 %v2062
    %v4115 = vunpack.c.l.b16 %v2063
    %v4116 = vunpack.c.h.b16 %v2063
    %v4117 = vunpack.c.l.b16 %v2064
    %v4118 = vunpack.c.h.b16 %v2064
    %v4119 = vunpack.c.l.b16 %v2065
    %v4120 = vunpack.c.h.b16 %v2065
    %v4121 = vunpack.c.l.b16 %v2066
    %v4122 = vunpack.c.h.b16 %v2066
    %v4123 = vunpack.c.l.b16 %v2067
    %v4124 = vunpack.c.h.b16 %v2067
    %v4125 = vunpack.c.l.b16 %v2068
    %v4126 = vunpack.c.h.b16 %v2068
    %v4127 = vunpack.c.l.b16 %v2069
    %v4128 = vunpack.c.h.b16 %v2069
    %v4129 = vunpack.c.l.b16 %v2070
    %v4130 = vunpack.c.h.b16 %v2070
    %v4131 = vunpack.c.l.b16 %v2071
    %v4132 = vunpack.c.h.b16 %v2071
    %v4133 = vunpack.c.l.b16 %v2072
    %v4134 = vunpack.c.h.b16 %v2072
    %v4135 = vunpack.c.l.b16 %v2073
    %v4136 = vunpack.c.h.b16 %v2073
    %v4137 = vunpack.c.l.b16 %v2074
    %v4138 = vunpack.c.h.b16 %v2074
    %v4139 = vunpack.c.l.b16 %v2075
    %v4140 = vunpack.c.h.b16 %v2075
    %v4141 = vunpack.c.l.b16 %v2076
    %v4142 = vunpack.c.h.b16 %v2076
    %v4143 = vunpack.c.l.b16 %v2077
    %v4144 = vunpack.c.h.b16 %v2077
    %v4145 = vunpack.c.l.b16 %v2078
    %v4146 = vunpack.c.h.b16 %v2078
    %v4147 = vunpack.c.l.b16 %v2079
    %v4148 = vunpack.c.h.b16 %v2079
    %v4149 = vunpack.c.l.b16 %v2080
    %v4150 = vunpack.c.h.b16 %v2080
    %v4151 = vunpack.c.l.b16 %v2081
    %v4152 = vunpack.c.h.b16 %v2081
    %v4153 = vunpack.c.l.b16 %v2082
    %v4154 = vunpack.c.h.b16 %v2082
    %v4155 = vunpack.c.l.b16 %v2083
    %v4156 = vunpack.c.h.b16 %v2083
    %v4157 = vunpack.c.l.b16 %v2084
    %v4158 = vunpack.c.h.b16 %v2084
    %v4159 = vunpack.c.l.b16 %v2085
    %v4160 = vunpack.c.h.b16 %v2085
    %v4161 = vunpack.c.l.b16 %v2086
    %v4162 = vunpack.c.h.b16 %v2086
    %v4163 = vunpack.c.l.b16 %v2087
    %v4164 = vunpack.c.h.b16 %v2087
    %v4165 = vunpack.c.l.b16 %v2088
    %v4166 = vunpack.c.h.b16 %v2088
    %v4167 = vunpack.c.l.b16 %v2089
    %v4168 = vunpack.c.h.b16 %v2089
    %v4169 = vunpack.c.l.b16 %v2090
    %v4170 = vunpack.c.h.b16 %v2090
    %v4171 = vunpack.c.l.b16 %v2091
    %v4172 = vunpack.c.h.b16 %v2091
    %v4173 = vunpack.c.l.b16 %v2092
    %v4174 = vunpack.c.h.b16 %v2092
    %v4175 = vunpack.c.l.b16 %v2093
    %v4176 = vunpack.c.h.b16 %v2093
    %v4177 = vunpack.c.l.b16 %v2094
    %v4178 = vunpack.c.h.b16 %v2094
    %v4179 = vunpack.c.l.b16 %v2095
    %v4180 = vunpack.c.h.b16 %v2095
    %v4181 = vunpack.c.l.b16 %v2096
    %v4182 = vunpack.c.h.b16 %v2096
    %v4183 = vunpack.c.l.b16 %v2097
    %v4184 = vunpack.c.h.b16 %v2097
    %v4185 = vunpack.c.l.b16 %v2098
    %v4186 = vunpack.c.h.b16 %v2098
    %v4187 = vunpack.c.l.b16 %v2099
    %v4188 = vunpack.c.h.b16 %v2099
    %v4189 = vunpack.c.l.b16 %v2100
    %v4190 = vunpack.c.h.b16 %v2100
    %v4191 = vunpack.c.l.b16 %v2101
    %v4192 = vunpack.c.h.b16 %v2101
    %v4193 = vunpack.c.l.b16 %v2102
    %v4194 = vunpack.c.h.b16 %v2102
    %v4195 = vunpack.c.l.b16 %v2103
    %v4196 = vunpack.c.h.b16 %v2103
    %v4197 = vunpack.c.l.b16 %v2104
    %v4198 = vunpack.c.h.b16 %v2104
    %v4199 = vunpack.c.l.b16 %v2105
    %v4200 = vunpack.c.h.b16 %v2105
    %v4201 = vunpack.c.l.b16 %v2106
    %v4202 = vunpack.c.h.b16 %v2106
    %v4203 = vunpack.c.l.b16 %v2107
    %v4204 = vunpack.c.h.b16 %v2107
    %v4205 = vunpack.c.l.b16 %v2108
    %v4206 = vunpack.c.h.b16 %v2108
    %v4207 = vunpack.c.l.b16 %v2109
    %v4208 = vunpack.c.h.b16 %v2109
    %v4209 = vunpack.c.l.b16 %v2110
    %v4210 = vunpack.c.h.b16 %v2110
    %v4211 = vunpack.c.l.b16 %v2111
    %v4212 = vunpack.c.h.b16 %v2111
    %v4213 = vunpack.c.l.b16 %v2112
    %v4214 = vunpack.c.h.b16 %v2112
    %v4215 = vunpack.c.l.b16 %v2113
    %v4216 = vunpack.c.h.b16 %v2113
    %v4217 = vunpack.c.l.b16 %v2114
    %v4218 = vunpack.c.h.b16 %v2114
    %v4219 = vunpack.c.l.b16 %v2115
    %v4220 = vunpack.c.h.b16 %v2115
    %v4221 = vunpack.c.l.b16 %v2116
    %v4222 = vunpack.c.h.b16 %v2116
    %v4223 = vunpack.c.l.b16 %v2117
    %v4224 = vunpack.c.h.b16 %v2117
    %v4225 = vunpack.c.l.b16 %v2118
    %v4226 = vunpack.c.h.b16 %v2118
    %v4227 = vunpack.c.l.b16 %v2119
    %v4228 = vunpack.c.h.b16 %v2119
    %v4229 = vunpack.c.l.b16 %v2120
    %v4230 = vunpack.c.h.b16 %v2120
    %v4231 = vunpack.c.l.b16 %v2121
    %v4232 = vunpack.c.h.b16 %v2121
    %v4233 = vunpack.c.l.b16 %v2122
    %v4234 = vunpack.c.h.b16 %v2122
    %v4235 = vunpack.c.l.b16 %v2123
    %v4236 = vunpack.c.h.b16 %v2123
    %v4237 = vunpack.c.l.b16 %v2124
    %v4238 = vunpack.c.h.b16 %v2124
    %v4239 = vunpack.c.l.b16 %v2125
    %v4240 = vunpack.c.h.b16 %v2125
    %v4241 = vunpack.c.l.b16 %v2126
    %v4242 = vunpack.c.h.b16 %v2126
    %v4243 = vunpack.c.l.b16 %v2127
    %v4244 = vunpack.c.h.b16 %v2127
    %v4245 = vunpack.c.l.b16 %v2128
    %v4246 = vunpack.c.h.b16 %v2128
    %v4247 = vunpack.c.l.b16 %v2129
    %v4248 = vunpack.c.h.b16 %v2129
    %v4249 = vunpack.c.l.b16 %v2130
    %v4250 = vunpack.c.h.b16 %v2130
    %v4251 = vunpack.c.l.b16 %v2131
    %v4252 = vunpack.c.h.b16 %v2131
    %v4253 = vunpack.c.l.b16 %v2132
    %v4254 = vunpack.c.h.b16 %v2132
    %v4255 = vunpack.c.l.b16 %v2133
    %v4256 = vunpack.c.h.b16 %v2133
    %v4257 = vunpack.c.l.b16 %v2134
    %v4258 = vunpack.c.h.b16 %v2134
    %v4259 = vunpack.c.l.b16 %v2135
    %v4260 = vunpack.c.h.b16 %v2135
    %v4261 = vunpack.c.l.b16 %v2136
    %v4262 = vunpack.c.h.b16 %v2136
    %v4263 = vunpack.c.l.b16 %v2137
    %v4264 = vunpack.c.h.b16 %v2137
    %v4265 = vunpack.c.l.b16 %v2138
    %v4266 = vunpack.c.h.b16 %v2138
    %v4267 = vunpack.c.l.b16 %v2139
    %v4268 = vunpack.c.h.b16 %v2139
    %v4269 = vunpack.c.l.b16 %v2140
    %v4270 = vunpack.c.h.b16 %v2140
    %v4271 = vunpack.c.l.b16 %v2141
    %v4272 = vunpack.c.h.b16 %v2141
    %v4273 = vunpack.c.l.b16 %v2142
    %v4274 = vunpack.c.h.b16 %v2142
    %v4275 = vunpack.c.l.b16 %v2143
    %v4276 = vunpack.c.h.b16 %v2143
    %v4277 = vunpack.c.l.b16 %v2144
    %v4278 = vunpack.c.h.b16 %v2144
    %v4279 = vunpack.c.l.b16 %v2145
    %v4280 = vunpack.c.h.b16 %v2145
    %v4281 = vunpack.c.l.b16 %v2146
    %v4282 = vunpack.c.h.b16 %v2146
    %v4283 = vunpack.c.l.b16 %v2147
    %v4284 = vunpack.c.h.b16 %v2147
    %v4285 = vunpack.c.l.b16 %v2148
    %v4286 = vunpack.c.h.b16 %v2148
    %v4287 = vunpack.c.l.b16 %v2149
    %v4288 = vunpack.c.h.b16 %v2149
    %v4289 = vunpack.c.l.b16 %v2150
    %v4290 = vunpack.c.h.b16 %v2150
    %v4291 = vunpack.c.l.b16 %v2151
    %v4292 = vunpack.c.h.b16 %v2151
    %v4293 = vunpack.c.l.b16 %v2152
    %v4294 = vunpack.c.h.b16 %v2152
    %v4295 = vunpack.c.l.b16 %v2153
    %v4296 = vunpack.c.h.b16 %v2153
    %v4297 = vunpack.c.l.b16 %v2154
    %v4298 = vunpack.c.h.b16 %v2154
    %v4299 = vunpack.c.l.b16 %v2155
    %v4300 = vunpack.c.h.b16 %v2155
    %v4301 = vunpack.c.l.b16 %v2156
    %v4302 = vunpack.c.h.b16 %v2156
    %v4303 = vunpack.c.l.b16 %v2157
    %v4304 = vunpack.c.h.b16 %v2157
    %v4305 = vunpack.c.l.b16 %v2158
    %v4306 = vunpack.c.h.b16 %v2158
    %v4307 = vunpack.c.l.b16 %v2159
    %v4308 = vunpack.c.h.b16 %v2159
    %v4309 = vunpack.c.l.b16 %v2160
    %v4310 = vunpack.c.h.b16 %v2160
    %v4311 = vunpack.c.l.b16 %v2161
    %v4312 = vunpack.c.h.b16 %v2161
    %v4313 = vunpack.c.l.b16 %v2162
    %v4314 = vunpack.c.h.b16 %v2162
    %v4315 = vunpack.c.l.b16 %v2163
    %v4316 = vunpack.c.h.b16 %v2163
    %v4317 = vunpack.c.l.b16 %v2164
    %v4318 = vunpack.c.h.b16 %v2164
    %v4319 = vunpack.c.l.b16 %v2165
    %v4320 = vunpack.c.h.b16 %v2165
    %v4321 = vunpack.c.l.b16 %v2166
    %v4322 = vunpack.c.h.b16 %v2166
    %v4323 = vunpack.c.l.b16 %v2167
    %v4324 = vunpack.c.h.b16 %v2167
    %v4325 = vunpack.c.l.b16 %v2168
    %v4326 = vunpack.c.h.b16 %v2168
    %v4327 = vunpack.c.l.b16 %v2169
    %v4328 = vunpack.c.h.b16 %v2169
    %v4329 = vunpack.c.l.b16 %v2170
    %v4330 = vunpack.c.h.b16 %v2170
    %v4331 = vunpack.c.l.b16 %v2171
    %v4332 = vunpack.c.h.b16 %v2171
    %v4333 = vunpack.c.l.b16 %v2172
    %v4334 = vunpack.c.h.b16 %v2172
    %v4335 = vunpack.c.l.b16 %v2173
    %v4336 = vunpack.c.h.b16 %v2173
    %v4337 = vunpack.c.l.b16 %v2174
    %v4338 = vunpack.c.h.b16 %v2174
    %v4339 = vunpack.c.l.b16 %v2175
    %v4340 = vunpack.c.h.b16 %v2175
    %v4341 = vunpack.c.l.b16 %v2176
    %v4342 = vunpack.c.h.b16 %v2176
    %v4343 = vunpack.c.l.b16 %v2177
    %v4344 = vunpack.c.h.b16 %v2177
    %v4345 = vunpack.c.l.b16 %v2178
    %v4346 = vunpack.c.h.b16 %v2178
    %v4347 = vunpack.c.l.b16 %v2179
    %v4348 = vunpack.c.h.b16 %v2179
    %v4349 = vunpack.c.l.b16 %v2180
    %v4350 = vunpack.c.h.b16 %v2180
    %v4351 = vunpack.c.l.b16 %v2181
    %v4352 = vunpack.c.h.b16 %v2181
    %v4353 = vunpack.c.l.b16 %v2182
    %v4354 = vunpack.c.h.b16 %v2182
    %v4355 = vunpack.c.l.b16 %v2183
    %v4356 = vunpack.c.h.b16 %v2183
    %v4357 = vunpack.c.l.b16 %v2184
    %v4358 = vunpack.c.h.b16 %v2184
    %v4359 = vunpack.c.l.b16 %v2185
    %v4360 = vunpack.c.h.b16 %v2185
    %v4361 = vunpack.c.l.b16 %v2186
    %v4362 = vunpack.c.h.b16 %v2186
    %v4363 = vunpack.c.l.b16 %v2187
    %v4364 = vunpack.c.h.b16 %v2187
    %v4365 = vunpack.c.l.b16 %v2188
    %v4366 = vunpack.c.h.b16 %v2188
    %v4367 = vunpack.c.l.b16 %v2189
    %v4368 = vunpack.c.h.b16 %v2189
    %v4369 = vunpack.c.l.b16 %v2190
    %v4370 = vunpack.c.h.b16 %v2190
    %v4371 = vunpack.c.l.b16 %v2191
    %v4372 = vunpack.c.h.b16 %v2191
    %v4373 = vunpack.c.l.b16 %v2192
    %v4374 = vunpack.c.h.b16 %v2192
    %v4375 = vunpack.c.l.b16 %v2193
    %v4376 = vunpack.c.h.b16 %v2193
    %v4377 = vunpack.c.l.b16 %v2194
    %v4378 = vunpack.c.h.b16 %v2194
    %v4379 = vunpack.c.l.b16 %v2195
    %v4380 = vunpack.c.h.b16 %v2195
    %v4381 = vunpack.c.l.b16 %v2196
    %v4382 = vunpack.c.h.b16 %v2196
    %v4383 = vunpack.c.l.b16 %v2197
    %v4384 = vunpack.c.h.b16 %v2197
    %v4385 = vunpack.c.l.b16 %v2198
    %v4386 = vunpack.c.h.b16 %v2198
    %v4387 = vunpack.c.l.b16 %v2199
    %v4388 = vunpack.c.h.b16 %v2199
    %v4389 = vunpack.c.l.b16 %v2200
    %v4390 = vunpack.c.h.b16 %v2200
    %v4391 = vunpack.c.l.b16 %v2201
    %v4392 = vunpack.c.h.b16 %v2201
    %v4393 = vunpack.c.l.b16 %v2202
    %v4394 = vunpack.c.h.b16 %v2202
    %v4395 = vunpack.c.l.b16 %v2203
    %v4396 = vunpack.c.h.b16 %v2203
    %v4397 = vunpack.c.l.b16 %v2204
    %v4398 = vunpack.c.h.b16 %v2204
    %v4399 = vunpack.c.l.b16 %v2205
    %v4400 = vunpack.c.h.b16 %v2205
    %v4401 = vunpack.c.l.b16 %v2206
    %v4402 = vunpack.c.h.b16 %v2206
    %v4403 = vunpack.c.l.b16 %v2207
    %v4404 = vunpack.c.h.b16 %v2207
    %v4405 = vunpack.c.l.b16 %v2208
    %v4406 = vunpack.c.h.b16 %v2208
    %v4407 = vunpack.c.l.b16 %v2209
    %v4408 = vunpack.c.h.b16 %v2209
    %v4409 = vunpack.c.l.b16 %v2210
    %v4410 = vunpack.c.h.b16 %v2210
    %v4411 = vunpack.c.l.b16 %v2211
    %v4412 = vunpack.c.h.b16 %v2211
    %v4413 = vunpack.c.l.b16 %v2212
    %v4414 = vunpack.c.h.b16 %v2212
    %v4415 = vunpack.c.l.b16 %v2213
    %v4416 = vunpack.c.h.b16 %v2213
    %v4417 = vunpack.c.l.b16 %v2214
    %v4418 = vunpack.c.h.b16 %v2214
    %v4419 = vunpack.c.l.b16 %v2215
    %v4420 = vunpack.c.h.b16 %v2215
    %v4421 = vunpack.c.l.b16 %v2216
    %v4422 = vunpack.c.h.b16 %v2216
    %v4423 = vunpack.c.l.b16 %v2217
    %v4424 = vunpack.c.h.b16 %v2217
    %v4425 = vunpack.c.l.b16 %v2218
    %v4426 = vunpack.c.h.b16 %v2218
    %v4427 = vunpack.c.l.b16 %v2219
    %v4428 = vunpack.c.h.b16 %v2219
    %v4429 = vunpack.c.l.b16 %v2220
    %v4430 = vunpack.c.h.b16 %v2220
    %v4431 = vunpack.c.l.b16 %v2221
    %v4432 = vunpack.c.h.b16 %v2221
    %v4433 = vunpack.c.l.b16 %v2222
    %v4434 = vunpack.c.h.b16 %v2222
    %v4435 = vunpack.c.l.b16 %v2223
    %v4436 = vunpack.c.h.b16 %v2223
    %v4437 = vunpack.c.l.b16 %v2224
    %v4438 = vunpack.c.h.b16 %v2224
    %v4439 = vunpack.c.l.b16 %v2225
    %v4440 = vunpack.c.h.b16 %v2225
    %v4441 = vunpack.c.l.b16 %v2226
    %v4442 = vunpack.c.h.b16 %v2226
    %v4443 = vunpack.c.l.b16 %v2227
    %v4444 = vunpack.c.h.b16 %v2227
    %v4445 = vunpack.c.l.b16 %v2228
    %v4446 = vunpack.c.h.b16 %v2228
    %v4447 = vunpack.c.l.b16 %v2229
    %v4448 = vunpack.c.h.b16 %v2229
    %v4449 = vunpack.c.l.b16 %v2230
    %v4450 = vunpack.c.h.b16 %v2230
    %v4451 = vunpack.c.l.b16 %v2231
    %v4452 = vunpack.c.h.b16 %v2231
    %v4453 = vunpack.c.l.b16 %v2232
    %v4454 = vunpack.c.h.b16 %v2232
    %v4455 = vunpack.c.l.b16 %v2233
    %v4456 = vunpack.c.h.b16 %v2233
    %v4457 = vunpack.c.l.b16 %v2234
    %v4458 = vunpack.c.h.b16 %v2234
    %v4459 = vunpack.c.l.b16 %v2235
    %v4460 = vunpack.c.h.b16 %v2235
    %v4461 = vunpack.c.l.b16 %v2236
    %v4462 = vunpack.c.h.b16 %v2236
    %v4463 = vunpack.c.l.b16 %v2237
    %v4464 = vunpack.c.h.b16 %v2237
    %v4465 = vunpack.c.l.b16 %v2238
    %v4466 = vunpack.c.h.b16 %v2238
    %v4467 = vunpack.c.l.b16 %v2239
    %v4468 = vunpack.c.h.b16 %v2239
    %v4469 = vunpack.c.l.b16 %v2240
    %v4470 = vunpack.c.h.b16 %v2240
    %v4471 = vunpack.c.l.b16 %v2241
    %v4472 = vunpack.c.h.b16 %v2241
    %v4473 = vunpack.c.l.b16 %v2242
    %v4474 = vunpack.c.h.b16 %v2242
    %v4475 = vunpack.c.l.b16 %v2243
    %v4476 = vunpack.c.h.b16 %v2243
    %v4477 = vunpack.c.l.b16 %v2244
    %v4478 = vunpack.c.h.b16 %v2244
    %v4479 = vunpack.c.l.b16 %v2245
    %v4480 = vunpack.c.h.b16 %v2245
    %v4481 = vunpack.c.l.b16 %v2246
    %v4482 = vunpack.c.h.b16 %v2246
    %v4483 = vunpack.c.l.b16 %v2247
    %v4484 = vunpack.c.h.b16 %v2247
    %v4485 = vunpack.c.l.b16 %v2248
    %v4486 = vunpack.c.h.b16 %v2248
    %v4487 = vunpack.c.l.b16 %v2249
    %v4488 = vunpack.c.h.b16 %v2249
    %v4489 = vunpack.c.l.b16 %v2250
    %v4490 = vunpack.c.h.b16 %v2250
    %v4491 = vunpack.c.l.b16 %v2251
    %v4492 = vunpack.c.h.b16 %v2251
    %v4493 = vunpack.c.l.b16 %v2252
    %v4494 = vunpack.c.h.b16 %v2252
    %v4495 = vunpack.c.l.b16 %v2253
    %v4496 = vunpack.c.h.b16 %v2253
    %v4497 = vunpack.c.l.b16 %v2254
    %v4498 = vunpack.c.h.b16 %v2254
    %v4499 = vunpack.c.l.b16 %v2255
    %v4500 = vunpack.c.h.b16 %v2255
    %v4501 = vunpack.c.l.b16 %v2256
    %v4502 = vunpack.c.h.b16 %v2256
    %v4503 = vunpack.c.l.b16 %v2257
    %v4504 = vunpack.c.h.b16 %v2257
    %v4505 = vunpack.c.l.b16 %v2258
    %v4506 = vunpack.c.h.b16 %v2258
    %v4507 = vunpack.c.l.b16 %v2259
    %v4508 = vunpack.c.h.b16 %v2259
    %v4509 = vunpack.c.l.b16 %v2260
    %v4510 = vunpack.c.h.b16 %v2260
    %v4511 = vunpack.c.l.b16 %v2261
    %v4512 = vunpack.c.h.b16 %v2261
    %v4513 = vunpack.c.l.b16 %v2262
    %v4514 = vunpack.c.h.b16 %v2262
    %v4515 = vunpack.c.l.b16 %v2263
    %v4516 = vunpack.c.h.b16 %v2263
    %v4517 = vunpack.c.l.b16 %v2264
    %v4518 = vunpack.c.h.b16 %v2264
    %v4519 = vunpack.c.l.b16 %v2265
    %v4520 = vunpack.c.h.b16 %v2265
    %v4521 = vunpack.c.l.b16 %v2266
    %v4522 = vunpack.c.h.b16 %v2266
    %v4523 = vunpack.c.l.b16 %v2267
    %v4524 = vunpack.c.h.b16 %v2267
    %v4525 = vunpack.c.l.b16 %v2268
    %v4526 = vunpack.c.h.b16 %v2268
    %v4527 = vunpack.c.l.b16 %v2269
    %v4528 = vunpack.c.h.b16 %v2269
    %v4529 = vunpack.c.l.b16 %v2270
    %v4530 = vunpack.c.h.b16 %v2270
    %v4531 = vunpack.c.l.b16 %v2271
    %v4532 = vunpack.c.h.b16 %v2271
    %v4533 = vunpack.c.l.b16 %v2272
    %v4534 = vunpack.c.h.b16 %v2272
    %v4535 = vunpack.c.l.b16 %v2273
    %v4536 = vunpack.c.h.b16 %v2273
    %v4537 = vunpack.c.l.b16 %v2274
    %v4538 = vunpack.c.h.b16 %v2274
    %v4539 = vunpack.c.l.b16 %v2275
    %v4540 = vunpack.c.h.b16 %v2275
    %v4541 = vunpack.c.l.b16 %v2276
    %v4542 = vunpack.c.h.b16 %v2276
    %v4543 = vunpack.c.l.b16 %v2277
    %v4544 = vunpack.c.h.b16 %v2277
    %v4545 = vunpack.c.l.b16 %v2278
    %v4546 = vunpack.c.h.b16 %v2278
    %v4547 = vunpack.c.l.b16 %v2279
    %v4548 = vunpack.c.h.b16 %v2279
    %v4549 = vunpack.c.l.b16 %v2280
    %v4550 = vunpack.c.h.b16 %v2280
    %v4551 = vunpack.c.l.b16 %v2281
    %v4552 = vunpack.c.h.b16 %v2281
    %v4553 = vunpack.c.l.b16 %v2282
    %v4554 = vunpack.c.h.b16 %v2282
    %v4555 = vunpack.c.l.b16 %v2283
    %v4556 = vunpack.c.h.b16 %v2283
    %v4557 = vunpack.c.l.b16 %v2284
    %v4558 = vunpack.c.h.b16 %v2284
    %v4559 = vunpack.c.l.b16 %v2285
    %v4560 = vunpack.c.h.b16 %v2285
    %v4561 = vunpack.c.l.b16 %v2286
    %v4562 = vunpack.c.h.b16 %v2286
    %v4563 = vunpack.c.l.b16 %v2287
    %v4564 = vunpack.c.h.b16 %v2287
    %v4565 = vunpack.c.l.b16 %v2288
    %v4566 = vunpack.c.h.b16 %v2288
    %v4567 = vunpack.c.l.b16 %v2289
    %v4568 = vunpack.c.h.b16 %v2289
    %v4569 = vunpack.c.l.b16 %v2290
    %v4570 = vunpack.c.h.b16 %v2290
    %v4571 = vunpack.c.l.b16 %v2291
    %v4572 = vunpack.c.h.b16 %v2291
    %v4573 = vunpack.c.l.b16 %v2292
    %v4574 = vunpack.c.h.b16 %v2292
    %v4575 = vunpack.c.l.b16 %v2293
    %v4576 = vunpack.c.h.b16 %v2293
    %v4577 = vunpack.c.l.b16 %v2294
    %v4578 = vunpack.c.h.b16 %v2294
    %v4579 = vunpack.c.l.b16 %v2295
    %v4580 = vunpack.c.h.b16 %v2295
    %v4581 = vunpack.c.l.b16 %v2296
    %v4582 = vunpack.c.h.b16 %v2296
    %v4583 = vunpack.c.l.b16 %v2297
    %v4584 = vunpack.c.h.b16 %v2297
    %v4585 = vunpack.c.l.b16 %v2298
    %v4586 = vunpack.c.h.b16 %v2298
    %v4587 = vunpack.c.l.b16 %v2299
    %v4588 = vunpack.c.h.b16 %v2299
    %v4589 = vunpack.c.l.b16 %v2300
    %v4590 = vunpack.c.h.b16 %v2300
    %v4591 = vunpack.c.l.b16 %v2301
    %v4592 = vunpack.c.h.b16 %v2301
    %v4593 = vunpack.c.l.b16 %v2302
    %v4594 = vunpack.c.h.b16 %v2302
    %v4595 = vunpack.c.l.b16 %v2303
    %v4596 = vunpack.c.h.b16 %v2303
    %v4597 = vunpack.c.l.b16 %v2304
    %v4598 = vunpack.c.h.b16 %v2304
    %v4599 = vunpack.c.l.b16 %v2305
    %v4600 = vunpack.c.h.b16 %v2305
    %v4601 = vunpack.c.l.b16 %v2306
    %v4602 = vunpack.c.h.b16 %v2306
    %v4603 = vunpack.c.l.b16 %v2307
    %v4604 = vunpack.c.h.b16 %v2307
    %v4605 = vunpack.c.l.b16 %v2308
    %v4606 = vunpack.c.h.b16 %v2308
    %v4607 = vunpack.c.l.b16 %v2309
    %v4608 = vunpack.c.h.b16 %v2309
    %v4609 = vunpack.c.l.b16 %v2310
    %v4610 = vunpack.c.h.b16 %v2310
    %v4611 = vunpack.c.l.b16 %v2311
    %v4612 = vunpack.c.h.b16 %v2311
    %v4613 = vunpack.c.l.b16 %v2312
    %v4614 = vunpack.c.h.b16 %v2312
    %v4615 = vunpack.c.l.b16 %v2313
    %v4616 = vunpack.c.h.b16 %v2313
    %v4617 = vunpack.c.l.b16 %v2314
    %v4618 = vunpack.c.h.b16 %v2314
    %v4619 = vunpack.c.l.b16 %v2315
    %v4620 = vunpack.c.h.b16 %v2315
    %v4621 = vunpack.c.l.b16 %v2316
    %v4622 = vunpack.c.h.b16 %v2316
    %v4623 = vunpack.c.l.b16 %v2317
    %v4624 = vunpack.c.h.b16 %v2317
    %v4625 = vunpack.c.l.b16 %v2318
    %v4626 = vunpack.c.h.b16 %v2318
    %v4627 = vunpack.c.l.b16 %v2319
    %v4628 = vunpack.c.h.b16 %v2319
    %v4629 = vunpack.c.l.b16 %v2320
    %v4630 = vunpack.c.h.b16 %v2320
    %v4631 = vunpack.c.l.b16 %v2321
    %v4632 = vunpack.c.h.b16 %v2321
    %v4633 = vunpack.c.l.b16 %v2322
    %v4634 = vunpack.c.h.b16 %v2322
    %v4635 = vunpack.c.l.b16 %v2323
    %v4636 = vunpack.c.h.b16 %v2323
    %v4637 = vunpack.c.l.b16 %v2324
    %v4638 = vunpack.c.h.b16 %v2324
    %v4639 = vunpack.c.l.b16 %v2325
    %v4640 = vunpack.c.h.b16 %v2325
    %v4641 = vunpack.c.l.b16 %v2326
    %v4642 = vunpack.c.h.b16 %v2326
    %v4643 = vunpack.c.l.b16 %v2327
    %v4644 = vunpack.c.h.b16 %v2327
    %v4645 = vunpack.c.l.b16 %v2328
    %v4646 = vunpack.c.h.b16 %v2328
    %v4647 = vunpack.c.l.b16 %v2329
    %v4648 = vunpack.c.h.b16 %v2329
    %v4649 = vunpack.c.l.b16 %v2330
    %v4650 = vunpack.c.h.b16 %v2330
    %v4651 = vunpack.c.l.b16 %v2331
    %v4652 = vunpack.c.h.b16 %v2331
    %v4653 = vunpack.c.l.b16 %v2332
    %v4654 = vunpack.c.h.b16 %v2332
    %v4655 = vunpack.c.l.b16 %v2333
    %v4656 = vunpack.c.h.b16 %v2333
    %v4657 = vunpack.c.l.b16 %v2334
    %v4658 = vunpack.c.h.b16 %v2334
    %v4659 = vunpack.c.l.b16 %v2335
    %v4660 = vunpack.c.h.b16 %v2335
    %v4661 = vunpack.c.l.b16 %v2336
    %v4662 = vunpack.c.h.b16 %v2336
    %v4663 = vunpack.c.l.b16 %v2337
    %v4664 = vunpack.c.h.b16 %v2337
    %v4665 = vunpack.c.l.b16 %v2338
    %v4666 = vunpack.c.h.b16 %v2338
    %v4667 = vunpack.c.l.b16 %v2339
    %v4668 = vunpack.c.h.b16 %v2339
    %v4669 = vunpack.c.l.b16 %v2340
    %v4670 = vunpack.c.h.b16 %v2340
    %v4671 = vunpack.c.l.b16 %v2341
    %v4672 = vunpack.c.h.b16 %v2341
    %v4673 = vunpack.c.l.b16 %v2342
    %v4674 = vunpack.c.h.b16 %v2342
    %v4675 = vunpack.c.l.b16 %v2343
    %v4676 = vunpack.c.h.b16 %v2343
    %v4677 = vunpack.c.l.b16 %v2344
    %v4678 = vunpack.c.h.b16 %v2344
    %v4679 = vunpack.c.l.b16 %v2345
    %v4680 = vunpack.c.h.b16 %v2345
    %v4681 = vunpack.c.l.b16 %v2346
    %v4682 = vunpack.c.h.b16 %v2346
    %v4683 = vunpack.c.l.b16 %v2347
    %v4684 = vunpack.c.h.b16 %v2347
    %v4685 = vunpack.c.l.b16 %v2348
    %v4686 = vunpack.c.h.b16 %v2348
    %v4687 = vunpack.c.l.b16 %v2349
    %v4688 = vunpack.c.h.b16 %v2349
    %v4689 = vunpack.c.l.b16 %v2350
    %v4690 = vunpack.c.h.b16 %v2350
    %v4691 = vunpack.c.l.b16 %v2351
    %v4692 = vunpack.c.h.b16 %v2351
    %v4693 = vunpack.c.l.b16 %v2352
    %v4694 = vunpack.c.h.b16 %v2352
    %v4695 = vunpack.c.l.b16 %v2353
    %v4696 = vunpack.c.h.b16 %v2353
    %v4697 = vunpack.c.l.b16 %v2354
    %v4698 = vunpack.c.h.b16 %v2354
    %v4699 = vunpack.c.l.b16 %v2355
    %v4700 = vunpack.c.h.b16 %v2355
    %v4701 = vunpack.c.l.b16 %v2356
    %v4702 = vunpack.c.h.b16 %v2356
    %v4703 = vunpack.c.l.b16 %v2357
    %v4704 = vunpack.c.h.b16 %v2357
    %v4705 = vunpack.c.l.b16 %v2358
    %v4706 = vunpack.c.h.b16 %v2358
    %v4707 = vunpack.c.l.b16 %v2359
    %v4708 = vunpack.c.h.b16 %v2359
    %v4709 = vunpack.c.l.b16 %v2360
    %v4710 = vunpack.c.h.b16 %v2360
    %v4711 = vunpack.c.l.b16 %v2361
    %v4712 = vunpack.c.h.b16 %v2361
    %v4713 = vunpack.c.l.b16 %v2362
    %v4714 = vunpack.c.h.b16 %v2362
    %v4715 = vunpack.c.l.b16 %v2363
    %v4716 = vunpack.c.h.b16 %v2363
    %v4717 = vunpack.c.l.b16 %v2364
    %v4718 = vunpack.c.h.b16 %v2364
    %v4719 = vunpack.c.l.b16 %v2365
    %v4720 = vunpack.c.h.b16 %v2365
    %v4721 = vunpack.c.l.b16 %v2366
    %v4722 = vunpack.c.h.b16 %v2366
    %v4723 = vunpack.c.l.b16 %v2367
    %v4724 = vunpack.c.h.b16 %v2367
    %v4725 = vunpack.c.l.b16 %v2368
    %v4726 = vunpack.c.h.b16 %v2368
    %v4727 = vunpack.c.l.b16 %v2369
    %v4728 = vunpack.c.h.b16 %v2369
    %v4729 = vunpack.c.l.b16 %v2370
    %v4730 = vunpack.c.h.b16 %v2370
    %v4731 = vunpack.c.l.b16 %v2371
    %v4732 = vunpack.c.h.b16 %v2371
    %v4733 = vunpack.c.l.b16 %v2372
    %v4734 = vunpack.c.h.b16 %v2372
    %v4735 = vunpack.c.l.b16 %v2373
    %v4736 = vunpack.c.h.b16 %v2373
    %v4737 = vunpack.c.l.b16 %v2374
    %v4738 = vunpack.c.h.b16 %v2374
    %v4739 = vunpack.c.l.b16 %v2375
    %v4740 = vunpack.c.h.b16 %v2375
    %v4741 = vunpack.c.l.b16 %v2376
    %v4742 = vunpack.c.h.b16 %v2376
    %v4743 = vunpack.c.l.b16 %v2377
    %v4744 = vunpack.c.h.b16 %v2377
    %v4745 = vunpack.c.l.b16 %v2378
    %v4746 = vunpack.c.h.b16 %v2378
    %v4747 = vunpack.c.l.b16 %v2379
    %v4748 = vunpack.c.h.b16 %v2379
    %v4749 = vunpack.c.l.b16 %v2380
    %v4750 = vunpack.c.h.b16 %v2380
    %v4751 = vunpack.c.l.b16 %v2381
    %v4752 = vunpack.c.h.b16 %v2381
    %v4753 = vunpack.c.l.b16 %v2382
    %v4754 = vunpack.c.h.b16 %v2382
    %v4755 = vunpack.c.l.b16 %v2383
    %v4756 = vunpack.c.h.b16 %v2383
    %v4757 = vunpack.c.l.b16 %v2384
    %v4758 = vunpack.c.h.b16 %v2384
    %v4759 = vunpack.c.l.b16 %v2385
    %v4760 = vunpack.c.h.b16 %v2385
    %v4761 = vunpack.c.l.b16 %v2386
    %v4762 = vunpack.c.h.b16 %v2386
    %v4763 = vunpack.c.l.b16 %v2387
    %v4764 = vunpack.c.h.b16 %v2387
    %v4765 = vunpack.c.l.b16 %v2388
    %v4766 = vunpack.c.h.b16 %v2388
    %v4767 = vunpack.c.l.b16 %v2389
    %v4768 = vunpack.c.h.b16 %v2389
    %v4769 = vunpack.c.l.b16 %v2390
    %v4770 = vunpack.c.h.b16 %v2390
    %v4771 = vunpack.c.l.b16 %v2391
    %v4772 = vunpack.c.h.b16 %v2391
    %v4773 = vunpack.c.l.b16 %v2392
    %v4774 = vunpack.c.h.b16 %v2392
    %v4775 = vunpack.c.l.b16 %v2393
    %v4776 = vunpack.c.h.b16 %v2393
    %v4777 = vunpack.c.l.b16 %v2394
    %v4778 = vunpack.c.h.b16 %v2394
    %v4779 = vunpack.c.l.b16 %v2395
    %v4780 = vunpack.c.h.b16 %v2395
    %v4781 = vunpack.c.l.b16 %v2396
    %v4782 = vunpack.c.h.b16 %v2396
    %v4783 = vunpack.c.l.b16 %v2397
    %v4784 = vunpack.c.h.b16 %v2397
    %v4785 = vunpack.c.l.b16 %v2398
    %v4786 = vunpack.c.h.b16 %v2398
    %v4787 = vunpack.c.l.b16 %v2399
    %v4788 = vunpack.c.h.b16 %v2399
    %v4789 = vunpack.c.l.b16 %v2400
    %v4790 = vunpack.c.h.b16 %v2400
    %v4791 = vunpack.c.l.b16 %v2401
    %v4792 = vunpack.c.h.b16 %v2401
    %v4793 = vunpack.c.l.b16 %v2402
    %v4794 = vunpack.c.h.b16 %v2402
    %v4795 = vunpack.c.l.b16 %v2403
    %v4796 = vunpack.c.h.b16 %v2403
    %v4797 = vunpack.c.l.b16 %v2404
    %v4798 = vunpack.c.h.b16 %v2404
    %v4799 = vunpack.c.l.b16 %v2405
    %v4800 = vunpack.c.h.b16 %v2405
    %v4801 = vunpack.c.l.b16 %v2406
    %v4802 = vunpack.c.h.b16 %v2406
    %v4803 = vunpack.c.l.b16 %v2407
    %v4804 = vunpack.c.h.b16 %v2407
    %v4805 = vunpack.c.l.b16 %v2408
    %v4806 = vunpack.c.h.b16 %v2408
    %v4807 = vunpack.c.l.b16 %v2409
    %v4808 = vunpack.c.h.b16 %v2409
    %v4809 = vunpack.c.l.b16 %v2410
    %v4810 = vunpack.c.h.b16 %v2410
    %v4811 = vunpack.c.l.b16 %v2411
    %v4812 = vunpack.c.h.b16 %v2411
    %v4813 = vunpack.c.l.b16 %v2412
    %v4814 = vunpack.c.h.b16 %v2412
    %v4815 = vunpack.c.l.b16 %v2413
    %v4816 = vunpack.c.h.b16 %v2413
    %v4817 = vunpack.c.l.b16 %v2414
    %v4818 = vunpack.c.h.b16 %v2414
    %v4819 = vunpack.c.l.b16 %v2415
    %v4820 = vunpack.c.h.b16 %v2415
    %v4821 = vunpack.c.l.b16 %v2416
    %v4822 = vunpack.c.h.b16 %v2416
    %v4823 = vunpack.c.l.b16 %v2417
    %v4824 = vunpack.c.h.b16 %v2417
    %v4825 = vunpack.c.l.b16 %v2418
    %v4826 = vunpack.c.h.b16 %v2418
    %v4827 = vunpack.c.l.b16 %v2419
    %v4828 = vunpack.c.h.b16 %v2419
    %v4829 = vunpack.c.l.b16 %v2420
    %v4830 = vunpack.c.h.b16 %v2420
    %v4831 = vunpack.c.l.b16 %v2421
    %v4832 = vunpack.c.h.b16 %v2421
    %v4833 = vunpack.c.l.b16 %v2422
    %v4834 = vunpack.c.h.b16 %v2422
    %v4835 = vunpack.c.l.b16 %v2423
    %v4836 = vunpack.c.h.b16 %v2423
    %v4837 = vunpack.c.l.b16 %v2424
    %v4838 = vunpack.c.h.b16 %v2424
    %v4839 = vunpack.c.l.b16 %v2425
    %v4840 = vunpack.c.h.b16 %v2425
    %v4841 = vunpack.c.l.b16 %v2426
    %v4842 = vunpack.c.h.b16 %v2426
    %v4843 = vunpack.c.l.b16 %v2427
    %v4844 = vunpack.c.h.b16 %v2427
    %v4845 = vunpack.c.l.b16 %v2428
    %v4846 = vunpack.c.h.b16 %v2428
    %v4847 = vunpack.c.l.b16 %v2429
    %v4848 = vunpack.c.h.b16 %v2429
    %v4849 = vunpack.c.l.b16 %v2430
    %v4850 = vunpack.c.h.b16 %v2430
    %v4851 = vunpack.c.l.b16 %v2431
    %v4852 = vunpack.c.h.b16 %v2431
    %v4853 = vunpack.c.l.b16 %v2432
    %v4854 = vunpack.c.h.b16 %v2432
    %v4855 = vunpack.c.l.b16 %v2433
    %v4856 = vunpack.c.h.b16 %v2433
    %v4857 = vunpack.c.l.b16 %v2434
    %v4858 = vunpack.c.h.b16 %v2434
    %v4859 = vunpack.c.l.b16 %v2435
    %v4860 = vunpack.c.h.b16 %v2435
    %v4861 = vunpack.c.l.b16 %v2436
    %v4862 = vunpack.c.h.b16 %v2436
    %v4863 = vunpack.c.l.b16 %v2437
    %v4864 = vunpack.c.h.b16 %v2437
    %v4865 = vunpack.c.l.b16 %v2438
    %v4866 = vunpack.c.h.b16 %v2438
    %v4867 = vunpack.c.l.b16 %v2439
    %v4868 = vunpack.c.h.b16 %v2439
    %v4869 = vunpack.c.l.b16 %v2440
    %v4870 = vunpack.c.h.b16 %v2440
    %v4871 = vunpack.c.l.b16 %v2441
    %v4872 = vunpack.c.h.b16 %v2441
    %v4873 = vunpack.c.l.b16 %v2442
    %v4874 = vunpack.c.h.b16 %v2442
    %v4875 = vunpack.c.l.b16 %v2443
    %v4876 = vunpack.c.h.b16 %v2443
    %v4877 = vunpack.c.l.b16 %v2444
    %v4878 = vunpack.c.h.b16 %v2444
    %v4879 = vunpack.c.l.b16 %v2445
    %v4880 = vunpack.c.h.b16 %v2445
    %v4881 = vunpack.c.l.b16 %v2446
    %v4882 = vunpack.c.h.b16 %v2446
    %v4883 = vunpack.c.l.b16 %v2447
    %v4884 = vunpack.c.h.b16 %v2447
    %v4885 = vunpack.c.l.b16 %v2448
    %v4886 = vunpack.c.h.b16 %v2448
    %v4887 = vunpack.c.l.b16 %v2449
    %v4888 = vunpack.c.h.b16 %v2449
    %v4889 = vunpack.c.l.b16 %v2450
    %v4890 = vunpack.c.h.b16 %v2450
    %v4891 = vunpack.c.l.b16 %v2451
    %v4892 = vunpack.c.h.b16 %v2451
    %v4893 = vunpack.c.l.b16 %v2452
    %v4894 = vunpack.c.h.b16 %v2452
    %v4895 = vunpack.c.l.b16 %v2453
    %v4896 = vunpack.c.h.b16 %v2453
    %v4897 = vunpack.c.l.b16 %v2454
    %v4898 = vunpack.c.h.b16 %v2454
    %v4899 = vunpack.c.l.b16 %v2455
    %v4900 = vunpack.c.h.b16 %v2455
    %v4901 = vunpack.c.l.b16 %v2456
    %v4902 = vunpack.c.h.b16 %v2456
    %v4903 = vunpack.c.l.b16 %v2457
    %v4904 = vunpack.c.h.b16 %v2457
    %v4905 = vunpack.c.l.b16 %v2458
    %v4906 = vunpack.c.h.b16 %v2458
    %v4907 = vunpack.c.l.b16 %v2459
    %v4908 = vunpack.c.h.b16 %v2459
    %v4909 = vunpack.c.l.b16 %v2460
    %v4910 = vunpack.c.h.b16 %v2460
    %v4911 = vunpack.c.l.b16 %v2461
    %v4912 = vunpack.c.h.b16 %v2461
    %v4913 = vunpack.c.l.b16 %v2462
    %v4914 = vunpack.c.h.b16 %v2462
    %v4915 = vunpack.c.l.b16 %v2463
    %v4916 = vunpack.c.h.b16 %v2463
    %v4917 = vunpack.c.l.b16 %v2464
    %v4918 = vunpack.c.h.b16 %v2464
    %v4919 = vunpack.c.l.b16 %v2465
    %v4920 = vunpack.c.h.b16 %v2465
    %v4921 = vunpack.c.l.b16 %v2466
    %v4922 = vunpack.c.h.b16 %v2466
    %v4923 = vunpack.c.l.b16 %v2467
    %v4924 = vunpack.c.h.b16 %v2467
    %v4925 = vunpack.c.l.b16 %v2468
    %v4926 = vunpack.c.h.b16 %v2468
    %v4927 = vunpack.c.l.b16 %v2469
    %v4928 = vunpack.c.h.b16 %v2469
    %v4929 = vunpack.c.l.b16 %v2470
    %v4930 = vunpack.c.h.b16 %v2470
    %v4931 = vunpack.c.l.b16 %v2471
    %v4932 = vunpack.c.h.b16 %v2471
    %v4933 = vunpack.c.l.b16 %v2472
    %v4934 = vunpack.c.h.b16 %v2472
    %v4935 = vunpack.c.l.b16 %v2473
    %v4936 = vunpack.c.h.b16 %v2473
    %v4937 = vunpack.c.l.b16 %v2474
    %v4938 = vunpack.c.h.b16 %v2474
    %v4939 = vunpack.c.l.b16 %v2475
    %v4940 = vunpack.c.h.b16 %v2475
    %v4941 = vunpack.c.l.b16 %v2476
    %v4942 = vunpack.c.h.b16 %v2476
    %v4943 = vunpack.c.l.b16 %v2477
    %v4944 = vunpack.c.h.b16 %v2477
    %v4945 = vunpack.c.l.b16 %v2478
    %v4946 = vunpack.c.h.b16 %v2478
    %v4947 = vunpack.c.l.b16 %v2479
    %v4948 = vunpack.c.h.b16 %v2479
    %v4949 = vunpack.c.l.b16 %v2480
    %v4950 = vunpack.c.h.b16 %v2480
    %v4951 = vunpack.c.l.b16 %v2481
    %v4952 = vunpack.c.h.b16 %v2481
    %v4953 = vunpack.c.l.b16 %v2482
    %v4954 = vunpack.c.h.b16 %v2482
    %v4955 = vunpack.c.l.b16 %v2483
    %v4956 = vunpack.c.h.b16 %v2483
    %v4957 = vunpack.c.l.b16 %v2484
    %v4958 = vunpack.c.h.b16 %v2484
    %v4959 = vunpack.c.l.b16 %v2485
    %v4960 = vunpack.c.h.b16 %v2485
    %v4961 = vunpack.c.l.b16 %v2486
    %v4962 = vunpack.c.h.b16 %v2486
    %v4963 = vunpack.c.l.b16 %v2487
    %v4964 = vunpack.c.h.b16 %v2487
    %v4965 = vunpack.c.l.b16 %v2488
    %v4966 = vunpack.c.h.b16 %v2488
    %v4967 = vunpack.c.l.b16 %v2489
    %v4968 = vunpack.c.h.b16 %v2489
    %v4969 = vunpack.c.l.b16 %v2490
    %v4970 = vunpack.c.h.b16 %v2490
    %v4971 = vunpack.c.l.b16 %v2491
    %v4972 = vunpack.c.h.b16 %v2491
    %v4973 = vunpack.c.l.b16 %v2492
    %v4974 = vunpack.c.h.b16 %v2492
    %v4975 = vunpack.c.l.b16 %v2493
    %v4976 = vunpack.c.h.b16 %v2493
    %v4977 = vunpack.c.l.b16 %v2494
    %v4978 = vunpack.c.h.b16 %v2494
    %v4979 = vunpack.c.l.b16 %v2495
    %v4980 = vunpack.c.h.b16 %v2495
    %v4981 = vunpack.c.l.b16 %v2496
    %v4982 = vunpack.c.h.b16 %v2496
    %v4983 = vunpack.c.l.b16 %v2497
    %v4984 = vunpack.c.h.b16 %v2497
    %v4985 = vunpack.c.l.b16 %v2498
    %v4986 = vunpack.c.h.b16 %v2498
    %v4987 = vunpack.c.l.b16 %v2499
    %v4988 = vunpack.c.h.b16 %v2499
    %v4989 = vunpack.c.l.b16 %v2500
    %v4990 = vunpack.c.h.b16 %v2500
    %v4991 = vunpack.c.l.b16 %v2501
    %v4992 = vunpack.c.h.b16 %v2501
    %v4993 = vunpack.c.l.b16 %v2502
    %v4994 = vunpack.c.h.b16 %v2502
    %v4995 = vunpack.c.l.b16 %v2503
    %v4996 = vunpack.c.h.b16 %v2503
    %v4997 = vunpack.c.l.b16 %v2504
    %v4998 = vunpack.c.h.b16 %v2504
    %v4999 = vunpack.c.l.b16 %v2505
    %v5000 = vunpack.c.h.b16 %v2505
    %v5001 = vunpack.c.l.b16 %v2506
    %v5002 = vunpack.c.h.b16 %v2506
    %v5003 = vunpack.c.l.b16 %v2507
    %v5004 = vunpack.c.h.b16 %v2507
    %v5005 = vunpack.c.l.b16 %v2508
    %v5006 = vunpack.c.h.b16 %v2508
    %v5007 = vunpack.c.l.b16 %v2509
    %v5008 = vunpack.c.h.b16 %v2509
    %v5009 = vunpack.c.l.b16 %v2510
    %v5010 = vunpack.c.h.b16 %v2510
    %v5011 = vunpack.c.l.b16 %v2511
    %v5012 = vunpack.c.h.b16 %v2511
    %v5013 = vunpack.c.l.b16 %v2512
    %v5014 = vunpack.c.h.b16 %v2512
    %v5015 = vunpack.c.l.b16 %v2513
    %v5016 = vunpack.c.h.b16 %v2513
    %v5017 = vunpack.c.l.b16 %v2514
    %v5018 = vunpack.c.h.b16 %v2514
    %v5019 = vunpack.c.l.b16 %v2515
    %v5020 = vunpack.c.h.b16 %v2515
    %v5021 = vunpack.c.l.b16 %v2516
    %v5022 = vunpack.c.h.b16 %v2516
    %v5023 = vunpack.c.l.b16 %v2517
    %v5024 = vunpack.c.h.b16 %v2517
    %v5025 = vunpack.c.l.b16 %v2518
    %v5026 = vunpack.c.h.b16 %v2518
    %v5027 = vunpack.c.l.b16 %v2519
    %v5028 = vunpack.c.h.b16 %v2519
    %v5029 = vunpack.c.l.b16 %v2520
    %v5030 = vunpack.c.h.b16 %v2520
    %v5031 = vunpack.c.l.b16 %v2521
    %v5032 = vunpack.c.h.b16 %v2521
    %v5033 = vunpack.c.l.b16 %v2522
    %v5034 = vunpack.c.h.b16 %v2522
    %v5035 = vunpack.c.l.b16 %v2523
    %v5036 = vunpack.c.h.b16 %v2523
    %v5037 = vunpack.c.l.b16 %v2524
    %v5038 = vunpack.c.h.b16 %v2524
    %v5039 = vunpack.c.l.b16 %v2525
    %v5040 = vunpack.c.h.b16 %v2525
    %v5041 = vunpack.c.l.b16 %v2526
    %v5042 = vunpack.c.h.b16 %v2526
    %v5043 = vunpack.c.l.b16 %v2527
    %v5044 = vunpack.c.h.b16 %v2527
    %v5045 = vunpack.c.l.b16 %v2528
    %v5046 = vunpack.c.h.b16 %v2528
    %v5047 = vunpack.c.l.b16 %v2529
    %v5048 = vunpack.c.h.b16 %v2529
    %v5049 = vunpack.c.l.b16 %v2530
    %v5050 = vunpack.c.h.b16 %v2530
    %v5051 = vunpack.c.l.b16 %v2531
    %v5052 = vunpack.c.h.b16 %v2531
    %v5053 = vunpack.c.l.b16 %v2532
    %v5054 = vunpack.c.h.b16 %v2532
    %v5055 = vunpack.c.l.b16 %v2533
    %v5056 = vunpack.c.h.b16 %v2533
    %v5057 = vunpack.c.l.b16 %v2534
    %v5058 = vunpack.c.h.b16 %v2534
    %v5059 = vunpack.c.l.b16 %v2535
    %v5060 = vunpack.c.h.b16 %v2535
    %v5061 = vunpack.c.l.b16 %v2536
    %v5062 = vunpack.c.h.b16 %v2536
    %v5063 = vunpack.c.l.b16 %v2537
    %v5064 = vunpack.c.h.b16 %v2537
    %v5065 = vunpack.c.l.b16 %v2538
    %v5066 = vunpack.c.h.b16 %v2538
    %v5067 = vunpack.c.l.b16 %v2539
    %v5068 = vunpack.c.h.b16 %v2539
    %v5069 = vunpack.c.l.b16 %v2540
    %v5070 = vunpack.c.h.b16 %v2540
    %v5071 = vunpack.c.l.b16 %v2541
    %v5072 = vunpack.c.h.b16 %v2541
    %v5073 = vunpack.c.l.b16 %v2542
    %v5074 = vunpack.c.h.b16 %v2542
    %v5075 = vunpack.c.l.b16 %v2543
    %v5076 = vunpack.c.h.b16 %v2543
    %v5077 = vunpack.c.l.b16 %v2544
    %v5078 = vunpack.c.h.b16 %v2544
    %v5079 = vunpack.c.l.b16 %v2545
    %v5080 = vunpack.c.h.b16 %v2545
    %v5081 = vunpack.c.l.b16 %v2546
    %v5082 = vunpack.c.h.b16 %v2546
    %v5083 = vunpack.c.l.b16 %v2547
    %v5084 = vunpack.c.h.b16 %v2547
    %v5085 = vunpack.c.l.b16 %v2548
    %v5086 = vunpack.c.h.b16 %v2548
    %v5087 = vunpack.c.l.b16 %v2549
    %v5088 = vunpack.c.h.b16 %v2549
    %v5089 = vunpack.c.l.b16 %v2550
    %v5090 = vunpack.c.h.b16 %v2550
    %v5091 = vunpack.c.l.b16 %v2551
    %v5092 = vunpack.c.h.b16 %v2551
    %v5093 = vunpack.c.l.b16 %v2552
    %v5094 = vunpack.c.h.b16 %v2552
    %v5095 = vunpack.c.l.b16 %v2553
    %v5096 = vunpack.c.h.b16 %v2553
    %v5097 = vunpack.c.l.b16 %v2554
    %v5098 = vunpack.c.h.b16 %v2554
    %v5099 = vunpack.c.l.b16 %v2555
    %v5100 = vunpack.c.h.b16 %v2555
    %v5101 = vunpack.c.l.b16 %v2556
    %v5102 = vunpack.c.h.b16 %v2556
    %v5103 = vunpack.c.l.b16 %v2557
    %v5104 = vunpack.c.h.b16 %v2557
    %v5105 = vunpack.c.l.b16 %v2558
    %v5106 = vunpack.c.h.b16 %v2558
    %v5107 = vunpack.c.l.b16 %v2559
    %v5108 = vunpack.c.h.b16 %v2559
    %v5109 = vunpack.c.l.b16 %v2560
    %v5110 = vunpack.c.h.b16 %v2560
    %v5111 = vunpack.c.l.b16 %v2561
    %v5112 = vunpack.c.h.b16 %v2561
    %v5113 = vunpack.c.l.b16 %v2562
    %v5114 = vunpack.c.h.b16 %v2562
    %v5115 = vunpack.c.l.b16 %v2563
    %v5116 = vunpack.c.h.b16 %v2563
    %v5117 = vunpack.c.l.b16 %v2564
    %v5118 = vunpack.c.h.b16 %v2564
    %v5119 = vunpack.c.l.b16 %v2565
    %v5120 = vunpack.c.h.b16 %v2565
    %v5121 = vunpack.c.l.b16 %v2566
    %v5122 = vunpack.c.h.b16 %v2566
    %v5123 = vunpack.c.l.b16 %v2567
    %v5124 = vunpack.c.h.b16 %v2567
    %v5125 = vunpack.c.l.b16 %v2568
    %v5126 = vunpack.c.h.b16 %v2568
    %v5127 = vunpack.c.l.b16 %v2569
    %v5128 = vunpack.c.h.b16 %v2569
    %v5129 = vunpack.c.l.b16 %v2570
    %v5130 = vunpack.c.h.b16 %v2570
    %v5131 = vunpack.c.l.b16 %v2571
    %v5132 = vunpack.c.h.b16 %v2571
    %v5133 = vunpack.c.l.b16 %v2572
    %v5134 = vunpack.c.h.b16 %v2572
    %v5135 = vunpack.c.l.b16 %v2573
    %v5136 = vunpack.c.h.b16 %v2573
    %v5137 = vunpack.c.l.b16 %v2574
    %v5138 = vunpack.c.h.b16 %v2574
    %v5139 = vunpack.c.l.b16 %v2575
    %v5140 = vunpack.c.h.b16 %v2575
    %v5141 = vunpack.c.l.b16 %v2576
    %v5142 = vunpack.c.h.b16 %v2576
    %v5143 = vunpack.c.l.b16 %v2577
    %v5144 = vunpack.c.h.b16 %v2577
    %v5145 = vunpack.c.l.b16 %v2578
    %v5146 = vunpack.c.h.b16 %v2578
    %v5147 = vunpack.c.l.b16 %v2579
    %v5148 = vunpack.c.h.b16 %v2579
    %v5149 = vunpack.c.l.b16 %v2580
    %v5150 = vunpack.c.h.b16 %v2580
    %v5151 = vunpack.c.l.b16 %v2581
    %v5152 = vunpack.c.h.b16 %v2581
    %v5153 = vunpack.c.l.b16 %v2582
    %v5154 = vunpack.c.h.b16 %v2582
    %v5155 = vunpack.c.l.b16 %v2583
    %v5156 = vunpack.c.h.b16 %v2583
    %v5157 = vunpack.c.l.b16 %v2584
    %v5158 = vunpack.c.h.b16 %v2584
    %v5159 = vunpack.c.l.b16 %v2585
    %v5160 = vunpack.c.h.b16 %v2585
    %v5161 = vunpack.c.l.b16 %v2586
    %v5162 = vunpack.c.h.b16 %v2586
    %v5163 = vunpack.c.l.b16 %v2587
    %v5164 = vunpack.c.h.b16 %v2587
    %v5165 = vunpack.c.l.b16 %v2588
    %v5166 = vunpack.c.h.b16 %v2588
    %v5167 = vunpack.c.l.b16 %v2589
    %v5168 = vunpack.c.h.b16 %v2589
    %v5169 = vunpack.c.l.b16 %v2590
    %v5170 = vunpack.c.h.b16 %v2590
    %v5171 = vunpack.c.l.b16 %v2591
    %v5172 = vunpack.c.h.b16 %v2591
    %v5173 = vunpack.c.l.b16 %v2592
    %v5174 = vunpack.c.h.b16 %v2592
    %v5175 = vunpack.c.l.b16 %v2593
    %v5176 = vunpack.c.h.b16 %v2593
    %v5177 = vunpack.c.l.b16 %v2594
    %v5178 = vunpack.c.h.b16 %v2594
    %v5179 = vunpack.c.l.b16 %v2595
    %v5180 = vunpack.c.h.b16 %v2595
    %v5181 = vunpack.c.l.b16 %v2596
    %v5182 = vunpack.c.h.b16 %v2596
    %v5183 = vunpack.c.l.b16 %v2597
    %v5184 = vunpack.c.h.b16 %v2597
    %v5185 = vunpack.c.l.b16 %v2598
    %v5186 = vunpack.c.h.b16 %v2598
    %v5187 = vunpack.c.l.b16 %v2599
    %v5188 = vunpack.c.h.b16 %v2599
    %v5189 = vunpack.c.l.b16 %v2600
    %v5190 = vunpack.c.h.b16 %v2600
    %v5191 = vunpack.c.l.b16 %v2601
    %v5192 = vunpack.c.h.b16 %v2601
    %v5193 = vunpack.c.l.b16 %v2602
    %v5194 = vunpack.c.h.b16 %v2602
    %v5195 = vunpack.c.l.b16 %v2603
    %v5196 = vunpack.c.h.b16 %v2603
    %v5197 = vunpack.c.l.b16 %v2604
    %v5198 = vunpack.c.h.b16 %v2604
    %v5199 = vunpack.c.l.b16 %v2605
    %v5200 = vunpack.c.h.b16 %v2605
    %v5201 = vunpack.c.l.b16 %v2606
    %v5202 = vunpack.c.h.b16 %v2606
    %v5203 = vunpack.c.l.b16 %v2607
    %v5204 = vunpack.c.h.b16 %v2607
    %v5205 = vunpack.c.l.b16 %v2608
    %v5206 = vunpack.c.h.b16 %v2608
    %v5207 = vunpack.c.l.b16 %v2609
    %v5208 = vunpack.c.h.b16 %v2609
    %v5209 = vunpack.c.l.b16 %v2610
    %v5210 = vunpack.c.h.b16 %v2610
    %v5211 = vunpack.c.l.b16 %v2611
    %v5212 = vunpack.c.h.b16 %v2611
    %v5213 = vunpack.c.l.b16 %v2612
    %v5214 = vunpack.c.h.b16 %v2612
    %v5215 = vunpack.c.l.b16 %v2613
    %v5216 = vunpack.c.h.b16 %v2613
    %v5217 = vunpack.c.l.b16 %v2614
    %v5218 = vunpack.c.h.b16 %v2614
    %v5219 = vunpack.c.l.b16 %v2615
    %v5220 = vunpack.c.h.b16 %v2615
    %v5221 = vunpack.c.l.b16 %v2616
    %v5222 = vunpack.c.h.b16 %v2616
    %v5223 = vunpack.c.l.b16 %v2617
    %v5224 = vunpack.c.h.b16 %v2617
    %v5225 = vunpack.c.l.b16 %v2618
    %v5226 = vunpack.c.h.b16 %v2618
    %v5227 = vunpack.c.l.b16 %v2619
    %v5228 = vunpack.c.h.b16 %v2619
    %v5229 = vunpack.c.l.b16 %v2620
    %v5230 = vunpack.c.h.b16 %v2620
    %v5231 = vunpack.c.l.b16 %v2621
    %v5232 = vunpack.c.h.b16 %v2621
    %v5233 = vunpack.c.l.b16 %v2622
    %v5234 = vunpack.c.h.b16 %v2622
    %v5235 = vunpack.c.l.b16 %v2623
    %v5236 = vunpack.c.h.b16 %v2623
    %v5237 = vunpack.c.l.b16 %v2624
    %v5238 = vunpack.c.h.b16 %v2624
    %v5239 = vunpack.c.l.b16 %v2625
    %v5240 = vunpack.c.h.b16 %v2625
    %v5241 = vunpack.c.l.b16 %v2626
    %v5242 = vunpack.c.h.b16 %v2626
    %v5243 = vunpack.c.l.b16 %v2627
    %v5244 = vunpack.c.h.b16 %v2627
    %v5245 = vunpack.c.l.b16 %v2628
    %v5246 = vunpack.c.h.b16 %v2628
    %v5247 = vunpack.c.l.b16 %v2629
    %v5248 = vunpack.c.h.b16 %v2629
    %v5249 = vunpack.c.l.b16 %v2630
    %v5250 = vunpack.c.h.b16 %v2630
    %v5251 = vunpack.c.l.b16 %v2631
    %v5252 = vunpack.c.h.b16 %v2631
    %v5253 = vunpack.c.l.b16 %v2632
    %v5254 = vunpack.c.h.b16 %v2632
    %v5255 = vunpack.c.l.b16 %v2633
    %v5256 = vunpack.c.h.b16 %v2633
    %v5257 = vunpack.c.l.b16 %v2634
    %v5258 = vunpack.c.h.b16 %v2634
    %v5259 = vunpack.c.l.b16 %v2635
    %v5260 = vunpack.c.h.b16 %v2635
    %v5261 = vunpack.c.l.b16 %v2636
    %v5262 = vunpack.c.h.b16 %v2636
    %v5263 = vunpack.c.l.b16 %v2637
    %v5264 = vunpack.c.h.b16 %v2637
    %v5265 = vunpack.c.l.b16 %v2638
    %v5266 = vunpack.c.h.b16 %v2638
    %v5267 = vunpack.c.l.b16 %v2639
    %v5268 = vunpack.c.h.b16 %v2639
    %v5269 = vunpack.c.l.b16 %v2640
    %v5270 = vunpack.c.h.b16 %v2640
    %v5271 = vunpack.c.l.b16 %v2641
    %v5272 = vunpack.c.h.b16 %v2641
    %v5273 = vunpack.c.l.b16 %v2642
    %v5274 = vunpack.c.h.b16 %v2642
    %v5275 = vunpack.c.l.b16 %v2643
    %v5276 = vunpack.c.h.b16 %v2643
    %v5277 = vunpack.c.l.b16 %v2644
    %v5278 = vunpack.c.h.b16 %v2644
    %v5279 = vunpack.c.l.b16 %v2645
    %v5280 = vunpack.c.h.b16 %v2645
    %v5281 = vunpack.c.l.b16 %v2646
    %v5282 = vunpack.c.h.b16 %v2646
    %v5283 = vunpack.c.l.b16 %v2647
    %v5284 = vunpack.c.h.b16 %v2647
    %v5285 = vunpack.c.l.b16 %v2648
    %v5286 = vunpack.c.h.b16 %v2648
    %v5287 = vunpack.c.l.b16 %v2649
    %v5288 = vunpack.c.h.b16 %v2649
    %v5289 = vunpack.c.l.b16 %v2650
    %v5290 = vunpack.c.h.b16 %v2650
    %v5291 = vunpack.c.l.b16 %v2651
    %v5292 = vunpack.c.h.b16 %v2651
    %v5293 = vunpack.c.l.b16 %v2652
    %v5294 = vunpack.c.h.b16 %v2652
    %v5295 = vunpack.c.l.b16 %v2653
    %v5296 = vunpack.c.h.b16 %v2653
    %v5297 = vunpack.c.l.b16 %v2654
    %v5298 = vunpack.c.h.b16 %v2654
    %v5299 = vunpack.c.l.b16 %v2655
    %v5300 = vunpack.c.h.b16 %v2655
    %v5301 = vunpack.c.l.b16 %v2656
    %v5302 = vunpack.c.h.b16 %v2656
    %v5303 = vunpack.c.l.b16 %v2657
    %v5304 = vunpack.c.h.b16 %v2657
    %v5305 = vunpack.c.l.b16 %v2658
    %v5306 = vunpack.c.h.b16 %v2658
    %v5307 = vunpack.c.l.b16 %v2659
    %v5308 = vunpack.c.h.b16 %v2659
    %v5309 = vunpack.c.l.b16 %v2660
    %v5310 = vunpack.c.h.b16 %v2660
    %v5311 = vunpack.c.l.b16 %v2661
    %v5312 = vunpack.c.h.b16 %v2661
    %v5313 = vunpack.c.l.b16 %v2662
    %v5314 = vunpack.c.h.b16 %v2662
    %v5315 = vunpack.c.l.b16 %v2663
    %v5316 = vunpack.c.h.b16 %v2663
    %v5317 = vunpack.c.l.b16 %v2664
    %v5318 = vunpack.c.h.b16 %v2664
    %v5319 = vunpack.c.l.b16 %v2665
    %v5320 = vunpack.c.h.b16 %v2665
    %v5321 = vunpack.c.l.b16 %v2666
    %v5322 = vunpack.c.h.b16 %v2666
    %v5323 = vunpack.c.l.b16 %v2667
    %v5324 = vunpack.c.h.b16 %v2667
    %v5325 = vunpack.c.l.b16 %v2668
    %v5326 = vunpack.c.h.b16 %v2668
    %v5327 = vunpack.c.l.b16 %v2669
    %v5328 = vunpack.c.h.b16 %v2669
    %v5329 = vunpack.c.l.b16 %v2670
    %v5330 = vunpack.c.h.b16 %v2670
    %v5331 = vunpack.c.l.b16 %v2671
    %v5332 = vunpack.c.h.b16 %v2671
    %v5333 = vunpack.c.l.b16 %v2672
    %v5334 = vunpack.c.h.b16 %v2672
    %v5335 = vunpack.c.l.b16 %v2673
    %v5336 = vunpack.c.h.b16 %v2673
    %v5337 = vunpack.c.l.b16 %v2674
    %v5338 = vunpack.c.h.b16 %v2674
    %v5339 = vunpack.c.l.b16 %v2675
    %v5340 = vunpack.c.h.b16 %v2675
    %v5341 = vunpack.c.l.b16 %v2676
    %v5342 = vunpack.c.h.b16 %v2676
    %v5343 = vunpack.c.l.b16 %v2677
    %v5344 = vunpack.c.h.b16 %v2677
    %v5345 = vunpack.c.l.b16 %v2678
    %v5346 = vunpack.c.h.b16 %v2678
    %v5347 = vunpack.c.l.b16 %v2679
    %v5348 = vunpack.c.h.b16 %v2679
    %v5349 = vunpack.c.l.b16 %v2680
    %v5350 = vunpack.c.h.b16 %v2680
    %v5351 = vunpack.c.l.b16 %v2681
    %v5352 = vunpack.c.h.b16 %v2681
    %v5353 = vunpack.c.l.b16 %v2682
    %v5354 = vunpack.c.h.b16 %v2682
    %v5355 = vunpack.c.l.b16 %v2683
    %v5356 = vunpack.c.h.b16 %v2683
    %v5357 = vunpack.c.l.b16 %v2684
    %v5358 = vunpack.c.h.b16 %v2684
    %v5359 = vunpack.c.l.b16 %v2685
    %v5360 = vunpack.c.h.b16 %v2685
    %v5361 = vunpack.c.l.b16 %v2686
    %v5362 = vunpack.c.h.b16 %v2686
    %v5363 = vunpack.c.l.b16 %v2687
    %v5364 = vunpack.c.h.b16 %v2687
    %v5365 = vunpack.c.l.b16 %v2688
    %v5366 = vunpack.c.h.b16 %v2688
    %v5367 = vunpack.c.l.b16 %v2689
    %v5368 = vunpack.c.h.b16 %v2689
    %v5369 = vunpack.c.l.b16 %v2690
    %v5370 = vunpack.c.h.b16 %v2690
    %v5371 = vunpack.c.l.b16 %v2691
    %v5372 = vunpack.c.h.b16 %v2691
    %v5373 = vunpack.c.l.b16 %v2692
    %v5374 = vunpack.c.h.b16 %v2692
    %v5375 = vunpack.c.l.b16 %v2693
    %v5376 = vunpack.c.h.b16 %v2693
    %v5377 = vunpack.c.l.b16 %v2694
    %v5378 = vunpack.c.h.b16 %v2694
    %v5379 = vunpack.c.l.b16 %v2695
    %v5380 = vunpack.c.h.b16 %v2695
    %v5381 = vunpack.c.l.b16 %v2696
    %v5382 = vunpack.c.h.b16 %v2696
    %v5383 = vunpack.c.l.b16 %v2697
    %v5384 = vunpack.c.h.b16 %v2697
    %v5385 = vunpack.c.l.b16 %v2698
    %v5386 = vunpack.c.h.b16 %v2698
    %v5387 = vunpack.c.l.b16 %v2699
    %v5388 = vunpack.c.h.b16 %v2699
    %v5389 = vunpack.c.l.b16 %v2700
    %v5390 = vunpack.c.h.b16 %v2700
    %v5391 = vunpack.c.l.b16 %v2701
    %v5392 = vunpack.c.h.b16 %v2701
    %v5393 = vunpack.c.l.b16 %v2702
    %v5394 = vunpack.c.h.b16 %v2702
    %v5395 = vunpack.c.l.b16 %v2703
    %v5396 = vunpack.c.h.b16 %v2703
    %v5397 = vunpack.c.l.b16 %v2704
    %v5398 = vunpack.c.h.b16 %v2704
    %v5399 = vunpack.c.l.b16 %v2705
    %v5400 = vunpack.c.h.b16 %v2705
    %v5401 = vunpack.c.l.b16 %v2706
    %v5402 = vunpack.c.h.b16 %v2706
    %v5403 = vunpack.c.l.b16 %v2707
    %v5404 = vunpack.c.h.b16 %v2707
    %v5405 = vunpack.c.l.b16 %v2708
    %v5406 = vunpack.c.h.b16 %v2708
    %v5407 = vunpack.c.l.b16 %v2709
    %v5408 = vunpack.c.h.b16 %v2709
    %v5409 = vunpack.c.l.b16 %v2710
    %v5410 = vunpack.c.h.b16 %v2710
    %v5411 = vunpack.c.l.b16 %v2711
    %v5412 = vunpack.c.h.b16 %v2711
    %v5413 = vunpack.c.l.b16 %v2712
    %v5414 = vunpack.c.h.b16 %v2712
    %v5415 = vunpack.c.l.b16 %v2713
    %v5416 = vunpack.c.h.b16 %v2713
    %v5417 = vunpack.c.l.b16 %v2714
    %v5418 = vunpack.c.h.b16 %v2714
    %v5419 = vunpack.c.l.b16 %v2715
    %v5420 = vunpack.c.h.b16 %v2715
    %v5421 = vunpack.c.l.b16 %v2716
    %v5422 = vunpack.c.h.b16 %v2716
    %v5423 = vunpack.c.l.b16 %v2717
    %v5424 = vunpack.c.h.b16 %v2717
    %v5425 = vunpack.c.l.b16 %v2718
    %v5426 = vunpack.c.h.b16 %v2718
    %v5427 = vunpack.c.l.b16 %v2719
    %v5428 = vunpack.c.h.b16 %v2719
    %v5429 = vunpack.c.l.b16 %v2720
    %v5430 = vunpack.c.h.b16 %v2720
    %v5431 = vunpack.c.l.b16 %v2721
    %v5432 = vunpack.c.h.b16 %v2721
    %v5433 = vunpack.c.l.b16 %v2722
    %v5434 = vunpack.c.h.b16 %v2722
    %v5435 = vunpack.c.l.b16 %v2723
    %v5436 = vunpack.c.h.b16 %v2723
    %v5437 = vunpack.c.l.b16 %v2724
    %v5438 = vunpack.c.h.b16 %v2724
    %v5439 = vunpack.c.l.b16 %v2725
    %v5440 = vunpack.c.h.b16 %v2725
    %v5441 = vunpack.c.l.b16 %v2726
    %v5442 = vunpack.c.h.b16 %v2726
    %v5443 = vunpack.c.l.b16 %v2727
    %v5444 = vunpack.c.h.b16 %v2727
    %v5445 = vunpack.c.l.b16 %v2728
    %v5446 = vunpack.c.h.b16 %v2728
    %v5447 = vunpack.c.l.b16 %v2729
    %v5448 = vunpack.c.h.b16 %v2729
    %v5449 = vunpack.c.l.b16 %v2730
    %v5450 = vunpack.c.h.b16 %v2730
    %v5451 = vunpack.c.l.b16 %v2731
    %v5452 = vunpack.c.h.b16 %v2731
    %v5453 = vunpack.c.l.b16 %v2732
    %v5454 = vunpack.c.h.b16 %v2732
    %v5455 = vunpack.c.l.b16 %v2733
    %v5456 = vunpack.c.h.b16 %v2733
    %v5457 = vunpack.c.l.b16 %v2734
    %v5458 = vunpack.c.h.b16 %v2734
    %v5459 = vunpack.c.l.b16 %v2735
    %v5460 = vunpack.c.h.b16 %v2735
    %v5461 = vunpack.c.l.b16 %v2736
    %v5462 = vunpack.c.h.b16 %v2736
    %v5463 = vunpack.c.l.b16 %v2737
    %v5464 = vunpack.c.h.b16 %v2737
    %v5465 = vunpack.c.l.b16 %v2738
    %v5466 = vunpack.c.h.b16 %v2738
    %v5467 = vunpack.c.l.b16 %v2739
    %v5468 = vunpack.c.h.b16 %v2739
    %v5469 = vunpack.c.l.b16 %v2740
    %v5470 = vunpack.c.h.b16 %v2740
    %v5471 = vunpack.c.l.b16 %v2741
    %v5472 = vunpack.c.h.b16 %v2741
    %v5473 = vunpack.c.l.b16 %v2742
    %v5474 = vunpack.c.h.b16 %v2742
    %v5475 = vunpack.c.l.b16 %v2743
    %v5476 = vunpack.c.h.b16 %v2743
    %v5477 = vunpack.c.l.b16 %v2744
    %v5478 = vunpack.c.h.b16 %v2744
    %v5479 = vunpack.c.l.b16 %v2745
    %v5480 = vunpack.c.h.b16 %v2745
    %v5481 = vunpack.c.l.b16 %v2746
    %v5482 = vunpack.c.h.b16 %v2746
    %v5483 = vunpack.c.l.b16 %v2747
    %v5484 = vunpack.c.h.b16 %v2747
    %v5485 = vunpack.c.l.b16 %v2748
    %v5486 = vunpack.c.h.b16 %v2748
    %v5487 = vunpack.c.l.b16 %v2749
    %v5488 = vunpack.c.h.b16 %v2749
    %v5489 = vunpack.c.l.b16 %v2750
    %v5490 = vunpack.c.h.b16 %v2750
    %v5491 = vunpack.c.l.b16 %v2751
    %v5492 = vunpack.c.h.b16 %v2751
    %v5493 = vunpack.c.l.b16 %v2752
    %v5494 = vunpack.c.h.b16 %v2752
    %v5495 = vunpack.c.l.b16 %v2753
    %v5496 = vunpack.c.h.b16 %v2753
    %v5497 = vunpack.c.l.b16 %v2754
    %v5498 = vunpack.c.h.b16 %v2754
    %v5499 = vunpack.c.l.b16 %v2755
    %v5500 = vunpack.c.h.b16 %v2755
    %v5501 = vunpack.c.l.b16 %v2756
    %v5502 = vunpack.c.h.b16 %v2756
    %v5503 = vunpack.c.l.b16 %v2757
    %v5504 = vunpack.c.h.b16 %v2757
    %v5505 = vunpack.c.l.b16 %v2758
    %v5506 = vunpack.c.h.b16 %v2758
    %v5507 = vunpack.c.l.b16 %v2759
    %v5508 = vunpack.c.h.b16 %v2759
    %v5509 = vunpack.c.l.b16 %v2760
    %v5510 = vunpack.c.h.b16 %v2760
    %v5511 = vunpack.c.l.b16 %v2761
    %v5512 = vunpack.c.h.b16 %v2761
    %v5513 = vunpack.c.l.b16 %v2762
    %v5514 = vunpack.c.h.b16 %v2762
    %v5515 = vunpack.c.l.b16 %v2763
    %v5516 = vunpack.c.h.b16 %v2763
    %v5517 = vunpack.c.l.b16 %v2764
    %v5518 = vunpack.c.h.b16 %v2764
    %v5519 = vunpack.c.l.b16 %v2765
    %v5520 = vunpack.c.h.b16 %v2765
    %v5521 = vunpack.c.l.b16 %v2766
    %v5522 = vunpack.c.h.b16 %v2766
    %v5523 = vunpack.c.l.b16 %v2767
    %v5524 = vunpack.c.h.b16 %v2767
    %v5525 = vunpack.c.l.b16 %v2768
    %v5526 = vunpack.c.h.b16 %v2768
    %v5527 = vunpack.c.l.b16 %v2769
    %v5528 = vunpack.c.h.b16 %v2769
    %v5529 = vunpack.c.l.b16 %v2770
    %v5530 = vunpack.c.h.b16 %v2770
    %v5531 = vunpack.c.l.b16 %v2771
    %v5532 = vunpack.c.h.b16 %v2771
    %v5533 = vunpack.c.l.b16 %v2772
    %v5534 = vunpack.c.h.b16 %v2772
    %v5535 = vunpack.c.l.b16 %v2773
    %v5536 = vunpack.c.h.b16 %v2773
    %v5537 = vunpack.c.l.b16 %v2774
    %v5538 = vunpack.c.h.b16 %v2774
    %v5539 = vunpack.c.l.b16 %v2775
    %v5540 = vunpack.c.h.b16 %v2775
    %v5541 = vunpack.c.l.b16 %v2776
    %v5542 = vunpack.c.h.b16 %v2776
    %v5543 = vunpack.c.l.b16 %v2777
    %v5544 = vunpack.c.h.b16 %v2777
    %v5545 = vunpack.c.l.b16 %v2778
    %v5546 = vunpack.c.h.b16 %v2778
    %v5547 = vunpack.c.l.b16 %v2779
    %v5548 = vunpack.c.h.b16 %v2779
    %v5549 = vunpack.c.l.b16 %v2780
    %v5550 = vunpack.c.h.b16 %v2780
    %v5551 = vunpack.c.l.b16 %v2781
    %v5552 = vunpack.c.h.b16 %v2781
    %v5553 = vunpack.c.l.b16 %v2782
    %v5554 = vunpack.c.h.b16 %v2782
    %v5555 = vunpack.c.l.b16 %v2783
    %v5556 = vunpack.c.h.b16 %v2783
    %v5557 = vunpack.c.l.b16 %v2784
    %v5558 = vunpack.c.h.b16 %v2784
    %v5559 = vunpack.c.l.b16 %v2785
    %v5560 = vunpack.c.h.b16 %v2785
    %v5561 = vunpack.c.l.b16 %v2786
    %v5562 = vunpack.c.h.b16 %v2786
    %v5563 = vunpack.c.l.b16 %v2787
    %v5564 = vunpack.c.h.b16 %v2787
    %v5565 = vunpack.c.l.b16 %v2788
    %v5566 = vunpack.c.h.b16 %v2788
    %v5567 = vunpack.c.l.b16 %v2789
    %v5568 = vunpack.c.h.b16 %v2789
    %v5569 = vunpack.c.l.b16 %v2790
    %v5570 = vunpack.c.h.b16 %v2790
    %v5571 = vunpack.c.l.b16 %v2791
    %v5572 = vunpack.c.h.b16 %v2791
    %v5573 = vunpack.c.l.b16 %v2792
    %v5574 = vunpack.c.h.b16 %v2792
    %v5575 = vunpack.c.l.b16 %v2793
    %v5576 = vunpack.c.h.b16 %v2793
    %v5577 = vunpack.c.l.b16 %v2794
    %v5578 = vunpack.c.h.b16 %v2794
    %v5579 = vunpack.c.l.b16 %v2795
    %v5580 = vunpack.c.h.b16 %v2795
    %v5581 = vunpack.c.l.b16 %v2796
    %v5582 = vunpack.c.h.b16 %v2796
    %v5583 = vunpack.c.l.b16 %v2797
    %v5584 = vunpack.c.h.b16 %v2797
    %v5585 = vunpack.c.l.b16 %v2798
    %v5586 = vunpack.c.h.b16 %v2798
    %v5587 = vunpack.c.l.b16 %v2799
    %v5588 = vunpack.c.h.b16 %v2799
    %v5589 = vunpack.c.l.b16 %v2800
    %v5590 = vunpack.c.h.b16 %v2800
    %v5591 = vunpack.c.l.b16 %v2801
    %v5592 = vunpack.c.h.b16 %v2801
    %v5593 = vunpack.c.l.b16 %v2802
    %v5594 = vunpack.c.h.b16 %v2802
    %v5595 = vunpack.c.l.b16 %v2803
    %v5596 = vunpack.c.h.b16 %v2803
    %v5597 = vunpack.c.l.b16 %v2804
    %v5598 = vunpack.c.h.b16 %v2804
    %v5599 = vunpack.c.l.b16 %v2805
    %v5600 = vunpack.c.h.b16 %v2805
    %v5601 = vunpack.c.l.b16 %v2806
    %v5602 = vunpack.c.h.b16 %v2806
    %v5603 = vunpack.c.l.b16 %v2807
    %v5604 = vunpack.c.h.b16 %v2807
    %v5605 = vunpack.c.l.b16 %v2808
    %v5606 = vunpack.c.h.b16 %v2808
    %v5607 = vunpack.c.l.b16 %v2809
    %v5608 = vunpack.c.h.b16 %v2809
    %v5609 = vunpack.c.l.b16 %v2810
    %v5610 = vunpack.c.h.b16 %v2810
    %v5611 = vunpack.c.l.b16 %v2811
    %v5612 = vunpack.c.h.b16 %v2811
    %v5613 = vunpack.c.l.b16 %v2812
    %v5614 = vunpack.c.h.b16 %v2812
    %v5615 = vunpack.c.l.b16 %v2813
    %v5616 = vunpack.c.h.b16 %v2813
    %v5617 = vunpack.c.l.b16 %v2814
    %v5618 = vunpack.c.h.b16 %v2814
    %v5619 = vunpack.c.l.b16 %v2815
    %v5620 = vunpack.c.h.b16 %v2815
    %v5621 = vunpack.c.l.b16 %v2816
    %v5622 = vunpack.c.h.b16 %v2816
    %v5623 = vunpack.c.l.b16 %v2817
    %v5624 = vunpack.c.h.b16 %v2817
    %v5625 = vunpack.c.l.b16 %v2818
    %v5626 = vunpack.c.h.b16 %v2818
    %v5627 = vunpack.c.l.b16 %v2819
    %v5628 = vunpack.c.h.b16 %v2819
    %v5629 = vunpack.c.l.b16 %v2820
    %v5630 = vunpack.c.h.b16 %v2820
    %v5631 = vunpack.c.l.b16 %v2821
    %v5632 = vunpack.c.h.b16 %v2821
    %v5633 = vunpack.c.l.b16 %v2822
    %v5634 = vunpack.c.h.b16 %v2822
    %v5635 = vunpack.c.l.b16 %v2823
    %v5636 = vunpack.c.h.b16 %v2823
    %v5637 = vunpack.c.l.b16 %v2824
    %v5638 = vunpack.c.h.b16 %v2824
    %v5639 = vunpack.c.l.b16 %v2825
    %v5640 = vunpack.c.h.b16 %v2825
    %v5641 = vunpack.c.l.b16 %v2826
    %v5642 = vunpack.c.h.b16 %v2826
    %v5643 = vunpack.c.l.b16 %v2827
    %v5644 = vunpack.c.h.b16 %v2827
    %v5645 = vunpack.c.l.b16 %v2828
    %v5646 = vunpack.c.h.b16 %v2828
    %v5647 = vunpack.c.l.b16 %v2829
    %v5648 = vunpack.c.h.b16 %v2829
    %v5649 = vunpack.c.l.b16 %v2830
    %v5650 = vunpack.c.h.b16 %v2830
    %v5651 = vunpack.c.l.b16 %v2831
    %v5652 = vunpack.c.h.b16 %v2831
    %v5653 = vunpack.c.l.b16 %v2832
    %v5654 = vunpack.c.h.b16 %v2832
    %v5655 = vunpack.c.l.b16 %v2833
    %v5656 = vunpack.c.h.b16 %v2833
    %v5657 = vunpack.c.l.b16 %v2834
    %v5658 = vunpack.c.h.b16 %v2834
    %v5659 = vunpack.c.l.b16 %v2835
    %v5660 = vunpack.c.h.b16 %v2835
    %v5661 = vunpack.c.l.b16 %v2836
    %v5662 = vunpack.c.h.b16 %v2836
    %v5663 = vunpack.c.l.b16 %v2837
    %v5664 = vunpack.c.h.b16 %v2837
    %v5665 = vunpack.c.l.b16 %v2838
    %v5666 = vunpack.c.h.b16 %v2838
    %v5667 = vunpack.c.l.b16 %v2839
    %v5668 = vunpack.c.h.b16 %v2839
    %v5669 = vunpack.c.l.b16 %v2840
    %v5670 = vunpack.c.h.b16 %v2840
    %v5671 = vunpack.c.l.b16 %v2841
    %v5672 = vunpack.c.h.b16 %v2841
    %v5673 = vunpack.c.l.b16 %v2842
    %v5674 = vunpack.c.h.b16 %v2842
    %v5675 = vunpack.c.l.b16 %v2843
    %v5676 = vunpack.c.h.b16 %v2843
    %v5677 = vunpack.c.l.b16 %v2844
    %v5678 = vunpack.c.h.b16 %v2844
    %v5679 = vunpack.c.l.b16 %v2845
    %v5680 = vunpack.c.h.b16 %v2845
    %v5681 = vunpack.c.l.b16 %v2846
    %v5682 = vunpack.c.h.b16 %v2846
    %v5683 = vunpack.c.l.b16 %v2847
    %v5684 = vunpack.c.h.b16 %v2847
    %v5685 = vunpack.c.l.b16 %v2848
    %v5686 = vunpack.c.h.b16 %v2848
    %v5687 = vunpack.c.l.b16 %v2849
    %v5688 = vunpack.c.h.b16 %v2849
    %v5689 = vunpack.c.l.b16 %v2850
    %v5690 = vunpack.c.h.b16 %v2850
    %v5691 = vunpack.c.l.b16 %v2851
    %v5692 = vunpack.c.h.b16 %v2851
    %v5693 = vunpack.c.l.b16 %v2852
    %v5694 = vunpack.c.h.b16 %v2852
    %v5695 = vunpack.c.l.b16 %v2853
    %v5696 = vunpack.c.h.b16 %v2853
    %v5697 = vunpack.c.l.b16 %v2854
    %v5698 = vunpack.c.h.b16 %v2854
    %v5699 = vunpack.c.l.b16 %v2855
    %v5700 = vunpack.c.h.b16 %v2855
    %v5701 = vunpack.c.l.b16 %v2856
    %v5702 = vunpack.c.h.b16 %v2856
    %v5703 = vunpack.c.l.b16 %v2857
    %v5704 = vunpack.c.h.b16 %v2857
    %v5705 = vunpack.c.l.b16 %v2858
    %v5706 = vunpack.c.h.b16 %v2858
    %v5707 = vunpack.c.l.b16 %v2859
    %v5708 = vunpack.c.h.b16 %v2859
    %v5709 = vunpack.c.l.b16 %v2860
    %v5710 = vunpack.c.h.b16 %v2860
    %v5711 = vunpack.c.l.b16 %v2861
    %v5712 = vunpack.c.h.b16 %v2861
    %v5713 = vunpack.c.l.b16 %v2862
    %v5714 = vunpack.c.h.b16 %v2862
    %v5715 = vunpack.c.l.b16 %v2863
    %v5716 = vunpack.c.h.b16 %v2863
    %v5717 = vunpack.c.l.b16 %v2864
    %v5718 = vunpack.c.h.b16 %v2864
    %v5719 = vunpack.c.l.b16 %v2865
    %v5720 = vunpack.c.h.b16 %v2865
    %v5721 = vunpack.c.l.b16 %v2866
    %v5722 = vunpack.c.h.b16 %v2866
    %v5723 = vunpack.c.l.b16 %v2867
    %v5724 = vunpack.c.h.b16 %v2867
    %v5725 = vunpack.c.l.b16 %v2868
    %v5726 = vunpack.c.h.b16 %v2868
    %v5727 = vunpack.c.l.b16 %v2869
    %v5728 = vunpack.c.h.b16 %v2869
    %v5729 = vunpack.c.l.b16 %v2870
    %v5730 = vunpack.c.h.b16 %v2870
    %v5731 = vunpack.c.l.b16 %v2871
    %v5732 = vunpack.c.h.b16 %v2871
    %v5733 = vunpack.c.l.b16 %v2872
    %v5734 = vunpack.c.h.b16 %v2872
    %v5735 = vunpack.c.l.b16 %v2873
    %v5736 = vunpack.c.h.b16 %v2873
    %v5737 = vunpack.c.l.b16 %v2874
    %v5738 = vunpack.c.h.b16 %v2874
    %v5739 = vunpack.c.l.b16 %v2875
    %v5740 = vunpack.c.h.b16 %v2875
    %v5741 = vunpack.c.l.b16 %v2876
    %v5742 = vunpack.c.h.b16 %v2876
    %v5743 = vunpack.c.l.b16 %v2877
    %v5744 = vunpack.c.h.b16 %v2877
    %v5745 = vunpack.c.l.b16 %v2878
    %v5746 = vunpack.c.h.b16 %v2878
    %v5747 = vunpack.c.l.b16 %v2879
    %v5748 = vunpack.c.h.b16 %v2879
    %v5749 = vunpack.c.l.b16 %v2880
    %v5750 = vunpack.c.h.b16 %v2880
    %v5751 = vunpack.c.l.b16 %v2881
    %v5752 = vunpack.c.h.b16 %v2881
    %v5753 = vunpack.c.l.b16 %v2882
    %v5754 = vunpack.c.h.b16 %v2882
    %v5755 = vunpack.c.l.b16 %v2883
    %v5756 = vunpack.c.h.b16 %v2883
    %v5757 = vunpack.c.l.b16 %v2884
    %v5758 = vunpack.c.h.b16 %v2884
    %v5759 = vunpack.c.l.b16 %v2885
    %v5760 = vunpack.c.h.b16 %v2885
    %v5761 = vunpack.c.l.b16 %v2886
    %v5762 = vunpack.c.h.b16 %v2886
    %v5763 = vunpack.c.l.b16 %v2887
    %v5764 = vunpack.c.h.b16 %v2887
    %v5765 = vunpack.c.l.b16 %v2888
    %v5766 = vunpack.c.h.b16 %v2888
    %v5767 = vunpack.c.l.b16 %v2889
    %v5768 = vunpack.c.h.b16 %v2889
    %v5769 = vunpack.c.l.b16 %v2890
    %v5770 = vunpack.c.h.b16 %v2890
    %v5771 = vunpack.c.l.b16 %v2891
    %v5772 = vunpack.c.h.b16 %v2891
    %v5773 = vunpack.c.l.b16 %v2892
    %v5774 = vunpack.c.h.b16 %v2892
    %v5775 = vunpack.c.l.b16 %v2893
    %v5776 = vunpack.c.h.b16 %v2893
    %v5777 = vunpack.c.l.b16 %v2894
    %v5778 = vunpack.c.h.b16 %v2894
    %v5779 = vunpack.c.l.b16 %v2895
    %v5780 = vunpack.c.h.b16 %v2895
    %v5781 = vunpack.c.l.b16 %v2896
    %v5782 = vunpack.c.h.b16 %v2896
    %v5783 = vunpack.c.l.b16 %v2897
    %v5784 = vunpack.c.h.b16 %v2897
    %v5785 = vunpack.c.l.b16 %v2898
    %v5786 = vunpack.c.h.b16 %v2898
    %v5787 = vunpack.c.l.b16 %v2899
    %v5788 = vunpack.c.h.b16 %v2899
    %v5789 = vunpack.c.l.b16 %v2900
    %v5790 = vunpack.c.h.b16 %v2900
    %v5791 = vunpack.c.l.b16 %v2901
    %v5792 = vunpack.c.h.b16 %v2901
    %v5793 = vunpack.c.l.b16 %v2902
    %v5794 = vunpack.c.h.b16 %v2902
    %v5795 = vunpack.c.l.b16 %v2903
    %v5796 = vunpack.c.h.b16 %v2903
    %v5797 = vunpack.c.l.b16 %v2904
    %v5798 = vunpack.c.h.b16 %v2904
    %v5799 = vunpack.c.l.b16 %v2905
    %v5800 = vunpack.c.h.b16 %v2905
    %v5801 = vunpack.c.l.b16 %v2906
    %v5802 = vunpack.c.h.b16 %v2906
    %v5803 = vunpack.c.l.b16 %v2907
    %v5804 = vunpack.c.h.b16 %v2907
    %v5805 = vunpack.c.l.b16 %v2908
    %v5806 = vunpack.c.h.b16 %v2908
    %v5807 = vunpack.c.l.b16 %v2909
    %v5808 = vunpack.c.h.b16 %v2909
    %v5809 = vunpack.c.l.b16 %v2910
    %v5810 = vunpack.c.h.b16 %v2910
    %v5811 = vunpack.c.l.b16 %v2911
    %v5812 = vunpack.c.h.b16 %v2911
    %v5813 = vunpack.c.l.b16 %v2912
    %v5814 = vunpack.c.h.b16 %v2912
    %v5815 = vunpack.c.l.b16 %v2913
    %v5816 = vunpack.c.h.b16 %v2913
    %v5817 = vunpack.c.l.b16 %v2914
    %v5818 = vunpack.c.h.b16 %v2914
    %v5819 = vunpack.c.l.b16 %v2915
    %v5820 = vunpack.c.h.b16 %v2915
    %v5821 = vunpack.c.l.b16 %v2916
    %v5822 = vunpack.c.h.b16 %v2916
    %v5823 = vunpack.c.l.b16 %v2917
    %v5824 = vunpack.c.h.b16 %v2917
    %v5825 = vunpack.c.l.b16 %v2918
    %v5826 = vunpack.c.h.b16 %v2918
    %v5827 = vunpack.c.l.b16 %v2919
    %v5828 = vunpack.c.h.b16 %v2919
    %v5829 = vunpack.c.l.b16 %v2920
    %v5830 = vunpack.c.h.b16 %v2920
    %v5831 = vunpack.c.l.b16 %v2921
    %v5832 = vunpack.c.h.b16 %v2921
    %v5833 = vunpack.c.l.b16 %v2922
    %v5834 = vunpack.c.h.b16 %v2922
    %v5835 = vunpack.c.l.b16 %v2923
    %v5836 = vunpack.c.h.b16 %v2923
    %v5837 = vunpack.c.l.b16 %v2924
    %v5838 = vunpack.c.h.b16 %v2924
    %v5839 = vunpack.c.l.b16 %v2925
    %v5840 = vunpack.c.h.b16 %v2925
    %v5841 = vunpack.c.l.b16 %v2926
    %v5842 = vunpack.c.h.b16 %v2926
    %v5843 = vunpack.c.l.b16 %v2927
    %v5844 = vunpack.c.h.b16 %v2927
    %v5845 = vunpack.c.l.b16 %v2928
    %v5846 = vunpack.c.h.b16 %v2928
    %v5847 = vunpack.c.l.b16 %v2929
    %v5848 = vunpack.c.h.b16 %v2929
    %v5849 = vunpack.c.l.b16 %v2930
    %v5850 = vunpack.c.h.b16 %v2930
    %v5851 = vunpack.c.l.b16 %v2931
    %v5852 = vunpack.c.h.b16 %v2931
    %v5853 = vunpack.c.l.b16 %v2932
    %v5854 = vunpack.c.h.b16 %v2932
    %v5855 = vunpack.c.l.b16 %v2933
    %v5856 = vunpack.c.h.b16 %v2933
    %v5857 = vunpack.c.l.b16 %v2934
    %v5858 = vunpack.c.h.b16 %v2934
    %v5859 = vunpack.c.l.b16 %v2935
    %v5860 = vunpack.c.h.b16 %v2935
    %v5861 = vunpack.c.l.b16 %v2936
    %v5862 = vunpack.c.h.b16 %v2936
    %v5863 = vunpack.c.l.b16 %v2937
    %v5864 = vunpack.c.h.b16 %v2937
    %v5865 = vunpack.c.l.b16 %v2938
    %v5866 = vunpack.c.h.b16 %v2938
    %v5867 = vunpack.c.l.b16 %v2939
    %v5868 = vunpack.c.h.b16 %v2939
    %v5869 = vunpack.c.l.b16 %v2940
    %v5870 = vunpack.c.h.b16 %v2940
    %v5871 = vunpack.c.l.b16 %v2941
    %v5872 = vunpack.c.h.b16 %v2941
    %v5873 = vunpack.c.l.b16 %v2942
    %v5874 = vunpack.c.h.b16 %v2942
    %v5875 = vunpack.c.l.b16 %v2943
    %v5876 = vunpack.c.h.b16 %v2943
    %v5877 = vunpack.c.l.b16 %v2944
    %v5878 = vunpack.c.h.b16 %v2944
    %v5879 = vunpack.c.l.b16 %v2945
    %v5880 = vunpack.c.h.b16 %v2945
    %v5881 = vunpack.c.l.b16 %v2946
    %v5882 = vunpack.c.h.b16 %v2946
    %v5883 = vunpack.c.l.b16 %v2947
    %v5884 = vunpack.c.h.b16 %v2947
    %v5885 = vunpack.c.l.b16 %v2948
    %v5886 = vunpack.c.h.b16 %v2948
    %v5887 = vunpack.c.l.b16 %v2949
    %v5888 = vunpack.c.h.b16 %v2949
    %v5889 = vunpack.c.l.b16 %v2950
    %v5890 = vunpack.c.h.b16 %v2950
    %v5891 = vunpack.c.l.b16 %v2951
    %v5892 = vunpack.c.h.b16 %v2951
    %v5893 = vunpack.c.l.b16 %v2952
    %v5894 = vunpack.c.h.b16 %v2952
    %v5895 = vunpack.c.l.b16 %v2953
    %v5896 = vunpack.c.h.b16 %v2953
    %v5897 = vunpack.c.l.b16 %v2954
    %v5898 = vunpack.c.h.b16 %v2954
    %v5899 = vunpack.c.l.b16 %v2955
    %v5900 = vunpack.c.h.b16 %v2955
    %v5901 = vunpack.c.l.b16 %v2956
    %v5902 = vunpack.c.h.b16 %v2956
    %v5903 = vunpack.c.l.b16 %v2957
    %v5904 = vunpack.c.h.b16 %v2957
    %v5905 = vunpack.c.l.b16 %v2958
    %v5906 = vunpack.c.h.b16 %v2958
    %v5907 = vunpack.c.l.b16 %v2959
    %v5908 = vunpack.c.h.b16 %v2959
    %v5909 = vunpack.c.l.b16 %v2960
    %v5910 = vunpack.c.h.b16 %v2960
    %v5911 = vunpack.c.l.b16 %v2961
    %v5912 = vunpack.c.h.b16 %v2961
    %v5913 = vunpack.c.l.b16 %v2962
    %v5914 = vunpack.c.h.b16 %v2962
    %v5915 = vunpack.c.l.b16 %v2963
    %v5916 = vunpack.c.h.b16 %v2963
    %v5917 = vunpack.c.l.b16 %v2964
    %v5918 = vunpack.c.h.b16 %v2964
    %v5919 = vunpack.c.l.b16 %v2965
    %v5920 = vunpack.c.h.b16 %v2965
    %v5921 = vunpack.c.l.b16 %v2966
    %v5922 = vunpack.c.h.b16 %v2966
    %v5923 = vunpack.c.l.b16 %v2967
    %v5924 = vunpack.c.h.b16 %v2967
    %v5925 = vunpack.c.l.b16 %v2968
    %v5926 = vunpack.c.h.b16 %v2968
    %v5927 = vunpack.c.l.b16 %v2969
    %v5928 = vunpack.c.h.b16 %v2969
    %v5929 = vunpack.c.l.b16 %v2970
    %v5930 = vunpack.c.h.b16 %v2970
    %v5931 = vunpack.c.l.b16 %v2971
    %v5932 = vunpack.c.h.b16 %v2971
    %v5933 = vunpack.c.l.b16 %v2972
    %v5934 = vunpack.c.h.b16 %v2972
    %v5935 = vunpack.c.l.b16 %v2973
    %v5936 = vunpack.c.h.b16 %v2973
    %v5937 = vunpack.c.l.b16 %v2974
    %v5938 = vunpack.c.h.b16 %v2974
    %v5939 = vunpack.c.l.b16 %v2975
    %v5940 = vunpack.c.h.b16 %v2975
    %v5941 = vunpack.c.l.b16 %v2976
    %v5942 = vunpack.c.h.b16 %v2976
    %v5943 = vunpack.c.l.b16 %v2977
    %v5944 = vunpack.c.h.b16 %v2977
    %v5945 = vunpack.c.l.b16 %v2978
    %v5946 = vunpack.c.h.b16 %v2978
    %v5947 = vunpack.c.l.b16 %v2979
    %v5948 = vunpack.c.h.b16 %v2979
    %v5949 = vunpack.c.l.b16 %v2980
    %v5950 = vunpack.c.h.b16 %v2980
    %v5951 = vunpack.c.l.b16 %v2981
    %v5952 = vunpack.c.h.b16 %v2981
    %v5953 = vunpack.c.l.b16 %v2982
    %v5954 = vunpack.c.h.b16 %v2982
    %v5955 = vunpack.c.l.b16 %v2983
    %v5956 = vunpack.c.h.b16 %v2983
    %v5957 = vunpack.c.l.b16 %v2984
    %v5958 = vunpack.c.h.b16 %v2984
    %v5959 = vunpack.c.l.b16 %v2985
    %v5960 = vunpack.c.h.b16 %v2985
    %v5961 = vunpack.c.l.b16 %v2986
    %v5962 = vunpack.c.h.b16 %v2986
    %v5963 = vunpack.c.l.b16 %v2987
    %v5964 = vunpack.c.h.b16 %v2987
    %v5965 = vunpack.c.l.b16 %v2988
    %v5966 = vunpack.c.h.b16 %v2988
    %v5967 = vunpack.c.l.b16 %v2989
    %v5968 = vunpack.c.h.b16 %v2989
    %v5969 = vunpack.c.l.b16 %v2990
    %v5970 = vunpack.c.h.b16 %v2990
    %v5971 = vunpack.c.l.b16 %v2991
    %v5972 = vunpack.c.h.b16 %v2991
    %v5973 = vunpack.c.l.b16 %v2992
    %v5974 = vunpack.c.h.b16 %v2992
    %v5975 = vunpack.c.l.b16 %v2993
    %v5976 = vunpack.c.h.b16 %v2993
    %v5977 = vunpack.c.l.b16 %v2994
    %v5978 = vunpack.c.h.b16 %v2994
    %v5979 = vunpack.c.l.b16 %v2995
    %v5980 = vunpack.c.h.b16 %v2995
    %v5981 = vunpack.c.l.b16 %v2996
    %v5982 = vunpack.c.h.b16 %v2996
    %v5983 = vunpack.c.l.b16 %v2997
    %v5984 = vunpack.c.h.b16 %v2997
    %v5985 = vunpack.c.l.b16 %v2998
    %v5986 = vunpack.c.h.b16 %v2998
    %v5987 = vunpack.c.l.b16 %v2999
    %v5988 = vunpack.c.h.b16 %v2999
    %v5989 = vunpack.c.l.b16 %v3000
    %v5990 = vunpack.c.h.b16 %v3000
    %v5991 = vunpack.c.l.b16 %v3001
    %v5992 = vunpack.c.h.b16 %v3001
    %v5993 = vunpack.c.l.b16 %v3002
    %v5994 = vunpack.c.h.b16 %v3002
    %v5995 = vunpack.c.l.b16 %v3003
    %v5996 = vunpack.c.h.b16 %v3003
    %v5997 = vunpack.c.l.b16 %v3004
    %v5998 = vunpack.c.h.b16 %v3004
    %v5999 = vunpack.c.l.b16 %v3005
    %v6000 = vunpack.c.h.b16 %v3005
    %v6001 = vunpack.c.l.b16 %v3006
    %v6002 = vunpack.c.h.b16 %v3006
    %v6003 = vunpack.c.l.b16 %v3007
    %v6004 = vunpack.c.h.b16 %v3007
    %v6005 = vunpack.c.l.b16 %v3008
    %v6006 = vunpack.c.h.b16 %v3008
    %v6007 = vunpack.c.l.b16 %v3009
    %v6008 = vunpack.c.h.b16 %v3009
    %v6009 = vunpack.c.l.b16 %v3010
    %v6010 = vunpack.c.h.b16 %v3010
    %v6011 = vunpack.c.l.b16 %v3011
    %v6012 = vunpack.c.h.b16 %v3011
    %v6013 = vunpack.c.l.b16 %v3012
    %v6014 = vunpack.c.h.b16 %v3012
    %v6015 = vunpack.c.l.b16 %v3013
    %v6016 = vunpack.c.h.b16 %v3013
    %v6017 = vunpack.c.l.b16 %v3014
    %v6018 = vunpack.c.h.b16 %v3014
    %v6019 = vunpack.c.l.b16 %v3015
    %v6020 = vunpack.c.h.b16 %v3015
    %v6021 = vunpack.c.l.b16 %v3016
    %v6022 = vunpack.c.h.b16 %v3016
    %v6023 = vunpack.c.l.b16 %v3017
    %v6024 = vunpack.c.h.b16 %v3017
    %v6025 = vunpack.c.l.b16 %v3018
    %v6026 = vunpack.c.h.b16 %v3018
    %v6027 = vunpack.c.l.b16 %v3019
    %v6028 = vunpack.c.h.b16 %v3019
    %v6029 = vunpack.c.l.b16 %v3020
    %v6030 = vunpack.c.h.b16 %v3020
    %v6031 = vunpack.c.l.b16 %v3021
    %v6032 = vunpack.c.h.b16 %v3021
    %v6033 = vunpack.c.l.b16 %v3022
    %v6034 = vunpack.c.h.b16 %v3022
    %v6035 = vunpack.c.l.b16 %v3023
    %v6036 = vunpack.c.h.b16 %v3023
    %v6037 = vunpack.c.l.b16 %v3024
    %v6038 = vunpack.c.h.b16 %v3024
    %v6039 = vunpack.c.l.b16 %v3025
    %v6040 = vunpack.c.h.b16 %v3025
    %v6041 = vunpack.c.l.b16 %v3026
    %v6042 = vunpack.c.h.b16 %v3026
    %v6043 = vunpack.c.l.b16 %v3027
    %v6044 = vunpack.c.h.b16 %v3027
    %v6045 = vunpack.c.l.b16 %v3028
    %v6046 = vunpack.c.h.b16 %v3028
    %v6047 = vunpack.c.l.b16 %v3029
    %v6048 = vunpack.c.h.b16 %v3029
    %v6049 = vunpack.c.l.b16 %v3030
    %v6050 = vunpack.c.h.b16 %v3030
    %v6051 = vunpack.c.l.b16 %v3031
    %v6052 = vunpack.c.h.b16 %v3031
    %v6053 = vunpack.c.l.b16 %v3032
    %v6054 = vunpack.c.h.b16 %v3032
    %v6055 = vunpack.c.l.b16 %v3033
    %v6056 = vunpack.c.h.b16 %v3033
    %v6057 = vunpack.c.l.b16 %v3034
    %v6058 = vunpack.c.h.b16 %v3034
    %v6059 = vunpack.c.l.b16 %v3035
    %v6060 = vunpack.c.h.b16 %v3035
    %v6061 = vunpack.c.l.b16 %v3036
    %v6062 = vunpack.c.h.b16 %v3036
    %v6063 = vunpack.c.l.b16 %v3037
    %v6064 = vunpack.c.h.b16 %v3037
    %v6065 = vunpack.c.l.b16 %v3038
    %v6066 = vunpack.c.h.b16 %v3038
    %v6067 = vunpack.c.l.b16 %v3039
    %v6068 = vunpack.c.h.b16 %v3039
    %v6069 = vunpack.c.l.b16 %v3040
    %v6070 = vunpack.c.h.b16 %v3040
    %v6071 = vunpack.c.l.b16 %v3041
    %v6072 = vunpack.c.h.b16 %v3041
    %v6073 = vunpack.c.l.b16 %v3042
    %v6074 = vunpack.c.h.b16 %v3042
    %v6075 = vunpack.c.l.b16 %v3043
    %v6076 = vunpack.c.h.b16 %v3043
    %v6077 = vunpack.c.l.b16 %v3044
    %v6078 = vunpack.c.h.b16 %v3044
    %v6079 = vunpack.c.l.b16 %v3045
    %v6080 = vunpack.c.h.b16 %v3045
    %v6081 = vunpack.c.l.b16 %v3046
    %v6082 = vunpack.c.h.b16 %v3046
    %v6083 = vunpack.c.l.b16 %v3047
    %v6084 = vunpack.c.h.b16 %v3047
    %v6085 = vunpack.c.l.b16 %v3048
    %v6086 = vunpack.c.h.b16 %v3048
    %v6087 = vunpack.c.l.b16 %v3049
    %v6088 = vunpack.c.h.b16 %v3049
    %v6089 = vunpack.c.l.b16 %v3050
    %v6090 = vunpack.c.h.b16 %v3050
    %v6091 = vunpack.c.l.b16 %v3051
    %v6092 = vunpack.c.h.b16 %v3051
    %v6093 = vunpack.c.l.b16 %v3052
    %v6094 = vunpack.c.h.b16 %v3052
    %v6095 = vunpack.c.l.b16 %v3053
    %v6096 = vunpack.c.h.b16 %v3053
    %v6097 = vunpack.c.l.b16 %v3054
    %v6098 = vunpack.c.h.b16 %v3054
    %v6099 = vunpack.c.l.b16 %v3055
    %v6100 = vunpack.c.h.b16 %v3055
    %v6101 = vunpack.c.l.b16 %v3056
    %v6102 = vunpack.c.h.b16 %v3056
    %v6103 = vunpack.c.l.b16 %v3057
    %v6104 = vunpack.c.h.b16 %v3057
    %v6105 = vunpack.c.l.b16 %v3058
    %v6106 = vunpack.c.h.b16 %v3058
    %v6107 = vunpack.c.l.b16 %v3059
    %v6108 = vunpack.c.h.b16 %v3059
    %v6109 = vunpack.c.l.b16 %v3060
    %v6110 = vunpack.c.h.b16 %v3060
    %v6111 = vunpack.c.l.b16 %v3061
    %v6112 = vunpack.c.h.b16 %v3061
    %v6113 = vunpack.c.l.b16 %v3062
    %v6114 = vunpack.c.h.b16 %v3062
    %v6115 = vunpack.c.l.b16 %v3063
    %v6116 = vunpack.c.h.b16 %v3063
    %v6117 = vunpack.c.l.b16 %v3064
    %v6118 = vunpack.c.h.b16 %v3064
    %v6119 = vunpack.c.l.b16 %v3065
    %v6120 = vunpack.c.h.b16 %v3065
    %v6121 = vunpack.c.l.b16 %v3066
    %v6122 = vunpack.c.h.b16 %v3066
    %v6123 = vunpack.c.l.b16 %v3067
    %v6124 = vunpack.c.h.b16 %v3067
    %v6125 = vunpack.c.l.b16 %v3068
    %v6126 = vunpack.c.h.b16 %v3068
    %v6127 = vunpack.c.l.b16 %v3069
    %v6128 = vunpack.c.h.b16 %v3069
    %v6129 = vunpack.c.l.b16 %v3070
    %v6130 = vunpack.c.h.b16 %v3070
    %v6131 = vunpack.c.l.b16 %v3071
    %v6132 = vunpack.c.h.b16 %v3071
    %v6133 = vunpack.c.l.b16 %v3072
    %v6134 = vunpack.c.h.b16 %v3072
    %v6135 = vunpack.c.l.b16 %v3073
    %v6136 = vunpack.c.h.b16 %v3073
    %v6137 = vunpack.c.l.b16 %v3074
    %v6138 = vunpack.c.h.b16 %v3074
    %v6139 = vunpack.c.l.b16 %v3075
    %v6140 = vunpack.c.h.b16 %v3075
    %v6141 = vunpack.c.l.b16 %v3076
    %v6142 = vunpack.c.h.b16 %v3076
    %v6143 = vunpack.c.l.b16 %v3077
    %v6144 = vunpack.c.h.b16 %v3077
    %v6145 = vunpack.c.l.b16 %v3078
    %v6146 = vunpack.c.h.b16 %v3078
    %v6147 = vunpack.c.l.b16 %v3079
    %v6148 = vunpack.c.h.b16 %v3079
    %v6149 = vunpack.c.l.b16 %v3080
    %v6150 = vunpack.c.h.b16 %v3080
    %v6151 = vunpack.c.l.b16 %v3081
    %v6152 = vunpack.c.h.b16 %v3081
    %v6153 = vunpack.c.l.b16 %v3082
    %v6154 = vunpack.c.h.b16 %v3082
    %v6155 = vpack.c.b16 %v4115, %v4107
    %v6156 = vpack.c.b16 %v4116, %v4108
    %v6157 = vpack.c.b16 %v4117, %v4109
    %v6158 = vpack.c.b16 %v4118, %v4110
    %v6159 = vpack.c.b16 %v4119, %v4111
    %v6160 = vpack.c.b16 %v4120, %v4112
    %v6161 = vpack.c.b16 %v4121, %v4113
    %v6162 = vpack.c.b16 %v4122, %v4114
    %v6163 = vpack.c.b16 %v4131, %v4123
    %v6164 = vpack.c.b16 %v4132, %v4124
    %v6165 = vpack.c.b16 %v4133, %v4125
    %v6166 = vpack.c.b16 %v4134, %v4126
    %v6167 = vpack.c.b16 %v4135, %v4127
    %v6168 = vpack.c.b16 %v4136, %v4128
    %v6169 = vpack.c.b16 %v4137, %v4129
    %v6170 = vpack.c.b16 %v4138, %v4130
    %v6171 = vpack.c.b16 %v4147, %v4139
    %v6172 = vpack.c.b16 %v4148, %v4140
    %v6173 = vpack.c.b16 %v4149, %v4141
    %v6174 = vpack.c.b16 %v4150, %v4142
    %v6175 = vpack.c.b16 %v4151, %v4143
    %v6176 = vpack.c.b16 %v4152, %v4144
    %v6177 = vpack.c.b16 %v4153, %v4145
    %v6178 = vpack.c.b16 %v4154, %v4146
    %v6179 = vpack.c.b16 %v4163, %v4155
    %v6180 = vpack.c.b16 %v4164, %v4156
    %v6181 = vpack.c.b16 %v4165, %v4157
    %v6182 = vpack.c.b16 %v4166, %v4158
    %v6183 = vpack.c.b16 %v4167, %v4159
    %v6184 = vpack.c.b16 %v4168, %v4160
    %v6185 = vpack.c.b16 %v4169, %v4161
    %v6186 = vpack.c.b16 %v4170, %v4162
    %v6187 = vpack.c.b16 %v4179, %v4171
    %v6188 = vpack.c.b16 %v4180, %v4172
    %v6189 = vpack.c.b16 %v4181, %v4173
    %v6190 = vpack.c.b16 %v4182, %v4174
    %v6191 = vpack.c.b16 %v4183, %v4175
    %v6192 = vpack.c.b16 %v4184, %v4176
    %v6193 = vpack.c.b16 %v4185, %v4177
    %v6194 = vpack.c.b16 %v4186, %v4178
    %v6195 = vpack.c.b16 %v4195, %v4187
    %v6196 = vpack.c.b16 %v4196, %v4188
    %v6197 = vpack.c.b16 %v4197, %v4189
    %v6198 = vpack.c.b16 %v4198, %v4190
    %v6199 = vpack.c.b16 %v4199, %v4191
    %v6200 = vpack.c.b16 %v4200, %v4192
    %v6201 = vpack.c.b16 %v4201, %v4193
    %v6202 = vpack.c.b16 %v4202, %v4194
    %v6203 = vpack.c.b16 %v4211, %v4203
    %v6204 = vpack.c.b16 %v4212, %v4204
    %v6205 = vpack.c.b16 %v4213, %v4205
    %v6206 = vpack.c.b16 %v4214, %v4206
    %v6207 = vpack.c.b16 %v4215, %v4207
    %v6208 = vpack.c.b16 %v4216, %v4208
    %v6209 = vpack.c.b16 %v4217, %v4209
    %v6210 = vpack.c.b16 %v4218, %v4210
    %v6211 = vpack.c.b16 %v4227, %v4219
    %v6212 = vpack.c.b16 %v4228, %v4220
    %v6213 = vpack.c.b16 %v4229, %v4221
    %v6214 = vpack.c.b16 %v4230, %v4222
    %v6215 = vpack.c.b16 %v4231, %v4223
    %v6216 = vpack.c.b16 %v4232, %v4224
    %v6217 = vpack.c.b16 %v4233, %v4225
    %v6218 = vpack.c.b16 %v4234, %v4226
    %v6219 = vpack.c.b16 %v4243, %v4235
    %v6220 = vpack.c.b16 %v4244, %v4236
    %v6221 = vpack.c.b16 %v4245, %v4237
    %v6222 = vpack.c.b16 %v4246, %v4238
    %v6223 = vpack.c.b16 %v4247, %v4239
    %v6224 = vpack.c.b16 %v4248, %v4240
    %v6225 = vpack.c.b16 %v4249, %v4241
    %v6226 = vpack.c.b16 %v4250, %v4242
    %v6227 = vpack.c.b16 %v4259, %v4251
    %v6228 = vpack.c.b16 %v4260, %v4252
    %v6229 = vpack.c.b16 %v4261, %v4253
    %v6230 = vpack.c.b16 %v4262, %v4254
    %v6231 = vpack.c.b16 %v4263, %v4255
    %v6232 = vpack.c.b16 %v4264, %v4256
    %v6233 = vpack.c.b16 %v4265, %v4257
    %v6234 = vpack.c.b16 %v4266, %v4258
    %v6235 = vpack.c.b16 %v4275, %v4267
    %v6236 = vpack.c.b16 %v4276, %v4268
    %v6237 = vpack.c.b16 %v4277, %v4269
    %v6238 = vpack.c.b16 %v4278, %v4270
    %v6239 = vpack.c.b16 %v4279, %v4271
    %v6240 = vpack.c.b16 %v4280, %v4272
    %v6241 = vpack.c.b16 %v4281, %v4273
    %v6242 = vpack.c.b16 %v4282, %v4274
    %v6243 = vpack.c.b16 %v4291, %v4283
    %v6244 = vpack.c.b16 %v4292, %v4284
    %v6245 = vpack.c.b16 %v4293, %v4285
    %v6246 = vpack.c.b16 %v4294, %v4286
    %v6247 = vpack.c.b16 %v4295, %v4287
    %v6248 = vpack.c.b16 %v4296, %v4288
    %v6249 = vpack.c.b16 %v4297, %v4289
    %v6250 = vpack.c.b16 %v4298, %v4290
    %v6251 = vpack.c.b16 %v4307, %v4299
    %v6252 = vpack.c.b16 %v4308, %v4300
    %v6253 = vpack.c.b16 %v4309, %v4301
    %v6254 = vpack.c.b16 %v4310, %v4302
    %v6255 = vpack.c.b16 %v4311, %v4303
    %v6256 = vpack.c.b16 %v4312, %v4304
    %v6257 = vpack.c.b16 %v4313, %v4305
    %v6258 = vpack.c.b16 %v4314, %v4306
    %v6259 = vpack.c.b16 %v4323, %v4315
    %v6260 = vpack.c.b16 %v4324, %v4316
    %v6261 = vpack.c.b16 %v4325, %v4317
    %v6262 = vpack.c.b16 %v4326, %v4318
    %v6263 = vpack.c.b16 %v4327, %v4319
    %v6264 = vpack.c.b16 %v4328, %v4320
    %v6265 = vpack.c.b16 %v4329, %v4321
    %v6266 = vpack.c.b16 %v4330, %v4322
    %v6267 = vpack.c.b16 %v4339, %v4331
    %v6268 = vpack.c.b16 %v4340, %v4332
    %v6269 = vpack.c.b16 %v4341, %v4333
    %v6270 = vpack.c.b16 %v4342, %v4334
    %v6271 = vpack.c.b16 %v4343, %v4335
    %v6272 = vpack.c.b16 %v4344, %v4336
    %v6273 = vpack.c.b16 %v4345, %v4337
    %v6274 = vpack.c.b16 %v4346, %v4338
    %v6275 = vpack.c.b16 %v4355, %v4347
    %v6276 = vpack.c.b16 %v4356, %v4348
    %v6277 = vpack.c.b16 %v4357, %v4349
    %v6278 = vpack.c.b16 %v4358, %v4350
    %v6279 = vpack.c.b16 %v4359, %v4351
    %v6280 = vpack.c.b16 %v4360, %v4352
    %v6281 = vpack.c.b16 %v4361, %v4353
    %v6282 = vpack.c.b16 %v4362, %v4354
    %v6283 = vpack.c.b16 %v4371, %v4363
    %v6284 = vpack.c.b16 %v4372, %v4364
    %v6285 = vpack.c.b16 %v4373, %v4365
    %v6286 = vpack.c.b16 %v4374, %v4366
    %v6287 = vpack.c.b16 %v4375, %v4367
    %v6288 = vpack.c.b16 %v4376, %v4368
    %v6289 = vpack.c.b16 %v4377, %v4369
    %v6290 = vpack.c.b16 %v4378, %v4370
    %v6291 = vpack.c.b16 %v4387, %v4379
    %v6292 = vpack.c.b16 %v4388, %v4380
    %v6293 = vpack.c.b16 %v4389, %v4381
    %v6294 = vpack.c.b16 %v4390, %v4382
    %v6295 = vpack.c.b16 %v4391, %v4383
    %v6296 = vpack.c.b16 %v4392, %v4384
    %v6297 = vpack.c.b16 %v4393, %v4385
    %v6298 = vpack.c.b16 %v4394, %v4386
    %v6299 = vpack.c.b16 %v4403, %v4395
    %v6300 = vpack.c.b16 %v4404, %v4396
    %v6301 = vpack.c.b16 %v4405, %v4397
    %v6302 = vpack.c.b16 %v4406, %v4398
    %v6303 = vpack.c.b16 %v4407, %v4399
    %v6304 = vpack.c.b16 %v4408, %v4400
    %v6305 = vpack.c.b16 %v4409, %v4401
    %v6306 = vpack.c.b16 %v4410, %v4402
    %v6307 = vpack.c.b16 %v4419, %v4411
    %v6308 = vpack.c.b16 %v4420, %v4412
    %v6309 = vpack.c.b16 %v4421, %v4413
    %v6310 = vpack.c.b16 %v4422, %v4414
    %v6311 = vpack.c.b16 %v4423, %v4415
    %v6312 = vpack.c.b16 %v4424, %v4416
    %v6313 = vpack.c.b16 %v4425, %v4417
    %v6314 = vpack.c.b16 %v4426, %v4418
    %v6315 = vpack.c.b16 %v4435, %v4427
    %v6316 = vpack.c.b16 %v4436, %v4428
    %v6317 = vpack.c.b16 %v4437, %v4429
    %v6318 = vpack.c.b16 %v4438, %v4430
    %v6319 = vpack.c.b16 %v4439, %v4431
    %v6320 = vpack.c.b16 %v4440, %v4432
    %v6321 = vpack.c.b16 %v4441, %v4433
    %v6322 = vpack.c.b16 %v4442, %v4434
    %v6323 = vpack.c.b16 %v4451, %v4443
    %v6324 = vpack.c.b16 %v4452, %v4444
    %v6325 = vpack.c.b16 %v4453, %v4445
    %v6326 = vpack.c.b16 %v4454, %v4446
    %v6327 = vpack.c.b16 %v4455, %v4447
    %v6328 = vpack.c.b16 %v4456, %v4448
    %v6329 = vpack.c.b16 %v4457, %v4449
    %v6330 = vpack.c.b16 %v4458, %v4450
    %v6331 = vpack.c.b16 %v4467, %v4459
    %v6332 = vpack.c.b16 %v4468, %v4460
    %v6333 = vpack.c.b16 %v4469, %v4461
    %v6334 = vpack.c.b16 %v4470, %v4462
    %v6335 = vpack.c.b16 %v4471, %v4463
    %v6336 = vpack.c.b16 %v4472, %v4464
    %v6337 = vpack.c.b16 %v4473, %v4465
    %v6338 = vpack.c.b16 %v4474, %v4466
    %v6339 = vpack.c.b16 %v4483, %v4475
    %v6340 = vpack.c.b16 %v4484, %v4476
    %v6341 = vpack.c.b16 %v4485, %v4477
    %v6342 = vpack.c.b16 %v4486, %v4478
    %v6343 = vpack.c.b16 %v4487, %v4479
    %v6344 = vpack.c.b16 %v4488, %v4480
    %v6345 = vpack.c.b16 %v4489, %v4481
    %v6346 = vpack.c.b16 %v4490, %v4482
    %v6347 = vpack.c.b16 %v4499, %v4491
    %v6348 = vpack.c.b16 %v4500, %v4492
    %v6349 = vpack.c.b16 %v4501, %v4493
    %v6350 = vpack.c.b16 %v4502, %v4494
    %v6351 = vpack.c.b16 %v4503, %v4495
    %v6352 = vpack.c.b16 %v4504, %v4496
    %v6353 = vpack.c.b16 %v4505, %v4497
    %v6354 = vpack.c.b16 %v4506, %v4498
    %v6355 = vpack.c.b16 %v4515, %v4507
    %v6356 = vpack.c.b16 %v4516, %v4508
    %v6357 = vpack.c.b16 %v4517, %v4509
    %v6358 = vpack.c.b16 %v4518, %v4510
    %v6359 = vpack.c.b16 %v4519, %v4511
    %v6360 = vpack.c.b16 %v4520, %v4512
    %v6361 = vpack.c.b16 %v4521, %v4513
    %v6362 = vpack.c.b16 %v4522, %v4514
    %v6363 = vpack.c.b16 %v4531, %v4523
    %v6364 = vpack.c.b16 %v4532, %v4524
    %v6365 = vpack.c.b16 %v4533, %v4525
    %v6366 = vpack.c.b16 %v4534, %v4526
    %v6367 = vpack.c.b16 %v4535, %v4527
    %v6368 = vpack.c.b16 %v4536, %v4528
    %v6369 = vpack.c.b16 %v4537, %v4529
    %v6370 = vpack.c.b16 %v4538, %v4530
    %v6371 = vpack.c.b16 %v4547, %v4539
    %v6372 = vpack.c.b16 %v4548, %v4540
    %v6373 = vpack.c.b16 %v4549, %v4541
    %v6374 = vpack.c.b16 %v4550, %v4542
    %v6375 = vpack.c.b16 %v4551, %v4543
    %v6376 = vpack.c.b16 %v4552, %v4544
    %v6377 = vpack.c.b16 %v4553, %v4545
    %v6378 = vpack.c.b16 %v4554, %v4546
    %v6379 = vpack.c.b16 %v4563, %v4555
    %v6380 = vpack.c.b16 %v4564, %v4556
    %v6381 = vpack.c.b16 %v4565, %v4557
    %v6382 = vpack.c.b16 %v4566, %v4558
    %v6383 = vpack.c.b16 %v4567, %v4559
    %v6384 = vpack.c.b16 %v4568, %v4560
    %v6385 = vpack.c.b16 %v4569, %v4561
    %v6386 = vpack.c.b16 %v4570, %v4562
    %v6387 = vpack.c.b16 %v4579, %v4571
    %v6388 = vpack.c.b16 %v4580, %v4572
    %v6389 = vpack.c.b16 %v4581, %v4573
    %v6390 = vpack.c.b16 %v4582, %v4574
    %v6391 = vpack.c.b16 %v4583, %v4575
    %v6392 = vpack.c.b16 %v4584, %v4576
    %v6393 = vpack.c.b16 %v4585, %v4577
    %v6394 = vpack.c.b16 %v4586, %v4578
    %v6395 = vpack.c.b16 %v4595, %v4587
    %v6396 = vpack.c.b16 %v4596, %v4588
    %v6397 = vpack.c.b16 %v4597, %v4589
    %v6398 = vpack.c.b16 %v4598, %v4590
    %v6399 = vpack.c.b16 %v4599, %v4591
    %v6400 = vpack.c.b16 %v4600, %v4592
    %v6401 = vpack.c.b16 %v4601, %v4593
    %v6402 = vpack.c.b16 %v4602, %v4594
    %v6403 = vpack.c.b16 %v4611, %v4603
    %v6404 = vpack.c.b16 %v4612, %v4604
    %v6405 = vpack.c.b16 %v4613, %v4605
    %v6406 = vpack.c.b16 %v4614, %v4606
    %v6407 = vpack.c.b16 %v4615, %v4607
    %v6408 = vpack.c.b16 %v4616, %v4608
    %v6409 = vpack.c.b16 %v4617, %v4609
    %v6410 = vpack.c.b16 %v4618, %v4610
    %v6411 = vpack.c.b16 %v4627, %v4619
    %v6412 = vpack.c.b16 %v4628, %v4620
    %v6413 = vpack.c.b16 %v4629, %v4621
    %v6414 = vpack.c.b16 %v4630, %v4622
    %v6415 = vpack.c.b16 %v4631, %v4623
    %v6416 = vpack.c.b16 %v4632, %v4624
    %v6417 = vpack.c.b16 %v4633, %v4625
    %v6418 = vpack.c.b16 %v4634, %v4626
    %v6419 = vpack.c.b16 %v4643, %v4635
    %v6420 = vpack.c.b16 %v4644, %v4636
    %v6421 = vpack.c.b16 %v4645, %v4637
    %v6422 = vpack.c.b16 %v4646, %v4638
    %v6423 = vpack.c.b16 %v4647, %v4639
    %v6424 = vpack.c.b16 %v4648, %v4640
    %v6425 = vpack.c.b16 %v4649, %v4641
    %v6426 = vpack.c.b16 %v4650, %v4642
    %v6427 = vpack.c.b16 %v4659, %v4651
    %v6428 = vpack.c.b16 %v4660, %v4652
    %v6429 = vpack.c.b16 %v4661, %v4653
    %v6430 = vpack.c.b16 %v4662, %v4654
    %v6431 = vpack.c.b16 %v4663, %v4655
    %v6432 = vpack.c.b16 %v4664, %v4656
    %v6433 = vpack.c.b16 %v4665, %v4657
    %v6434 = vpack.c.b16 %v4666, %v4658
    %v6435 = vpack.c.b16 %v4675, %v4667
    %v6436 = vpack.c.b16 %v4676, %v4668
    %v6437 = vpack.c.b16 %v4677, %v4669
    %v6438 = vpack.c.b16 %v4678, %v4670
    %v6439 = vpack.c.b16 %v4679, %v4671
    %v6440 = vpack.c.b16 %v4680, %v4672
    %v6441 = vpack.c.b16 %v4681, %v4673
    %v6442 = vpack.c.b16 %v4682, %v4674
    %v6443 = vpack.c.b16 %v4691, %v4683
    %v6444 = vpack.c.b16 %v4692, %v4684
    %v6445 = vpack.c.b16 %v4693, %v4685
    %v6446 = vpack.c.b16 %v4694, %v4686
    %v6447 = vpack.c.b16 %v4695, %v4687
    %v6448 = vpack.c.b16 %v4696, %v4688
    %v6449 = vpack.c.b16 %v4697, %v4689
    %v6450 = vpack.c.b16 %v4698, %v4690
    %v6451 = vpack.c.b16 %v4707, %v4699
    %v6452 = vpack.c.b16 %v4708, %v4700
    %v6453 = vpack.c.b16 %v4709, %v4701
    %v6454 = vpack.c.b16 %v4710, %v4702
    %v6455 = vpack.c.b16 %v4711, %v4703
    %v6456 = vpack.c.b16 %v4712, %v4704
    %v6457 = vpack.c.b16 %v4713, %v4705
    %v6458 = vpack.c.b16 %v4714, %v4706
    %v6459 = vpack.c.b16 %v4723, %v4715
    %v6460 = vpack.c.b16 %v4724, %v4716
    %v6461 = vpack.c.b16 %v4725, %v4717
    %v6462 = vpack.c.b16 %v4726, %v4718
    %v6463 = vpack.c.b16 %v4727, %v4719
    %v6464 = vpack.c.b16 %v4728, %v4720
    %v6465 = vpack.c.b16 %v4729, %v4721
    %v6466 = vpack.c.b16 %v4730, %v4722
    %v6467 = vpack.c.b16 %v4739, %v4731
    %v6468 = vpack.c.b16 %v4740, %v4732
    %v6469 = vpack.c.b16 %v4741, %v4733
    %v6470 = vpack.c.b16 %v4742, %v4734
    %v6471 = vpack.c.b16 %v4743, %v4735
    %v6472 = vpack.c.b16 %v4744, %v4736
    %v6473 = vpack.c.b16 %v4745, %v4737
    %v6474 = vpack.c.b16 %v4746, %v4738
    %v6475 = vpack.c.b16 %v4755, %v4747
    %v6476 = vpack.c.b16 %v4756, %v4748
    %v6477 = vpack.c.b16 %v4757, %v4749
    %v6478 = vpack.c.b16 %v4758, %v4750
    %v6479 = vpack.c.b16 %v4759, %v4751
    %v6480 = vpack.c.b16 %v4760, %v4752
    %v6481 = vpack.c.b16 %v4761, %v4753
    %v6482 = vpack.c.b16 %v4762, %v4754
    %v6483 = vpack.c.b16 %v4771, %v4763
    %v6484 = vpack.c.b16 %v4772, %v4764
    %v6485 = vpack.c.b16 %v4773, %v4765
    %v6486 = vpack.c.b16 %v4774, %v4766
    %v6487 = vpack.c.b16 %v4775, %v4767
    %v6488 = vpack.c.b16 %v4776, %v4768
    %v6489 = vpack.c.b16 %v4777, %v4769
    %v6490 = vpack.c.b16 %v4778, %v4770
    %v6491 = vpack.c.b16 %v4787, %v4779
    %v6492 = vpack.c.b16 %v4788, %v4780
    %v6493 = vpack.c.b16 %v4789, %v4781
    %v6494 = vpack.c.b16 %v4790, %v4782
    %v6495 = vpack.c.b16 %v4791, %v4783
    %v6496 = vpack.c.b16 %v4792, %v4784
    %v6497 = vpack.c.b16 %v4793, %v4785
    %v6498 = vpack.c.b16 %v4794, %v4786
    %v6499 = vpack.c.b16 %v4803, %v4795
    %v6500 = vpack.c.b16 %v4804, %v4796
    %v6501 = vpack.c.b16 %v4805, %v4797
    %v6502 = vpack.c.b16 %v4806, %v4798
    %v6503 = vpack.c.b16 %v4807, %v4799
    %v6504 = vpack.c.b16 %v4808, %v4800
    %v6505 = vpack.c.b16 %v4809, %v4801
    %v6506 = vpack.c.b16 %v4810, %v4802
    %v6507 = vpack.c.b16 %v4819, %v4811
    %v6508 = vpack.c.b16 %v4820, %v4812
    %v6509 = vpack.c.b16 %v4821, %v4813
    %v6510 = vpack.c.b16 %v4822, %v4814
    %v6511 = vpack.c.b16 %v4823, %v4815
    %v6512 = vpack.c.b16 %v4824, %v4816
    %v6513 = vpack.c.b16 %v4825, %v4817
    %v6514 = vpack.c.b16 %v4826, %v4818
    %v6515 = vpack.c.b16 %v4835, %v4827
    %v6516 = vpack.c.b16 %v4836, %v4828
    %v6517 = vpack.c.b16 %v4837, %v4829
    %v6518 = vpack.c.b16 %v4838, %v4830
    %v6519 = vpack.c.b16 %v4839, %v4831
    %v6520 = vpack.c.b16 %v4840, %v4832
    %v6521 = vpack.c.b16 %v4841, %v4833
    %v6522 = vpack.c.b16 %v4842, %v4834
    %v6523 = vpack.c.b16 %v4851, %v4843
    %v6524 = vpack.c.b16 %v4852, %v4844
    %v6525 = vpack.c.b16 %v4853, %v4845
    %v6526 = vpack.c.b16 %v4854, %v4846
    %v6527 = vpack.c.b16 %v4855, %v4847
    %v6528 = vpack.c.b16 %v4856, %v4848
    %v6529 = vpack.c.b16 %v4857, %v4849
    %v6530 = vpack.c.b16 %v4858, %v4850
    %v6531 = vpack.c.b16 %v4867, %v4859
    %v6532 = vpack.c.b16 %v4868, %v4860
    %v6533 = vpack.c.b16 %v4869, %v4861
    %v6534 = vpack.c.b16 %v4870, %v4862
    %v6535 = vpack.c.b16 %v4871, %v4863
    %v6536 = vpack.c.b16 %v4872, %v4864
    %v6537 = vpack.c.b16 %v4873, %v4865
    %v6538 = vpack.c.b16 %v4874, %v4866
    %v6539 = vpack.c.b16 %v4883, %v4875
    %v6540 = vpack.c.b16 %v4884, %v4876
    %v6541 = vpack.c.b16 %v4885, %v4877
    %v6542 = vpack.c.b16 %v4886, %v4878
    %v6543 = vpack.c.b16 %v4887, %v4879
    %v6544 = vpack.c.b16 %v4888, %v4880
    %v6545 = vpack.c.b16 %v4889, %v4881
    %v6546 = vpack.c.b16 %v4890, %v4882
    %v6547 = vpack.c.b16 %v4899, %v4891
    %v6548 = vpack.c.b16 %v4900, %v4892
    %v6549 = vpack.c.b16 %v4901, %v4893
    %v6550 = vpack.c.b16 %v4902, %v4894
    %v6551 = vpack.c.b16 %v4903, %v4895
    %v6552 = vpack.c.b16 %v4904, %v4896
    %v6553 = vpack.c.b16 %v4905, %v4897
    %v6554 = vpack.c.b16 %v4906, %v4898
    %v6555 = vpack.c.b16 %v4915, %v4907
    %v6556 = vpack.c.b16 %v4916, %v4908
    %v6557 = vpack.c.b16 %v4917, %v4909
    %v6558 = vpack.c.b16 %v4918, %v4910
    %v6559 = vpack.c.b16 %v4919, %v4911
    %v6560 = vpack.c.b16 %v4920, %v4912
    %v6561 = vpack.c.b16 %v4921, %v4913
    %v6562 = vpack.c.b16 %v4922, %v4914
    %v6563 = vpack.c.b16 %v4931, %v4923
    %v6564 = vpack.c.b16 %v4932, %v4924
    %v6565 = vpack.c.b16 %v4933, %v4925
    %v6566 = vpack.c.b16 %v4934, %v4926
    %v6567 = vpack.c.b16 %v4935, %v4927
    %v6568 = vpack.c.b16 %v4936, %v4928
    %v6569 = vpack.c.b16 %v4937, %v4929
    %v6570 = vpack.c.b16 %v4938, %v4930
    %v6571 = vpack.c.b16 %v4947, %v4939
    %v6572 = vpack.c.b16 %v4948, %v4940
    %v6573 = vpack.c.b16 %v4949, %v4941
    %v6574 = vpack.c.b16 %v4950, %v4942
    %v6575 = vpack.c.b16 %v4951, %v4943
    %v6576 = vpack.c.b16 %v4952, %v4944
    %v6577 = vpack.c.b16 %v4953, %v4945
    %v6578 = vpack.c.b16 %v4954, %v4946
    %v6579 = vpack.c.b16 %v4963, %v4955
    %v6580 = vpack.c.b16 %v4964, %v4956
    %v6581 = vpack.c.b16 %v4965, %v4957
    %v6582 = vpack.c.b16 %v4966, %v4958
    %v6583 = vpack.c.b16 %v4967, %v4959
    %v6584 = vpack.c.b16 %v4968, %v4960
    %v6585 = vpack.c.b16 %v4969, %v4961
    %v6586 = vpack.c.b16 %v4970, %v4962
    %v6587 = vpack.c.b16 %v4979, %v4971
    %v6588 = vpack.c.b16 %v4980, %v4972
    %v6589 = vpack.c.b16 %v4981, %v4973
    %v6590 = vpack.c.b16 %v4982, %v4974
    %v6591 = vpack.c.b16 %v4983, %v4975
    %v6592 = vpack.c.b16 %v4984, %v4976
    %v6593 = vpack.c.b16 %v4985, %v4977
    %v6594 = vpack.c.b16 %v4986, %v4978
    %v6595 = vpack.c.b16 %v4995, %v4987
    %v6596 = vpack.c.b16 %v4996, %v4988
    %v6597 = vpack.c.b16 %v4997, %v4989
    %v6598 = vpack.c.b16 %v4998, %v4990
    %v6599 = vpack.c.b16 %v4999, %v4991
    %v6600 = vpack.c.b16 %v5000, %v4992
    %v6601 = vpack.c.b16 %v5001, %v4993
    %v6602 = vpack.c.b16 %v5002, %v4994
    %v6603 = vpack.c.b16 %v5011, %v5003
    %v6604 = vpack.c.b16 %v5012, %v5004
    %v6605 = vpack.c.b16 %v5013, %v5005
    %v6606 = vpack.c.b16 %v5014, %v5006
    %v6607 = vpack.c.b16 %v5015, %v5007
    %v6608 = vpack.c.b16 %v5016, %v5008
    %v6609 = vpack.c.b16 %v5017, %v5009
    %v6610 = vpack.c.b16 %v5018, %v5010
    %v6611 = vpack.c.b16 %v5027, %v5019
    %v6612 = vpack.c.b16 %v5028, %v5020
    %v6613 = vpack.c.b16 %v5029, %v5021
    %v6614 = vpack.c.b16 %v5030, %v5022
    %v6615 = vpack.c.b16 %v5031, %v5023
    %v6616 = vpack.c.b16 %v5032, %v5024
    %v6617 = vpack.c.b16 %v5033, %v5025
    %v6618 = vpack.c.b16 %v5034, %v5026
    %v6619 = vpack.c.b16 %v5043, %v5035
    %v6620 = vpack.c.b16 %v5044, %v5036
    %v6621 = vpack.c.b16 %v5045, %v5037
    %v6622 = vpack.c.b16 %v5046, %v5038
    %v6623 = vpack.c.b16 %v5047, %v5039
    %v6624 = vpack.c.b16 %v5048, %v5040
    %v6625 = vpack.c.b16 %v5049, %v5041
    %v6626 = vpack.c.b16 %v5050, %v5042
    %v6627 = vpack.c.b16 %v5059, %v5051
    %v6628 = vpack.c.b16 %v5060, %v5052
    %v6629 = vpack.c.b16 %v5061, %v5053
    %v6630 = vpack.c.b16 %v5062, %v5054
    %v6631 = vpack.c.b16 %v5063, %v5055
    %v6632 = vpack.c.b16 %v5064, %v5056
    %v6633 = vpack.c.b16 %v5065, %v5057
    %v6634 = vpack.c.b16 %v5066, %v5058
    %v6635 = vpack.c.b16 %v5075, %v5067
    %v6636 = vpack.c.b16 %v5076, %v5068
    %v6637 = vpack.c.b16 %v5077, %v5069
    %v6638 = vpack.c.b16 %v5078, %v5070
    %v6639 = vpack.c.b16 %v5079, %v5071
    %v6640 = vpack.c.b16 %v5080, %v5072
    %v6641 = vpack.c.b16 %v5081, %v5073
    %v6642 = vpack.c.b16 %v5082, %v5074
    %v6643 = vpack.c.b16 %v5091, %v5083
    %v6644 = vpack.c.b16 %v5092, %v5084
    %v6645 = vpack.c.b16 %v5093, %v5085
    %v6646 = vpack.c.b16 %v5094, %v5086
    %v6647 = vpack.c.b16 %v5095, %v5087
    %v6648 = vpack.c.b16 %v5096, %v5088
    %v6649 = vpack.c.b16 %v5097, %v5089
    %v6650 = vpack.c.b16 %v5098, %v5090
    %v6651 = vpack.c.b16 %v5107, %v5099
    %v6652 = vpack.c.b16 %v5108, %v5100
    %v6653 = vpack.c.b16 %v5109, %v5101
    %v6654 = vpack.c.b16 %v5110, %v5102
    %v6655 = vpack.c.b16 %v5111, %v5103
    %v6656 = vpack.c.b16 %v5112, %v5104
    %v6657 = vpack.c.b16 %v5113, %v5105
    %v6658 = vpack.c.b16 %v5114, %v5106
    %v6659 = vpack.c.b16 %v5123, %v5115
    %v6660 = vpack.c.b16 %v5124, %v5116
    %v6661 = vpack.c.b16 %v5125, %v5117
    %v6662 = vpack.c.b16 %v5126, %v5118
    %v6663 = vpack.c.b16 %v5127, %v5119
    %v6664 = vpack.c.b16 %v5128, %v5120
    %v6665 = vpack.c.b16 %v5129, %v5121
    %v6666 = vpack.c.b16 %v5130, %v5122
    %v6667 = vpack.c.b16 %v5139, %v5131
    %v6668 = vpack.c.b16 %v5140, %v5132
    %v6669 = vpack.c.b16 %v5141, %v5133
    %v6670 = vpack.c.b16 %v5142, %v5134
    %v6671 = vpack.c.b16 %v5143, %v5135
    %v6672 = vpack.c.b16 %v5144, %v5136
    %v6673 = vpack.c.b16 %v5145, %v5137
    %v6674 = vpack.c.b16 %v5146, %v5138
    %v6675 = vpack.c.b16 %v5155, %v5147
    %v6676 = vpack.c.b16 %v5156, %v5148
    %v6677 = vpack.c.b16 %v5157, %v5149
    %v6678 = vpack.c.b16 %v5158, %v5150
    %v6679 = vpack.c.b16 %v5159, %v5151
    %v6680 = vpack.c.b16 %v5160, %v5152
    %v6681 = vpack.c.b16 %v5161, %v5153
    %v6682 = vpack.c.b16 %v5162, %v5154
    %v6683 = vpack.c.b16 %v5171, %v5163
    %v6684 = vpack.c.b16 %v5172, %v5164
    %v6685 = vpack.c.b16 %v5173, %v5165
    %v6686 = vpack.c.b16 %v5174, %v5166
    %v6687 = vpack.c.b16 %v5175, %v5167
    %v6688 = vpack.c.b16 %v5176, %v5168
    %v6689 = vpack.c.b16 %v5177, %v5169
    %v6690 = vpack.c.b16 %v5178, %v5170
    %v6691 = vpack.c.b16 %v5187, %v5179
    %v6692 = vpack.c.b16 %v5188, %v5180
    %v6693 = vpack.c.b16 %v5189, %v5181
    %v6694 = vpack.c.b16 %v5190, %v5182
    %v6695 = vpack.c.b16 %v5191, %v5183
    %v6696 = vpack.c.b16 %v5192, %v5184
    %v6697 = vpack.c.b16 %v5193, %v5185
    %v6698 = vpack.c.b16 %v5194, %v5186
    %v6699 = vpack.c.b16 %v5203, %v5195
    %v6700 = vpack.c.b16 %v5204, %v5196
    %v6701 = vpack.c.b16 %v5205, %v5197
    %v6702 = vpack.c.b16 %v5206, %v5198
    %v6703 = vpack.c.b16 %v5207, %v5199
    %v6704 = vpack.c.b16 %v5208, %v5200
    %v6705 = vpack.c.b16 %v5209, %v5201
    %v6706 = vpack.c.b16 %v5210, %v5202
    %v6707 = vpack.c.b16 %v5219, %v5211
    %v6708 = vpack.c.b16 %v5220, %v5212
    %v6709 = vpack.c.b16 %v5221, %v5213
    %v6710 = vpack.c.b16 %v5222, %v5214
    %v6711 = vpack.c.b16 %v5223, %v5215
    %v6712 = vpack.c.b16 %v5224, %v5216
    %v6713 = vpack.c.b16 %v5225, %v5217
    %v6714 = vpack.c.b16 %v5226, %v5218
    %v6715 = vpack.c.b16 %v5235, %v5227
    %v6716 = vpack.c.b16 %v5236, %v5228
    %v6717 = vpack.c.b16 %v5237, %v5229
    %v6718 = vpack.c.b16 %v5238, %v5230
    %v6719 = vpack.c.b16 %v5239, %v5231
    %v6720 = vpack.c.b16 %v5240, %v5232
    %v6721 = vpack.c.b16 %v5241, %v5233
    %v6722 = vpack.c.b16 %v5242, %v5234
    %v6723 = vpack.c.b16 %v5251, %v5243
    %v6724 = vpack.c.b16 %v5252, %v5244
    %v6725 = vpack.c.b16 %v5253, %v5245
    %v6726 = vpack.c.b16 %v5254, %v5246
    %v6727 = vpack.c.b16 %v5255, %v5247
    %v6728 = vpack.c.b16 %v5256, %v5248
    %v6729 = vpack.c.b16 %v5257, %v5249
    %v6730 = vpack.c.b16 %v5258, %v5250
    %v6731 = vpack.c.b16 %v5267, %v5259
    %v6732 = vpack.c.b16 %v5268, %v5260
    %v6733 = vpack.c.b16 %v5269, %v5261
    %v6734 = vpack.c.b16 %v5270, %v5262
    %v6735 = vpack.c.b16 %v5271, %v5263
    %v6736 = vpack.c.b16 %v5272, %v5264
    %v6737 = vpack.c.b16 %v5273, %v5265
    %v6738 = vpack.c.b16 %v5274, %v5266
    %v6739 = vpack.c.b16 %v5283, %v5275
    %v6740 = vpack.c.b16 %v5284, %v5276
    %v6741 = vpack.c.b16 %v5285, %v5277
    %v6742 = vpack.c.b16 %v5286, %v5278
    %v6743 = vpack.c.b16 %v5287, %v5279
    %v6744 = vpack.c.b16 %v5288, %v5280
    %v6745 = vpack.c.b16 %v5289, %v5281
    %v6746 = vpack.c.b16 %v5290, %v5282
    %v6747 = vpack.c.b16 %v5299, %v5291
    %v6748 = vpack.c.b16 %v5300, %v5292
    %v6749 = vpack.c.b16 %v5301, %v5293
    %v6750 = vpack.c.b16 %v5302, %v5294
    %v6751 = vpack.c.b16 %v5303, %v5295
    %v6752 = vpack.c.b16 %v5304, %v5296
    %v6753 = vpack.c.b16 %v5305, %v5297
    %v6754 = vpack.c.b16 %v5306, %v5298
    %v6755 = vpack.c.b16 %v5315, %v5307
    %v6756 = vpack.c.b16 %v5316, %v5308
    %v6757 = vpack.c.b16 %v5317, %v5309
    %v6758 = vpack.c.b16 %v5318, %v5310
    %v6759 = vpack.c.b16 %v5319, %v5311
    %v6760 = vpack.c.b16 %v5320, %v5312
    %v6761 = vpack.c.b16 %v5321, %v5313
    %v6762 = vpack.c.b16 %v5322, %v5314
    %v6763 = vpack.c.b16 %v5331, %v5323
    %v6764 = vpack.c.b16 %v5332, %v5324
    %v6765 = vpack.c.b16 %v5333, %v5325
    %v6766 = vpack.c.b16 %v5334, %v5326
    %v6767 = vpack.c.b16 %v5335, %v5327
    %v6768 = vpack.c.b16 %v5336, %v5328
    %v6769 = vpack.c.b16 %v5337, %v5329
    %v6770 = vpack.c.b16 %v5338, %v5330
    %v6771 = vpack.c.b16 %v5347, %v5339
    %v6772 = vpack.c.b16 %v5348, %v5340
    %v6773 = vpack.c.b16 %v5349, %v5341
    %v6774 = vpack.c.b16 %v5350, %v5342
    %v6775 = vpack.c.b16 %v5351, %v5343
    %v6776 = vpack.c.b16 %v5352, %v5344
    %v6777 = vpack.c.b16 %v5353, %v5345
    %v6778 = vpack.c.b16 %v5354, %v5346
    %v6779 = vpack.c.b16 %v5363, %v5355
    %v6780 = vpack.c.b16 %v5364, %v5356
    %v6781 = vpack.c.b16 %v5365, %v5357
    %v6782 = vpack.c.b16 %v5366, %v5358
    %v6783 = vpack.c.b16 %v5367, %v5359
    %v6784 = vpack.c.b16 %v5368, %v5360
    %v6785 = vpack.c.b16 %v5369, %v5361
    %v6786 = vpack.c.b16 %v5370, %v5362
    %v6787 = vpack.c.b16 %v5379, %v5371
    %v6788 = vpack.c.b16 %v5380, %v5372
    %v6789 = vpack.c.b16 %v5381, %v5373
    %v6790 = vpack.c.b16 %v5382, %v5374
    %v6791 = vpack.c.b16 %v5383, %v5375
    %v6792 = vpack.c.b16 %v5384, %v5376
    %v6793 = vpack.c.b16 %v5385, %v5377
    %v6794 = vpack.c.b16 %v5386, %v5378
    %v6795 = vpack.c.b16 %v5395, %v5387
    %v6796 = vpack.c.b16 %v5396, %v5388
    %v6797 = vpack.c.b16 %v5397, %v5389
    %v6798 = vpack.c.b16 %v5398, %v5390
    %v6799 = vpack.c.b16 %v5399, %v5391
    %v6800 = vpack.c.b16 %v5400, %v5392
    %v6801 = vpack.c.b16 %v5401, %v5393
    %v6802 = vpack.c.b16 %v5402, %v5394
    %v6803 = vpack.c.b16 %v5411, %v5403
    %v6804 = vpack.c.b16 %v5412, %v5404
    %v6805 = vpack.c.b16 %v5413, %v5405
    %v6806 = vpack.c.b16 %v5414, %v5406
    %v6807 = vpack.c.b16 %v5415, %v5407
    %v6808 = vpack.c.b16 %v5416, %v5408
    %v6809 = vpack.c.b16 %v5417, %v5409
    %v6810 = vpack.c.b16 %v5418, %v5410
    %v6811 = vpack.c.b16 %v5427, %v5419
    %v6812 = vpack.c.b16 %v5428, %v5420
    %v6813 = vpack.c.b16 %v5429, %v5421
    %v6814 = vpack.c.b16 %v5430, %v5422
    %v6815 = vpack.c.b16 %v5431, %v5423
    %v6816 = vpack.c.b16 %v5432, %v5424
    %v6817 = vpack.c.b16 %v5433, %v5425
    %v6818 = vpack.c.b16 %v5434, %v5426
    %v6819 = vpack.c.b16 %v5443, %v5435
    %v6820 = vpack.c.b16 %v5444, %v5436
    %v6821 = vpack.c.b16 %v5445, %v5437
    %v6822 = vpack.c.b16 %v5446, %v5438
    %v6823 = vpack.c.b16 %v5447, %v5439
    %v6824 = vpack.c.b16 %v5448, %v5440
    %v6825 = vpack.c.b16 %v5449, %v5441
    %v6826 = vpack.c.b16 %v5450, %v5442
    %v6827 = vpack.c.b16 %v5459, %v5451
    %v6828 = vpack.c.b16 %v5460, %v5452
    %v6829 = vpack.c.b16 %v5461, %v5453
    %v6830 = vpack.c.b16 %v5462, %v5454
    %v6831 = vpack.c.b16 %v5463, %v5455
    %v6832 = vpack.c.b16 %v5464, %v5456
    %v6833 = vpack.c.b16 %v5465, %v5457
    %v6834 = vpack.c.b16 %v5466, %v5458
    %v6835 = vpack.c.b16 %v5475, %v5467
    %v6836 = vpack.c.b16 %v5476, %v5468
    %v6837 = vpack.c.b16 %v5477, %v5469
    %v6838 = vpack.c.b16 %v5478, %v5470
    %v6839 = vpack.c.b16 %v5479, %v5471
    %v6840 = vpack.c.b16 %v5480, %v5472
    %v6841 = vpack.c.b16 %v5481, %v5473
    %v6842 = vpack.c.b16 %v5482, %v5474
    %v6843 = vpack.c.b16 %v5491, %v5483
    %v6844 = vpack.c.b16 %v5492, %v5484
    %v6845 = vpack.c.b16 %v5493, %v5485
    %v6846 = vpack.c.b16 %v5494, %v5486
    %v6847 = vpack.c.b16 %v5495, %v5487
    %v6848 = vpack.c.b16 %v5496, %v5488
    %v6849 = vpack.c.b16 %v5497, %v5489
    %v6850 = vpack.c.b16 %v5498, %v5490
    %v6851 = vpack.c.b16 %v5507, %v5499
    %v6852 = vpack.c.b16 %v5508, %v5500
    %v6853 = vpack.c.b16 %v5509, %v5501
    %v6854 = vpack.c.b16 %v5510, %v5502
    %v6855 = vpack.c.b16 %v5511, %v5503
    %v6856 = vpack.c.b16 %v5512, %v5504
    %v6857 = vpack.c.b16 %v5513, %v5505
    %v6858 = vpack.c.b16 %v5514, %v5506
    %v6859 = vpack.c.b16 %v5523, %v5515
    %v6860 = vpack.c.b16 %v5524, %v5516
    %v6861 = vpack.c.b16 %v5525, %v5517
    %v6862 = vpack.c.b16 %v5526, %v5518
    %v6863 = vpack.c.b16 %v5527, %v5519
    %v6864 = vpack.c.b16 %v5528, %v5520
    %v6865 = vpack.c.b16 %v5529, %v5521
    %v6866 = vpack.c.b16 %v5530, %v5522
    %v6867 = vpack.c.b16 %v5539, %v5531
    %v6868 = vpack.c.b16 %v5540, %v5532
    %v6869 = vpack.c.b16 %v5541, %v5533
    %v6870 = vpack.c.b16 %v5542, %v5534
    %v6871 = vpack.c.b16 %v5543, %v5535
    %v6872 = vpack.c.b16 %v5544, %v5536
    %v6873 = vpack.c.b16 %v5545, %v5537
    %v6874 = vpack.c.b16 %v5546, %v5538
    %v6875 = vpack.c.b16 %v5555, %v5547
    %v6876 = vpack.c.b16 %v5556, %v5548
    %v6877 = vpack.c.b16 %v5557, %v5549
    %v6878 = vpack.c.b16 %v5558, %v5550
    %v6879 = vpack.c.b16 %v5559, %v5551
    %v6880 = vpack.c.b16 %v5560, %v5552
    %v6881 = vpack.c.b16 %v5561, %v5553
    %v6882 = vpack.c.b16 %v5562, %v5554
    %v6883 = vpack.c.b16 %v5571, %v5563
    %v6884 = vpack.c.b16 %v5572, %v5564
    %v6885 = vpack.c.b16 %v5573, %v5565
    %v6886 = vpack.c.b16 %v5574, %v5566
    %v6887 = vpack.c.b16 %v5575, %v5567
    %v6888 = vpack.c.b16 %v5576, %v5568
    %v6889 = vpack.c.b16 %v5577, %v5569
    %v6890 = vpack.c.b16 %v5578, %v5570
    %v6891 = vpack.c.b16 %v5587, %v5579
    %v6892 = vpack.c.b16 %v5588, %v5580
    %v6893 = vpack.c.b16 %v5589, %v5581
    %v6894 = vpack.c.b16 %v5590, %v5582
    %v6895 = vpack.c.b16 %v5591, %v5583
    %v6896 = vpack.c.b16 %v5592, %v5584
    %v6897 = vpack.c.b16 %v5593, %v5585
    %v6898 = vpack.c.b16 %v5594, %v5586
    %v6899 = vpack.c.b16 %v5603, %v5595
    %v6900 = vpack.c.b16 %v5604, %v5596
    %v6901 = vpack.c.b16 %v5605, %v5597
    %v6902 = vpack.c.b16 %v5606, %v5598
    %v6903 = vpack.c.b16 %v5607, %v5599
    %v6904 = vpack.c.b16 %v5608, %v5600
    %v6905 = vpack.c.b16 %v5609, %v5601
    %v6906 = vpack.c.b16 %v5610, %v5602
    %v6907 = vpack.c.b16 %v5619, %v5611
    %v6908 = vpack.c.b16 %v5620, %v5612
    %v6909 = vpack.c.b16 %v5621, %v5613
    %v6910 = vpack.c.b16 %v5622, %v5614
    %v6911 = vpack.c.b16 %v5623, %v5615
    %v6912 = vpack.c.b16 %v5624, %v5616
    %v6913 = vpack.c.b16 %v5625, %v5617
    %v6914 = vpack.c.b16 %v5626, %v5618
    %v6915 = vpack.c.b16 %v5635, %v5627
    %v6916 = vpack.c.b16 %v5636, %v5628
    %v6917 = vpack.c.b16 %v5637, %v5629
    %v6918 = vpack.c.b16 %v5638, %v5630
    %v6919 = vpack.c.b16 %v5639, %v5631
    %v6920 = vpack.c.b16 %v5640, %v5632
    %v6921 = vpack.c.b16 %v5641, %v5633
    %v6922 = vpack.c.b16 %v5642, %v5634
    %v6923 = vpack.c.b16 %v5651, %v5643
    %v6924 = vpack.c.b16 %v5652, %v5644
    %v6925 = vpack.c.b16 %v5653, %v5645
    %v6926 = vpack.c.b16 %v5654, %v5646
    %v6927 = vpack.c.b16 %v5655, %v5647
    %v6928 = vpack.c.b16 %v5656, %v5648
    %v6929 = vpack.c.b16 %v5657, %v5649
    %v6930 = vpack.c.b16 %v5658, %v5650
    %v6931 = vpack.c.b16 %v5667, %v5659
    %v6932 = vpack.c.b16 %v5668, %v5660
    %v6933 = vpack.c.b16 %v5669, %v5661
    %v6934 = vpack.c.b16 %v5670, %v5662
    %v6935 = vpack.c.b16 %v5671, %v5663
    %v6936 = vpack.c.b16 %v5672, %v5664
    %v6937 = vpack.c.b16 %v5673, %v5665
    %v6938 = vpack.c.b16 %v5674, %v5666
    %v6939 = vpack.c.b16 %v5683, %v5675
    %v6940 = vpack.c.b16 %v5684, %v5676
    %v6941 = vpack.c.b16 %v5685, %v5677
    %v6942 = vpack.c.b16 %v5686, %v5678
    %v6943 = vpack.c.b16 %v5687, %v5679
    %v6944 = vpack.c.b16 %v5688, %v5680
    %v6945 = vpack.c.b16 %v5689, %v5681
    %v6946 = vpack.c.b16 %v5690, %v5682
    %v6947 = vpack.c.b16 %v5699, %v5691
    %v6948 = vpack.c.b16 %v5700, %v5692
    %v6949 = vpack.c.b16 %v5701, %v5693
    %v6950 = vpack.c.b16 %v5702, %v5694
    %v6951 = vpack.c.b16 %v5703, %v5695
    %v6952 = vpack.c.b16 %v5704, %v5696
    %v6953 = vpack.c.b16 %v5705, %v5697
    %v6954 = vpack.c.b16 %v5706, %v5698
    %v6955 = vpack.c.b16 %v5715, %v5707
    %v6956 = vpack.c.b16 %v5716, %v5708
    %v6957 = vpack.c.b16 %v5717, %v5709
    %v6958 = vpack.c.b16 %v5718, %v5710
    %v6959 = vpack.c.b16 %v5719, %v5711
    %v6960 = vpack.c.b16 %v5720, %v5712
    %v6961 = vpack.c.b16 %v5721, %v5713
    %v6962 = vpack.c.b16 %v5722, %v5714
    %v6963 = vpack.c.b16 %v5731, %v5723
    %v6964 = vpack.c.b16 %v5732, %v5724
    %v6965 = vpack.c.b16 %v5733, %v5725
    %v6966 = vpack.c.b16 %v5734, %v5726
    %v6967 = vpack.c.b16 %v5735, %v5727
    %v6968 = vpack.c.b16 %v5736, %v5728
    %v6969 = vpack.c.b16 %v5737, %v5729
    %v6970 = vpack.c.b16 %v5738, %v5730
    %v6971 = vpack.c.b16 %v5747, %v5739
    %v6972 = vpack.c.b16 %v5748, %v5740
    %v6973 = vpack.c.b16 %v5749, %v5741
    %v6974 = vpack.c.b16 %v5750, %v5742
    %v6975 = vpack.c.b16 %v5751, %v5743
    %v6976 = vpack.c.b16 %v5752, %v5744
    %v6977 = vpack.c.b16 %v5753, %v5745
    %v6978 = vpack.c.b16 %v5754, %v5746
    %v6979 = vpack.c.b16 %v5763, %v5755
    %v6980 = vpack.c.b16 %v5764, %v5756
    %v6981 = vpack.c.b16 %v5765, %v5757
    %v6982 = vpack.c.b16 %v5766, %v5758
    %v6983 = vpack.c.b16 %v5767, %v5759
    %v6984 = vpack.c.b16 %v5768, %v5760
    %v6985 = vpack.c.b16 %v5769, %v5761
    %v6986 = vpack.c.b16 %v5770, %v5762
    %v6987 = vpack.c.b16 %v5779, %v5771
    %v6988 = vpack.c.b16 %v5780, %v5772
    %v6989 = vpack.c.b16 %v5781, %v5773
    %v6990 = vpack.c.b16 %v5782, %v5774
    %v6991 = vpack.c.b16 %v5783, %v5775
    %v6992 = vpack.c.b16 %v5784, %v5776
    %v6993 = vpack.c.b16 %v5785, %v5777
    %v6994 = vpack.c.b16 %v5786, %v5778
    %v6995 = vpack.c.b16 %v5795, %v5787
    %v6996 = vpack.c.b16 %v5796, %v5788
    %v6997 = vpack.c.b16 %v5797, %v5789
    %v6998 = vpack.c.b16 %v5798, %v5790
    %v6999 = vpack.c.b16 %v5799, %v5791
    %v7000 = vpack.c.b16 %v5800, %v5792
    %v7001 = vpack.c.b16 %v5801, %v5793
    %v7002 = vpack.c.b16 %v5802, %v5794
    %v7003 = vpack.c.b16 %v5811, %v5803
    %v7004 = vpack.c.b16 %v5812, %v5804
    %v7005 = vpack.c.b16 %v5813, %v5805
    %v7006 = vpack.c.b16 %v5814, %v5806
    %v7007 = vpack.c.b16 %v5815, %v5807
    %v7008 = vpack.c.b16 %v5816, %v5808
    %v7009 = vpack.c.b16 %v5817, %v5809
    %v7010 = vpack.c.b16 %v5818, %v5810
    %v7011 = vpack.c.b16 %v5827, %v5819
    %v7012 = vpack.c.b16 %v5828, %v5820
    %v7013 = vpack.c.b16 %v5829, %v5821
    %v7014 = vpack.c.b16 %v5830, %v5822
    %v7015 = vpack.c.b16 %v5831, %v5823
    %v7016 = vpack.c.b16 %v5832, %v5824
    %v7017 = vpack.c.b16 %v5833, %v5825
    %v7018 = vpack.c.b16 %v5834, %v5826
    %v7019 = vpack.c.b16 %v5843, %v5835
    %v7020 = vpack.c.b16 %v5844, %v5836
    %v7021 = vpack.c.b16 %v5845, %v5837
    %v7022 = vpack.c.b16 %v5846, %v5838
    %v7023 = vpack.c.b16 %v5847, %v5839
    %v7024 = vpack.c.b16 %v5848, %v5840
    %v7025 = vpack.c.b16 %v5849, %v5841
    %v7026 = vpack.c.b16 %v5850, %v5842
    %v7027 = vpack.c.b16 %v5859, %v5851
    %v7028 = vpack.c.b16 %v5860, %v5852
    %v7029 = vpack.c.b16 %v5861, %v5853
    %v7030 = vpack.c.b16 %v5862, %v5854
    %v7031 = vpack.c.b16 %v5863, %v5855
    %v7032 = vpack.c.b16 %v5864, %v5856
    %v7033 = vpack.c.b16 %v5865, %v5857
    %v7034 = vpack.c.b16 %v5866, %v5858
    %v7035 = vpack.c.b16 %v5875, %v5867
    %v7036 = vpack.c.b16 %v5876, %v5868
    %v7037 = vpack.c.b16 %v5877, %v5869
    %v7038 = vpack.c.b16 %v5878, %v5870
    %v7039 = vpack.c.b16 %v5879, %v5871
    %v7040 = vpack.c.b16 %v5880, %v5872
    %v7041 = vpack.c.b16 %v5881, %v5873
    %v7042 = vpack.c.b16 %v5882, %v5874
    %v7043 = vpack.c.b16 %v5891, %v5883
    %v7044 = vpack.c.b16 %v5892, %v5884
    %v7045 = vpack.c.b16 %v5893, %v5885
    %v7046 = vpack.c.b16 %v5894, %v5886
    %v7047 = vpack.c.b16 %v5895, %v5887
    %v7048 = vpack.c.b16 %v5896, %v5888
    %v7049 = vpack.c.b16 %v5897, %v5889
    %v7050 = vpack.c.b16 %v5898, %v5890
    %v7051 = vpack.c.b16 %v5907, %v5899
    %v7052 = vpack.c.b16 %v5908, %v5900
    %v7053 = vpack.c.b16 %v5909, %v5901
    %v7054 = vpack.c.b16 %v5910, %v5902
    %v7055 = vpack.c.b16 %v5911, %v5903
    %v7056 = vpack.c.b16 %v5912, %v5904
    %v7057 = vpack.c.b16 %v5913, %v5905
    %v7058 = vpack.c.b16 %v5914, %v5906
    %v7059 = vpack.c.b16 %v5923, %v5915
    %v7060 = vpack.c.b16 %v5924, %v5916
    %v7061 = vpack.c.b16 %v5925, %v5917
    %v7062 = vpack.c.b16 %v5926, %v5918
    %v7063 = vpack.c.b16 %v5927, %v5919
    %v7064 = vpack.c.b16 %v5928, %v5920
    %v7065 = vpack.c.b16 %v5929, %v5921
    %v7066 = vpack.c.b16 %v5930, %v5922
    %v7067 = vpack.c.b16 %v5939, %v5931
    %v7068 = vpack.c.b16 %v5940, %v5932
    %v7069 = vpack.c.b16 %v5941, %v5933
    %v7070 = vpack.c.b16 %v5942, %v5934
    %v7071 = vpack.c.b16 %v5943, %v5935
    %v7072 = vpack.c.b16 %v5944, %v5936
    %v7073 = vpack.c.b16 %v5945, %v5937
    %v7074 = vpack.c.b16 %v5946, %v5938
    %v7075 = vpack.c.b16 %v5955, %v5947
    %v7076 = vpack.c.b16 %v5956, %v5948
    %v7077 = vpack.c.b16 %v5957, %v5949
    %v7078 = vpack.c.b16 %v5958, %v5950
    %v7079 = vpack.c.b16 %v5959, %v5951
    %v7080 = vpack.c.b16 %v5960, %v5952
    %v7081 = vpack.c.b16 %v5961, %v5953
    %v7082 = vpack.c.b16 %v5962, %v5954
    %v7083 = vpack.c.b16 %v5971, %v5963
    %v7084 = vpack.c.b16 %v5972, %v5964
    %v7085 = vpack.c.b16 %v5973, %v5965
    %v7086 = vpack.c.b16 %v5974, %v5966
    %v7087 = vpack.c.b16 %v5975, %v5967
    %v7088 = vpack.c.b16 %v5976, %v5968
    %v7089 = vpack.c.b16 %v5977, %v5969
    %v7090 = vpack.c.b16 %v5978, %v5970
    %v7091 = vpack.c.b16 %v5987, %v5979
    %v7092 = vpack.c.b16 %v5988, %v5980
    %v7093 = vpack.c.b16 %v5989, %v5981
    %v7094 = vpack.c.b16 %v5990, %v5982
    %v7095 = vpack.c.b16 %v5991, %v5983
    %v7096 = vpack.c.b16 %v5992, %v5984
    %v7097 = vpack.c.b16 %v5993, %v5985
    %v7098 = vpack.c.b16 %v5994, %v5986
    %v7099 = vpack.c.b16 %v6003, %v5995
    %v7100 = vpack.c.b16 %v6004, %v5996
    %v7101 = vpack.c.b16 %v6005, %v5997
    %v7102 = vpack.c.b16 %v6006, %v5998
    %v7103 = vpack.c.b16 %v6007, %v5999
    %v7104 = vpack.c.b16 %v6008, %v6000
    %v7105 = vpack.c.b16 %v6009, %v6001
    %v7106 = vpack.c.b16 %v6010, %v6002
    %v7107 = vpack.c.b16 %v6019, %v6011
    %v7108 = vpack.c.b16 %v6020, %v6012
    %v7109 = vpack.c.b16 %v6021, %v6013
    %v7110 = vpack.c.b16 %v6022, %v6014
    %v7111 = vpack.c.b16 %v6023, %v6015
    %v7112 = vpack.c.b16 %v6024, %v6016
    %v7113 = vpack.c.b16 %v6025, %v6017
    %v7114 = vpack.c.b16 %v6026, %v6018
    %v7115 = vpack.c.b16 %v6035, %v6027
    %v7116 = vpack.c.b16 %v6036, %v6028
    %v7117 = vpack.c.b16 %v6037, %v6029
    %v7118 = vpack.c.b16 %v6038, %v6030
    %v7119 = vpack.c.b16 %v6039, %v6031
    %v7120 = vpack.c.b16 %v6040, %v6032
    %v7121 = vpack.c.b16 %v6041, %v6033
    %v7122 = vpack.c.b16 %v6042, %v6034
    %v7123 = vpack.c.b16 %v6051, %v6043
    %v7124 = vpack.c.b16 %v6052, %v6044
    %v7125 = vpack.c.b16 %v6053, %v6045
    %v7126 = vpack.c.b16 %v6054, %v6046
    %v7127 = vpack.c.b16 %v6055, %v6047
    %v7128 = vpack.c.b16 %v6056, %v6048
    %v7129 = vpack.c.b16 %v6057, %v6049
    %v7130 = vpack.c.b16 %v6058, %v6050
    %v7131 = vpack.c.b16 %v6067, %v6059
    %v7132 = vpack.c.b16 %v6068, %v6060
    %v7133 = vpack.c.b16 %v6069, %v6061
    %v7134 = vpack.c.b16 %v6070, %v6062
    %v7135 = vpack.c.b16 %v6071, %v6063
    %v7136 = vpack.c.b16 %v6072, %v6064
    %v7137 = vpack.c.b16 %v6073, %v6065
    %v7138 = vpack.c.b16 %v6074, %v6066
    %v7139 = vpack.c.b16 %v6083, %v6075
    %v7140 = vpack.c.b16 %v6084, %v6076
    %v7141 = vpack.c.b16 %v6085, %v6077
    %v7142 = vpack.c.b16 %v6086, %v6078
    %v7143 = vpack.c.b16 %v6087, %v6079
    %v7144 = vpack.c.b16 %v6088, %v6080
    %v7145 = vpack.c.b16 %v6089, %v6081
    %v7146 = vpack.c.b16 %v6090, %v6082
    %v7147 = vpack.c.b16 %v6099, %v6091
    %v7148 = vpack.c.b16 %v6100, %v6092
    %v7149 = vpack.c.b16 %v6101, %v6093
    %v7150 = vpack.c.b16 %v6102, %v6094
    %v7151 = vpack.c.b16 %v6103, %v6095
    %v7152 = vpack.c.b16 %v6104, %v6096
    %v7153 = vpack.c.b16 %v6105, %v6097
    %v7154 = vpack.c.b16 %v6106, %v6098
    %v7155 = vpack.c.b16 %v6115, %v6107
    %v7156 = vpack.c.b16 %v6116, %v6108
    %v7157 = vpack.c.b16 %v6117, %v6109
    %v7158 = vpack.c.b16 %v6118, %v6110
    %v7159 = vpack.c.b16 %v6119, %v6111
    %v7160 = vpack.c.b16 %v6120, %v6112
    %v7161 = vpack.c.b16 %v6121, %v6113
    %v7162 = vpack.c.b16 %v6122, %v6114
    %v7163 = vpack.c.b16 %v6131, %v6123
    %v7164 = vpack.c.b16 %v6132, %v6124
    %v7165 = vpack.c.b16 %v6133, %v6125
    %v7166 = vpack.c.b16 %v6134, %v6126
    %v7167 = vpack.c.b16 %v6135, %v6127
    %v7168 = vpack.c.b16 %v6136, %v6128
    %v7169 = vpack.c.b16 %v6137, %v6129
    %v7170 = vpack.c.b16 %v6138, %v6130
    %v7171 = vpack.c.b16 %v6147, %v6139
    %v7172 = vpack.c.b16 %v6148, %v6140
    %v7173 = vpack.c.b16 %v6149, %v6141
    %v7174 = vpack.c.b16 %v6150, %v6142
    %v7175 = vpack.c.b16 %v6151, %v6143
    %v7176 = vpack.c.b16 %v6152, %v6144
    %v7177 = vpack.c.b16 %v6153, %v6145
    %v7178 = vpack.c.b16 %v6154, %v6146
    %8203 = vmatprep.subr.bf16.mxu0 %v6156
    %8204 = vmatpush1.bf16.msra.mxu0 %v6155
    %8205 = vmatprep.subr.bf16.mxu0 %v6164
    %8206 = vmatpush1.bf16.msra.mxu0 %v6163
    %8207 = vmatprep.subr.bf16.mxu0 %v6172
    %8208 = vmatpush1.bf16.msra.mxu0 %v6171
    %8209 = vmatprep.subr.bf16.mxu0 %v6180
    %8210 = vmatpush1.bf16.msra.mxu0 %v6179
    %8211 = vmatprep.subr.bf16.mxu0 %v6188
    %8212 = vmatpush1.bf16.msra.mxu0 %v6187
    %8213 = vmatprep.subr.bf16.mxu0 %v6196
    %8214 = vmatpush1.bf16.msra.mxu0 %v6195
    %8215 = vmatprep.subr.bf16.mxu0 %v6204
    %8216 = vmatpush1.bf16.msra.mxu0 %v6203
    %8217 = vmatprep.subr.bf16.mxu0 %v6212
    %8218 = vmatpush1.bf16.msra.mxu0 %v6211
    %8219 = vmatprep.subr.bf16.mxu0 %v6220
    %8220 = vmatpush1.bf16.msra.mxu0 %v6219
    %8221 = vmatprep.subr.bf16.mxu0 %v6228
    %8222 = vmatpush1.bf16.msra.mxu0 %v6227
    %8223 = vmatprep.subr.bf16.mxu0 %v6236
    %8224 = vmatpush1.bf16.msra.mxu0 %v6235
    %8225 = vmatprep.subr.bf16.mxu0 %v6244
    %8226 = vmatpush1.bf16.msra.mxu0 %v6243
    %8227 = vmatprep.subr.bf16.mxu0 %v6252
    %8228 = vmatpush1.bf16.msra.mxu0 %v6251
    %8229 = vmatprep.subr.bf16.mxu0 %v6260
    %8230 = vmatpush1.bf16.msra.mxu0 %v6259
    %8231 = vmatprep.subr.bf16.mxu0 %v6268
    %8232 = vmatpush1.bf16.msra.mxu0 %v6267
    %8233 = vmatprep.subr.bf16.mxu0 %v6276
    %8234 = vmatpush1.bf16.msra.mxu0 %v6275
    %8235 = vmatprep.mubr.bf16.mxu0 %v2044
    %8236 = vmatmul.mubr.bf16.gmra.mrb[0].mxu0 %v2043
    %v8237 = vpop.f32.mrb[0].mxu0
    %v8238 = vadd.f32 0.0, %v8237
    %v8239 = vpop.f32.mrb[0].mxu0
    %v8240 = vadd.f32 0.0, %v8239
    %v8241 = vpop.f32.mrb[0].mxu0
    %v8242 = vpop.f32.mrb[0].mxu0
    %8243 = vdwg.mxu0
    %8244 = vmatprep.subr.bf16.mxu0 %v6284
    %8245 = vmatpush1.bf16.msra.mxu0 %v6283
    %8246 = vmatprep.subr.bf16.mxu0 %v6292
    %8247 = vmatpush1.bf16.msra.mxu0 %v6291
    %8248 = vmatprep.subr.bf16.mxu0 %v6300
    %8249 = vmatpush1.bf16.msra.mxu0 %v6299
    %8250 = vmatprep.subr.bf16.mxu0 %v6308
    %8251 = vmatpush1.bf16.msra.mxu0 %v6307
    %8252 = vmatprep.subr.bf16.mxu0 %v6316
    %8253 = vmatpush1.bf16.msra.mxu0 %v6315
    %8254 = vmatprep.subr.bf16.mxu0 %v6324
    %8255 = vmatpush1.bf16.msra.mxu0 %v6323
    %8256 = vmatprep.subr.bf16.mxu0 %v6332
    %8257 = vmatpush1.bf16.msra.mxu0 %v6331
    %8258 = vmatprep.subr.bf16.mxu0 %v6340
    %8259 = vmatpush1.bf16.msra.mxu0 %v6339
    %8260 = vmatprep.subr.bf16.mxu0 %v6348
    %8261 = vmatpush1.bf16.msra.mxu0 %v6347
    %8262 = vmatprep.subr.bf16.mxu0 %v6356
    %8263 = vmatpush1.bf16.msra.mxu0 %v6355
    %8264 = vmatprep.subr.bf16.mxu0 %v6364
    %8265 = vmatpush1.bf16.msra.mxu0 %v6363
    %8266 = vmatprep.subr.bf16.mxu0 %v6372
    %8267 = vmatpush1.bf16.msra.mxu0 %v6371
    %8268 = vmatprep.subr.bf16.mxu0 %v6380
    %8269 = vmatpush1.bf16.msra.mxu0 %v6379
    %8270 = vmatprep.subr.bf16.mxu0 %v6388
    %8271 = vmatpush1.bf16.msra.mxu0 %v6387
    %8272 = vmatprep.subr.bf16.mxu0 %v6396
    %8273 = vmatpush1.bf16.msra.mxu0 %v6395
    %8274 = vmatprep.subr.bf16.mxu0 %v6404
    %8275 = vmatpush1.bf16.msra.mxu0 %v6403
    %8276 = vmatprep.mubr.bf16.mxu0 %v2046
    %8277 = vmatmul.mubr.bf16.gmra.mrb[0].mxu0 %v2045
    %v8278 = vpop.f32.mrb[0].mxu0
    %v8279 = vadd.f32 %v8238, %v8278
    %v8280 = vpop.f32.mrb[0].mxu0
    %v8281 = vadd.f32 %v8240, %v8280
    %v8282 = vpop.f32.mrb[0].mxu0
    %v8283 = vpop.f32.mrb[0].mxu0
    %8284 = vdwg.mxu0
    %8285 = vmatprep.subr.bf16.mxu0 %v6412
    %8286 = vmatpush1.bf16.msra.mxu0 %v6411
    %8287 = vmatprep.subr.bf16.mxu0 %v6420
    %8288 = vmatpush1.bf16.msra.mxu0 %v6419
    %8289 = vmatprep.subr.bf16.mxu0 %v6428
    %8290 = vmatpush1.bf16.msra.mxu0 %v6427
    %8291 = vmatprep.subr.bf16.mxu0 %v6436
    %8292 = vmatpush1.bf16.msra.mxu0 %v6435
    %8293 = vmatprep.subr.bf16.mxu0 %v6444
    %8294 = vmatpush1.bf16.msra.mxu0 %v6443
    %8295 = vmatprep.subr.bf16.mxu0 %v6452
    %8296 = vmatpush1.bf16.msra.mxu0 %v6451
    %8297 = vmatprep.subr.bf16.mxu0 %v6460
    %8298 = vmatpush1.bf16.msra.mxu0 %v6459
    %8299 = vmatprep.subr.bf16.mxu0 %v6468
    %8300 = vmatpush1.bf16.msra.mxu0 %v6467
    %8301 = vmatprep.subr.bf16.mxu0 %v6476
    %8302 = vmatpush1.bf16.msra.mxu0 %v6475
    %8303 = vmatprep.subr.bf16.mxu0 %v6484
    %8304 = vmatpush1.bf16.msra.mxu0 %v6483
    %8305 = vmatprep.subr.bf16.mxu0 %v6492
    %8306 = vmatpush1.bf16.msra.mxu0 %v6491
    %8307 = vmatprep.subr.bf16.mxu0 %v6500
    %8308 = vmatpush1.bf16.msra.mxu0 %v6499
    %8309 = vmatprep.subr.bf16.mxu0 %v6508
    %8310 = vmatpush1.bf16.msra.mxu0 %v6507
    %8311 = vmatprep.subr.bf16.mxu0 %v6516
    %8312 = vmatpush1.bf16.msra.mxu0 %v6515
    %8313 = vmatprep.subr.bf16.mxu0 %v6524
    %8314 = vmatpush1.bf16.msra.mxu0 %v6523
    %8315 = vmatprep.subr.bf16.mxu0 %v6532
    %8316 = vmatpush1.bf16.msra.mxu0 %v6531
    %8317 = vmatprep.mubr.bf16.mxu0 %v2048
    %8318 = vmatmul.mubr.bf16.gmra.mrb[0].mxu0 %v2047
    %v8319 = vpop.f32.mrb[0].mxu0
    %v8320 = vadd.f32 %v8279, %v8319
    %v8321 = vpop.f32.mrb[0].mxu0
    %v8322 = vadd.f32 %v8281, %v8321
    %v8323 = vpop.f32.mrb[0].mxu0
    %v8324 = vpop.f32.mrb[0].mxu0
    %8325 = vdwg.mxu0
    %8326 = vmatprep.subr.bf16.mxu0 %v6540
    %8327 = vmatpush1.bf16.msra.mxu0 %v6539
    %8328 = vmatprep.subr.bf16.mxu0 %v6548
    %8329 = vmatpush1.bf16.msra.mxu0 %v6547
    %8330 = vmatprep.subr.bf16.mxu0 %v6556
    %8331 = vmatpush1.bf16.msra.mxu0 %v6555
    %8332 = vmatprep.subr.bf16.mxu0 %v6564
    %8333 = vmatpush1.bf16.msra.mxu0 %v6563
    %8334 = vmatprep.subr.bf16.mxu0 %v6572
    %8335 = vmatpush1.bf16.msra.mxu0 %v6571
    %8336 = vmatprep.subr.bf16.mxu0 %v6580
    %8337 = vmatpush1.bf16.msra.mxu0 %v6579
    %8338 = vmatprep.subr.bf16.mxu0 %v6588
    %8339 = vmatpush1.bf16.msra.mxu0 %v6587
    %8340 = vmatprep.subr.bf16.mxu0 %v6596
    %8341 = vmatpush1.bf16.msra.mxu0 %v6595
    %8342 = vmatprep.subr.bf16.mxu0 %v6604
    %8343 = vmatpush1.bf16.msra.mxu0 %v6603
    %8344 = vmatprep.subr.bf16.mxu0 %v6612
    %8345 = vmatpush1.bf16.msra.mxu0 %v6611
    %8346 = vmatprep.subr.bf16.mxu0 %v6620
    %8347 = vmatpush1.bf16.msra.mxu0 %v6619
    %8348 = vmatprep.subr.bf16.mxu0 %v6628
    %8349 = vmatpush1.bf16.msra.mxu0 %v6627
    %8350 = vmatprep.subr.bf16.mxu0 %v6636
    %8351 = vmatpush1.bf16.msra.mxu0 %v6635
    %8352 = vmatprep.subr.bf16.mxu0 %v6644
    %8353 = vmatpush1.bf16.msra.mxu0 %v6643
    %8354 = vmatprep.subr.bf16.mxu0 %v6652
    %8355 = vmatpush1.bf16.msra.mxu0 %v6651
    %8356 = vmatprep.subr.bf16.mxu0 %v6660
    %8357 = vmatpush1.bf16.msra.mxu0 %v6659
    %8358 = vmatprep.mubr.bf16.mxu0 %v2050
    %8359 = vmatmul.mubr.bf16.gmra.mrb[0].mxu0 %v2049
    %v8360 = vpop.f32.mrb[0].mxu0
    %v8361 = vadd.f32 %v8320, %v8360
    %v8362 = vpop.f32.mrb[0].mxu0
    %v8363 = vadd.f32 %v8322, %v8362
    %v8364 = vpop.f32.mrb[0].mxu0
    %v8365 = vpop.f32.mrb[0].mxu0
    %8366 = vdwg.mxu0
    %8367 = vmatprep.subr.bf16.mxu0 %v6668
    %8368 = vmatpush1.bf16.msra.mxu0 %v6667
    %8369 = vmatprep.subr.bf16.mxu0 %v6676
    %8370 = vmatpush1.bf16.msra.mxu0 %v6675
    %8371 = vmatprep.subr.bf16.mxu0 %v6684
    %8372 = vmatpush1.bf16.msra.mxu0 %v6683
    %8373 = vmatprep.subr.bf16.mxu0 %v6692
    %8374 = vmatpush1.bf16.msra.mxu0 %v6691
    %8375 = vmatprep.subr.bf16.mxu0 %v6700
    %8376 = vmatpush1.bf16.msra.mxu0 %v6699
    %8377 = vmatprep.subr.bf16.mxu0 %v6708
    %8378 = vmatpush1.bf16.msra.mxu0 %v6707
    %8379 = vmatprep.subr.bf16.mxu0 %v6716
    %8380 = vmatpush1.bf16.msra.mxu0 %v6715
    %8381 = vmatprep.subr.bf16.mxu0 %v6724
    %8382 = vmatpush1.bf16.msra.mxu0 %v6723
    %8383 = vmatprep.subr.bf16.mxu0 %v6732
    %8384 = vmatpush1.bf16.msra.mxu0 %v6731
    %8385 = vmatprep.subr.bf16.mxu0 %v6740
    %8386 = vmatpush1.bf16.msra.mxu0 %v6739
    %8387 = vmatprep.subr.bf16.mxu0 %v6748
    %8388 = vmatpush1.bf16.msra.mxu0 %v6747
    %8389 = vmatprep.subr.bf16.mxu0 %v6756
    %8390 = vmatpush1.bf16.msra.mxu0 %v6755
    %8391 = vmatprep.subr.bf16.mxu0 %v6764
    %8392 = vmatpush1.bf16.msra.mxu0 %v6763
    %8393 = vmatprep.subr.bf16.mxu0 %v6772
    %8394 = vmatpush1.bf16.msra.mxu0 %v6771
    %8395 = vmatprep.subr.bf16.mxu0 %v6780
    %8396 = vmatpush1.bf16.msra.mxu0 %v6779
    %8397 = vmatprep.subr.bf16.mxu0 %v6788
    %8398 = vmatpush1.bf16.msra.mxu0 %v6787
    %8399 = vmatprep.mubr.bf16.mxu0 %v2052
    %8400 = vmatmul.mubr.bf16.gmra.mrb[0].mxu0 %v2051
    %v8401 = vpop.f32.mrb[0].mxu0
    %v8402 = vadd.f32 %v8361, %v8401
    %v8403 = vpop.f32.mrb[0].mxu0
    %v8404 = vadd.f32 %v8363, %v8403
    %v8405 = vpop.f32.mrb[0].mxu0
    %v8406 = vpop.f32.mrb[0].mxu0
    %8407 = vdwg.mxu0
    %8408 = vmatprep.subr.bf16.mxu0 %v6796
    %8409 = vmatpush1.bf16.msra.mxu0 %v6795
    %8410 = vmatprep.subr.bf16.mxu0 %v6804
    %8411 = vmatpush1.bf16.msra.mxu0 %v6803
    %8412 = vmatprep.subr.bf16.mxu0 %v6812
    %8413 = vmatpush1.bf16.msra.mxu0 %v6811
    %8414 = vmatprep.subr.bf16.mxu0 %v6820
    %8415 = vmatpush1.bf16.msra.mxu0 %v6819
    %8416 = vmatprep.subr.bf16.mxu0 %v6828
    %8417 = vmatpush1.bf16.msra.mxu0 %v6827
    %8418 = vmatprep.subr.bf16.mxu0 %v6836
    %8419 = vmatpush1.bf16.msra.mxu0 %v6835
    %8420 = vmatprep.subr.bf16.mxu0 %v6844
    %8421 = vmatpush1.bf16.msra.mxu0 %v6843
    %8422 = vmatprep.subr.bf16.mxu0 %v6852
    %8423 = vmatpush1.bf16.msra.mxu0 %v6851
    %8424 = vmatprep.subr.bf16.mxu0 %v6860
    %8425 = vmatpush1.bf16.msra.mxu0 %v6859
    %8426 = vmatprep.subr.bf16.mxu0 %v6868
    %8427 = vmatpush1.bf16.msra.mxu0 %v6867
    %8428 = vmatprep.subr.bf16.mxu0 %v6876
    %8429 = vmatpush1.bf16.msra.mxu0 %v6875
    %8430 = vmatprep.subr.bf16.mxu0 %v6884
    %8431 = vmatpush1.bf16.msra.mxu0 %v6883
    %8432 = vmatprep.subr.bf16.mxu0 %v6892
    %8433 = vmatpush1.bf16.msra.mxu0 %v6891
    %8434 = vmatprep.subr.bf16.mxu0 %v6900
    %8435 = vmatpush1.bf16.msra.mxu0 %v6899
    %8436 = vmatprep.subr.bf16.mxu0 %v6908
    %8437 = vmatpush1.bf16.msra.mxu0 %v6907
    %8438 = vmatprep.subr.bf16.mxu0 %v6916
    %8439 = vmatpush1.bf16.msra.mxu0 %v6915
    %8440 = vmatprep.mubr.bf16.mxu0 %v2054
    %8441 = vmatmul.mubr.bf16.gmra.mrb[0].mxu0 %v2053
    %v8442 = vpop.f32.mrb[0].mxu0
    %v8443 = vadd.f32 %v8402, %v8442
    %v8444 = vpop.f32.mrb[0].mxu0
    %v8445 = vadd.f32 %v8404, %v8444
    %v8446 = vpop.f32.mrb[0].mxu0
    %v8447 = vpop.f32.mrb[0].mxu0
    %8448 = vdwg.mxu0
    %8449 = vmatprep.subr.bf16.mxu0 %v6924
    %8450 = vmatpush1.bf16.msra.mxu0 %v6923
    %8451 = vmatprep.subr.bf16.mxu0 %v6932
    %8452 = vmatpush1.bf16.msra.mxu0 %v6931
    %8453 = vmatprep.subr.bf16.mxu0 %v6940
    %8454 = vmatpush1.bf16.msra.mxu0 %v6939
    %8455 = vmatprep.subr.bf16.mxu0 %v6948
    %8456 = vmatpush1.bf16.msra.mxu0 %v6947
    %8457 = vmatprep.subr.bf16.mxu0 %v6956
    %8458 = vmatpush1.bf16.msra.mxu0 %v6955
    %8459 = vmatprep.subr.bf16.mxu0 %v6964
    %8460 = vmatpush1.bf16.msra.mxu0 %v6963
    %8461 = vmatprep.subr.bf16.mxu0 %v6972
    %8462 = vmatpush1.bf16.msra.mxu0 %v6971
    %8463 = vmatprep.subr.bf16.mxu0 %v6980
    %8464 = vmatpush1.bf16.msra.mxu0 %v6979
    %8465 = vmatprep.subr.bf16.mxu0 %v6988
    %8466 = vmatpush1.bf16.msra.mxu0 %v6987
    %8467 = vmatprep.subr.bf16.mxu0 %v6996
    %8468 = vmatpush1.bf16.msra.mxu0 %v6995
    %8469 = vmatprep.subr.bf16.mxu0 %v7004
    %8470 = vmatpush1.bf16.msra.mxu0 %v7003
    %8471 = vmatprep.subr.bf16.mxu0 %v7012
    %8472 = vmatpush1.bf16.msra.mxu0 %v7011
    %8473 = vmatprep.subr.bf16.mxu0 %v7020
    %8474 = vmatpush1.bf16.msra.mxu0 %v7019
    %8475 = vmatprep.subr.bf16.mxu0 %v7028
    %8476 = vmatpush1.bf16.msra.mxu0 %v7027
    %8477 = vmatprep.subr.bf16.mxu0 %v7036
    %8478 = vmatpush1.bf16.msra.mxu0 %v7035
    %8479 = vmatprep.subr.bf16.mxu0 %v7044
    %8480 = vmatpush1.bf16.msra.mxu0 %v7043
    %8481 = vmatprep.mubr.bf16.mxu0 %v2056
    %8482 = vmatmul.mubr.bf16.gmra.mrb[0].mxu0 %v2055
    %v8483 = vpop.f32.mrb[0].mxu0
    %v8484 = vadd.f32 %v8443, %v8483
    %v8485 = vpop.f32.mrb[0].mxu0
    %v8486 = vadd.f32 %v8445, %v8485
    %v8487 = vpop.f32.mrb[0].mxu0
    %v8488 = vpop.f32.mrb[0].mxu0
    %8489 = vdwg.mxu0
    %8490 = vmatprep.subr.bf16.mxu0 %v7052
    %8491 = vmatpush1.bf16.msra.mxu0 %v7051
    %8492 = vmatprep.subr.bf16.mxu0 %v7060
    %8493 = vmatpush1.bf16.msra.mxu0 %v7059
    %8494 = vmatprep.subr.bf16.mxu0 %v7068
    %8495 = vmatpush1.bf16.msra.mxu0 %v7067
    %8496 = vmatprep.subr.bf16.mxu0 %v7076
    %8497 = vmatpush1.bf16.msra.mxu0 %v7075
    %8498 = vmatprep.subr.bf16.mxu0 %v7084
    %8499 = vmatpush1.bf16.msra.mxu0 %v7083
    %8500 = vmatprep.subr.bf16.mxu0 %v7092
    %8501 = vmatpush1.bf16.msra.mxu0 %v7091
    %8502 = vmatprep.subr.bf16.mxu0 %v7100
    %8503 = vmatpush1.bf16.msra.mxu0 %v7099
    %8504 = vmatprep.subr.bf16.mxu0 %v7108
    %8505 = vmatpush1.bf16.msra.mxu0 %v7107
    %8506 = vmatprep.subr.bf16.mxu0 %v7116
    %8507 = vmatpush1.bf16.msra.mxu0 %v7115
    %8508 = vmatprep.subr.bf16.mxu0 %v7124
    %8509 = vmatpush1.bf16.msra.mxu0 %v7123
    %8510 = vmatprep.subr.bf16.mxu0 %v7132
    %8511 = vmatpush1.bf16.msra.mxu0 %v7131
    %8512 = vmatprep.subr.bf16.mxu0 %v7140
    %8513 = vmatpush1.bf16.msra.mxu0 %v7139
    %8514 = vmatprep.subr.bf16.mxu0 %v7148
    %8515 = vmatpush1.bf16.msra.mxu0 %v7147
    %8516 = vmatprep.subr.bf16.mxu0 %v7156
    %8517 = vmatpush1.bf16.msra.mxu0 %v7155
    %8518 = vmatprep.subr.bf16.mxu0 %v7164
    %8519 = vmatpush1.bf16.msra.mxu0 %v7163
    %8520 = vmatprep.subr.bf16.mxu0 %v7172
    %8521 = vmatpush1.bf16.msra.mxu0 %v7171
    %8522 = vmatprep.mubr.bf16.mxu0 %v2058
    %8523 = vmatmul.mubr.bf16.gmra.mrb[0].mxu0 %v2057
    %v8524 = vpop.f32.mrb[0].mxu0
    %v8525 = vadd.f32 %v8484, %v8524
    %v8526 = vpop.f32.mrb[0].mxu0
    %v8527 = vadd.f32 %v8486, %v8526
    %v8528 = vpop.f32.mrb[0].mxu0
    %v8529 = vpop.f32.mrb[0].mxu0
    %8530 = vdwg.mxu0
    %8531 = vmatprep.subr.bf16.mxu0 %v6158
    %8532 = vmatpush1.bf16.msra.mxu0 %v6157
    %8533 = vmatprep.subr.bf16.mxu0 %v6166
    %8534 = vmatpush1.bf16.msra.mxu0 %v6165
    %8535 = vmatprep.subr.bf16.mxu0 %v6174
    %8536 = vmatpush1.bf16.msra.mxu0 %v6173
    %8537 = vmatprep.subr.bf16.mxu0 %v6182
    %8538 = vmatpush1.bf16.msra.mxu0 %v6181
    %8539 = vmatprep.subr.bf16.mxu0 %v6190
    %8540 = vmatpush1.bf16.msra.mxu0 %v6189
    %8541 = vmatprep.subr.bf16.mxu0 %v6198
    %8542 = vmatpush1.bf16.msra.mxu0 %v6197
    %8543 = vmatprep.subr.bf16.mxu0 %v6206
    %8544 = vmatpush1.bf16.msra.mxu0 %v6205
    %8545 = vmatprep.subr.bf16.mxu0 %v6214
    %8546 = vmatpush1.bf16.msra.mxu0 %v6213
    %8547 = vmatprep.subr.bf16.mxu0 %v6222
    %8548 = vmatpush1.bf16.msra.mxu0 %v6221
    %8549 = vmatprep.subr.bf16.mxu0 %v6230
    %8550 = vmatpush1.bf16.msra.mxu0 %v6229
    %8551 = vmatprep.subr.bf16.mxu0 %v6238
    %8552 = vmatpush1.bf16.msra.mxu0 %v6237
    %8553 = vmatprep.subr.bf16.mxu0 %v6246
    %8554 = vmatpush1.bf16.msra.mxu0 %v6245
    %8555 = vmatprep.subr.bf16.mxu0 %v6254
    %8556 = vmatpush1.bf16.msra.mxu0 %v6253
    %8557 = vmatprep.subr.bf16.mxu0 %v6262
    %8558 = vmatpush1.bf16.msra.mxu0 %v6261
    %8559 = vmatprep.subr.bf16.mxu0 %v6270
    %8560 = vmatpush1.bf16.msra.mxu0 %v6269
    %8561 = vmatprep.subr.bf16.mxu0 %v6278
    %8562 = vmatpush1.bf16.msra.mxu0 %v6277
    %8563 = vmatprep.mubr.bf16.mxu0 %v2044
    %8564 = vmatmul.mubr.bf16.gmra.mrb[0].mxu0 %v2043
    %v8565 = vpop.f32.mrb[0].mxu0
    %v8566 = vadd.f32 0.0, %v8565
    %v8567 = vpop.f32.mrb[0].mxu0
    %v8568 = vadd.f32 0.0, %v8567
    %v8569 = vpop.f32.mrb[0].mxu0
    %v8570 = vpop.f32.mrb[0].mxu0
    %8571 = vdwg.mxu0
    %8572 = vmatprep.subr.bf16.mxu0 %v6286
    %8573 = vmatpush1.bf16.msra.mxu0 %v6285
    %8574 = vmatprep.subr.bf16.mxu0 %v6294
    %8575 = vmatpush1.bf16.msra.mxu0 %v6293
    %8576 = vmatprep.subr.bf16.mxu0 %v6302
    %8577 = vmatpush1.bf16.msra.mxu0 %v6301
    %8578 = vmatprep.subr.bf16.mxu0 %v6310
    %8579 = vmatpush1.bf16.msra.mxu0 %v6309
    %8580 = vmatprep.subr.bf16.mxu0 %v6318
    %8581 = vmatpush1.bf16.msra.mxu0 %v6317
    %8582 = vmatprep.subr.bf16.mxu0 %v6326
    %8583 = vmatpush1.bf16.msra.mxu0 %v6325
    %8584 = vmatprep.subr.bf16.mxu0 %v6334
    %8585 = vmatpush1.bf16.msra.mxu0 %v6333
    %8586 = vmatprep.subr.bf16.mxu0 %v6342
    %8587 = vmatpush1.bf16.msra.mxu0 %v6341
    %8588 = vmatprep.subr.bf16.mxu0 %v6350
    %8589 = vmatpush1.bf16.msra.mxu0 %v6349
    %8590 = vmatprep.subr.bf16.mxu0 %v6358
    %8591 = vmatpush1.bf16.msra.mxu0 %v6357
    %8592 = vmatprep.subr.bf16.mxu0 %v6366
    %8593 = vmatpush1.bf16.msra.mxu0 %v6365
    %8594 = vmatprep.subr.bf16.mxu0 %v6374
    %8595 = vmatpush1.bf16.msra.mxu0 %v6373
    %8596 = vmatprep.subr.bf16.mxu0 %v6382
    %8597 = vmatpush1.bf16.msra.mxu0 %v6381
    %8598 = vmatprep.subr.bf16.mxu0 %v6390
    %8599 = vmatpush1.bf16.msra.mxu0 %v6389
    %8600 = vmatprep.subr.bf16.mxu0 %v6398
    %8601 = vmatpush1.bf16.msra.mxu0 %v6397
    %8602 = vmatprep.subr.bf16.mxu0 %v6406
    %8603 = vmatpush1.bf16.msra.mxu0 %v6405
    %8604 = vmatprep.mubr.bf16.mxu0 %v2046
    %8605 = vmatmul.mubr.bf16.gmra.mrb[0].mxu0 %v2045
    %v8606 = vpop.f32.mrb[0].mxu0
    %v8607 = vadd.f32 %v8566, %v8606
    %v8608 = vpop.f32.mrb[0].mxu0
    %v8609 = vadd.f32 %v8568, %v8608
    %v8610 = vpop.f32.mrb[0].mxu0
    %v8611 = vpop.f32.mrb[0].mxu0
    %8612 = vdwg.mxu0
    %8613 = vmatprep.subr.bf16.mxu0 %v6414
    %8614 = vmatpush1.bf16.msra.mxu0 %v6413
    %8615 = vmatprep.subr.bf16.mxu0 %v6422
    %8616 = vmatpush1.bf16.msra.mxu0 %v6421
    %8617 = vmatprep.subr.bf16.mxu0 %v6430
    %8618 = vmatpush1.bf16.msra.mxu0 %v6429
    %8619 = vmatprep.subr.bf16.mxu0 %v6438
    %8620 = vmatpush1.bf16.msra.mxu0 %v6437
    %8621 = vmatprep.subr.bf16.mxu0 %v6446
    %8622 = vmatpush1.bf16.msra.mxu0 %v6445
    %8623 = vmatprep.subr.bf16.mxu0 %v6454
    %8624 = vmatpush1.bf16.msra.mxu0 %v6453
    %8625 = vmatprep.subr.bf16.mxu0 %v6462
    %8626 = vmatpush1.bf16.msra.mxu0 %v6461
    %8627 = vmatprep.subr.bf16.mxu0 %v6470
    %8628 = vmatpush1.bf16.msra.mxu0 %v6469
    %8629 = vmatprep.subr.bf16.mxu0 %v6478
    %8630 = vmatpush1.bf16.msra.mxu0 %v6477
    %8631 = vmatprep.subr.bf16.mxu0 %v6486
    %8632 = vmatpush1.bf16.msra.mxu0 %v6485
    %8633 = vmatprep.subr.bf16.mxu0 %v6494
    %8634 = vmatpush1.bf16.msra.mxu0 %v6493
    %8635 = vmatprep.subr.bf16.mxu0 %v6502
    %8636 = vmatpush1.bf16.msra.mxu0 %v6501
    %8637 = vmatprep.subr.bf16.mxu0 %v6510
    %8638 = vmatpush1.bf16.msra.mxu0 %v6509
    %8639 = vmatprep.subr.bf16.mxu0 %v6518
    %8640 = vmatpush1.bf16.msra.mxu0 %v6517
    %8641 = vmatprep.subr.bf16.mxu0 %v6526
    %8642 = vmatpush1.bf16.msra.mxu0 %v6525
    %8643 = vmatprep.subr.bf16.mxu0 %v6534
    %8644 = vmatpush1.bf16.msra.mxu0 %v6533
    %8645 = vmatprep.mubr.bf16.mxu0 %v2048
    %8646 = vmatmul.mubr.bf16.gmra.mrb[0].mxu0 %v2047
    %v8647 = vpop.f32.mrb[0].mxu0
    %v8648 = vadd.f32 %v8607, %v8647
    %v8649 = vpop.f32.mrb[0].mxu0
    %v8650 = vadd.f32 %v8609, %v8649
    %v8651 = vpop.f32.mrb[0].mxu0
    %v8652 = vpop.f32.mrb[0].mxu0
    %8653 = vdwg.mxu0
    %8654 = vmatprep.subr.bf16.mxu0 %v6542
    %8655 = vmatpush1.bf16.msra.mxu0 %v6541
    %8656 = vmatprep.subr.bf16.mxu0 %v6550
    %8657 = vmatpush1.bf16.msra.mxu0 %v6549
    %8658 = vmatprep.subr.bf16.mxu0 %v6558
    %8659 = vmatpush1.bf16.msra.mxu0 %v6557
    %8660 = vmatprep.subr.bf16.mxu0 %v6566
    %8661 = vmatpush1.bf16.msra.mxu0 %v6565
    %8662 = vmatprep.subr.bf16.mxu0 %v6574
    %8663 = vmatpush1.bf16.msra.mxu0 %v6573
    %8664 = vmatprep.subr.bf16.mxu0 %v6582
    %8665 = vmatpush1.bf16.msra.mxu0 %v6581
    %8666 = vmatprep.subr.bf16.mxu0 %v6590
    %8667 = vmatpush1.bf16.msra.mxu0 %v6589
    %8668 = vmatprep.subr.bf16.mxu0 %v6598
    %8669 = vmatpush1.bf16.msra.mxu0 %v6597
    %8670 = vmatprep.subr.bf16.mxu0 %v6606
    %8671 = vmatpush1.bf16.msra.mxu0 %v6605
    %8672 = vmatprep.subr.bf16.mxu0 %v6614
    %8673 = vmatpush1.bf16.msra.mxu0 %v6613
    %8674 = vmatprep.subr.bf16.mxu0 %v6622
    %8675 = vmatpush1.bf16.msra.mxu0 %v6621
    %8676 = vmatprep.subr.bf16.mxu0 %v6630
    %8677 = vmatpush1.bf16.msra.mxu0 %v6629
    %8678 = vmatprep.subr.bf16.mxu0 %v6638
    %8679 = vmatpush1.bf16.msra.mxu0 %v6637
    %8680 = vmatprep.subr.bf16.mxu0 %v6646
    %8681 = vmatpush1.bf16.msra.mxu0 %v6645
    %8682 = vmatprep.subr.bf16.mxu0 %v6654
    %8683 = vmatpush1.bf16.msra.mxu0 %v6653
    %8684 = vmatprep.subr.bf16.mxu0 %v6662
    %8685 = vmatpush1.bf16.msra.mxu0 %v6661
    %8686 = vmatprep.mubr.bf16.mxu0 %v2050
    %8687 = vmatmul.mubr.bf16.gmra.mrb[0].mxu0 %v2049
    %v8688 = vpop.f32.mrb[0].mxu0
    %v8689 = vadd.f32 %v8648, %v8688
    %v8690 = vpop.f32.mrb[0].mxu0
    %v8691 = vadd.f32 %v8650, %v8690
    %v8692 = vpop.f32.mrb[0].mxu0
    %v8693 = vpop.f32.mrb[0].mxu0
    %8694 = vdwg.mxu0
    %8695 = vmatprep.subr.bf16.mxu0 %v6670
    %8696 = vmatpush1.bf16.msra.mxu0 %v6669
    %8697 = vmatprep.subr.bf16.mxu0 %v6678
    %8698 = vmatpush1.bf16.msra.mxu0 %v6677
    %8699 = vmatprep.subr.bf16.mxu0 %v6686
    %8700 = vmatpush1.bf16.msra.mxu0 %v6685
    %8701 = vmatprep.subr.bf16.mxu0 %v6694
    %8702 = vmatpush1.bf16.msra.mxu0 %v6693
    %8703 = vmatprep.subr.bf16.mxu0 %v6702
    %8704 = vmatpush1.bf16.msra.mxu0 %v6701
    %8705 = vmatprep.subr.bf16.mxu0 %v6710
    %8706 = vmatpush1.bf16.msra.mxu0 %v6709
    %8707 = vmatprep.subr.bf16.mxu0 %v6718
    %8708 = vmatpush1.bf16.msra.mxu0 %v6717
    %8709 = vmatprep.subr.bf16.mxu0 %v6726
    %8710 = vmatpush1.bf16.msra.mxu0 %v6725
    %8711 = vmatprep.subr.bf16.mxu0 %v6734
    %8712 = vmatpush1.bf16.msra.mxu0 %v6733
    %8713 = vmatprep.subr.bf16.mxu0 %v6742
    %8714 = vmatpush1.bf16.msra.mxu0 %v6741
    %8715 = vmatprep.subr.bf16.mxu0 %v6750
    %8716 = vmatpush1.bf16.msra.mxu0 %v6749
    %8717 = vmatprep.subr.bf16.mxu0 %v6758
    %8718 = vmatpush1.bf16.msra.mxu0 %v6757
    %8719 = vmatprep.subr.bf16.mxu0 %v6766
    %8720 = vmatpush1.bf16.msra.mxu0 %v6765
    %8721 = vmatprep.subr.bf16.mxu0 %v6774
    %8722 = vmatpush1.bf16.msra.mxu0 %v6773
    %8723 = vmatprep.subr.bf16.mxu0 %v6782
    %8724 = vmatpush1.bf16.msra.mxu0 %v6781
    %8725 = vmatprep.subr.bf16.mxu0 %v6790
    %8726 = vmatpush1.bf16.msra.mxu0 %v6789
    %8727 = vmatprep.mubr.bf16.mxu0 %v2052
    %8728 = vmatmul.mubr.bf16.gmra.mrb[0].mxu0 %v2051
    %v8729 = vpop.f32.mrb[0].mxu0
    %v8730 = vadd.f32 %v8689, %v8729
    %v8731 = vpop.f32.mrb[0].mxu0
    %v8732 = vadd.f32 %v8691, %v8731
    %v8733 = vpop.f32.mrb[0].mxu0
    %v8734 = vpop.f32.mrb[0].mxu0
    %8735 = vdwg.mxu0
    %8736 = vmatprep.subr.bf16.mxu0 %v6798
    %8737 = vmatpush1.bf16.msra.mxu0 %v6797
    %8738 = vmatprep.subr.bf16.mxu0 %v6806
    %8739 = vmatpush1.bf16.msra.mxu0 %v6805
    %8740 = vmatprep.subr.bf16.mxu0 %v6814
    %8741 = vmatpush1.bf16.msra.mxu0 %v6813
    %8742 = vmatprep.subr.bf16.mxu0 %v6822
    %8743 = vmatpush1.bf16.msra.mxu0 %v6821
    %8744 = vmatprep.subr.bf16.mxu0 %v6830
    %8745 = vmatpush1.bf16.msra.mxu0 %v6829
    %8746 = vmatprep.subr.bf16.mxu0 %v6838
    %8747 = vmatpush1.bf16.msra.mxu0 %v6837
    %8748 = vmatprep.subr.bf16.mxu0 %v6846
    %8749 = vmatpush1.bf16.msra.mxu0 %v6845
    %8750 = vmatprep.subr.bf16.mxu0 %v6854
    %8751 = vmatpush1.bf16.msra.mxu0 %v6853
    %8752 = vmatprep.subr.bf16.mxu0 %v6862
    %8753 = vmatpush1.bf16.msra.mxu0 %v6861
    %8754 = vmatprep.subr.bf16.mxu0 %v6870
    %8755 = vmatpush1.bf16.msra.mxu0 %v6869
    %8756 = vmatprep.subr.bf16.mxu0 %v6878
    %8757 = vmatpush1.bf16.msra.mxu0 %v6877
    %8758 = vmatprep.subr.bf16.mxu0 %v6886
    %8759 = vmatpush1.bf16.msra.mxu0 %v6885
    %8760 = vmatprep.subr.bf16.mxu0 %v6894
    %8761 = vmatpush1.bf16.msra.mxu0 %v6893
    %8762 = vmatprep.subr.bf16.mxu0 %v6902
    %8763 = vmatpush1.bf16.msra.mxu0 %v6901
    %8764 = vmatprep.subr.bf16.mxu0 %v6910
    %8765 = vmatpush1.bf16.msra.mxu0 %v6909
    %8766 = vmatprep.subr.bf16.mxu0 %v6918
    %8767 = vmatpush1.bf16.msra.mxu0 %v6917
    %8768 = vmatprep.mubr.bf16.mxu0 %v2054
    %8769 = vmatmul.mubr.bf16.gmra.mrb[0].mxu0 %v2053
    %v8770 = vpop.f32.mrb[0].mxu0
    %v8771 = vadd.f32 %v8730, %v8770
    %v8772 = vpop.f32.mrb[0].mxu0
    %v8773 = vadd.f32 %v8732, %v8772
    %v8774 = vpop.f32.mrb[0].mxu0
    %v8775 = vpop.f32.mrb[0].mxu0
    %8776 = vdwg.mxu0
    %8777 = vmatprep.subr.bf16.mxu0 %v6926
    %8778 = vmatpush1.bf16.msra.mxu0 %v6925
    %8779 = vmatprep.subr.bf16.mxu0 %v6934
    %8780 = vmatpush1.bf16.msra.mxu0 %v6933
    %8781 = vmatprep.subr.bf16.mxu0 %v6942
    %8782 = vmatpush1.bf16.msra.mxu0 %v6941
    %8783 = vmatprep.subr.bf16.mxu0 %v6950
    %8784 = vmatpush1.bf16.msra.mxu0 %v6949
    %8785 = vmatprep.subr.bf16.mxu0 %v6958
    %8786 = vmatpush1.bf16.msra.mxu0 %v6957
    %8787 = vmatprep.subr.bf16.mxu0 %v6966
    %8788 = vmatpush1.bf16.msra.mxu0 %v6965
    %8789 = vmatprep.subr.bf16.mxu0 %v6974
    %8790 = vmatpush1.bf16.msra.mxu0 %v6973
    %8791 = vmatprep.subr.bf16.mxu0 %v6982
    %8792 = vmatpush1.bf16.msra.mxu0 %v6981
    %8793 = vmatprep.subr.bf16.mxu0 %v6990
    %8794 = vmatpush1.bf16.msra.mxu0 %v6989
    %8795 = vmatprep.subr.bf16.mxu0 %v6998
    %8796 = vmatpush1.bf16.msra.mxu0 %v6997
    %8797 = vmatprep.subr.bf16.mxu0 %v7006
    %8798 = vmatpush1.bf16.msra.mxu0 %v7005
    %8799 = vmatprep.subr.bf16.mxu0 %v7014
    %8800 = vmatpush1.bf16.msra.mxu0 %v7013
    %8801 = vmatprep.subr.bf16.mxu0 %v7022
    %8802 = vmatpush1.bf16.msra.mxu0 %v7021
    %8803 = vmatprep.subr.bf16.mxu0 %v7030
    %8804 = vmatpush1.bf16.msra.mxu0 %v7029
    %8805 = vmatprep.subr.bf16.mxu0 %v7038
    %8806 = vmatpush1.bf16.msra.mxu0 %v7037
    %8807 = vmatprep.subr.bf16.mxu0 %v7046
    %8808 = vmatpush1.bf16.msra.mxu0 %v7045
    %8809 = vmatprep.mubr.bf16.mxu0 %v2056
    %8810 = vmatmul.mubr.bf16.gmra.mrb[0].mxu0 %v2055
    %v8811 = vpop.f32.mrb[0].mxu0
    %v8812 = vadd.f32 %v8771, %v8811
    %v8813 = vpop.f32.mrb[0].mxu0
    %v8814 = vadd.f32 %v8773, %v8813
    %v8815 = vpop.f32.mrb[0].mxu0
    %v8816 = vpop.f32.mrb[0].mxu0
    %8817 = vdwg.mxu0
    %8818 = vmatprep.subr.bf16.mxu0 %v7054
    %8819 = vmatpush1.bf16.msra.mxu0 %v7053
    %8820 = vmatprep.subr.bf16.mxu0 %v7062
    %8821 = vmatpush1.bf16.msra.mxu0 %v7061
    %8822 = vmatprep.subr.bf16.mxu0 %v7070
    %8823 = vmatpush1.bf16.msra.mxu0 %v7069
    %8824 = vmatprep.subr.bf16.mxu0 %v7078
    %8825 = vmatpush1.bf16.msra.mxu0 %v7077
    %8826 = vmatprep.subr.bf16.mxu0 %v7086
    %8827 = vmatpush1.bf16.msra.mxu0 %v7085
    %8828 = vmatprep.subr.bf16.mxu0 %v7094
    %8829 = vmatpush1.bf16.msra.mxu0 %v7093
    %8830 = vmatprep.subr.bf16.mxu0 %v7102
    %8831 = vmatpush1.bf16.msra.mxu0 %v7101
    %8832 = vmatprep.subr.bf16.mxu0 %v7110
    %8833 = vmatpush1.bf16.msra.mxu0 %v7109
    %8834 = vmatprep.subr.bf16.mxu0 %v7118
    %8835 = vmatpush1.bf16.msra.mxu0 %v7117
    %8836 = vmatprep.subr.bf16.mxu0 %v7126
    %8837 = vmatpush1.bf16.msra.mxu0 %v7125
    %8838 = vmatprep.subr.bf16.mxu0 %v7134
    %8839 = vmatpush1.bf16.msra.mxu0 %v7133
    %8840 = vmatprep.subr.bf16.mxu0 %v7142
    %8841 = vmatpush1.bf16.msra.mxu0 %v7141
    %8842 = vmatprep.subr.bf16.mxu0 %v7150
    %8843 = vmatpush1.bf16.msra.mxu0 %v7149
    %8844 = vmatprep.subr.bf16.mxu0 %v7158
    %8845 = vmatpush1.bf16.msra.mxu0 %v7157
    %8846 = vmatprep.subr.bf16.mxu0 %v7166
    %8847 = vmatpush1.bf16.msra.mxu0 %v7165
    %8848 = vmatprep.subr.bf16.mxu0 %v7174
    %8849 = vmatpush1.bf16.msra.mxu0 %v7173
    %8850 = vmatprep.mubr.bf16.mxu0 %v2058
    %8851 = vmatmul.mubr.bf16.gmra.mrb[0].mxu0 %v2057
    %v8852 = vpop.f32.mrb[0].mxu0
    %v8853 = vadd.f32 %v8812, %v8852
    %v8854 = vpop.f32.mrb[0].mxu0
    %v8855 = vadd.f32 %v8814, %v8854
    %v8856 = vpop.f32.mrb[0].mxu0
    %v8857 = vpop.f32.mrb[0].mxu0
    %8858 = vdwg.mxu0
    %8859 = vmatprep.subr.bf16.mxu0 %v6160
    %8860 = vmatpush1.bf16.msra.mxu0 %v6159
    %8861 = vmatprep.subr.bf16.mxu0 %v6168
    %8862 = vmatpush1.bf16.msra.mxu0 %v6167
    %8863 = vmatprep.subr.bf16.mxu0 %v6176
    %8864 = vmatpush1.bf16.msra.mxu0 %v6175
    %8865 = vmatprep.subr.bf16.mxu0 %v6184
    %8866 = vmatpush1.bf16.msra.mxu0 %v6183
    %8867 = vmatprep.subr.bf16.mxu0 %v6192
    %8868 = vmatpush1.bf16.msra.mxu0 %v6191
    %8869 = vmatprep.subr.bf16.mxu0 %v6200
    %8870 = vmatpush1.bf16.msra.mxu0 %v6199
    %8871 = vmatprep.subr.bf16.mxu0 %v6208
    %8872 = vmatpush1.bf16.msra.mxu0 %v6207
    %8873 = vmatprep.subr.bf16.mxu0 %v6216
    %8874 = vmatpush1.bf16.msra.mxu0 %v6215
    %8875 = vmatprep.subr.bf16.mxu0 %v6224
    %8876 = vmatpush1.bf16.msra.mxu0 %v6223
    %8877 = vmatprep.subr.bf16.mxu0 %v6232
    %8878 = vmatpush1.bf16.msra.mxu0 %v6231
    %8879 = vmatprep.subr.bf16.mxu0 %v6240
    %8880 = vmatpush1.bf16.msra.mxu0 %v6239
    %8881 = vmatprep.subr.bf16.mxu0 %v6248
    %8882 = vmatpush1.bf16.msra.mxu0 %v6247
    %8883 = vmatprep.subr.bf16.mxu0 %v6256
    %8884 = vmatpush1.bf16.msra.mxu0 %v6255
    %8885 = vmatprep.subr.bf16.mxu0 %v6264
    %8886 = vmatpush1.bf16.msra.mxu0 %v6263
    %8887 = vmatprep.subr.bf16.mxu0 %v6272
    %8888 = vmatpush1.bf16.msra.mxu0 %v6271
    %8889 = vmatprep.subr.bf16.mxu0 %v6280
    %8890 = vmatpush1.bf16.msra.mxu0 %v6279
    %8891 = vmatprep.mubr.bf16.mxu0 %v2044
    %8892 = vmatmul.mubr.bf16.gmra.mrb[0].mxu0 %v2043
    %v8893 = vpop.f32.mrb[0].mxu0
    %v8894 = vadd.f32 0.0, %v8893
    %v8895 = vpop.f32.mrb[0].mxu0
    %v8896 = vadd.f32 0.0, %v8895
    %v8897 = vpop.f32.mrb[0].mxu0
    %v8898 = vpop.f32.mrb[0].mxu0
    %8899 = vdwg.mxu0
    %8900 = vmatprep.subr.bf16.mxu0 %v6288
    %8901 = vmatpush1.bf16.msra.mxu0 %v6287
    %8902 = vmatprep.subr.bf16.mxu0 %v6296
    %8903 = vmatpush1.bf16.msra.mxu0 %v6295
    %8904 = vmatprep.subr.bf16.mxu0 %v6304
    %8905 = vmatpush1.bf16.msra.mxu0 %v6303
    %8906 = vmatprep.subr.bf16.mxu0 %v6312
    %8907 = vmatpush1.bf16.msra.mxu0 %v6311
    %8908 = vmatprep.subr.bf16.mxu0 %v6320
    %8909 = vmatpush1.bf16.msra.mxu0 %v6319
    %8910 = vmatprep.subr.bf16.mxu0 %v6328
    %8911 = vmatpush1.bf16.msra.mxu0 %v6327
    %8912 = vmatprep.subr.bf16.mxu0 %v6336
    %8913 = vmatpush1.bf16.msra.mxu0 %v6335
    %8914 = vmatprep.subr.bf16.mxu0 %v6344
    %8915 = vmatpush1.bf16.msra.mxu0 %v6343
    %8916 = vmatprep.subr.bf16.mxu0 %v6352
    %8917 = vmatpush1.bf16.msra.mxu0 %v6351
    %8918 = vmatprep.subr.bf16.mxu0 %v6360
    %8919 = vmatpush1.bf16.msra.mxu0 %v6359
    %8920 = vmatprep.subr.bf16.mxu0 %v6368
    %8921 = vmatpush1.bf16.msra.mxu0 %v6367
    %8922 = vmatprep.subr.bf16.mxu0 %v6376
    %8923 = vmatpush1.bf16.msra.mxu0 %v6375
    %8924 = vmatprep.subr.bf16.mxu0 %v6384
    %8925 = vmatpush1.bf16.msra.mxu0 %v6383
    %8926 = vmatprep.subr.bf16.mxu0 %v6392
    %8927 = vmatpush1.bf16.msra.mxu0 %v6391
    %8928 = vmatprep.subr.bf16.mxu0 %v6400
    %8929 = vmatpush1.bf16.msra.mxu0 %v6399
    %8930 = vmatprep.subr.bf16.mxu0 %v6408
    %8931 = vmatpush1.bf16.msra.mxu0 %v6407
    %8932 = vmatprep.mubr.bf16.mxu0 %v2046
    %8933 = vmatmul.mubr.bf16.gmra.mrb[0].mxu0 %v2045
    %v8934 = vpop.f32.mrb[0].mxu0
    %v8935 = vadd.f32 %v8894, %v8934
    %v8936 = vpop.f32.mrb[0].mxu0
    %v8937 = vadd.f32 %v8896, %v8936
    %v8938 = vpop.f32.mrb[0].mxu0
    %v8939 = vpop.f32.mrb[0].mxu0
    %8940 = vdwg.mxu0
    %8941 = vmatprep.subr.bf16.mxu0 %v6416
    %8942 = vmatpush1.bf16.msra.mxu0 %v6415
    %8943 = vmatprep.subr.bf16.mxu0 %v6424
    %8944 = vmatpush1.bf16.msra.mxu0 %v6423
    %8945 = vmatprep.subr.bf16.mxu0 %v6432
    %8946 = vmatpush1.bf16.msra.mxu0 %v6431
    %8947 = vmatprep.subr.bf16.mxu0 %v6440
    %8948 = vmatpush1.bf16.msra.mxu0 %v6439
    %8949 = vmatprep.subr.bf16.mxu0 %v6448
    %8950 = vmatpush1.bf16.msra.mxu0 %v6447
    %8951 = vmatprep.subr.bf16.mxu0 %v6456
    %8952 = vmatpush1.bf16.msra.mxu0 %v6455
    %8953 = vmatprep.subr.bf16.mxu0 %v6464
    %8954 = vmatpush1.bf16.msra.mxu0 %v6463
    %8955 = vmatprep.subr.bf16.mxu0 %v6472
    %8956 = vmatpush1.bf16.msra.mxu0 %v6471
    %8957 = vmatprep.subr.bf16.mxu0 %v6480
    %8958 = vmatpush1.bf16.msra.mxu0 %v6479
    %8959 = vmatprep.subr.bf16.mxu0 %v6488
    %8960 = vmatpush1.bf16.msra.mxu0 %v6487
    %8961 = vmatprep.subr.bf16.mxu0 %v6496
    %8962 = vmatpush1.bf16.msra.mxu0 %v6495
    %8963 = vmatprep.subr.bf16.mxu0 %v6504
    %8964 = vmatpush1.bf16.msra.mxu0 %v6503
    %8965 = vmatprep.subr.bf16.mxu0 %v6512
    %8966 = vmatpush1.bf16.msra.mxu0 %v6511
    %8967 = vmatprep.subr.bf16.mxu0 %v6520
    %8968 = vmatpush1.bf16.msra.mxu0 %v6519
    %8969 = vmatprep.subr.bf16.mxu0 %v6528
    %8970 = vmatpush1.bf16.msra.mxu0 %v6527
    %8971 = vmatprep.subr.bf16.mxu0 %v6536
    %8972 = vmatpush1.bf16.msra.mxu0 %v6535
    %8973 = vmatprep.mubr.bf16.mxu0 %v2048
    %8974 = vmatmul.mubr.bf16.gmra.mrb[0].mxu0 %v2047
    %v8975 = vpop.f32.mrb[0].mxu0
    %v8976 = vadd.f32 %v8935, %v8975
    %v8977 = vpop.f32.mrb[0].mxu0
    %v8978 = vadd.f32 %v8937, %v8977
    %v8979 = vpop.f32.mrb[0].mxu0
    %v8980 = vpop.f32.mrb[0].mxu0
    %8981 = vdwg.mxu0
    %8982 = vmatprep.subr.bf16.mxu0 %v6544
    %8983 = vmatpush1.bf16.msra.mxu0 %v6543
    %8984 = vmatprep.subr.bf16.mxu0 %v6552
    %8985 = vmatpush1.bf16.msra.mxu0 %v6551
    %8986 = vmatprep.subr.bf16.mxu0 %v6560
    %8987 = vmatpush1.bf16.msra.mxu0 %v6559
    %8988 = vmatprep.subr.bf16.mxu0 %v6568
    %8989 = vmatpush1.bf16.msra.mxu0 %v6567
    %8990 = vmatprep.subr.bf16.mxu0 %v6576
    %8991 = vmatpush1.bf16.msra.mxu0 %v6575
    %8992 = vmatprep.subr.bf16.mxu0 %v6584
    %8993 = vmatpush1.bf16.msra.mxu0 %v6583
    %8994 = vmatprep.subr.bf16.mxu0 %v6592
    %8995 = vmatpush1.bf16.msra.mxu0 %v6591
    %8996 = vmatprep.subr.bf16.mxu0 %v6600
    %8997 = vmatpush1.bf16.msra.mxu0 %v6599
    %8998 = vmatprep.subr.bf16.mxu0 %v6608
    %8999 = vmatpush1.bf16.msra.mxu0 %v6607
    %9000 = vmatprep.subr.bf16.mxu0 %v6616
    %9001 = vmatpush1.bf16.msra.mxu0 %v6615
    %9002 = vmatprep.subr.bf16.mxu0 %v6624
    %9003 = vmatpush1.bf16.msra.mxu0 %v6623
    %9004 = vmatprep.subr.bf16.mxu0 %v6632
    %9005 = vmatpush1.bf16.msra.mxu0 %v6631
    %9006 = vmatprep.subr.bf16.mxu0 %v6640
    %9007 = vmatpush1.bf16.msra.mxu0 %v6639
    %9008 = vmatprep.subr.bf16.mxu0 %v6648
    %9009 = vmatpush1.bf16.msra.mxu0 %v6647
    %9010 = vmatprep.subr.bf16.mxu0 %v6656
    %9011 = vmatpush1.bf16.msra.mxu0 %v6655
    %9012 = vmatprep.subr.bf16.mxu0 %v6664
    %9013 = vmatpush1.bf16.msra.mxu0 %v6663
    %9014 = vmatprep.mubr.bf16.mxu0 %v2050
    %9015 = vmatmul.mubr.bf16.gmra.mrb[0].mxu0 %v2049
    %v9016 = vpop.f32.mrb[0].mxu0
    %v9017 = vadd.f32 %v8976, %v9016
    %v9018 = vpop.f32.mrb[0].mxu0
    %v9019 = vadd.f32 %v8978, %v9018
    %v9020 = vpop.f32.mrb[0].mxu0
    %v9021 = vpop.f32.mrb[0].mxu0
    %9022 = vdwg.mxu0
    %9023 = vmatprep.subr.bf16.mxu0 %v6672
    %9024 = vmatpush1.bf16.msra.mxu0 %v6671
    %9025 = vmatprep.subr.bf16.mxu0 %v6680
    %9026 = vmatpush1.bf16.msra.mxu0 %v6679
    %9027 = vmatprep.subr.bf16.mxu0 %v6688
    %9028 = vmatpush1.bf16.msra.mxu0 %v6687
    %9029 = vmatprep.subr.bf16.mxu0 %v6696
    %9030 = vmatpush1.bf16.msra.mxu0 %v6695
    %9031 = vmatprep.subr.bf16.mxu0 %v6704
    %9032 = vmatpush1.bf16.msra.mxu0 %v6703
    %9033 = vmatprep.subr.bf16.mxu0 %v6712
    %9034 = vmatpush1.bf16.msra.mxu0 %v6711
    %9035 = vmatprep.subr.bf16.mxu0 %v6720
    %9036 = vmatpush1.bf16.msra.mxu0 %v6719
    %9037 = vmatprep.subr.bf16.mxu0 %v6728
    %9038 = vmatpush1.bf16.msra.mxu0 %v6727
    %9039 = vmatprep.subr.bf16.mxu0 %v6736
    %9040 = vmatpush1.bf16.msra.mxu0 %v6735
    %9041 = vmatprep.subr.bf16.mxu0 %v6744
    %9042 = vmatpush1.bf16.msra.mxu0 %v6743
    %9043 = vmatprep.subr.bf16.mxu0 %v6752
    %9044 = vmatpush1.bf16.msra.mxu0 %v6751
    %9045 = vmatprep.subr.bf16.mxu0 %v6760
    %9046 = vmatpush1.bf16.msra.mxu0 %v6759
    %9047 = vmatprep.subr.bf16.mxu0 %v6768
    %9048 = vmatpush1.bf16.msra.mxu0 %v6767
    %9049 = vmatprep.subr.bf16.mxu0 %v6776
    %9050 = vmatpush1.bf16.msra.mxu0 %v6775
    %9051 = vmatprep.subr.bf16.mxu0 %v6784
    %9052 = vmatpush1.bf16.msra.mxu0 %v6783
    %9053 = vmatprep.subr.bf16.mxu0 %v6792
    %9054 = vmatpush1.bf16.msra.mxu0 %v6791
    %9055 = vmatprep.mubr.bf16.mxu0 %v2052
    %9056 = vmatmul.mubr.bf16.gmra.mrb[0].mxu0 %v2051
    %v9057 = vpop.f32.mrb[0].mxu0
    %v9058 = vadd.f32 %v9017, %v9057
    %v9059 = vpop.f32.mrb[0].mxu0
    %v9060 = vadd.f32 %v9019, %v9059
    %v9061 = vpop.f32.mrb[0].mxu0
    %v9062 = vpop.f32.mrb[0].mxu0
    %9063 = vdwg.mxu0
    %9064 = vmatprep.subr.bf16.mxu0 %v6800
    %9065 = vmatpush1.bf16.msra.mxu0 %v6799
    %9066 = vmatprep.subr.bf16.mxu0 %v6808
    %9067 = vmatpush1.bf16.msra.mxu0 %v6807
    %9068 = vmatprep.subr.bf16.mxu0 %v6816
    %9069 = vmatpush1.bf16.msra.mxu0 %v6815
    %9070 = vmatprep.subr.bf16.mxu0 %v6824
    %9071 = vmatpush1.bf16.msra.mxu0 %v6823
    %9072 = vmatprep.subr.bf16.mxu0 %v6832
    %9073 = vmatpush1.bf16.msra.mxu0 %v6831
    %9074 = vmatprep.subr.bf16.mxu0 %v6840
    %9075 = vmatpush1.bf16.msra.mxu0 %v6839
    %9076 = vmatprep.subr.bf16.mxu0 %v6848
    %9077 = vmatpush1.bf16.msra.mxu0 %v6847
    %9078 = vmatprep.subr.bf16.mxu0 %v6856
    %9079 = vmatpush1.bf16.msra.mxu0 %v6855
    %9080 = vmatprep.subr.bf16.mxu0 %v6864
    %9081 = vmatpush1.bf16.msra.mxu0 %v6863
    %9082 = vmatprep.subr.bf16.mxu0 %v6872
    %9083 = vmatpush1.bf16.msra.mxu0 %v6871
    %9084 = vmatprep.subr.bf16.mxu0 %v6880
    %9085 = vmatpush1.bf16.msra.mxu0 %v6879
    %9086 = vmatprep.subr.bf16.mxu0 %v6888
    %9087 = vmatpush1.bf16.msra.mxu0 %v6887
    %9088 = vmatprep.subr.bf16.mxu0 %v6896
    %9089 = vmatpush1.bf16.msra.mxu0 %v6895
    %9090 = vmatprep.subr.bf16.mxu0 %v6904
    %9091 = vmatpush1.bf16.msra.mxu0 %v6903
    %9092 = vmatprep.subr.bf16.mxu0 %v6912
    %9093 = vmatpush1.bf16.msra.mxu0 %v6911
    %9094 = vmatprep.subr.bf16.mxu0 %v6920
    %9095 = vmatpush1.bf16.msra.mxu0 %v6919
    %9096 = vmatprep.mubr.bf16.mxu0 %v2054
    %9097 = vmatmul.mubr.bf16.gmra.mrb[0].mxu0 %v2053
    %v9098 = vpop.f32.mrb[0].mxu0
    %v9099 = vadd.f32 %v9058, %v9098
    %v9100 = vpop.f32.mrb[0].mxu0
    %v9101 = vadd.f32 %v9060, %v9100
    %v9102 = vpop.f32.mrb[0].mxu0
    %v9103 = vpop.f32.mrb[0].mxu0
    %9104 = vdwg.mxu0
    %9105 = vmatprep.subr.bf16.mxu0 %v6928
    %9106 = vmatpush1.bf16.msra.mxu0 %v6927
    %9107 = vmatprep.subr.bf16.mxu0 %v6936
    %9108 = vmatpush1.bf16.msra.mxu0 %v6935
    %9109 = vmatprep.subr.bf16.mxu0 %v6944
    %9110 = vmatpush1.bf16.msra.mxu0 %v6943
    %9111 = vmatprep.subr.bf16.mxu0 %v6952
    %9112 = vmatpush1.bf16.msra.mxu0 %v6951
    %9113 = vmatprep.subr.bf16.mxu0 %v6960
    %9114 = vmatpush1.bf16.msra.mxu0 %v6959
    %9115 = vmatprep.subr.bf16.mxu0 %v6968
    %9116 = vmatpush1.bf16.msra.mxu0 %v6967
    %9117 = vmatprep.subr.bf16.mxu0 %v6976
    %9118 = vmatpush1.bf16.msra.mxu0 %v6975
    %9119 = vmatprep.subr.bf16.mxu0 %v6984
    %9120 = vmatpush1.bf16.msra.mxu0 %v6983
    %9121 = vmatprep.subr.bf16.mxu0 %v6992
    %9122 = vmatpush1.bf16.msra.mxu0 %v6991
    %9123 = vmatprep.subr.bf16.mxu0 %v7000
    %9124 = vmatpush1.bf16.msra.mxu0 %v6999
    %9125 = vmatprep.subr.bf16.mxu0 %v7008
    %9126 = vmatpush1.bf16.msra.mxu0 %v7007
    %9127 = vmatprep.subr.bf16.mxu0 %v7016
    %9128 = vmatpush1.bf16.msra.mxu0 %v7015
    %9129 = vmatprep.subr.bf16.mxu0 %v7024
    %9130 = vmatpush1.bf16.msra.mxu0 %v7023
    %9131 = vmatprep.subr.bf16.mxu0 %v7032
    %9132 = vmatpush1.bf16.msra.mxu0 %v7031
    %9133 = vmatprep.subr.bf16.mxu0 %v7040
    %9134 = vmatpush1.bf16.msra.mxu0 %v7039
    %9135 = vmatprep.subr.bf16.mxu0 %v7048
    %9136 = vmatpush1.bf16.msra.mxu0 %v7047
    %9137 = vmatprep.mubr.bf16.mxu0 %v2056
    %9138 = vmatmul.mubr.bf16.gmra.mrb[0].mxu0 %v2055
    %v9139 = vpop.f32.mrb[0].mxu0
    %v9140 = vadd.f32 %v9099, %v9139
    %v9141 = vpop.f32.mrb[0].mxu0
    %v9142 = vadd.f32 %v9101, %v9141
    %v9143 = vpop.f32.mrb[0].mxu0
    %v9144 = vpop.f32.mrb[0].mxu0
    %9145 = vdwg.mxu0
    %9146 = vmatprep.subr.bf16.mxu0 %v7056
    %9147 = vmatpush1.bf16.msra.mxu0 %v7055
    %9148 = vmatprep.subr.bf16.mxu0 %v7064
    %9149 = vmatpush1.bf16.msra.mxu0 %v7063
    %9150 = vmatprep.subr.bf16.mxu0 %v7072
    %9151 = vmatpush1.bf16.msra.mxu0 %v7071
    %9152 = vmatprep.subr.bf16.mxu0 %v7080
    %9153 = vmatpush1.bf16.msra.mxu0 %v7079
    %9154 = vmatprep.subr.bf16.mxu0 %v7088
    %9155 = vmatpush1.bf16.msra.mxu0 %v7087
    %9156 = vmatprep.subr.bf16.mxu0 %v7096
    %9157 = vmatpush1.bf16.msra.mxu0 %v7095
    %9158 = vmatprep.subr.bf16.mxu0 %v7104
    %9159 = vmatpush1.bf16.msra.mxu0 %v7103
    %9160 = vmatprep.subr.bf16.mxu0 %v7112
    %9161 = vmatpush1.bf16.msra.mxu0 %v7111
    %9162 = vmatprep.subr.bf16.mxu0 %v7120
    %9163 = vmatpush1.bf16.msra.mxu0 %v7119
    %9164 = vmatprep.subr.bf16.mxu0 %v7128
    %9165 = vmatpush1.bf16.msra.mxu0 %v7127
    %9166 = vmatprep.subr.bf16.mxu0 %v7136
    %9167 = vmatpush1.bf16.msra.mxu0 %v7135
    %9168 = vmatprep.subr.bf16.mxu0 %v7144
    %9169 = vmatpush1.bf16.msra.mxu0 %v7143
    %9170 = vmatprep.subr.bf16.mxu0 %v7152
    %9171 = vmatpush1.bf16.msra.mxu0 %v7151
    %9172 = vmatprep.subr.bf16.mxu0 %v7160
    %9173 = vmatpush1.bf16.msra.mxu0 %v7159
    %9174 = vmatprep.subr.bf16.mxu0 %v7168
    %9175 = vmatpush1.bf16.msra.mxu0 %v7167
    %9176 = vmatprep.subr.bf16.mxu0 %v7176
    %9177 = vmatpush1.bf16.msra.mxu0 %v7175
    %9178 = vmatprep.mubr.bf16.mxu0 %v2058
    %9179 = vmatmul.mubr.bf16.gmra.mrb[0].mxu0 %v2057
    %v9180 = vpop.f32.mrb[0].mxu0
    %v9181 = vadd.f32 %v9140, %v9180
    %v9182 = vpop.f32.mrb[0].mxu0
    %v9183 = vadd.f32 %v9142, %v9182
    %v9184 = vpop.f32.mrb[0].mxu0
    %v9185 = vpop.f32.mrb[0].mxu0
    %9186 = vdwg.mxu0
    %9187 = vmatprep.subr.bf16.mxu0 %v6162
    %9188 = vmatpush1.bf16.msra.mxu0 %v6161
    %9189 = vmatprep.subr.bf16.mxu0 %v6170
    %9190 = vmatpush1.bf16.msra.mxu0 %v6169
    %9191 = vmatprep.subr.bf16.mxu0 %v6178
    %9192 = vmatpush1.bf16.msra.mxu0 %v6177
    %9193 = vmatprep.subr.bf16.mxu0 %v6186
    %9194 = vmatpush1.bf16.msra.mxu0 %v6185
    %9195 = vmatprep.subr.bf16.mxu0 %v6194
    %9196 = vmatpush1.bf16.msra.mxu0 %v6193
    %9197 = vmatprep.subr.bf16.mxu0 %v6202
    %9198 = vmatpush1.bf16.msra.mxu0 %v6201
    %9199 = vmatprep.subr.bf16.mxu0 %v6210
    %9200 = vmatpush1.bf16.msra.mxu0 %v6209
    %9201 = vmatprep.subr.bf16.mxu0 %v6218
    %9202 = vmatpush1.bf16.msra.mxu0 %v6217
    %9203 = vmatprep.subr.bf16.mxu0 %v6226
    %9204 = vmatpush1.bf16.msra.mxu0 %v6225
    %9205 = vmatprep.subr.bf16.mxu0 %v6234
    %9206 = vmatpush1.bf16.msra.mxu0 %v6233
    %9207 = vmatprep.subr.bf16.mxu0 %v6242
    %9208 = vmatpush1.bf16.msra.mxu0 %v6241
    %9209 = vmatprep.subr.bf16.mxu0 %v6250
    %9210 = vmatpush1.bf16.msra.mxu0 %v6249
    %9211 = vmatprep.subr.bf16.mxu0 %v6258
    %9212 = vmatpush1.bf16.msra.mxu0 %v6257
    %9213 = vmatprep.subr.bf16.mxu0 %v6266
    %9214 = vmatpush1.bf16.msra.mxu0 %v6265
    %9215 = vmatprep.subr.bf16.mxu0 %v6274
    %9216 = vmatpush1.bf16.msra.mxu0 %v6273
    %9217 = vmatprep.subr.bf16.mxu0 %v6282
    %9218 = vmatpush1.bf16.msra.mxu0 %v6281
    %9219 = vmatprep.mubr.bf16.mxu0 %v2044
    %9220 = vmatmul.mubr.bf16.gmra.mrb[0].mxu0 %v2043
    %v9221 = vpop.f32.mrb[0].mxu0
    %v9222 = vadd.f32 0.0, %v9221
    %v9223 = vpop.f32.mrb[0].mxu0
    %v9224 = vadd.f32 0.0, %v9223
    %v9225 = vpop.f32.mrb[0].mxu0
    %v9226 = vpop.f32.mrb[0].mxu0
    %9227 = vdwg.mxu0
    %9228 = vmatprep.subr.bf16.mxu0 %v6290
    %9229 = vmatpush1.bf16.msra.mxu0 %v6289
    %9230 = vmatprep.subr.bf16.mxu0 %v6298
    %9231 = vmatpush1.bf16.msra.mxu0 %v6297
    %9232 = vmatprep.subr.bf16.mxu0 %v6306
    %9233 = vmatpush1.bf16.msra.mxu0 %v6305
    %9234 = vmatprep.subr.bf16.mxu0 %v6314
    %9235 = vmatpush1.bf16.msra.mxu0 %v6313
    %9236 = vmatprep.subr.bf16.mxu0 %v6322
    %9237 = vmatpush1.bf16.msra.mxu0 %v6321
    %9238 = vmatprep.subr.bf16.mxu0 %v6330
    %9239 = vmatpush1.bf16.msra.mxu0 %v6329
    %9240 = vmatprep.subr.bf16.mxu0 %v6338
    %9241 = vmatpush1.bf16.msra.mxu0 %v6337
    %9242 = vmatprep.subr.bf16.mxu0 %v6346
    %9243 = vmatpush1.bf16.msra.mxu0 %v6345
    %9244 = vmatprep.subr.bf16.mxu0 %v6354
    %9245 = vmatpush1.bf16.msra.mxu0 %v6353
    %9246 = vmatprep.subr.bf16.mxu0 %v6362
    %9247 = vmatpush1.bf16.msra.mxu0 %v6361
    %9248 = vmatprep.subr.bf16.mxu0 %v6370
    %9249 = vmatpush1.bf16.msra.mxu0 %v6369
    %9250 = vmatprep.subr.bf16.mxu0 %v6378
    %9251 = vmatpush1.bf16.msra.mxu0 %v6377
    %9252 = vmatprep.subr.bf16.mxu0 %v6386
    %9253 = vmatpush1.bf16.msra.mxu0 %v6385
    %9254 = vmatprep.subr.bf16.mxu0 %v6394
    %9255 = vmatpush1.bf16.msra.mxu0 %v6393
    %9256 = vmatprep.subr.bf16.mxu0 %v6402
    %9257 = vmatpush1.bf16.msra.mxu0 %v6401
    %9258 = vmatprep.subr.bf16.mxu0 %v6410
    %9259 = vmatpush1.bf16.msra.mxu0 %v6409
    %9260 = vmatprep.mubr.bf16.mxu0 %v2046
    %9261 = vmatmul.mubr.bf16.gmra.mrb[0].mxu0 %v2045
    %v9262 = vpop.f32.mrb[0].mxu0
    %v9263 = vadd.f32 %v9222, %v9262
    %v9264 = vpop.f32.mrb[0].mxu0
    %v9265 = vadd.f32 %v9224, %v9264
    %v9266 = vpop.f32.mrb[0].mxu0
    %v9267 = vpop.f32.mrb[0].mxu0
    %9268 = vdwg.mxu0
    %9269 = vmatprep.subr.bf16.mxu0 %v6418
    %9270 = vmatpush1.bf16.msra.mxu0 %v6417
    %9271 = vmatprep.subr.bf16.mxu0 %v6426
    %9272 = vmatpush1.bf16.msra.mxu0 %v6425
    %9273 = vmatprep.subr.bf16.mxu0 %v6434
    %9274 = vmatpush1.bf16.msra.mxu0 %v6433
    %9275 = vmatprep.subr.bf16.mxu0 %v6442
    %9276 = vmatpush1.bf16.msra.mxu0 %v6441
    %9277 = vmatprep.subr.bf16.mxu0 %v6450
    %9278 = vmatpush1.bf16.msra.mxu0 %v6449
    %9279 = vmatprep.subr.bf16.mxu0 %v6458
    %9280 = vmatpush1.bf16.msra.mxu0 %v6457
    %9281 = vmatprep.subr.bf16.mxu0 %v6466
    %9282 = vmatpush1.bf16.msra.mxu0 %v6465
    %9283 = vmatprep.subr.bf16.mxu0 %v6474
    %9284 = vmatpush1.bf16.msra.mxu0 %v6473
    %9285 = vmatprep.subr.bf16.mxu0 %v6482
    %9286 = vmatpush1.bf16.msra.mxu0 %v6481
    %9287 = vmatprep.subr.bf16.mxu0 %v6490
    %9288 = vmatpush1.bf16.msra.mxu0 %v6489
    %9289 = vmatprep.subr.bf16.mxu0 %v6498
    %9290 = vmatpush1.bf16.msra.mxu0 %v6497
    %9291 = vmatprep.subr.bf16.mxu0 %v6506
    %9292 = vmatpush1.bf16.msra.mxu0 %v6505
    %9293 = vmatprep.subr.bf16.mxu0 %v6514
    %9294 = vmatpush1.bf16.msra.mxu0 %v6513
    %9295 = vmatprep.subr.bf16.mxu0 %v6522
    %9296 = vmatpush1.bf16.msra.mxu0 %v6521
    %9297 = vmatprep.subr.bf16.mxu0 %v6530
    %9298 = vmatpush1.bf16.msra.mxu0 %v6529
    %9299 = vmatprep.subr.bf16.mxu0 %v6538
    %9300 = vmatpush1.bf16.msra.mxu0 %v6537
    %9301 = vmatprep.mubr.bf16.mxu0 %v2048
    %9302 = vmatmul.mubr.bf16.gmra.mrb[0].mxu0 %v2047
    %v9303 = vpop.f32.mrb[0].mxu0
    %v9304 = vadd.f32 %v9263, %v9303
    %v9305 = vpop.f32.mrb[0].mxu0
    %v9306 = vadd.f32 %v9265, %v9305
    %v9307 = vpop.f32.mrb[0].mxu0
    %v9308 = vpop.f32.mrb[0].mxu0
    %9309 = vdwg.mxu0
    %9310 = vmatprep.subr.bf16.mxu0 %v6546
    %9311 = vmatpush1.bf16.msra.mxu0 %v6545
    %9312 = vmatprep.subr.bf16.mxu0 %v6554
    %9313 = vmatpush1.bf16.msra.mxu0 %v6553
    %9314 = vmatprep.subr.bf16.mxu0 %v6562
    %9315 = vmatpush1.bf16.msra.mxu0 %v6561
    %9316 = vmatprep.subr.bf16.mxu0 %v6570
    %9317 = vmatpush1.bf16.msra.mxu0 %v6569
    %9318 = vmatprep.subr.bf16.mxu0 %v6578
    %9319 = vmatpush1.bf16.msra.mxu0 %v6577
    %9320 = vmatprep.subr.bf16.mxu0 %v6586
    %9321 = vmatpush1.bf16.msra.mxu0 %v6585
    %9322 = vmatprep.subr.bf16.mxu0 %v6594
    %9323 = vmatpush1.bf16.msra.mxu0 %v6593
    %9324 = vmatprep.subr.bf16.mxu0 %v6602
    %9325 = vmatpush1.bf16.msra.mxu0 %v6601
    %9326 = vmatprep.subr.bf16.mxu0 %v6610
    %9327 = vmatpush1.bf16.msra.mxu0 %v6609
    %9328 = vmatprep.subr.bf16.mxu0 %v6618
    %9329 = vmatpush1.bf16.msra.mxu0 %v6617
    %9330 = vmatprep.subr.bf16.mxu0 %v6626
    %9331 = vmatpush1.bf16.msra.mxu0 %v6625
    %9332 = vmatprep.subr.bf16.mxu0 %v6634
    %9333 = vmatpush1.bf16.msra.mxu0 %v6633
    %9334 = vmatprep.subr.bf16.mxu0 %v6642
    %9335 = vmatpush1.bf16.msra.mxu0 %v6641
    %9336 = vmatprep.subr.bf16.mxu0 %v6650
    %9337 = vmatpush1.bf16.msra.mxu0 %v6649
    %9338 = vmatprep.subr.bf16.mxu0 %v6658
    %9339 = vmatpush1.bf16.msra.mxu0 %v6657
    %9340 = vmatprep.subr.bf16.mxu0 %v6666
    %9341 = vmatpush1.bf16.msra.mxu0 %v6665
    %9342 = vmatprep.mubr.bf16.mxu0 %v2050
    %9343 = vmatmul.mubr.bf16.gmra.mrb[0].mxu0 %v2049
    %v9344 = vpop.f32.mrb[0].mxu0
    %v9345 = vadd.f32 %v9304, %v9344
    %v9346 = vpop.f32.mrb[0].mxu0
    %v9347 = vadd.f32 %v9306, %v9346
    %v9348 = vpop.f32.mrb[0].mxu0
    %v9349 = vpop.f32.mrb[0].mxu0
    %9350 = vdwg.mxu0
    %9351 = vmatprep.subr.bf16.mxu0 %v6674
    %9352 = vmatpush1.bf16.msra.mxu0 %v6673
    %9353 = vmatprep.subr.bf16.mxu0 %v6682
    %9354 = vmatpush1.bf16.msra.mxu0 %v6681
    %9355 = vmatprep.subr.bf16.mxu0 %v6690
    %9356 = vmatpush1.bf16.msra.mxu0 %v6689
    %9357 = vmatprep.subr.bf16.mxu0 %v6698
    %9358 = vmatpush1.bf16.msra.mxu0 %v6697
    %9359 = vmatprep.subr.bf16.mxu0 %v6706
    %9360 = vmatpush1.bf16.msra.mxu0 %v6705
    %9361 = vmatprep.subr.bf16.mxu0 %v6714
    %9362 = vmatpush1.bf16.msra.mxu0 %v6713
    %9363 = vmatprep.subr.bf16.mxu0 %v6722
    %9364 = vmatpush1.bf16.msra.mxu0 %v6721
    %9365 = vmatprep.subr.bf16.mxu0 %v6730
    %9366 = vmatpush1.bf16.msra.mxu0 %v6729
    %9367 = vmatprep.subr.bf16.mxu0 %v6738
    %9368 = vmatpush1.bf16.msra.mxu0 %v6737
    %9369 = vmatprep.subr.bf16.mxu0 %v6746
    %9370 = vmatpush1.bf16.msra.mxu0 %v6745
    %9371 = vmatprep.subr.bf16.mxu0 %v6754
    %9372 = vmatpush1.bf16.msra.mxu0 %v6753
    %9373 = vmatprep.subr.bf16.mxu0 %v6762
    %9374 = vmatpush1.bf16.msra.mxu0 %v6761
    %9375 = vmatprep.subr.bf16.mxu0 %v6770
    %9376 = vmatpush1.bf16.msra.mxu0 %v6769
    %9377 = vmatprep.subr.bf16.mxu0 %v6778
    %9378 = vmatpush1.bf16.msra.mxu0 %v6777
    %9379 = vmatprep.subr.bf16.mxu0 %v6786
    %9380 = vmatpush1.bf16.msra.mxu0 %v6785
    %9381 = vmatprep.subr.bf16.mxu0 %v6794
    %9382 = vmatpush1.bf16.msra.mxu0 %v6793
    %9383 = vmatprep.mubr.bf16.mxu0 %v2052
    %9384 = vmatmul.mubr.bf16.gmra.mrb[0].mxu0 %v2051
    %v9385 = vpop.f32.mrb[0].mxu0
    %v9386 = vadd.f32 %v9345, %v9385
    %v9387 = vpop.f32.mrb[0].mxu0
    %v9388 = vadd.f32 %v9347, %v9387
    %v9389 = vpop.f32.mrb[0].mxu0
    %v9390 = vpop.f32.mrb[0].mxu0
    %9391 = vdwg.mxu0
    %9392 = vmatprep.subr.bf16.mxu0 %v6802
    %9393 = vmatpush1.bf16.msra.mxu0 %v6801
    %9394 = vmatprep.subr.bf16.mxu0 %v6810
    %9395 = vmatpush1.bf16.msra.mxu0 %v6809
    %9396 = vmatprep.subr.bf16.mxu0 %v6818
    %9397 = vmatpush1.bf16.msra.mxu0 %v6817
    %9398 = vmatprep.subr.bf16.mxu0 %v6826
    %9399 = vmatpush1.bf16.msra.mxu0 %v6825
    %9400 = vmatprep.subr.bf16.mxu0 %v6834
    %9401 = vmatpush1.bf16.msra.mxu0 %v6833
    %9402 = vmatprep.subr.bf16.mxu0 %v6842
    %9403 = vmatpush1.bf16.msra.mxu0 %v6841
    %9404 = vmatprep.subr.bf16.mxu0 %v6850
    %9405 = vmatpush1.bf16.msra.mxu0 %v6849
    %9406 = vmatprep.subr.bf16.mxu0 %v6858
    %9407 = vmatpush1.bf16.msra.mxu0 %v6857
    %9408 = vmatprep.subr.bf16.mxu0 %v6866
    %9409 = vmatpush1.bf16.msra.mxu0 %v6865
    %9410 = vmatprep.subr.bf16.mxu0 %v6874
    %9411 = vmatpush1.bf16.msra.mxu0 %v6873
    %9412 = vmatprep.subr.bf16.mxu0 %v6882
    %9413 = vmatpush1.bf16.msra.mxu0 %v6881
    %9414 = vmatprep.subr.bf16.mxu0 %v6890
    %9415 = vmatpush1.bf16.msra.mxu0 %v6889
    %9416 = vmatprep.subr.bf16.mxu0 %v6898
    %9417 = vmatpush1.bf16.msra.mxu0 %v6897
    %9418 = vmatprep.subr.bf16.mxu0 %v6906
    %9419 = vmatpush1.bf16.msra.mxu0 %v6905
    %9420 = vmatprep.subr.bf16.mxu0 %v6914
    %9421 = vmatpush1.bf16.msra.mxu0 %v6913
    %9422 = vmatprep.subr.bf16.mxu0 %v6922
    %9423 = vmatpush1.bf16.msra.mxu0 %v6921
    %9424 = vmatprep.mubr.bf16.mxu0 %v2054
    %9425 = vmatmul.mubr.bf16.gmra.mrb[0].mxu0 %v2053
    %v9426 = vpop.f32.mrb[0].mxu0
    %v9427 = vadd.f32 %v9386, %v9426
    %v9428 = vpop.f32.mrb[0].mxu0
    %v9429 = vadd.f32 %v9388, %v9428
    %v9430 = vpop.f32.mrb[0].mxu0
    %v9431 = vpop.f32.mrb[0].mxu0
    %9432 = vdwg.mxu0
    %9433 = vmatprep.subr.bf16.mxu0 %v6930
    %9434 = vmatpush1.bf16.msra.mxu0 %v6929
    %9435 = vmatprep.subr.bf16.mxu0 %v6938
    %9436 = vmatpush1.bf16.msra.mxu0 %v6937
    %9437 = vmatprep.subr.bf16.mxu0 %v6946
    %9438 = vmatpush1.bf16.msra.mxu0 %v6945
    %9439 = vmatprep.subr.bf16.mxu0 %v6954
    %9440 = vmatpush1.bf16.msra.mxu0 %v6953
    %9441 = vmatprep.subr.bf16.mxu0 %v6962
    %9442 = vmatpush1.bf16.msra.mxu0 %v6961
    %9443 = vmatprep.subr.bf16.mxu0 %v6970
    %9444 = vmatpush1.bf16.msra.mxu0 %v6969
    %9445 = vmatprep.subr.bf16.mxu0 %v6978
    %9446 = vmatpush1.bf16.msra.mxu0 %v6977
    %9447 = vmatprep.subr.bf16.mxu0 %v6986
    %9448 = vmatpush1.bf16.msra.mxu0 %v6985
    %9449 = vmatprep.subr.bf16.mxu0 %v6994
    %9450 = vmatpush1.bf16.msra.mxu0 %v6993
    %9451 = vmatprep.subr.bf16.mxu0 %v7002
    %9452 = vmatpush1.bf16.msra.mxu0 %v7001
    %9453 = vmatprep.subr.bf16.mxu0 %v7010
    %9454 = vmatpush1.bf16.msra.mxu0 %v7009
    %9455 = vmatprep.subr.bf16.mxu0 %v7018
    %9456 = vmatpush1.bf16.msra.mxu0 %v7017
    %9457 = vmatprep.subr.bf16.mxu0 %v7026
    %9458 = vmatpush1.bf16.msra.mxu0 %v7025
    %9459 = vmatprep.subr.bf16.mxu0 %v7034
    %9460 = vmatpush1.bf16.msra.mxu0 %v7033
    %9461 = vmatprep.subr.bf16.mxu0 %v7042
    %9462 = vmatpush1.bf16.msra.mxu0 %v7041
    %9463 = vmatprep.subr.bf16.mxu0 %v7050
    %9464 = vmatpush1.bf16.msra.mxu0 %v7049
    %9465 = vmatprep.mubr.bf16.mxu0 %v2056
    %9466 = vmatmul.mubr.bf16.gmra.mrb[0].mxu0 %v2055
    %v9467 = vpop.f32.mrb[0].mxu0
    %v9468 = vadd.f32 %v9427, %v9467
    %v9469 = vpop.f32.mrb[0].mxu0
    %v9470 = vadd.f32 %v9429, %v9469
    %v9471 = vpop.f32.mrb[0].mxu0
    %v9472 = vpop.f32.mrb[0].mxu0
    %9473 = vdwg.mxu0
    %9474 = vmatprep.subr.bf16.mxu0 %v7058
    %9475 = vmatpush1.bf16.msra.mxu0 %v7057
    %9476 = vmatprep.subr.bf16.mxu0 %v7066
    %9477 = vmatpush1.bf16.msra.mxu0 %v7065
    %9478 = vmatprep.subr.bf16.mxu0 %v7074
    %9479 = vmatpush1.bf16.msra.mxu0 %v7073
    %9480 = vmatprep.subr.bf16.mxu0 %v7082
    %9481 = vmatpush1.bf16.msra.mxu0 %v7081
    %9482 = vmatprep.subr.bf16.mxu0 %v7090
    %9483 = vmatpush1.bf16.msra.mxu0 %v7089
    %9484 = vmatprep.subr.bf16.mxu0 %v7098
    %9485 = vmatpush1.bf16.msra.mxu0 %v7097
    %9486 = vmatprep.subr.bf16.mxu0 %v7106
    %9487 = vmatpush1.bf16.msra.mxu0 %v7105
    %9488 = vmatprep.subr.bf16.mxu0 %v7114
    %9489 = vmatpush1.bf16.msra.mxu0 %v7113
    %9490 = vmatprep.subr.bf16.mxu0 %v7122
    %9491 = vmatpush1.bf16.msra.mxu0 %v7121
    %9492 = vmatprep.subr.bf16.mxu0 %v7130
    %9493 = vmatpush1.bf16.msra.mxu0 %v7129
    %9494 = vmatprep.subr.bf16.mxu0 %v7138
    %9495 = vmatpush1.bf16.msra.mxu0 %v7137
    %9496 = vmatprep.subr.bf16.mxu0 %v7146
    %9497 = vmatpush1.bf16.msra.mxu0 %v7145
    %9498 = vmatprep.subr.bf16.mxu0 %v7154
    %9499 = vmatpush1.bf16.msra.mxu0 %v7153
    %9500 = vmatprep.subr.bf16.mxu0 %v7162
    %9501 = vmatpush1.bf16.msra.mxu0 %v7161
    %9502 = vmatprep.subr.bf16.mxu0 %v7170
    %9503 = vmatpush1.bf16.msra.mxu0 %v7169
    %9504 = vmatprep.subr.bf16.mxu0 %v7178
    %9505 = vmatpush1.bf16.msra.mxu0 %v7177
    %9506 = vmatprep.mubr.bf16.mxu0 %v2058
    %9507 = vmatmul.mubr.bf16.gmra.mrb[0].mxu0 %v2057
    %v9508 = vpop.f32.mrb[0].mxu0
    %v9509 = vadd.f32 %v9468, %v9508
    %v9510 = vpop.f32.mrb[0].mxu0
    %v9511 = vadd.f32 %v9470, %v9510
    %v9512 = vpop.f32.mrb[0].mxu0
    %v9513 = vpop.f32.mrb[0].mxu0
    %9514 = vdwg.mxu0
    %vm9515 = vcmask 1041408
    %v9516 = vsel %vm9515, %v8525, 0.0
    %v9517 = vrot.slane %v9516, 4
    %v9518 = vadd.f32 %v9516, %v9517
    %v9519 = vrot.slane %v9518, 2
    %v9520 = vadd.f32 %v9518, %v9519
    %v9521 = vrot.slane %v9520, 1
    %v9522 = vadd.f32 %v9520, %v9521
    %v9523 = vsel %vm9515, %v8527, 0.0
    %v9524 = vrot.slane %v9523, 4
    %v9525 = vadd.f32 %v9523, %v9524
    %v9526 = vrot.slane %v9525, 2
    %v9527 = vadd.f32 %v9525, %v9526
    %v9528 = vrot.slane %v9527, 1
    %v9529 = vadd.f32 %v9527, %v9528
    %v9530 = vsel %vm9515, %v8853, 0.0
    %v9531 = vrot.slane %v9530, 4
    %v9532 = vadd.f32 %v9530, %v9531
    %v9533 = vrot.slane %v9532, 2
    %v9534 = vadd.f32 %v9532, %v9533
    %v9535 = vrot.slane %v9534, 1
    %v9536 = vadd.f32 %v9534, %v9535
    %v9537 = vsel %vm9515, %v8855, 0.0
    %v9538 = vrot.slane %v9537, 4
    %v9539 = vadd.f32 %v9537, %v9538
    %v9540 = vrot.slane %v9539, 2
    %v9541 = vadd.f32 %v9539, %v9540
    %v9542 = vrot.slane %v9541, 1
    %v9543 = vadd.f32 %v9541, %v9542
    %v9544 = vsel %vm9515, %v9181, 0.0
    %v9545 = vrot.slane %v9544, 4
    %v9546 = vadd.f32 %v9544, %v9545
    %v9547 = vrot.slane %v9546, 2
    %v9548 = vadd.f32 %v9546, %v9547
    %v9549 = vrot.slane %v9548, 1
    %v9550 = vadd.f32 %v9548, %v9549
    %v9551 = vsel %vm9515, %v9183, 0.0
    %v9552 = vrot.slane %v9551, 4
    %v9553 = vadd.f32 %v9551, %v9552
    %v9554 = vrot.slane %v9553, 2
    %v9555 = vadd.f32 %v9553, %v9554
    %v9556 = vrot.slane %v9555, 1
    %v9557 = vadd.f32 %v9555, %v9556
    %v9558 = vsel %vm9515, %v9509, 0.0
    %v9559 = vrot.slane %v9558, 4
    %v9560 = vadd.f32 %v9558, %v9559
    %v9561 = vrot.slane %v9560, 2
    %v9562 = vadd.f32 %v9560, %v9561
    %v9563 = vrot.slane %v9562, 1
    %v9564 = vadd.f32 %v9562, %v9563
    %v9565 = vsel %vm9515, %v9511, 0.0
    %v9566 = vrot.slane %v9565, 4
    %v9567 = vadd.f32 %v9565, %v9566
    %v9568 = vrot.slane %v9567, 2
    %v9569 = vadd.f32 %v9567, %v9568
    %v9570 = vrot.slane %v9569, 1
    %v9571 = vadd.f32 %v9569, %v9570
    %v9572 = vld [vmem:[%s3] sm:$0xff]
    %v9573 = vld [vmem:[%s3 + $0x8] sm:$0xff]
    %v9574 = vld [vmem:[%s3 + $0x10] sm:$0xff]
    %v9575 = vld [vmem:[%s3 + $0x18] sm:$0xff]
    %v9576 = vld [vmem:[%s3 + $0x20] sm:$0xff]
    %v9577 = vld [vmem:[%s3 + $0x28] sm:$0xff]
    %v9578 = vld [vmem:[%s3 + $0x30] sm:$0xff]
    %v9579 = vld [vmem:[%s3 + $0x38] sm:$0xff]
    %v9580 = vld [vmem:[%s3 + $0x40] sm:$0xff]
    %v9581 = vld [vmem:[%s3 + $0x48] sm:$0xff]
    %v9582 = vld [vmem:[%s3 + $0x50] sm:$0xff]
    %v9583 = vld [vmem:[%s3 + $0x58] sm:$0xff]
    %v9584 = vld [vmem:[%s3 + $0x60] sm:$0xff]
    %v9585 = vld [vmem:[%s3 + $0x68] sm:$0xff]
    %v9586 = vld [vmem:[%s3 + $0x70] sm:$0xff]
    %v9587 = vld [vmem:[%s3 + $0x78] sm:$0xff]
    %v9588 = vld [vmem:[%s3 + $0x80] sm:$0xff]
    %v9589 = vld [vmem:[%s3 + $0x88] sm:$0xff]
    %v9590 = vld [vmem:[%s3 + $0x90] sm:$0xff]
    %v9591 = vld [vmem:[%s3 + $0x98] sm:$0xff]
    %v9592 = vld [vmem:[%s3 + $0xa0] sm:$0xff]
    %v9593 = vld [vmem:[%s3 + $0xa8] sm:$0xff]
    %v9594 = vld [vmem:[%s3 + $0xb0] sm:$0xff]
    %v9595 = vld [vmem:[%s3 + $0xb8] sm:$0xff]
    %v9596 = vld [vmem:[%s3 + $0xc0] sm:$0xff]
    %v9597 = vld [vmem:[%s3 + $0xc8] sm:$0xff]
    %v9598 = vld [vmem:[%s3 + $0xd0] sm:$0xff]
    %v9599 = vld [vmem:[%s3 + $0xd8] sm:$0xff]
    %v9600 = vld [vmem:[%s3 + $0xe0] sm:$0xff]
    %v9601 = vld [vmem:[%s3 + $0xe8] sm:$0xff]
    %v9602 = vld [vmem:[%s3 + $0xf0] sm:$0xff]
    %v9603 = vld [vmem:[%s3 + $0xf8] sm:$0xff]
    %v9604 = vld [vmem:[%s3 + $0x100] sm:$0xff]
    %v9605 = vld [vmem:[%s3 + $0x108] sm:$0xff]
    %v9606 = vld [vmem:[%s3 + $0x110] sm:$0xff]
    %v9607 = vld [vmem:[%s3 + $0x118] sm:$0xff]
    %v9608 = vld [vmem:[%s3 + $0x120] sm:$0xff]
    %v9609 = vld [vmem:[%s3 + $0x128] sm:$0xff]
    %v9610 = vld [vmem:[%s3 + $0x130] sm:$0xff]
    %v9611 = vld [vmem:[%s3 + $0x138] sm:$0xff]
    %v9612 = vld [vmem:[%s3 + $0x140] sm:$0xff]
    %v9613 = vld [vmem:[%s3 + $0x148] sm:$0xff]
    %v9614 = vld [vmem:[%s3 + $0x150] sm:$0xff]
    %v9615 = vld [vmem:[%s3 + $0x158] sm:$0xff]
    %v9616 = vld [vmem:[%s3 + $0x160] sm:$0xff]
    %v9617 = vld [vmem:[%s3 + $0x168] sm:$0xff]
    %v9618 = vld [vmem:[%s3 + $0x170] sm:$0xff]
    %v9619 = vld [vmem:[%s3 + $0x178] sm:$0xff]
    %v9620 = vld [vmem:[%s3 + $0x180] sm:$0xff]
    %v9621 = vld [vmem:[%s3 + $0x188] sm:$0xff]
    %v9622 = vld [vmem:[%s3 + $0x190] sm:$0xff]
    %v9623 = vld [vmem:[%s3 + $0x198] sm:$0xff]
    %v9624 = vld [vmem:[%s3 + $0x1a0] sm:$0xff]
    %v9625 = vld [vmem:[%s3 + $0x1a8] sm:$0xff]
    %v9626 = vld [vmem:[%s3 + $0x1b0] sm:$0xff]
    %v9627 = vld [vmem:[%s3 + $0x1b8] sm:$0xff]
    %v9628 = vld [vmem:[%s3 + $0x1c0] sm:$0xff]
    %v9629 = vld [vmem:[%s3 + $0x1c8] sm:$0xff]
    %v9630 = vld [vmem:[%s3 + $0x1d0] sm:$0xff]
    %v9631 = vld [vmem:[%s3 + $0x1d8] sm:$0xff]
    %v9632 = vld [vmem:[%s3 + $0x1e0] sm:$0xff]
    %v9633 = vld [vmem:[%s3 + $0x1e8] sm:$0xff]
    %v9634 = vld [vmem:[%s3 + $0x1f0] sm:$0xff]
    %v9635 = vld [vmem:[%s3 + $0x1f8] sm:$0xff]
    %v9636 = vld [vmem:[%s3 + $0x200] sm:$0xff]
    %v9637 = vld [vmem:[%s3 + $0x208] sm:$0xff]
    %v9638 = vld [vmem:[%s3 + $0x210] sm:$0xff]
    %v9639 = vld [vmem:[%s3 + $0x218] sm:$0xff]
    %v9640 = vld [vmem:[%s3 + $0x220] sm:$0xff]
    %v9641 = vld [vmem:[%s3 + $0x228] sm:$0xff]
    %v9642 = vld [vmem:[%s3 + $0x230] sm:$0xff]
    %v9643 = vld [vmem:[%s3 + $0x238] sm:$0xff]
    %v9644 = vld [vmem:[%s3 + $0x240] sm:$0xff]
    %v9645 = vld [vmem:[%s3 + $0x248] sm:$0xff]
    %v9646 = vld [vmem:[%s3 + $0x250] sm:$0xff]
    %v9647 = vld [vmem:[%s3 + $0x258] sm:$0xff]
    %v9648 = vld [vmem:[%s3 + $0x260] sm:$0xff]
    %v9649 = vld [vmem:[%s3 + $0x268] sm:$0xff]
    %v9650 = vld [vmem:[%s3 + $0x270] sm:$0xff]
    %v9651 = vld [vmem:[%s3 + $0x278] sm:$0xff]
    %v9652 = vld [vmem:[%s3 + $0x280] sm:$0xff]
    %v9653 = vld [vmem:[%s3 + $0x288] sm:$0xff]
    %v9654 = vld [vmem:[%s3 + $0x290] sm:$0xff]
    %v9655 = vld [vmem:[%s3 + $0x298] sm:$0xff]
    %v9656 = vld [vmem:[%s3 + $0x2a0] sm:$0xff]
    %v9657 = vld [vmem:[%s3 + $0x2a8] sm:$0xff]
    %v9658 = vld [vmem:[%s3 + $0x2b0] sm:$0xff]
    %v9659 = vld [vmem:[%s3 + $0x2b8] sm:$0xff]
    %v9660 = vld [vmem:[%s3 + $0x2c0] sm:$0xff]
    %v9661 = vld [vmem:[%s3 + $0x2c8] sm:$0xff]
    %v9662 = vld [vmem:[%s3 + $0x2d0] sm:$0xff]
    %v9663 = vld [vmem:[%s3 + $0x2d8] sm:$0xff]
    %v9664 = vld [vmem:[%s3 + $0x2e0] sm:$0xff]
    %v9665 = vld [vmem:[%s3 + $0x2e8] sm:$0xff]
    %v9666 = vld [vmem:[%s3 + $0x2f0] sm:$0xff]
    %v9667 = vld [vmem:[%s3 + $0x2f8] sm:$0xff]
    %v9668 = vld [vmem:[%s3 + $0x300] sm:$0xff]
    %v9669 = vld [vmem:[%s3 + $0x308] sm:$0xff]
    %v9670 = vld [vmem:[%s3 + $0x310] sm:$0xff]
    %v9671 = vld [vmem:[%s3 + $0x318] sm:$0xff]
    %v9672 = vld [vmem:[%s3 + $0x320] sm:$0xff]
    %v9673 = vld [vmem:[%s3 + $0x328] sm:$0xff]
    %v9674 = vld [vmem:[%s3 + $0x330] sm:$0xff]
    %v9675 = vld [vmem:[%s3 + $0x338] sm:$0xff]
    %v9676 = vld [vmem:[%s3 + $0x340] sm:$0xff]
    %v9677 = vld [vmem:[%s3 + $0x348] sm:$0xff]
    %v9678 = vld [vmem:[%s3 + $0x350] sm:$0xff]
    %v9679 = vld [vmem:[%s3 + $0x358] sm:$0xff]
    %v9680 = vld [vmem:[%s3 + $0x360] sm:$0xff]
    %v9681 = vld [vmem:[%s3 + $0x368] sm:$0xff]
    %v9682 = vld [vmem:[%s3 + $0x370] sm:$0xff]
    %v9683 = vld [vmem:[%s3 + $0x378] sm:$0xff]
    %v9684 = vld [vmem:[%s3 + $0x380] sm:$0xff]
    %v9685 = vld [vmem:[%s3 + $0x388] sm:$0xff]
    %v9686 = vld [vmem:[%s3 + $0x390] sm:$0xff]
    %v9687 = vld [vmem:[%s3 + $0x398] sm:$0xff]
    %v9688 = vld [vmem:[%s3 + $0x3a0] sm:$0xff]
    %v9689 = vld [vmem:[%s3 + $0x3a8] sm:$0xff]
    %v9690 = vld [vmem:[%s3 + $0x3b0] sm:$0xff]
    %v9691 = vld [vmem:[%s3 + $0x3b8] sm:$0xff]
    %v9692 = vld [vmem:[%s3 + $0x3c0] sm:$0xff]
    %v9693 = vld [vmem:[%s3 + $0x3c8] sm:$0xff]
    %v9694 = vld [vmem:[%s3 + $0x3d0] sm:$0xff]
    %v9695 = vld [vmem:[%s3 + $0x3d8] sm:$0xff]
    %v9696 = vld [vmem:[%s3 + $0x3e0] sm:$0xff]
    %v9697 = vld [vmem:[%s3 + $0x3e8] sm:$0xff]
    %v9698 = vld [vmem:[%s3 + $0x3f0] sm:$0xff]
    %v9699 = vld [vmem:[%s3 + $0x3f8] sm:$0xff]
    %9700 = vmatprep.subr.mxu0 0.0
    %9701 = vmatpush1.msra.mxu0 %v9572
    %9702 = vmatprep.subr.mxu0 0.0
    %9703 = vmatpush1.msra.mxu0 %v9573
    %9704 = vmatprep.subr.mxu0 0.0
    %9705 = vmatpush1.msra.mxu0 %v9574
    %9706 = vmatprep.subr.mxu0 0.0
    %9707 = vmatpush1.msra.mxu0 %v9575
    %9708 = vmatprep.subr.mxu0 0.0
    %9709 = vmatpush1.msra.mxu0 %v9576
    %9710 = vmatprep.subr.mxu0 0.0
    %9711 = vmatpush1.msra.mxu0 %v9577
    %9712 = vmatprep.subr.mxu0 0.0
    %9713 = vmatpush1.msra.mxu0 %v9578
    %9714 = vmatprep.subr.mxu0 0.0
    %9715 = vmatpush1.msra.mxu0 %v9579
    %9716 = vmatprep.subr.mxu0 0.0
    %9717 = vmatpush1.msra.mxu0 %v9580
    %9718 = vmatprep.subr.mxu0 0.0
    %9719 = vmatpush1.msra.mxu0 %v9581
    %9720 = vmatprep.subr.mxu0 0.0
    %9721 = vmatpush1.msra.mxu0 %v9582
    %9722 = vmatprep.subr.mxu0 0.0
    %9723 = vmatpush1.msra.mxu0 %v9583
    %9724 = vmatprep.subr.mxu0 0.0
    %9725 = vmatpush1.msra.mxu0 %v9584
    %9726 = vmatprep.subr.mxu0 0.0
    %9727 = vmatpush1.msra.mxu0 %v9585
    %9728 = vmatprep.subr.mxu0 0.0
    %9729 = vmatpush1.msra.mxu0 %v9586
    %9730 = vmatprep.subr.mxu0 0.0
    %9731 = vmatpush1.msra.mxu0 %v9587
    %9732 = vmatprep.subr.mxu0 0.0
    %9733 = vmatpush1.msra.mxu0 %v9588
    %9734 = vmatprep.subr.mxu0 0.0
    %9735 = vmatpush1.msra.mxu0 %v9589
    %9736 = vmatprep.subr.mxu0 0.0
    %9737 = vmatpush1.msra.mxu0 %v9590
    %9738 = vmatprep.subr.mxu0 0.0
    %9739 = vmatpush1.msra.mxu0 %v9591
    %9740 = vmatprep.subr.mxu0 0.0
    %9741 = vmatpush1.msra.mxu0 %v9592
    %9742 = vmatprep.subr.mxu0 0.0
    %9743 = vmatpush1.msra.mxu0 %v9593
    %9744 = vmatprep.subr.mxu0 0.0
    %9745 = vmatpush1.msra.mxu0 %v9594
    %9746 = vmatprep.subr.mxu0 0.0
    %9747 = vmatpush1.msra.mxu0 %v9595
    %9748 = vmatprep.subr.mxu0 0.0
    %9749 = vmatpush1.msra.mxu0 %v9596
    %9750 = vmatprep.subr.mxu0 0.0
    %9751 = vmatpush1.msra.mxu0 %v9597
    %9752 = vmatprep.subr.mxu0 0.0
    %9753 = vmatpush1.msra.mxu0 %v9598
    %9754 = vmatprep.subr.mxu0 0.0
    %9755 = vmatpush1.msra.mxu0 %v9599
    %9756 = vmatprep.subr.mxu0 0.0
    %9757 = vmatpush1.msra.mxu0 %v9600
    %9758 = vmatprep.subr.mxu0 0.0
    %9759 = vmatpush1.msra.mxu0 %v9601
    %9760 = vmatprep.subr.mxu0 0.0
    %9761 = vmatpush1.msra.mxu0 %v9602
    %9762 = vmatprep.subr.mxu0 0.0
    %9763 = vmatpush1.msra.mxu0 %v9603
    %9764 = vmatprep.mubr.f32.mxu0 %v9529
    %9765 = vmatmul.mubr.f32.gmra.mrb[0].mxu0 %v9522
    %v9766 = vpop.f32.mrb[0].mxu0
    %v9767 = vadd.f32 0.0, %v9766
    %v9768 = vpop.f32.mrb[0].mxu0
    %9769 = vdwg.mxu0
    %9770 = vmatprep.subr.mxu0 0.0
    %9771 = vmatpush1.msra.mxu0 %v9604
    %9772 = vmatprep.subr.mxu0 0.0
    %9773 = vmatpush1.msra.mxu0 %v9605
    %9774 = vmatprep.subr.mxu0 0.0
    %9775 = vmatpush1.msra.mxu0 %v9606
    %9776 = vmatprep.subr.mxu0 0.0
    %9777 = vmatpush1.msra.mxu0 %v9607
    %9778 = vmatprep.subr.mxu0 0.0
    %9779 = vmatpush1.msra.mxu0 %v9608
    %9780 = vmatprep.subr.mxu0 0.0
    %9781 = vmatpush1.msra.mxu0 %v9609
    %9782 = vmatprep.subr.mxu0 0.0
    %9783 = vmatpush1.msra.mxu0 %v9610
    %9784 = vmatprep.subr.mxu0 0.0
    %9785 = vmatpush1.msra.mxu0 %v9611
    %9786 = vmatprep.subr.mxu0 0.0
    %9787 = vmatpush1.msra.mxu0 %v9612
    %9788 = vmatprep.subr.mxu0 0.0
    %9789 = vmatpush1.msra.mxu0 %v9613
    %9790 = vmatprep.subr.mxu0 0.0
    %9791 = vmatpush1.msra.mxu0 %v9614
    %9792 = vmatprep.subr.mxu0 0.0
    %9793 = vmatpush1.msra.mxu0 %v9615
    %9794 = vmatprep.subr.mxu0 0.0
    %9795 = vmatpush1.msra.mxu0 %v9616
    %9796 = vmatprep.subr.mxu0 0.0
    %9797 = vmatpush1.msra.mxu0 %v9617
    %9798 = vmatprep.subr.mxu0 0.0
    %9799 = vmatpush1.msra.mxu0 %v9618
    %9800 = vmatprep.subr.mxu0 0.0
    %9801 = vmatpush1.msra.mxu0 %v9619
    %9802 = vmatprep.subr.mxu0 0.0
    %9803 = vmatpush1.msra.mxu0 %v9620
    %9804 = vmatprep.subr.mxu0 0.0
    %9805 = vmatpush1.msra.mxu0 %v9621
    %9806 = vmatprep.subr.mxu0 0.0
    %9807 = vmatpush1.msra.mxu0 %v9622
    %9808 = vmatprep.subr.mxu0 0.0
    %9809 = vmatpush1.msra.mxu0 %v9623
    %9810 = vmatprep.subr.mxu0 0.0
    %9811 = vmatpush1.msra.mxu0 %v9624
    %9812 = vmatprep.subr.mxu0 0.0
    %9813 = vmatpush1.msra.mxu0 %v9625
    %9814 = vmatprep.subr.mxu0 0.0
    %9815 = vmatpush1.msra.mxu0 %v9626
    %9816 = vmatprep.subr.mxu0 0.0
    %9817 = vmatpush1.msra.mxu0 %v9627
    %9818 = vmatprep.subr.mxu0 0.0
    %9819 = vmatpush1.msra.mxu0 %v9628
    %9820 = vmatprep.subr.mxu0 0.0
    %9821 = vmatpush1.msra.mxu0 %v9629
    %9822 = vmatprep.subr.mxu0 0.0
    %9823 = vmatpush1.msra.mxu0 %v9630
    %9824 = vmatprep.subr.mxu0 0.0
    %9825 = vmatpush1.msra.mxu0 %v9631
    %9826 = vmatprep.subr.mxu0 0.0
    %9827 = vmatpush1.msra.mxu0 %v9632
    %9828 = vmatprep.subr.mxu0 0.0
    %9829 = vmatpush1.msra.mxu0 %v9633
    %9830 = vmatprep.subr.mxu0 0.0
    %9831 = vmatpush1.msra.mxu0 %v9634
    %9832 = vmatprep.subr.mxu0 0.0
    %9833 = vmatpush1.msra.mxu0 %v9635
    %9834 = vmatprep.mubr.f32.mxu0 %v9543
    %9835 = vmatmul.mubr.f32.gmra.mrb[0].mxu0 %v9536
    %v9836 = vpop.f32.mrb[0].mxu0
    %v9837 = vadd.f32 %v9767, %v9836
    %v9838 = vpop.f32.mrb[0].mxu0
    %9839 = vdwg.mxu0
    %9840 = vmatprep.subr.mxu0 0.0
    %9841 = vmatpush1.msra.mxu0 %v9636
    %9842 = vmatprep.subr.mxu0 0.0
    %9843 = vmatpush1.msra.mxu0 %v9637
    %9844 = vmatprep.subr.mxu0 0.0
    %9845 = vmatpush1.msra.mxu0 %v9638
    %9846 = vmatprep.subr.mxu0 0.0
    %9847 = vmatpush1.msra.mxu0 %v9639
    %9848 = vmatprep.subr.mxu0 0.0
    %9849 = vmatpush1.msra.mxu0 %v9640
    %9850 = vmatprep.subr.mxu0 0.0
    %9851 = vmatpush1.msra.mxu0 %v9641
    %9852 = vmatprep.subr.mxu0 0.0
    %9853 = vmatpush1.msra.mxu0 %v9642
    %9854 = vmatprep.subr.mxu0 0.0
    %9855 = vmatpush1.msra.mxu0 %v9643
    %9856 = vmatprep.subr.mxu0 0.0
    %9857 = vmatpush1.msra.mxu0 %v9644
    %9858 = vmatprep.subr.mxu0 0.0
    %9859 = vmatpush1.msra.mxu0 %v9645
    %9860 = vmatprep.subr.mxu0 0.0
    %9861 = vmatpush1.msra.mxu0 %v9646
    %9862 = vmatprep.subr.mxu0 0.0
    %9863 = vmatpush1.msra.mxu0 %v9647
    %9864 = vmatprep.subr.mxu0 0.0
    %9865 = vmatpush1.msra.mxu0 %v9648
    %9866 = vmatprep.subr.mxu0 0.0
    %9867 = vmatpush1.msra.mxu0 %v9649
    %9868 = vmatprep.subr.mxu0 0.0
    %9869 = vmatpush1.msra.mxu0 %v9650
    %9870 = vmatprep.subr.mxu0 0.0
    %9871 = vmatpush1.msra.mxu0 %v9651
    %9872 = vmatprep.subr.mxu0 0.0
    %9873 = vmatpush1.msra.mxu0 %v9652
    %9874 = vmatprep.subr.mxu0 0.0
    %9875 = vmatpush1.msra.mxu0 %v9653
    %9876 = vmatprep.subr.mxu0 0.0
    %9877 = vmatpush1.msra.mxu0 %v9654
    %9878 = vmatprep.subr.mxu0 0.0
    %9879 = vmatpush1.msra.mxu0 %v9655
    %9880 = vmatprep.subr.mxu0 0.0
    %9881 = vmatpush1.msra.mxu0 %v9656
    %9882 = vmatprep.subr.mxu0 0.0
    %9883 = vmatpush1.msra.mxu0 %v9657
    %9884 = vmatprep.subr.mxu0 0.0
    %9885 = vmatpush1.msra.mxu0 %v9658
    %9886 = vmatprep.subr.mxu0 0.0
    %9887 = vmatpush1.msra.mxu0 %v9659
    %9888 = vmatprep.subr.mxu0 0.0
    %9889 = vmatpush1.msra.mxu0 %v9660
    %9890 = vmatprep.subr.mxu0 0.0
    %9891 = vmatpush1.msra.mxu0 %v9661
    %9892 = vmatprep.subr.mxu0 0.0
    %9893 = vmatpush1.msra.mxu0 %v9662
    %9894 = vmatprep.subr.mxu0 0.0
    %9895 = vmatpush1.msra.mxu0 %v9663
    %9896 = vmatprep.subr.mxu0 0.0
    %9897 = vmatpush1.msra.mxu0 %v9664
    %9898 = vmatprep.subr.mxu0 0.0
    %9899 = vmatpush1.msra.mxu0 %v9665
    %9900 = vmatprep.subr.mxu0 0.0
    %9901 = vmatpush1.msra.mxu0 %v9666
    %9902 = vmatprep.subr.mxu0 0.0
    %9903 = vmatpush1.msra.mxu0 %v9667
    %9904 = vmatprep.mubr.f32.mxu0 %v9557
    %9905 = vmatmul.mubr.f32.gmra.mrb[0].mxu0 %v9550
    %v9906 = vpop.f32.mrb[0].mxu0
    %v9907 = vadd.f32 %v9837, %v9906
    %v9908 = vpop.f32.mrb[0].mxu0
    %9909 = vdwg.mxu0
    %9910 = vmatprep.subr.mxu0 0.0
    %9911 = vmatpush1.msra.mxu0 %v9668
    %9912 = vmatprep.subr.mxu0 0.0
    %9913 = vmatpush1.msra.mxu0 %v9669
    %9914 = vmatprep.subr.mxu0 0.0
    %9915 = vmatpush1.msra.mxu0 %v9670
    %9916 = vmatprep.subr.mxu0 0.0
    %9917 = vmatpush1.msra.mxu0 %v9671
    %9918 = vmatprep.subr.mxu0 0.0
    %9919 = vmatpush1.msra.mxu0 %v9672
    %9920 = vmatprep.subr.mxu0 0.0
    %9921 = vmatpush1.msra.mxu0 %v9673
    %9922 = vmatprep.subr.mxu0 0.0
    %9923 = vmatpush1.msra.mxu0 %v9674
    %9924 = vmatprep.subr.mxu0 0.0
    %9925 = vmatpush1.msra.mxu0 %v9675
    %9926 = vmatprep.subr.mxu0 0.0
    %9927 = vmatpush1.msra.mxu0 %v9676
    %9928 = vmatprep.subr.mxu0 0.0
    %9929 = vmatpush1.msra.mxu0 %v9677
    %9930 = vmatprep.subr.mxu0 0.0
    %9931 = vmatpush1.msra.mxu0 %v9678
    %9932 = vmatprep.subr.mxu0 0.0
    %9933 = vmatpush1.msra.mxu0 %v9679
    %9934 = vmatprep.subr.mxu0 0.0
    %9935 = vmatpush1.msra.mxu0 %v9680
    %9936 = vmatprep.subr.mxu0 0.0
    %9937 = vmatpush1.msra.mxu0 %v9681
    %9938 = vmatprep.subr.mxu0 0.0
    %9939 = vmatpush1.msra.mxu0 %v9682
    %9940 = vmatprep.subr.mxu0 0.0
    %9941 = vmatpush1.msra.mxu0 %v9683
    %9942 = vmatprep.subr.mxu0 0.0
    %9943 = vmatpush1.msra.mxu0 %v9684
    %9944 = vmatprep.subr.mxu0 0.0
    %9945 = vmatpush1.msra.mxu0 %v9685
    %9946 = vmatprep.subr.mxu0 0.0
    %9947 = vmatpush1.msra.mxu0 %v9686
    %9948 = vmatprep.subr.mxu0 0.0
    %9949 = vmatpush1.msra.mxu0 %v9687
    %9950 = vmatprep.subr.mxu0 0.0
    %9951 = vmatpush1.msra.mxu0 %v9688
    %9952 = vmatprep.subr.mxu0 0.0
    %9953 = vmatpush1.msra.mxu0 %v9689
    %9954 = vmatprep.subr.mxu0 0.0
    %9955 = vmatpush1.msra.mxu0 %v9690
    %9956 = vmatprep.subr.mxu0 0.0
    %9957 = vmatpush1.msra.mxu0 %v9691
    %9958 = vmatprep.subr.mxu0 0.0
    %9959 = vmatpush1.msra.mxu0 %v9692
    %9960 = vmatprep.subr.mxu0 0.0
    %9961 = vmatpush1.msra.mxu0 %v9693
    %9962 = vmatprep.subr.mxu0 0.0
    %9963 = vmatpush1.msra.mxu0 %v9694
    %9964 = vmatprep.subr.mxu0 0.0
    %9965 = vmatpush1.msra.mxu0 %v9695
    %9966 = vmatprep.subr.mxu0 0.0
    %9967 = vmatpush1.msra.mxu0 %v9696
    %9968 = vmatprep.subr.mxu0 0.0
    %9969 = vmatpush1.msra.mxu0 %v9697
    %9970 = vmatprep.subr.mxu0 0.0
    %9971 = vmatpush1.msra.mxu0 %v9698
    %9972 = vmatprep.subr.mxu0 0.0
    %9973 = vmatpush1.msra.mxu0 %v9699
    %9974 = vmatprep.mubr.f32.mxu0 %v9571
    %9975 = vmatmul.mubr.f32.gmra.mrb[0].mxu0 %v9564
    %v9976 = vpop.f32.mrb[0].mxu0
    %v9977 = vadd.f32 %v9907, %v9976
    %v9978 = vpop.f32.mrb[0].mxu0
    %9979 = vdwg.mxu0
    %v9980 = vmul.f32 %v9977, 0.03125
    %v9981 = vld [vmem:[#allocation6] sm:$0xff]
    %v9982 = vld [vmem:[#allocation6 + $0x8] sm:$0xff]
    %v9983 = vld [vmem:[#allocation6 + $0x10] sm:$0xff]
    %v9984 = vld [vmem:[#allocation6 + $0x18] sm:$0xff]
    %v9985 = vld [vmem:[#allocation6 + $0x20] sm:$0xff]
    %v9986 = vld [vmem:[#allocation6 + $0x28] sm:$0xff]
    %v9987 = vld [vmem:[#allocation6 + $0x30] sm:$0xff]
    %v9988 = vld [vmem:[#allocation6 + $0x38] sm:$0xff]
    %v9989 = vld [vmem:[#allocation6 + $0x40] sm:$0xff]
    %v9990 = vld [vmem:[#allocation6 + $0x48] sm:$0xff]
    %v9991 = vld [vmem:[#allocation6 + $0x50] sm:$0xff]
    %v9992 = vld [vmem:[#allocation6 + $0x58] sm:$0xff]
    %v9993 = vld [vmem:[#allocation6 + $0x60] sm:$0xff]
    %v9994 = vld [vmem:[#allocation6 + $0x68] sm:$0xff]
    %v9995 = vld [vmem:[#allocation6 + $0x70] sm:$0xff]
    %v9996 = vld [vmem:[#allocation6 + $0x78] sm:$0xff]
    %v9997 = vld [vmem:[#allocation6 + $0x80] sm:$0xff]
    %v9998 = vld [vmem:[#allocation6 + $0x88] sm:$0xff]
    %v9999 = vld [vmem:[#allocation6 + $0x90] sm:$0xff]
    %v10000 = vld [vmem:[#allocation6 + $0x98] sm:$0xff]
    %v10001 = vld [vmem:[#allocation6 + $0xa0] sm:$0xff]
    %v10002 = vld [vmem:[#allocation6 + $0xa8] sm:$0xff]
    %v10003 = vld [vmem:[#allocation6 + $0xb0] sm:$0xff]
    %v10004 = vld [vmem:[#allocation6 + $0xb8] sm:$0xff]
    %v10005 = vld [vmem:[#allocation6 + $0xc0] sm:$0xff]
    %v10006 = vld [vmem:[#allocation6 + $0xc8] sm:$0xff]
    %v10007 = vld [vmem:[#allocation6 + $0xd0] sm:$0xff]
    %v10008 = vld [vmem:[#allocation6 + $0xd8] sm:$0xff]
    %v10009 = vld [vmem:[#allocation6 + $0xe0] sm:$0xff]
    %v10010 = vld [vmem:[#allocation6 + $0xe8] sm:$0xff]
    %v10011 = vld [vmem:[#allocation6 + $0xf0] sm:$0xff]
    %v10012 = vld [vmem:[#allocation6 + $0xf8] sm:$0xff]
    %v10013 = vld [vmem:[#allocation6 + $0x100] sm:$0xff]
    %v10014 = vld [vmem:[#allocation6 + $0x108] sm:$0xff]
    %v10015 = vld [vmem:[#allocation6 + $0x110] sm:$0xff]
    %v10016 = vld [vmem:[#allocation6 + $0x118] sm:$0xff]
    %v10017 = vld [vmem:[#allocation6 + $0x120] sm:$0xff]
    %v10018 = vld [vmem:[#allocation6 + $0x128] sm:$0xff]
    %v10019 = vld [vmem:[#allocation6 + $0x130] sm:$0xff]
    %v10020 = vld [vmem:[#allocation6 + $0x138] sm:$0xff]
    %v10021 = vld [vmem:[#allocation6 + $0x140] sm:$0xff]
    %v10022 = vld [vmem:[#allocation6 + $0x148] sm:$0xff]
    %v10023 = vld [vmem:[#allocation6 + $0x150] sm:$0xff]
    %v10024 = vld [vmem:[#allocation6 + $0x158] sm:$0xff]
    %v10025 = vld [vmem:[#allocation6 + $0x160] sm:$0xff]
    %v10026 = vld [vmem:[#allocation6 + $0x168] sm:$0xff]
    %v10027 = vld [vmem:[#allocation6 + $0x170] sm:$0xff]
    %v10028 = vld [vmem:[#allocation6 + $0x178] sm:$0xff]
    %v10029 = vld [vmem:[#allocation6 + $0x180] sm:$0xff]
    %v10030 = vld [vmem:[#allocation6 + $0x188] sm:$0xff]
    %v10031 = vld [vmem:[#allocation6 + $0x190] sm:$0xff]
    %v10032 = vld [vmem:[#allocation6 + $0x198] sm:$0xff]
    %v10033 = vld [vmem:[#allocation6 + $0x1a0] sm:$0xff]
    %v10034 = vld [vmem:[#allocation6 + $0x1a8] sm:$0xff]
    %v10035 = vld [vmem:[#allocation6 + $0x1b0] sm:$0xff]
    %v10036 = vld [vmem:[#allocation6 + $0x1b8] sm:$0xff]
    %v10037 = vld [vmem:[#allocation6 + $0x1c0] sm:$0xff]
    %v10038 = vld [vmem:[#allocation6 + $0x1c8] sm:$0xff]
    %v10039 = vld [vmem:[#allocation6 + $0x1d0] sm:$0xff]
    %v10040 = vld [vmem:[#allocation6 + $0x1d8] sm:$0xff]
    %v10041 = vld [vmem:[#allocation6 + $0x1e0] sm:$0xff]
    %v10042 = vld [vmem:[#allocation6 + $0x1e8] sm:$0xff]
    %v10043 = vld [vmem:[#allocation6 + $0x1f0] sm:$0xff]
    %v10044 = vld [vmem:[#allocation6 + $0x1f8] sm:$0xff]
    %vm10045 = vcmask 523264
    %v10047 = vsel %vm10045, %v9980, 0
    %10049 = vmatprep.subr.mxu0 %v9982
    %10050 = vmatpush1.msra.mxu0 %v9981
    %10051 = vmatprep.subr.mxu0 %v9990
    %10052 = vmatpush1.msra.mxu0 %v9989
    %10053 = vmatprep.subr.mxu0 %v9998
    %10054 = vmatpush1.msra.mxu0 %v9997
    %10055 = vmatprep.subr.mxu0 %v10006
    %10056 = vmatpush1.msra.mxu0 %v10005
    %10057 = vmatprep.subr.mxu0 %v10014
    %10058 = vmatpush1.msra.mxu0 %v10013
    %10059 = vmatprep.subr.mxu0 %v10022
    %10060 = vmatpush1.msra.mxu0 %v10021
    %10061 = vmatprep.subr.mxu0 %v10030
    %10062 = vmatpush1.msra.mxu0 %v10029
    %10063 = vmatprep.subr.mxu0 %v10038
    %10064 = vmatpush1.msra.mxu0 %v10037
    %10065 = vmatprep.subr.mxu0 0.0
    %10066 = vmatpush1.msra.mxu0 0.0
    %10067 = vmatprep.subr.mxu0 0.0
    %10068 = vmatpush1.msra.mxu0 0.0
    %10069 = vmatprep.subr.mxu0 0.0
    %10070 = vmatpush1.msra.mxu0 0.0
    %10071 = vmatprep.subr.mxu0 0.0
    %10072 = vmatpush1.msra.mxu0 0.0
    %10073 = vmatprep.subr.mxu0 0.0
    %10074 = vmatpush1.msra.mxu0 0.0
    %10075 = vmatprep.subr.mxu0 0.0
    %10076 = vmatpush1.msra.mxu0 0.0
    %10077 = vmatprep.subr.mxu0 0.0
    %10078 = vmatpush1.msra.mxu0 0.0
    %10079 = vmatprep.subr.mxu0 0.0
    %10080 = vmatpush1.msra.mxu0 0.0
    %10081 = vmatprep.subr.mxu0 0.0
    %10082 = vmatpush1.msra.mxu0 0.0
    %10083 = vmatprep.subr.mxu0 0.0
    %10084 = vmatpush1.msra.mxu0 0.0
    %10085 = vmatprep.subr.mxu0 0.0
    %10086 = vmatpush1.msra.mxu0 0.0
    %10087 = vmatprep.subr.mxu0 0.0
    %10088 = vmatpush1.msra.mxu0 0.0
    %10089 = vmatprep.subr.mxu0 0.0
    %10090 = vmatpush1.msra.mxu0 0.0
    %10091 = vmatprep.subr.mxu0 0.0
    %10092 = vmatpush1.msra.mxu0 0.0
    %10093 = vmatprep.subr.mxu0 0.0
    %10094 = vmatpush1.msra.mxu0 0.0
    %10095 = vmatprep.subr.mxu0 0.0
    %10096 = vmatpush1.msra.mxu0 0.0
    %10097 = vmatprep.subr.mxu0 0.0
    %10098 = vmatpush1.msra.mxu0 0.0
    %10099 = vmatprep.subr.mxu0 0.0
    %10100 = vmatpush1.msra.mxu0 0.0
    %10101 = vmatprep.subr.mxu0 0.0
    %10102 = vmatpush1.msra.mxu0 0.0
    %10103 = vmatprep.subr.mxu0 0.0
    %10104 = vmatpush1.msra.mxu0 0.0
    %10105 = vmatprep.subr.mxu0 0.0
    %10106 = vmatpush1.msra.mxu0 0.0
    %10107 = vmatprep.subr.mxu0 0.0
    %10108 = vmatpush1.msra.mxu0 0.0
    %10109 = vmatprep.subr.mxu0 0.0
    %10110 = vmatpush1.msra.mxu0 0.0
    %10111 = vmatprep.subr.mxu0 0.0
    %10112 = vmatpush1.msra.mxu0 0.0
    %10113 = vmatprep.mubr.f32.mxu0 0.0
    %10114 = vmatmul.mubr.f32.gmra.mrb[0].mxu0 %v10047
    %v10115 = vpop.f32.mrb[0].mxu0
    %v10116 = vadd.f32 0.0, %v10115
    %v10117 = vpop.f32.mrb[0].mxu0
    %v10118 = vadd.f32 0.0, %v10117
    %10119 = vdwg.mxu0
    %10120 = vmatprep.subr.mxu0 %v9984
    %10121 = vmatpush1.msra.mxu0 %v9983
    %10122 = vmatprep.subr.mxu0 %v9992
    %10123 = vmatpush1.msra.mxu0 %v9991
    %10124 = vmatprep.subr.mxu0 %v10000
    %10125 = vmatpush1.msra.mxu0 %v9999
    %10126 = vmatprep.subr.mxu0 %v10008
    %10127 = vmatpush1.msra.mxu0 %v10007
    %10128 = vmatprep.subr.mxu0 %v10016
    %10129 = vmatpush1.msra.mxu0 %v10015
    %10130 = vmatprep.subr.mxu0 %v10024
    %10131 = vmatpush1.msra.mxu0 %v10023
    %10132 = vmatprep.subr.mxu0 %v10032
    %10133 = vmatpush1.msra.mxu0 %v10031
    %10134 = vmatprep.subr.mxu0 %v10040
    %10135 = vmatpush1.msra.mxu0 %v10039
    %10136 = vmatprep.subr.mxu0 0.0
    %10137 = vmatpush1.msra.mxu0 0.0
    %10138 = vmatprep.subr.mxu0 0.0
    %10139 = vmatpush1.msra.mxu0 0.0
    %10140 = vmatprep.subr.mxu0 0.0
    %10141 = vmatpush1.msra.mxu0 0.0
    %10142 = vmatprep.subr.mxu0 0.0
    %10143 = vmatpush1.msra.mxu0 0.0
    %10144 = vmatprep.subr.mxu0 0.0
    %10145 = vmatpush1.msra.mxu0 0.0
    %10146 = vmatprep.subr.mxu0 0.0
    %10147 = vmatpush1.msra.mxu0 0.0
    %10148 = vmatprep.subr.mxu0 0.0
    %10149 = vmatpush1.msra.mxu0 0.0
    %10150 = vmatprep.subr.mxu0 0.0
    %10151 = vmatpush1.msra.mxu0 0.0
    %10152 = vmatprep.subr.mxu0 0.0
    %10153 = vmatpush1.msra.mxu0 0.0
    %10154 = vmatprep.subr.mxu0 0.0
    %10155 = vmatpush1.msra.mxu0 0.0
    %10156 = vmatprep.subr.mxu0 0.0
    %10157 = vmatpush1.msra.mxu0 0.0
    %10158 = vmatprep.subr.mxu0 0.0
    %10159 = vmatpush1.msra.mxu0 0.0
    %10160 = vmatprep.subr.mxu0 0.0
    %10161 = vmatpush1.msra.mxu0 0.0
    %10162 = vmatprep.subr.mxu0 0.0
    %10163 = vmatpush1.msra.mxu0 0.0
    %10164 = vmatprep.subr.mxu0 0.0
    %10165 = vmatpush1.msra.mxu0 0.0
    %10166 = vmatprep.subr.mxu0 0.0
    %10167 = vmatpush1.msra.mxu0 0.0
    %10168 = vmatprep.subr.mxu0 0.0
    %10169 = vmatpush1.msra.mxu0 0.0
    %10170 = vmatprep.subr.mxu0 0.0
    %10171 = vmatpush1.msra.mxu0 0.0
    %10172 = vmatprep.subr.mxu0 0.0
    %10173 = vmatpush1.msra.mxu0 0.0
    %10174 = vmatprep.subr.mxu0 0.0
    %10175 = vmatpush1.msra.mxu0 0.0
    %10176 = vmatprep.subr.mxu0 0.0
    %10177 = vmatpush1.msra.mxu0 0.0
    %10178 = vmatprep.subr.mxu0 0.0
    %10179 = vmatpush1.msra.mxu0 0.0
    %10180 = vmatprep.subr.mxu0 0.0
    %10181 = vmatpush1.msra.mxu0 0.0
    %10182 = vmatprep.subr.mxu0 0.0
    %10183 = vmatpush1.msra.mxu0 0.0
    %10184 = vmatprep.mubr.f32.mxu0 0.0
    %10185 = vmatmul.mubr.f32.gmra.mrb[0].mxu0 %v10047
    %v10186 = vpop.f32.mrb[0].mxu0
    %v10187 = vadd.f32 0.0, %v10186
    %v10188 = vpop.f32.mrb[0].mxu0
    %v10189 = vadd.f32 0.0, %v10188
    %10190 = vdwg.mxu0
    %10191 = vmatprep.subr.mxu0 %v9986
    %10192 = vmatpush1.msra.mxu0 %v9985
    %10193 = vmatprep.subr.mxu0 %v9994
    %10194 = vmatpush1.msra.mxu0 %v9993
    %10195 = vmatprep.subr.mxu0 %v10002
    %10196 = vmatpush1.msra.mxu0 %v10001
    %10197 = vmatprep.subr.mxu0 %v10010
    %10198 = vmatpush1.msra.mxu0 %v10009
    %10199 = vmatprep.subr.mxu0 %v10018
    %10200 = vmatpush1.msra.mxu0 %v10017
    %10201 = vmatprep.subr.mxu0 %v10026
    %10202 = vmatpush1.msra.mxu0 %v10025
    %10203 = vmatprep.subr.mxu0 %v10034
    %10204 = vmatpush1.msra.mxu0 %v10033
    %10205 = vmatprep.subr.mxu0 %v10042
    %10206 = vmatpush1.msra.mxu0 %v10041
    %10207 = vmatprep.subr.mxu0 0.0
    %10208 = vmatpush1.msra.mxu0 0.0
    %10209 = vmatprep.subr.mxu0 0.0
    %10210 = vmatpush1.msra.mxu0 0.0
    %10211 = vmatprep.subr.mxu0 0.0
    %10212 = vmatpush1.msra.mxu0 0.0
    %10213 = vmatprep.subr.mxu0 0.0
    %10214 = vmatpush1.msra.mxu0 0.0
    %10215 = vmatprep.subr.mxu0 0.0
    %10216 = vmatpush1.msra.mxu0 0.0
    %10217 = vmatprep.subr.mxu0 0.0
    %10218 = vmatpush1.msra.mxu0 0.0
    %10219 = vmatprep.subr.mxu0 0.0
    %10220 = vmatpush1.msra.mxu0 0.0
    %10221 = vmatprep.subr.mxu0 0.0
    %10222 = vmatpush1.msra.mxu0 0.0
    %10223 = vmatprep.subr.mxu0 0.0
    %10224 = vmatpush1.msra.mxu0 0.0
    %10225 = vmatprep.subr.mxu0 0.0
    %10226 = vmatpush1.msra.mxu0 0.0
    %10227 = vmatprep.subr.mxu0 0.0
    %10228 = vmatpush1.msra.mxu0 0.0
    %10229 = vmatprep.subr.mxu0 0.0
    %10230 = vmatpush1.msra.mxu0 0.0
    %10231 = vmatprep.subr.mxu0 0.0
    %10232 = vmatpush1.msra.mxu0 0.0
    %10233 = vmatprep.subr.mxu0 0.0
    %10234 = vmatpush1.msra.mxu0 0.0
    %10235 = vmatprep.subr.mxu0 0.0
    %10236 = vmatpush1.msra.mxu0 0.0
    %10237 = vmatprep.subr.mxu0 0.0
    %10238 = vmatpush1.msra.mxu0 0.0
    %10239 = vmatprep.subr.mxu0 0.0
    %10240 = vmatpush1.msra.mxu0 0.0
    %10241 = vmatprep.subr.mxu0 0.0
    %10242 = vmatpush1.msra.mxu0 0.0
    %10243 = vmatprep.subr.mxu0 0.0
    %10244 = vmatpush1.msra.mxu0 0.0
    %10245 = vmatprep.subr.mxu0 0.0
    %10246 = vmatpush1.msra.mxu0 0.0
    %10247 = vmatprep.subr.mxu0 0.0
    %10248 = vmatpush1.msra.mxu0 0.0
    %10249 = vmatprep.subr.mxu0 0.0
    %10250 = vmatpush1.msra.mxu0 0.0
    %10251 = vmatprep.subr.mxu0 0.0
    %10252 = vmatpush1.msra.mxu0 0.0
    %10253 = vmatprep.subr.mxu0 0.0
    %10254 = vmatpush1.msra.mxu0 0.0
    %10255 = vmatprep.mubr.f32.mxu0 0.0
    %10256 = vmatmul.mubr.f32.gmra.mrb[0].mxu0 %v10047
    %v10257 = vpop.f32.mrb[0].mxu0
    %v10258 = vadd.f32 0.0, %v10257
    %v10259 = vpop.f32.mrb[0].mxu0
    %v10260 = vadd.f32 0.0, %v10259
    %10261 = vdwg.mxu0
    %10262 = vmatprep.subr.mxu0 %v9988
    %10263 = vmatpush1.msra.mxu0 %v9987
    %10264 = vmatprep.subr.mxu0 %v9996
    %10265 = vmatpush1.msra.mxu0 %v9995
    %10266 = vmatprep.subr.mxu0 %v10004
    %10267 = vmatpush1.msra.mxu0 %v10003
    %10268 = vmatprep.subr.mxu0 %v10012
    %10269 = vmatpush1.msra.mxu0 %v10011
    %10270 = vmatprep.subr.mxu0 %v10020
    %10271 = vmatpush1.msra.mxu0 %v10019
    %10272 = vmatprep.subr.mxu0 %v10028
    %10273 = vmatpush1.msra.mxu0 %v10027
    %10274 = vmatprep.subr.mxu0 %v10036
    %10275 = vmatpush1.msra.mxu0 %v10035
    %10276 = vmatprep.subr.mxu0 %v10044
    %10277 = vmatpush1.msra.mxu0 %v10043
    %10278 = vmatprep.subr.mxu0 0.0
    %10279 = vmatpush1.msra.mxu0 0.0
    %10280 = vmatprep.subr.mxu0 0.0
    %10281 = vmatpush1.msra.mxu0 0.0
    %10282 = vmatprep.subr.mxu0 0.0
    %10283 = vmatpush1.msra.mxu0 0.0
    %10284 = vmatprep.subr.mxu0 0.0
    %10285 = vmatpush1.msra.mxu0 0.0
    %10286 = vmatprep.subr.mxu0 0.0
    %10287 = vmatpush1.msra.mxu0 0.0
    %10288 = vmatprep.subr.mxu0 0.0
    %10289 = vmatpush1.msra.mxu0 0.0
    %10290 = vmatprep.subr.mxu0 0.0
    %10291 = vmatpush1.msra.mxu0 0.0
    %10292 = vmatprep.subr.mxu0 0.0
    %10293 = vmatpush1.msra.mxu0 0.0
    %10294 = vmatprep.subr.mxu0 0.0
    %10295 = vmatpush1.msra.mxu0 0.0
    %10296 = vmatprep.subr.mxu0 0.0
    %10297 = vmatpush1.msra.mxu0 0.0
    %10298 = vmatprep.subr.mxu0 0.0
    %10299 = vmatpush1.msra.mxu0 0.0
    %10300 = vmatprep.subr.mxu0 0.0
    %10301 = vmatpush1.msra.mxu0 0.0
    %10302 = vmatprep.subr.mxu0 0.0
    %10303 = vmatpush1.msra.mxu0 0.0
    %10304 = vmatprep.subr.mxu0 0.0
    %10305 = vmatpush1.msra.mxu0 0.0
    %10306 = vmatprep.subr.mxu0 0.0
    %10307 = vmatpush1.msra.mxu0 0.0
    %10308 = vmatprep.subr.mxu0 0.0
    %10309 = vmatpush1.msra.mxu0 0.0
    %10310 = vmatprep.subr.mxu0 0.0
    %10311 = vmatpush1.msra.mxu0 0.0
    %10312 = vmatprep.subr.mxu0 0.0
    %10313 = vmatpush1.msra.mxu0 0.0
    %10314 = vmatprep.subr.mxu0 0.0
    %10315 = vmatpush1.msra.mxu0 0.0
    %10316 = vmatprep.subr.mxu0 0.0
    %10317 = vmatpush1.msra.mxu0 0.0
    %10318 = vmatprep.subr.mxu0 0.0
    %10319 = vmatpush1.msra.mxu0 0.0
    %10320 = vmatprep.subr.mxu0 0.0
    %10321 = vmatpush1.msra.mxu0 0.0
    %10322 = vmatprep.subr.mxu0 0.0
    %10323 = vmatpush1.msra.mxu0 0.0
    %10324 = vmatprep.subr.mxu0 0.0
    %10325 = vmatpush1.msra.mxu0 0.0
    %10326 = vmatprep.mubr.f32.mxu0 0.0
    %10327 = vmatmul.mubr.f32.gmra.mrb[0].mxu0 %v10047
    %v10328 = vpop.f32.mrb[0].mxu0
    %v10329 = vadd.f32 0.0, %v10328
    %v10330 = vpop.f32.mrb[0].mxu0
    %v10331 = vadd.f32 0.0, %v10330
    %10332 = vdwg.mxu0
    %v10333 = vlaneseq
    %v10334 = vshrl.u32 %v10333, 7
    %v10335 = vsub.s32 0, %v10334
    %v10336 = vrot.slane %v10116, %v10335
    %v10337 = vlaneseq
    %v10338 = vshrl.u32 %v10337, 7
    %v10339 = vsub.s32 0, %v10338
    %v10340 = vrot.slane %v10118, %v10339
    %v10341 = vlaneseq
    %v10342 = vshrl.u32 %v10341, 7
    %v10343 = vsub.s32 0, %v10342
    %v10344 = vrot.slane %v10187, %v10343
    %v10345 = vlaneseq
    %v10346 = vshrl.u32 %v10345, 7
    %v10347 = vsub.s32 0, %v10346
    %v10348 = vrot.slane %v10189, %v10347
    %v10349 = vlaneseq
    %v10350 = vshrl.u32 %v10349, 7
    %v10351 = vsub.s32 0, %v10350
    %v10352 = vrot.slane %v10258, %v10351
    %v10353 = vlaneseq
    %v10354 = vshrl.u32 %v10353, 7
    %v10355 = vsub.s32 0, %v10354
    %v10356 = vrot.slane %v10260, %v10355
    %v10357 = vlaneseq
    %v10358 = vshrl.u32 %v10357, 7
    %v10359 = vsub.s32 0, %v10358
    %v10360 = vrot.slane %v10329, %v10359
    %v10361 = vlaneseq
    %v10362 = vshrl.u32 %v10361, 7
    %v10363 = vsub.s32 0, %v10362
    %v10364 = vrot.slane %v10331, %v10363
    %v10365 = vsub.f32 %v8525, %v10336
    %v10366 = vsub.f32 %v8527, %v10340
    %v10367 = vsub.f32 %v8853, %v10344
    %v10368 = vsub.f32 %v8855, %v10348
    %v10369 = vsub.f32 %v9181, %v10352
    %v10370 = vsub.f32 %v9183, %v10356
    %v10371 = vsub.f32 %v9509, %v10360
    %v10372 = vsub.f32 %v9511, %v10364
    %v10373 = vmul.f32 %v10365, %v10365
    %v10374 = vmul.f32 %v10366, %v10366
    %v10375 = vmul.f32 %v10367, %v10367
    %v10376 = vmul.f32 %v10368, %v10368
    %v10377 = vmul.f32 %v10369, %v10369
    %v10378 = vmul.f32 %v10370, %v10370
    %v10379 = vmul.f32 %v10371, %v10371
    %v10380 = vmul.f32 %v10372, %v10372
    %v10381 = vsel %vm9515, %v10373, 0.0
    %v10382 = vrot.slane %v10381, 4
    %v10383 = vadd.f32 %v10381, %v10382
    %v10384 = vrot.slane %v10383, 2
    %v10385 = vadd.f32 %v10383, %v10384
    %v10386 = vrot.slane %v10385, 1
    %v10387 = vadd.f32 %v10385, %v10386
    %v10388 = vsel %vm9515, %v10374, 0.0
    %v10389 = vrot.slane %v10388, 4
    %v10390 = vadd.f32 %v10388, %v10389
    %v10391 = vrot.slane %v10390, 2
    %v10392 = vadd.f32 %v10390, %v10391
    %v10393 = vrot.slane %v10392, 1
    %v10394 = vadd.f32 %v10392, %v10393
    %v10395 = vsel %vm9515, %v10375, 0.0
    %v10396 = vrot.slane %v10395, 4
    %v10397 = vadd.f32 %v10395, %v10396
    %v10398 = vrot.slane %v10397, 2
    %v10399 = vadd.f32 %v10397, %v10398
    %v10400 = vrot.slane %v10399, 1
    %v10401 = vadd.f32 %v10399, %v10400
    %v10402 = vsel %vm9515, %v10376, 0.0
    %v10403 = vrot.slane %v10402, 4
    %v10404 = vadd.f32 %v10402, %v10403
    %v10405 = vrot.slane %v10404, 2
    %v10406 = vadd.f32 %v10404, %v10405
    %v10407 = vrot.slane %v10406, 1
    %v10408 = vadd.f32 %v10406, %v10407
    %v10409 = vsel %vm9515, %v10377, 0.0
    %v10410 = vrot.slane %v10409, 4
    %v10411 = vadd.f32 %v10409, %v10410
    %v10412 = vrot.slane %v10411, 2
    %v10413 = vadd.f32 %v10411, %v10412
    %v10414 = vrot.slane %v10413, 1
    %v10415 = vadd.f32 %v10413, %v10414
    %v10416 = vsel %vm9515, %v10378, 0.0
    %v10417 = vrot.slane %v10416, 4
    %v10418 = vadd.f32 %v10416, %v10417
    %v10419 = vrot.slane %v10418, 2
    %v10420 = vadd.f32 %v10418, %v10419
    %v10421 = vrot.slane %v10420, 1
    %v10422 = vadd.f32 %v10420, %v10421
    %v10423 = vsel %vm9515, %v10379, 0.0
    %v10424 = vrot.slane %v10423, 4
    %v10425 = vadd.f32 %v10423, %v10424
    %v10426 = vrot.slane %v10425, 2
    %v10427 = vadd.f32 %v10425, %v10426
    %v10428 = vrot.slane %v10427, 1
    %v10429 = vadd.f32 %v10427, %v10428
    %v10430 = vsel %vm9515, %v10380, 0.0
    %v10431 = vrot.slane %v10430, 4
    %v10432 = vadd.f32 %v10430, %v10431
    %v10433 = vrot.slane %v10432, 2
    %v10434 = vadd.f32 %v10432, %v10433
    %v10435 = vrot.slane %v10434, 1
    %v10436 = vadd.f32 %v10434, %v10435
    %10437 = vmatprep.subr.mxu0 0.0
    %10438 = vmatpush1.msra.mxu0 %v9572
    %10439 = vmatprep.subr.mxu0 0.0
    %10440 = vmatpush1.msra.mxu0 %v9573
    %10441 = vmatprep.subr.mxu0 0.0
    %10442 = vmatpush1.msra.mxu0 %v9574
    %10443 = vmatprep.subr.mxu0 0.0
    %10444 = vmatpush1.msra.mxu0 %v9575
    %10445 = vmatprep.subr.mxu0 0.0
    %10446 = vmatpush1.msra.mxu0 %v9576
    %10447 = vmatprep.subr.mxu0 0.0
    %10448 = vmatpush1.msra.mxu0 %v9577
    %10449 = vmatprep.subr.mxu0 0.0
    %10450 = vmatpush1.msra.mxu0 %v9578
    %10451 = vmatprep.subr.mxu0 0.0
    %10452 = vmatpush1.msra.mxu0 %v9579
    %10453 = vmatprep.subr.mxu0 0.0
    %10454 = vmatpush1.msra.mxu0 %v9580
    %10455 = vmatprep.subr.mxu0 0.0
    %10456 = vmatpush1.msra.mxu0 %v9581
    %10457 = vmatprep.subr.mxu0 0.0
    %10458 = vmatpush1.msra.mxu0 %v9582
    %10459 = vmatprep.subr.mxu0 0.0
    %10460 = vmatpush1.msra.mxu0 %v9583
    %10461 = vmatprep.subr.mxu0 0.0
    %10462 = vmatpush1.msra.mxu0 %v9584
    %10463 = vmatprep.subr.mxu0 0.0
    %10464 = vmatpush1.msra.mxu0 %v9585
    %10465 = vmatprep.subr.mxu0 0.0
    %10466 = vmatpush1.msra.mxu0 %v9586
    %10467 = vmatprep.subr.mxu0 0.0
    %10468 = vmatpush1.msra.mxu0 %v9587
    %10469 = vmatprep.subr.mxu0 0.0
    %10470 = vmatpush1.msra.mxu0 %v9588
    %10471 = vmatprep.subr.mxu0 0.0
    %10472 = vmatpush1.msra.mxu0 %v9589
    %10473 = vmatprep.subr.mxu0 0.0
    %10474 = vmatpush1.msra.mxu0 %v9590
    %10475 = vmatprep.subr.mxu0 0.0
    %10476 = vmatpush1.msra.mxu0 %v9591
    %10477 = vmatprep.subr.mxu0 0.0
    %10478 = vmatpush1.msra.mxu0 %v9592
    %10479 = vmatprep.subr.mxu0 0.0
    %10480 = vmatpush1.msra.mxu0 %v9593
    %10481 = vmatprep.subr.mxu0 0.0
    %10482 = vmatpush1.msra.mxu0 %v9594
    %10483 = vmatprep.subr.mxu0 0.0
    %10484 = vmatpush1.msra.mxu0 %v9595
    %10485 = vmatprep.subr.mxu0 0.0
    %10486 = vmatpush1.msra.mxu0 %v9596
    %10487 = vmatprep.subr.mxu0 0.0
    %10488 = vmatpush1.msra.mxu0 %v9597
    %10489 = vmatprep.subr.mxu0 0.0
    %10490 = vmatpush1.msra.mxu0 %v9598
    %10491 = vmatprep.subr.mxu0 0.0
    %10492 = vmatpush1.msra.mxu0 %v9599
    %10493 = vmatprep.subr.mxu0 0.0
    %10494 = vmatpush1.msra.mxu0 %v9600
    %10495 = vmatprep.subr.mxu0 0.0
    %10496 = vmatpush1.msra.mxu0 %v9601
    %10497 = vmatprep.subr.mxu0 0.0
    %10498 = vmatpush1.msra.mxu0 %v9602
    %10499 = vmatprep.subr.mxu0 0.0
    %10500 = vmatpush1.msra.mxu0 %v9603
    %10501 = vmatprep.mubr.f32.mxu0 %v10394
    %10502 = vmatmul.mubr.f32.gmra.mrb[0].mxu0 %v10387
    %v10503 = vpop.f32.mrb[0].mxu0
    %v10504 = vadd.f32 0.0, %v10503
    %v10505 = vpop.f32.mrb[0].mxu0
    %10506 = vdwg.mxu0
    %10507 = vmatprep.subr.mxu0 0.0
    %10508 = vmatpush1.msra.mxu0 %v9604
    %10509 = vmatprep.subr.mxu0 0.0
    %10510 = vmatpush1.msra.mxu0 %v9605
    %10511 = vmatprep.subr.mxu0 0.0
    %10512 = vmatpush1.msra.mxu0 %v9606
    %10513 = vmatprep.subr.mxu0 0.0
    %10514 = vmatpush1.msra.mxu0 %v9607
    %10515 = vmatprep.subr.mxu0 0.0
    %10516 = vmatpush1.msra.mxu0 %v9608
    %10517 = vmatprep.subr.mxu0 0.0
    %10518 = vmatpush1.msra.mxu0 %v9609
    %10519 = vmatprep.subr.mxu0 0.0
    %10520 = vmatpush1.msra.mxu0 %v9610
    %10521 = vmatprep.subr.mxu0 0.0
    %10522 = vmatpush1.msra.mxu0 %v9611
    %10523 = vmatprep.subr.mxu0 0.0
    %10524 = vmatpush1.msra.mxu0 %v9612
    %10525 = vmatprep.subr.mxu0 0.0
    %10526 = vmatpush1.msra.mxu0 %v9613
    %10527 = vmatprep.subr.mxu0 0.0
    %10528 = vmatpush1.msra.mxu0 %v9614
    %10529 = vmatprep.subr.mxu0 0.0
    %10530 = vmatpush1.msra.mxu0 %v9615
    %10531 = vmatprep.subr.mxu0 0.0
    %10532 = vmatpush1.msra.mxu0 %v9616
    %10533 = vmatprep.subr.mxu0 0.0
    %10534 = vmatpush1.msra.mxu0 %v9617
    %10535 = vmatprep.subr.mxu0 0.0
    %10536 = vmatpush1.msra.mxu0 %v9618
    %10537 = vmatprep.subr.mxu0 0.0
    %10538 = vmatpush1.msra.mxu0 %v9619
    %10539 = vmatprep.subr.mxu0 0.0
    %10540 = vmatpush1.msra.mxu0 %v9620
    %10541 = vmatprep.subr.mxu0 0.0
    %10542 = vmatpush1.msra.mxu0 %v9621
    %10543 = vmatprep.subr.mxu0 0.0
    %10544 = vmatpush1.msra.mxu0 %v9622
    %10545 = vmatprep.subr.mxu0 0.0
    %10546 = vmatpush1.msra.mxu0 %v9623
    %10547 = vmatprep.subr.mxu0 0.0
    %10548 = vmatpush1.msra.mxu0 %v9624
    %10549 = vmatprep.subr.mxu0 0.0
    %10550 = vmatpush1.msra.mxu0 %v9625
    %10551 = vmatprep.subr.mxu0 0.0
    %10552 = vmatpush1.msra.mxu0 %v9626
    %10553 = vmatprep.subr.mxu0 0.0
    %10554 = vmatpush1.msra.mxu0 %v9627
    %10555 = vmatprep.subr.mxu0 0.0
    %10556 = vmatpush1.msra.mxu0 %v9628
    %10557 = vmatprep.subr.mxu0 0.0
    %10558 = vmatpush1.msra.mxu0 %v9629
    %10559 = vmatprep.subr.mxu0 0.0
    %10560 = vmatpush1.msra.mxu0 %v9630
    %10561 = vmatprep.subr.mxu0 0.0
    %10562 = vmatpush1.msra.mxu0 %v9631
    %10563 = vmatprep.subr.mxu0 0.0
    %10564 = vmatpush1.msra.mxu0 %v9632
    %10565 = vmatprep.subr.mxu0 0.0
    %10566 = vmatpush1.msra.mxu0 %v9633
    %10567 = vmatprep.subr.mxu0 0.0
    %10568 = vmatpush1.msra.mxu0 %v9634
    %10569 = vmatprep.subr.mxu0 0.0
    %10570 = vmatpush1.msra.mxu0 %v9635
    %10571 = vmatprep.mubr.f32.mxu0 %v10408
    %10572 = vmatmul.mubr.f32.gmra.mrb[0].mxu0 %v10401
    %v10573 = vpop.f32.mrb[0].mxu0
    %v10574 = vadd.f32 %v10504, %v10573
    %v10575 = vpop.f32.mrb[0].mxu0
    %10576 = vdwg.mxu0
    %10577 = vmatprep.subr.mxu0 0.0
    %10578 = vmatpush1.msra.mxu0 %v9636
    %10579 = vmatprep.subr.mxu0 0.0
    %10580 = vmatpush1.msra.mxu0 %v9637
    %10581 = vmatprep.subr.mxu0 0.0
    %10582 = vmatpush1.msra.mxu0 %v9638
    %10583 = vmatprep.subr.mxu0 0.0
    %10584 = vmatpush1.msra.mxu0 %v9639
    %10585 = vmatprep.subr.mxu0 0.0
    %10586 = vmatpush1.msra.mxu0 %v9640
    %10587 = vmatprep.subr.mxu0 0.0
    %10588 = vmatpush1.msra.mxu0 %v9641
    %10589 = vmatprep.subr.mxu0 0.0
    %10590 = vmatpush1.msra.mxu0 %v9642
    %10591 = vmatprep.subr.mxu0 0.0
    %10592 = vmatpush1.msra.mxu0 %v9643
    %10593 = vmatprep.subr.mxu0 0.0
    %10594 = vmatpush1.msra.mxu0 %v9644
    %10595 = vmatprep.subr.mxu0 0.0
    %10596 = vmatpush1.msra.mxu0 %v9645
    %10597 = vmatprep.subr.mxu0 0.0
    %10598 = vmatpush1.msra.mxu0 %v9646
    %10599 = vmatprep.subr.mxu0 0.0
    %10600 = vmatpush1.msra.mxu0 %v9647
    %10601 = vmatprep.subr.mxu0 0.0
    %10602 = vmatpush1.msra.mxu0 %v9648
    %10603 = vmatprep.subr.mxu0 0.0
    %10604 = vmatpush1.msra.mxu0 %v9649
    %10605 = vmatprep.subr.mxu0 0.0
    %10606 = vmatpush1.msra.mxu0 %v9650
    %10607 = vmatprep.subr.mxu0 0.0
    %10608 = vmatpush1.msra.mxu0 %v9651
    %10609 = vmatprep.subr.mxu0 0.0
    %10610 = vmatpush1.msra.mxu0 %v9652
    %10611 = vmatprep.subr.mxu0 0.0
    %10612 = vmatpush1.msra.mxu0 %v9653
    %10613 = vmatprep.subr.mxu0 0.0
    %10614 = vmatpush1.msra.mxu0 %v9654
    %10615 = vmatprep.subr.mxu0 0.0
    %10616 = vmatpush1.msra.mxu0 %v9655
    %10617 = vmatprep.subr.mxu0 0.0
    %10618 = vmatpush1.msra.mxu0 %v9656
    %10619 = vmatprep.subr.mxu0 0.0
    %10620 = vmatpush1.msra.mxu0 %v9657
    %10621 = vmatprep.subr.mxu0 0.0
    %10622 = vmatpush1.msra.mxu0 %v9658
    %10623 = vmatprep.subr.mxu0 0.0
    %10624 = vmatpush1.msra.mxu0 %v9659
    %10625 = vmatprep.subr.mxu0 0.0
    %10626 = vmatpush1.msra.mxu0 %v9660
    %10627 = vmatprep.subr.mxu0 0.0
    %10628 = vmatpush1.msra.mxu0 %v9661
    %10629 = vmatprep.subr.mxu0 0.0
    %10630 = vmatpush1.msra.mxu0 %v9662
    %10631 = vmatprep.subr.mxu0 0.0
    %10632 = vmatpush1.msra.mxu0 %v9663
    %10633 = vmatprep.subr.mxu0 0.0
    %10634 = vmatpush1.msra.mxu0 %v9664
    %10635 = vmatprep.subr.mxu0 0.0
    %10636 = vmatpush1.msra.mxu0 %v9665
    %10637 = vmatprep.subr.mxu0 0.0
    %10638 = vmatpush1.msra.mxu0 %v9666
    %10639 = vmatprep.subr.mxu0 0.0
    %10640 = vmatpush1.msra.mxu0 %v9667
    %10641 = vmatprep.mubr.f32.mxu0 %v10422
    %10642 = vmatmul.mubr.f32.gmra.mrb[0].mxu0 %v10415
    %v10643 = vpop.f32.mrb[0].mxu0
    %v10644 = vadd.f32 %v10574, %v10643
    %v10645 = vpop.f32.mrb[0].mxu0
    %10646 = vdwg.mxu0
    %10647 = vmatprep.subr.mxu0 0.0
    %10648 = vmatpush1.msra.mxu0 %v9668
    %10649 = vmatprep.subr.mxu0 0.0
    %10650 = vmatpush1.msra.mxu0 %v9669
    %10651 = vmatprep.subr.mxu0 0.0
    %10652 = vmatpush1.msra.mxu0 %v9670
    %10653 = vmatprep.subr.mxu0 0.0
    %10654 = vmatpush1.msra.mxu0 %v9671
    %10655 = vmatprep.subr.mxu0 0.0
    %10656 = vmatpush1.msra.mxu0 %v9672
    %10657 = vmatprep.subr.mxu0 0.0
    %10658 = vmatpush1.msra.mxu0 %v9673
    %10659 = vmatprep.subr.mxu0 0.0
    %10660 = vmatpush1.msra.mxu0 %v9674
    %10661 = vmatprep.subr.mxu0 0.0
    %10662 = vmatpush1.msra.mxu0 %v9675
    %10663 = vmatprep.subr.mxu0 0.0
    %10664 = vmatpush1.msra.mxu0 %v9676
    %10665 = vmatprep.subr.mxu0 0.0
    %10666 = vmatpush1.msra.mxu0 %v9677
    %10667 = vmatprep.subr.mxu0 0.0
    %10668 = vmatpush1.msra.mxu0 %v9678
    %10669 = vmatprep.subr.mxu0 0.0
    %10670 = vmatpush1.msra.mxu0 %v9679
    %10671 = vmatprep.subr.mxu0 0.0
    %10672 = vmatpush1.msra.mxu0 %v9680
    %10673 = vmatprep.subr.mxu0 0.0
    %10674 = vmatpush1.msra.mxu0 %v9681
    %10675 = vmatprep.subr.mxu0 0.0
    %10676 = vmatpush1.msra.mxu0 %v9682
    %10677 = vmatprep.subr.mxu0 0.0
    %10678 = vmatpush1.msra.mxu0 %v9683
    %10679 = vmatprep.subr.mxu0 0.0
    %10680 = vmatpush1.msra.mxu0 %v9684
    %10681 = vmatprep.subr.mxu0 0.0
    %10682 = vmatpush1.msra.mxu0 %v9685
    %10683 = vmatprep.subr.mxu0 0.0
    %10684 = vmatpush1.msra.mxu0 %v9686
    %10685 = vmatprep.subr.mxu0 0.0
    %10686 = vmatpush1.msra.mxu0 %v9687
    %10687 = vmatprep.subr.mxu0 0.0
    %10688 = vmatpush1.msra.mxu0 %v9688
    %10689 = vmatprep.subr.mxu0 0.0
    %10690 = vmatpush1.msra.mxu0 %v9689
    %10691 = vmatprep.subr.mxu0 0.0
    %10692 = vmatpush1.msra.mxu0 %v9690
    %10693 = vmatprep.subr.mxu0 0.0
    %10694 = vmatpush1.msra.mxu0 %v9691
    %10695 = vmatprep.subr.mxu0 0.0
    %10696 = vmatpush1.msra.mxu0 %v9692
    %10697 = vmatprep.subr.mxu0 0.0
    %10698 = vmatpush1.msra.mxu0 %v9693
    %10699 = vmatprep.subr.mxu0 0.0
    %10700 = vmatpush1.msra.mxu0 %v9694
    %10701 = vmatprep.subr.mxu0 0.0
    %10702 = vmatpush1.msra.mxu0 %v9695
    %10703 = vmatprep.subr.mxu0 0.0
    %10704 = vmatpush1.msra.mxu0 %v9696
    %10705 = vmatprep.subr.mxu0 0.0
    %10706 = vmatpush1.msra.mxu0 %v9697
    %10707 = vmatprep.subr.mxu0 0.0
    %10708 = vmatpush1.msra.mxu0 %v9698
    %10709 = vmatprep.subr.mxu0 0.0
    %10710 = vmatpush1.msra.mxu0 %v9699
    %10711 = vmatprep.mubr.f32.mxu0 %v10436
    %10712 = vmatmul.mubr.f32.gmra.mrb[0].mxu0 %v10429
    %v10713 = vpop.f32.mrb[0].mxu0
    %v10714 = vadd.f32 %v10644, %v10713
    %v10715 = vpop.f32.mrb[0].mxu0
    %10716 = vdwg.mxu0
    %v10717 = vmul.f32 %v10714, 0.03125
    %v10718 = vld [vmem:[#allocation7] sm:$0xff]
    %v10720 = vsel %vm10045, %v10717, 0
    %10722 = vmatprep.subr.mxu0 %v9982
    %10723 = vmatpush1.msra.mxu0 %v9981
    %10724 = vmatprep.subr.mxu0 %v9990
    %10725 = vmatpush1.msra.mxu0 %v9989
    %10726 = vmatprep.subr.mxu0 %v9998
    %10727 = vmatpush1.msra.mxu0 %v9997
    %10728 = vmatprep.subr.mxu0 %v10006
    %10729 = vmatpush1.msra.mxu0 %v10005
    %10730 = vmatprep.subr.mxu0 %v10014
    %10731 = vmatpush1.msra.mxu0 %v10013
    %10732 = vmatprep.subr.mxu0 %v10022
    %10733 = vmatpush1.msra.mxu0 %v10021
    %10734 = vmatprep.subr.mxu0 %v10030
    %10735 = vmatpush1.msra.mxu0 %v10029
    %10736 = vmatprep.subr.mxu0 %v10038
    %10737 = vmatpush1.msra.mxu0 %v10037
    %10738 = vmatprep.subr.mxu0 0.0
    %10739 = vmatpush1.msra.mxu0 0.0
    %10740 = vmatprep.subr.mxu0 0.0
    %10741 = vmatpush1.msra.mxu0 0.0
    %10742 = vmatprep.subr.mxu0 0.0
    %10743 = vmatpush1.msra.mxu0 0.0
    %10744 = vmatprep.subr.mxu0 0.0
    %10745 = vmatpush1.msra.mxu0 0.0
    %10746 = vmatprep.subr.mxu0 0.0
    %10747 = vmatpush1.msra.mxu0 0.0
    %10748 = vmatprep.subr.mxu0 0.0
    %10749 = vmatpush1.msra.mxu0 0.0
    %10750 = vmatprep.subr.mxu0 0.0
    %10751 = vmatpush1.msra.mxu0 0.0
    %10752 = vmatprep.subr.mxu0 0.0
    %10753 = vmatpush1.msra.mxu0 0.0
    %10754 = vmatprep.subr.mxu0 0.0
    %10755 = vmatpush1.msra.mxu0 0.0
    %10756 = vmatprep.subr.mxu0 0.0
    %10757 = vmatpush1.msra.mxu0 0.0
    %10758 = vmatprep.subr.mxu0 0.0
    %10759 = vmatpush1.msra.mxu0 0.0
    %10760 = vmatprep.subr.mxu0 0.0
    %10761 = vmatpush1.msra.mxu0 0.0
    %10762 = vmatprep.subr.mxu0 0.0
    %10763 = vmatpush1.msra.mxu0 0.0
    %10764 = vmatprep.subr.mxu0 0.0
    %10765 = vmatpush1.msra.mxu0 0.0
    %10766 = vmatprep.subr.mxu0 0.0
    %10767 = vmatpush1.msra.mxu0 0.0
    %10768 = vmatprep.subr.mxu0 0.0
    %10769 = vmatpush1.msra.mxu0 0.0
    %10770 = vmatprep.subr.mxu0 0.0
    %10771 = vmatpush1.msra.mxu0 0.0
    %10772 = vmatprep.subr.mxu0 0.0
    %10773 = vmatpush1.msra.mxu0 0.0
    %10774 = vmatprep.subr.mxu0 0.0
    %10775 = vmatpush1.msra.mxu0 0.0
    %10776 = vmatprep.subr.mxu0 0.0
    %10777 = vmatpush1.msra.mxu0 0.0
    %10778 = vmatprep.subr.mxu0 0.0
    %10779 = vmatpush1.msra.mxu0 0.0
    %10780 = vmatprep.subr.mxu0 0.0
    %10781 = vmatpush1.msra.mxu0 0.0
    %10782 = vmatprep.subr.mxu0 0.0
    %10783 = vmatpush1.msra.mxu0 0.0
    %10784 = vmatprep.subr.mxu0 0.0
    %10785 = vmatpush1.msra.mxu0 0.0
    %10786 = vmatprep.mubr.f32.mxu0 0.0
    %10787 = vmatmul.mubr.f32.gmra.mrb[0].mxu0 %v10720
    %v10788 = vpop.f32.mrb[0].mxu0
    %v10789 = vadd.f32 1e-05, %v10788
    %v10790 = vpop.f32.mrb[0].mxu0
    %v10791 = vadd.f32 1e-05, %v10790
    %10792 = vdwg.mxu0
    %10793 = vmatprep.subr.mxu0 %v9984
    %10794 = vmatpush1.msra.mxu0 %v9983
    %10795 = vmatprep.subr.mxu0 %v9992
    %10796 = vmatpush1.msra.mxu0 %v9991
    %10797 = vmatprep.subr.mxu0 %v10000
    %10798 = vmatpush1.msra.mxu0 %v9999
    %10799 = vmatprep.subr.mxu0 %v10008
    %10800 = vmatpush1.msra.mxu0 %v10007
    %10801 = vmatprep.subr.mxu0 %v10016
    %10802 = vmatpush1.msra.mxu0 %v10015
    %10803 = vmatprep.subr.mxu0 %v10024
    %10804 = vmatpush1.msra.mxu0 %v10023
    %10805 = vmatprep.subr.mxu0 %v10032
    %10806 = vmatpush1.msra.mxu0 %v10031
    %10807 = vmatprep.subr.mxu0 %v10040
    %10808 = vmatpush1.msra.mxu0 %v10039
    %10809 = vmatprep.subr.mxu0 0.0
    %10810 = vmatpush1.msra.mxu0 0.0
    %10811 = vmatprep.subr.mxu0 0.0
    %10812 = vmatpush1.msra.mxu0 0.0
    %10813 = vmatprep.subr.mxu0 0.0
    %10814 = vmatpush1.msra.mxu0 0.0
    %10815 = vmatprep.subr.mxu0 0.0
    %10816 = vmatpush1.msra.mxu0 0.0
    %10817 = vmatprep.subr.mxu0 0.0
    %10818 = vmatpush1.msra.mxu0 0.0
    %10819 = vmatprep.subr.mxu0 0.0
    %10820 = vmatpush1.msra.mxu0 0.0
    %10821 = vmatprep.subr.mxu0 0.0
    %10822 = vmatpush1.msra.mxu0 0.0
    %10823 = vmatprep.subr.mxu0 0.0
    %10824 = vmatpush1.msra.mxu0 0.0
    %10825 = vmatprep.subr.mxu0 0.0
    %10826 = vmatpush1.msra.mxu0 0.0
    %10827 = vmatprep.subr.mxu0 0.0
    %10828 = vmatpush1.msra.mxu0 0.0
    %10829 = vmatprep.subr.mxu0 0.0
    %10830 = vmatpush1.msra.mxu0 0.0
    %10831 = vmatprep.subr.mxu0 0.0
    %10832 = vmatpush1.msra.mxu0 0.0
    %10833 = vmatprep.subr.mxu0 0.0
    %10834 = vmatpush1.msra.mxu0 0.0
    %10835 = vmatprep.subr.mxu0 0.0
    %10836 = vmatpush1.msra.mxu0 0.0
    %10837 = vmatprep.subr.mxu0 0.0
    %10838 = vmatpush1.msra.mxu0 0.0
    %10839 = vmatprep.subr.mxu0 0.0
    %10840 = vmatpush1.msra.mxu0 0.0
    %10841 = vmatprep.subr.mxu0 0.0
    %10842 = vmatpush1.msra.mxu0 0.0
    %10843 = vmatprep.subr.mxu0 0.0
    %10844 = vmatpush1.msra.mxu0 0.0
    %10845 = vmatprep.subr.mxu0 0.0
    %10846 = vmatpush1.msra.mxu0 0.0
    %10847 = vmatprep.subr.mxu0 0.0
    %10848 = vmatpush1.msra.mxu0 0.0
    %10849 = vmatprep.subr.mxu0 0.0
    %10850 = vmatpush1.msra.mxu0 0.0
    %10851 = vmatprep.subr.mxu0 0.0
    %10852 = vmatpush1.msra.mxu0 0.0
    %10853 = vmatprep.subr.mxu0 0.0
    %10854 = vmatpush1.msra.mxu0 0.0
    %10855 = vmatprep.subr.mxu0 0.0
    %10856 = vmatpush1.msra.mxu0 0.0
    %10857 = vmatprep.mubr.f32.mxu0 0.0
    %10858 = vmatmul.mubr.f32.gmra.mrb[0].mxu0 %v10720
    %v10859 = vpop.f32.mrb[0].mxu0
    %v10860 = vadd.f32 1e-05, %v10859
    %v10861 = vpop.f32.mrb[0].mxu0
    %v10862 = vadd.f32 1e-05, %v10861
    %10863 = vdwg.mxu0
    %10864 = vmatprep.subr.mxu0 %v9986
    %10865 = vmatpush1.msra.mxu0 %v9985
    %10866 = vmatprep.subr.mxu0 %v9994
    %10867 = vmatpush1.msra.mxu0 %v9993
    %10868 = vmatprep.subr.mxu0 %v10002
    %10869 = vmatpush1.msra.mxu0 %v10001
    %10870 = vmatprep.subr.mxu0 %v10010
    %10871 = vmatpush1.msra.mxu0 %v10009
    %10872 = vmatprep.subr.mxu0 %v10018
    %10873 = vmatpush1.msra.mxu0 %v10017
    %10874 = vmatprep.subr.mxu0 %v10026
    %10875 = vmatpush1.msra.mxu0 %v10025
    %10876 = vmatprep.subr.mxu0 %v10034
    %10877 = vmatpush1.msra.mxu0 %v10033
    %10878 = vmatprep.subr.mxu0 %v10042
    %10879 = vmatpush1.msra.mxu0 %v10041
    %10880 = vmatprep.subr.mxu0 0.0
    %10881 = vmatpush1.msra.mxu0 0.0
    %10882 = vmatprep.subr.mxu0 0.0
    %10883 = vmatpush1.msra.mxu0 0.0
    %10884 = vmatprep.subr.mxu0 0.0
    %10885 = vmatpush1.msra.mxu0 0.0
    %10886 = vmatprep.subr.mxu0 0.0
    %10887 = vmatpush1.msra.mxu0 0.0
    %10888 = vmatprep.subr.mxu0 0.0
    %10889 = vmatpush1.msra.mxu0 0.0
    %10890 = vmatprep.subr.mxu0 0.0
    %10891 = vmatpush1.msra.mxu0 0.0
    %10892 = vmatprep.subr.mxu0 0.0
    %10893 = vmatpush1.msra.mxu0 0.0
    %10894 = vmatprep.subr.mxu0 0.0
    %10895 = vmatpush1.msra.mxu0 0.0
    %10896 = vmatprep.subr.mxu0 0.0
    %10897 = vmatpush1.msra.mxu0 0.0
    %10898 = vmatprep.subr.mxu0 0.0
    %10899 = vmatpush1.msra.mxu0 0.0
    %10900 = vmatprep.subr.mxu0 0.0
    %10901 = vmatpush1.msra.mxu0 0.0
    %10902 = vmatprep.subr.mxu0 0.0
    %10903 = vmatpush1.msra.mxu0 0.0
    %10904 = vmatprep.subr.mxu0 0.0
    %10905 = vmatpush1.msra.mxu0 0.0
    %10906 = vmatprep.subr.mxu0 0.0
    %10907 = vmatpush1.msra.mxu0 0.0
    %10908 = vmatprep.subr.mxu0 0.0
    %10909 = vmatpush1.msra.mxu0 0.0
    %10910 = vmatprep.subr.mxu0 0.0
    %10911 = vmatpush1.msra.mxu0 0.0
    %10912 = vmatprep.subr.mxu0 0.0
    %10913 = vmatpush1.msra.mxu0 0.0
    %10914 = vmatprep.subr.mxu0 0.0
    %10915 = vmatpush1.msra.mxu0 0.0
    %10916 = vmatprep.subr.mxu0 0.0
    %10917 = vmatpush1.msra.mxu0 0.0
    %10918 = vmatprep.subr.mxu0 0.0
    %10919 = vmatpush1.msra.mxu0 0.0
    %10920 = vmatprep.subr.mxu0 0.0
    %10921 = vmatpush1.msra.mxu0 0.0
    %10922 = vmatprep.subr.mxu0 0.0
    %10923 = vmatpush1.msra.mxu0 0.0
    %10924 = vmatprep.subr.mxu0 0.0
    %10925 = vmatpush1.msra.mxu0 0.0
    %10926 = vmatprep.subr.mxu0 0.0
    %10927 = vmatpush1.msra.mxu0 0.0
    %10928 = vmatprep.mubr.f32.mxu0 0.0
    %10929 = vmatmul.mubr.f32.gmra.mrb[0].mxu0 %v10720
    %v10930 = vpop.f32.mrb[0].mxu0
    %v10931 = vadd.f32 1e-05, %v10930
    %v10932 = vpop.f32.mrb[0].mxu0
    %v10933 = vadd.f32 1e-05, %v10932
    %10934 = vdwg.mxu0
    %10935 = vmatprep.subr.mxu0 %v9988
    %10936 = vmatpush1.msra.mxu0 %v9987
    %10937 = vmatprep.subr.mxu0 %v9996
    %10938 = vmatpush1.msra.mxu0 %v9995
    %10939 = vmatprep.subr.mxu0 %v10004
    %10940 = vmatpush1.msra.mxu0 %v10003
    %10941 = vmatprep.subr.mxu0 %v10012
    %10942 = vmatpush1.msra.mxu0 %v10011
    %10943 = vmatprep.subr.mxu0 %v10020
    %10944 = vmatpush1.msra.mxu0 %v10019
    %10945 = vmatprep.subr.mxu0 %v10028
    %10946 = vmatpush1.msra.mxu0 %v10027
    %10947 = vmatprep.subr.mxu0 %v10036
    %10948 = vmatpush1.msra.mxu0 %v10035
    %10949 = vmatprep.subr.mxu0 %v10044
    %10950 = vmatpush1.msra.mxu0 %v10043
    %10951 = vmatprep.subr.mxu0 0.0
    %10952 = vmatpush1.msra.mxu0 0.0
    %10953 = vmatprep.subr.mxu0 0.0
    %10954 = vmatpush1.msra.mxu0 0.0
    %10955 = vmatprep.subr.mxu0 0.0
    %10956 = vmatpush1.msra.mxu0 0.0
    %10957 = vmatprep.subr.mxu0 0.0
    %10958 = vmatpush1.msra.mxu0 0.0
    %10959 = vmatprep.subr.mxu0 0.0
    %10960 = vmatpush1.msra.mxu0 0.0
    %10961 = vmatprep.subr.mxu0 0.0
    %10962 = vmatpush1.msra.mxu0 0.0
    %10963 = vmatprep.subr.mxu0 0.0
    %10964 = vmatpush1.msra.mxu0 0.0
    %10965 = vmatprep.subr.mxu0 0.0
    %10966 = vmatpush1.msra.mxu0 0.0
    %10967 = vmatprep.subr.mxu0 0.0
    %10968 = vmatpush1.msra.mxu0 0.0
    %10969 = vmatprep.subr.mxu0 0.0
    %10970 = vmatpush1.msra.mxu0 0.0
    %10971 = vmatprep.subr.mxu0 0.0
    %10972 = vmatpush1.msra.mxu0 0.0
    %10973 = vmatprep.subr.mxu0 0.0
    %10974 = vmatpush1.msra.mxu0 0.0
    %10975 = vmatprep.subr.mxu0 0.0
    %10976 = vmatpush1.msra.mxu0 0.0
    %10977 = vmatprep.subr.mxu0 0.0
    %10978 = vmatpush1.msra.mxu0 0.0
    %10979 = vmatprep.subr.mxu0 0.0
    %10980 = vmatpush1.msra.mxu0 0.0
    %10981 = vmatprep.subr.mxu0 0.0
    %10982 = vmatpush1.msra.mxu0 0.0
    %10983 = vmatprep.subr.mxu0 0.0
    %10984 = vmatpush1.msra.mxu0 0.0
    %10985 = vmatprep.subr.mxu0 0.0
    %10986 = vmatpush1.msra.mxu0 0.0
    %10987 = vmatprep.subr.mxu0 0.0
    %10988 = vmatpush1.msra.mxu0 0.0
    %10989 = vmatprep.subr.mxu0 0.0
    %10990 = vmatpush1.msra.mxu0 0.0
    %10991 = vmatprep.subr.mxu0 0.0
    %10992 = vmatpush1.msra.mxu0 0.0
    %10993 = vmatprep.subr.mxu0 0.0
    %10994 = vmatpush1.msra.mxu0 0.0
    %10995 = vmatprep.subr.mxu0 0.0
    %10996 = vmatpush1.msra.mxu0 0.0
    %10997 = vmatprep.subr.mxu0 0.0
    %10998 = vmatpush1.msra.mxu0 0.0
    %10999 = vmatprep.mubr.f32.mxu0 0.0
    %11000 = vmatmul.mubr.f32.gmra.mrb[0].mxu0 %v10720
    %v11001 = vpop.f32.mrb[0].mxu0
    %v11002 = vadd.f32 1e-05, %v11001
    %v11003 = vpop.f32.mrb[0].mxu0
    %v11004 = vadd.f32 1e-05, %v11003
    %11005 = vdwg.mxu0
    %v11006 = vrsqrt.pop %v10789
    %v11007 = vrsqrt.pop %v10791
    %v11008 = vrsqrt.pop %v10860
    %v11009 = vrsqrt.pop %v10862
    %v11010 = vrsqrt.pop %v10931
    %v11011 = vrsqrt.pop %v10933
    %v11012 = vrsqrt.pop %v11002
    %v11013 = vrsqrt.pop %v11004
    %v11022 = vcombine.low %v11006, %v11007
    %v11023 = vcombine.low %v11008, %v11009
    %v11024 = vcombine.low %v11010, %v11011
    %v11025 = vcombine.low %v11012, %v11013
    %v11027 = vunpack.c.l.s4 1966171168
    %v11028 = vunpack.c.0.s8 %v11027
    %v11029 = vlaneseq
    %v11030 = vshrl.u32 %v11029, 7
    %v11031 = vsub.s32 %v11028, %v11030
    %v11032 = vrot.slane %v11022, %v11031
    %v11034 = vunpack.c.l.s4 1966171168
    %v11035 = vunpack.c.0.s8 %v11034
    %v11036 = vlaneseq
    %v11037 = vshrl.u32 %v11036, 7
    %v11038 = vsub.s32 %v11035, %v11037
    %v11039 = vrot.slane %v11023, %v11038
    %v11041 = vunpack.c.l.s4 1966171168
    %v11042 = vunpack.c.0.s8 %v11041
    %v11043 = vlaneseq
    %v11044 = vshrl.u32 %v11043, 7
    %v11045 = vsub.s32 %v11042, %v11044
    %v11046 = vrot.slane %v11024, %v11045
    %v11048 = vunpack.c.l.s4 1966171168
    %v11049 = vunpack.c.0.s8 %v11048
    %v11050 = vlaneseq
    %v11051 = vshrl.u32 %v11050, 7
    %v11052 = vsub.s32 %v11049, %v11051
    %v11053 = vrot.slane %v11025, %v11052
    %v11054 = vcombine.low %v11032, %v11039
    %v11055 = vcombine.low %v11046, %v11053
    %v11057 = vunpack.c.l.s4 1966171168
    %v11058 = vunpack.c.0.s8 %v11057
    %v11059 = vlaneseq
    %v11060 = vshrl.u32 %v11059, 7
    %v11061 = vsub.s32 %v11058, %v11060
    %v11062 = vrot.slane %v11054, %v11061
    %v11064 = vunpack.c.l.s4 1966171168
    %v11065 = vunpack.c.0.s8 %v11064
    %v11066 = vlaneseq
    %v11067 = vshrl.u32 %v11066, 7
    %v11068 = vsub.s32 %v11065, %v11067
    %v11069 = vrot.slane %v11055, %v11068
    %v11070 = vcombine.low %v11062, %v11069
    %v11072 = vmul.f32 %v10718, %v11070
    %v11074 = vlaneseq
    %v11075 = vshrl.u32 %v11074, 7
    %v11076 = vsub.s32 0, %v11075
    %v11077 = vrot.slane %v11072, %v11076
    %v11078 = vlaneseq
    %v11079 = vshrl.u32 %v11078, 7
    %v11080 = vsub.s32 1, %v11079
    %v11081 = vrot.slane %v11072, %v11080
    %v11082 = vlaneseq
    %v11083 = vshrl.u32 %v11082, 7
    %v11084 = vsub.s32 2, %v11083
    %v11085 = vrot.slane %v11072, %v11084
    %v11086 = vlaneseq
    %v11087 = vshrl.u32 %v11086, 7
    %v11088 = vsub.s32 3, %v11087
    %v11089 = vrot.slane %v11072, %v11088
    %v11090 = vlaneseq
    %v11091 = vshrl.u32 %v11090, 7
    %v11092 = vsub.s32 4, %v11091
    %v11093 = vrot.slane %v11072, %v11092
    %v11094 = vlaneseq
    %v11095 = vshrl.u32 %v11094, 7
    %v11096 = vsub.s32 5, %v11095
    %v11097 = vrot.slane %v11072, %v11096
    %v11098 = vlaneseq
    %v11099 = vshrl.u32 %v11098, 7
    %v11100 = vsub.s32 6, %v11099
    %v11101 = vrot.slane %v11072, %v11100
    %v11102 = vlaneseq
    %v11103 = vshrl.u32 %v11102, 7
    %v11104 = vsub.s32 7, %v11103
    %v11105 = vrot.slane %v11072, %v11104
    %v11114 = vmul.f32 %v10365, %v11077
    %v11115 = vmul.f32 %v10366, %v11081
    %v11116 = vmul.f32 %v10367, %v11085
    %v11117 = vmul.f32 %v10368, %v11089
    %v11118 = vmul.f32 %v10369, %v11093
    %v11119 = vmul.f32 %v10370, %v11097
    %v11120 = vmul.f32 %v10371, %v11101
    %v11121 = vmul.f32 %v10372, %v11105
    %v11122 = vld [vmem:[#allocation9] sm:$0xff]
    %v11124 = vlaneseq
    %v11125 = vshrl.u32 %v11124, 7
    %v11126 = vsub.s32 0, %v11125
    %v11127 = vrot.slane %v11122, %v11126
    %v11128 = vlaneseq
    %v11129 = vshrl.u32 %v11128, 7
    %v11130 = vsub.s32 1, %v11129
    %v11131 = vrot.slane %v11122, %v11130
    %v11132 = vlaneseq
    %v11133 = vshrl.u32 %v11132, 7
    %v11134 = vsub.s32 2, %v11133
    %v11135 = vrot.slane %v11122, %v11134
    %v11136 = vlaneseq
    %v11137 = vshrl.u32 %v11136, 7
    %v11138 = vsub.s32 3, %v11137
    %v11139 = vrot.slane %v11122, %v11138
    %v11140 = vlaneseq
    %v11141 = vshrl.u32 %v11140, 7
    %v11142 = vsub.s32 4, %v11141
    %v11143 = vrot.slane %v11122, %v11142
    %v11144 = vlaneseq
    %v11145 = vshrl.u32 %v11144, 7
    %v11146 = vsub.s32 5, %v11145
    %v11147 = vrot.slane %v11122, %v11146
    %v11148 = vlaneseq
    %v11149 = vshrl.u32 %v11148, 7
    %v11150 = vsub.s32 6, %v11149
    %v11151 = vrot.slane %v11122, %v11150
    %v11152 = vlaneseq
    %v11153 = vshrl.u32 %v11152, 7
    %v11154 = vsub.s32 7, %v11153
    %v11155 = vrot.slane %v11122, %v11154
    %v11164 = vadd.f32 %v11114, %v11127
    %v11165 = vadd.f32 %v11115, %v11131
    %v11166 = vadd.f32 %v11116, %v11135
    %v11167 = vadd.f32 %v11117, %v11139
    %v11168 = vadd.f32 %v11118, %v11143
    %v11169 = vadd.f32 %v11119, %v11147
    %v11170 = vadd.f32 %v11120, %v11151
    %v11171 = vadd.f32 %v11121, %v11155
    %vm11172 = vcmp.gt.f32.partialorder %v11164, 0.0
    %vm11173 = vcmp.gt.f32.partialorder %v11165, 0.0
    %vm11174 = vcmp.gt.f32.partialorder %v11166, 0.0
    %vm11175 = vcmp.gt.f32.partialorder %v11167, 0.0
    %vm11176 = vcmp.gt.f32.partialorder %v11168, 0.0
    %vm11177 = vcmp.gt.f32.partialorder %v11169, 0.0
    %vm11178 = vcmp.gt.f32.partialorder %v11170, 0.0
    %vm11179 = vcmp.gt.f32.partialorder %v11171, 0.0
    %v11180 = vmul.f32 %v11164, 0.2
    %v11181 = vmul.f32 %v11165, 0.2
    %v11182 = vmul.f32 %v11166, 0.2
    %v11183 = vmul.f32 %v11167, 0.2
    %v11184 = vmul.f32 %v11168, 0.2
    %v11185 = vmul.f32 %v11169, 0.2
    %v11186 = vmul.f32 %v11170, 0.2
    %v11187 = vmul.f32 %v11171, 0.2
    %v11188 = vsel %vm11172, %v11164, %v11180
    %v11189 = vsel %vm11173, %v11165, %v11181
    %v11190 = vsel %vm11174, %v11166, %v11182
    %v11191 = vsel %vm11175, %v11167, %v11183
    %v11192 = vsel %vm11176, %v11168, %v11184
    %v11193 = vsel %vm11177, %v11169, %v11185
    %v11194 = vsel %vm11178, %v11170, %v11186
    %v11195 = vsel %vm11179, %v11171, %v11187
    %v11196 = vld [vmem:[#allocation10] sm:$0xff]
    %v11198 = vlaneseq
    %v11199 = vshrl.u32 %v11198, 7
    %v11200 = vsub.s32 0, %v11199
    %v11201 = vrot.slane %v11196, %v11200
    %v11202 = vlaneseq
    %v11203 = vshrl.u32 %v11202, 7
    %v11204 = vsub.s32 1, %v11203
    %v11205 = vrot.slane %v11196, %v11204
    %v11206 = vlaneseq
    %v11207 = vshrl.u32 %v11206, 7
    %v11208 = vsub.s32 2, %v11207
    %v11209 = vrot.slane %v11196, %v11208
    %v11210 = vlaneseq
    %v11211 = vshrl.u32 %v11210, 7
    %v11212 = vsub.s32 3, %v11211
    %v11213 = vrot.slane %v11196, %v11212
    %v11214 = vlaneseq
    %v11215 = vshrl.u32 %v11214, 7
    %v11216 = vsub.s32 4, %v11215
    %v11217 = vrot.slane %v11196, %v11216
    %v11218 = vlaneseq
    %v11219 = vshrl.u32 %v11218, 7
    %v11220 = vsub.s32 5, %v11219
    %v11221 = vrot.slane %v11196, %v11220
    %v11222 = vlaneseq
    %v11223 = vshrl.u32 %v11222, 7
    %v11224 = vsub.s32 6, %v11223
    %v11225 = vrot.slane %v11196, %v11224
    %v11226 = vlaneseq
    %v11227 = vshrl.u32 %v11226, 7
    %v11228 = vsub.s32 7, %v11227
    %v11229 = vrot.slane %v11196, %v11228
    %v11238 = vmul.f32 %v11188, %v11201
    %v11239 = vmul.f32 %v11189, %v11205
    %v11240 = vmul.f32 %v11190, %v11209
    %v11241 = vmul.f32 %v11191, %v11213
    %v11242 = vmul.f32 %v11192, %v11217
    %v11243 = vmul.f32 %v11193, %v11221
    %v11244 = vmul.f32 %v11194, %v11225
    %v11245 = vmul.f32 %v11195, %v11229
    %v11246 = vsel %vm9515, %v11238, 0.0
    %v11247 = vsel %vm9515, %v11239, 0.0
    %v11248 = vadd.f32 %v11246, %v11247
    %v11249 = vsel %vm9515, %v11240, 0.0
    %v11250 = vadd.f32 %v11248, %v11249
    %v11251 = vsel %vm9515, %v11241, 0.0
    %v11252 = vadd.f32 %v11250, %v11251
    %v11253 = vsel %vm9515, %v11242, 0.0
    %v11254 = vadd.f32 %v11252, %v11253
    %v11255 = vsel %vm9515, %v11243, 0.0
    %v11256 = vadd.f32 %v11254, %v11255
    %v11257 = vsel %vm9515, %v11244, 0.0
    %v11258 = vadd.f32 %v11256, %v11257
    %v11259 = vsel %vm9515, %v11245, 0.0
    %v11260 = vadd.f32 %v11258, %v11259
    %11261 = vadd.xlane.f32.xlu0 %v11260
    %v11262 = vpop.xlane.xlu0 %11261
    %v11263 = vxor.u32 %v11262, 2147483648
    %v11264 = vmul.f32 %v11263, 1.442695
    %v11265 = vpow.pop %v11264
    %v11266 = vadd.f32 %v11265, 1.0
    %v11267 = vrcp.pop %v11266
    %v11268 = vmul.f32 1.0, %v11267
    %vm11269 = vcmask 1024
    %11270 = vst.msk [vmem:[%s8] sm:$0x3] %vm11269, %v11268
    // Predicated region
    $region58: #{discriminator_forward.1} parent=1 // pred_check
      _
    $region59: #{discriminator_forward.1} parent=1 // pred_check_branch
      %11272 = sbr.rel (0) target = $region61
    $region60: #{discriminator_forward.1} parent=1 // pred_region
      _
    $region61: #{discriminator_forward.1} parent=1 // pred_fallthru
      _
    // Predicated region
    $region62: #{discriminator_forward.1} parent=1 // pred_check
      _
    $region63: #{discriminator_forward.1} parent=1 // pred_check_branch
      %11274 = sbr.rel (0) target = $region65
    $region64: #{discriminator_forward.1} parent=1 // pred_region
      _
    $region65: #{discriminator_forward.1} parent=1 // pred_fallthru
      _
    %11275 = vsyncpa [#allocation3], 1
    %11276 = vsyncpa [#allocation5], 1
    %11277 = vsyncpa [#allocation8], 1
    %11278 = vsyncpa [#allocation11], 1

</llo_original>
